<compile_context>
chip_gen: v7x
topology: tpu7x:2x2x1
jax: 0.10.0
libtpu: 0.0.40
codegen_flags: <defaults>
</compile_context>

<pallas_src>
import jax
import jax.numpy as jnp
from jax.experimental import pallas as pl
from jax.experimental.pallas import tpu as pltpu


# ----------------------------------------------------------------------------
# In-kernel helper: single-layer LSTM over x_ref (B, T, D) + fused linear head.
# Writes head(h_seq) into out_ref (B, T, O) and returns (h_n, c_n) as values.
# ----------------------------------------------------------------------------
def _lstm_with_head(x_ref, w_ih_ref, w_hh_ref, b_ref, head_w_ref, head_b_ref,
                    out_ref, gates_sc, hseq_sc, h0, c0):
    B, T, D = x_ref.shape
    H = w_hh_ref.shape[0]

    # (1) Batched input projection for ALL timesteps: (B*T, D) @ (D, 4H) + bias.
    #     One MXU matmul with M = B*T instead of T tiny M = B matmuls on the serial path.
    x2 = x_ref[...].reshape(B * T, D)                      # trivial reshape (T % 8 == 0)
    gates_sc[...] = (jnp.dot(x2, w_ih_ref[...],
                             preferred_element_type=jnp.float32)
                     + b_ref[...])                         # (B*T, 4H), row = b*T + t

    w_hh = w_hh_ref[...]                                   # hoist recurrent weight load

    # (2) Recurrence: only h @ W_hh + precomputed gate inputs on the serial path.
    #     h/c are carried as register values; unroll=True gives the scheduler full
    #     visibility across the (static, short) time loop.
    def step(t, carry):
        h, c = carry
        # Gather this step's precomputed gate inputs (rows b*T + t, one per batch elem).
        gx = jnp.concatenate(
            [gates_sc[pl.ds(b * T + t, 1), :] for b in range(B)], axis=0)  # (B, 4H)
        g = gx + jnp.dot(h, w_hh, preferred_element_type=jnp.float32)

        # PyTorch gate ordering: input, forget, cell (g), output.
        i_g = jax.nn.sigmoid(g[:, 0 * H:1 * H])
        f_g = jax.nn.sigmoid(g[:, 1 * H:2 * H])
        g_g = jnp.tanh(g[:, 2 * H:3 * H])
        o_g = jax.nn.sigmoid(g[:, 3 * H:4 * H])

        c_new = f_g * c + i_g * g_g
        h_new = o_g * jnp.tanh(c_new)

        # Stash hidden state batch-major (row = b*T + t) for the fused head below.
        for b in range(B):
            hseq_sc[pl.ds(b * T + t, 1), :] = h_new[b:b + 1, :]
        return h_new, c_new

    h_n, c_n = jax.lax.fori_loop(0, T, step, (h0, c0), unroll=True)

    # (3) Fused dense head over all hidden states at once: (B*T, H) @ (H, O).
    y = (jnp.dot(hseq_sc[...], head_w_ref[...],
                 preferred_element_type=jnp.float32)
         + head_b_ref[...])                                # (B*T, O)
    out_ref[...] = y.reshape(B, T, -1).astype(out_ref.dtype)   # single store
    return h_n, c_n


# ----------------------------------------------------------------------------
# Whole-model kernel: hindcast LSTM+head, then forecast LSTM+head seeded with
# (hn, cn).  The state never leaves VMEM/registers.
# ----------------------------------------------------------------------------
def _google_lstm_kernel(hist_ref, fore_ref,
                        h_wih_ref, h_whh_ref, h_b_ref, h_hw_ref, h_hb_ref,
                        f_wih_ref, f_whh_ref, f_b_ref, f_hw_ref, f_hb_ref,
                        out_ref, hind_out_ref,
                        h_gates_sc, h_hseq_sc, f_gates_sc, f_hseq_sc):
    B = hist_ref.shape[0]
    H = h_whh_ref.shape[0]

    # Hindcast: zero initial state built in-kernel (no h0/c0 input DMAs).
    h0 = jnp.zeros((B, H), jnp.float32)
    c0 = jnp.zeros((B, H), jnp.float32)
    hn, cn = _lstm_with_head(hist_ref, h_wih_ref, h_whh_ref, h_b_ref,
                             h_hw_ref, h_hb_ref, hind_out_ref,
                             h_gates_sc, h_hseq_sc, h0, c0)

    # Forecast: seeded with (hn, cn) held in registers.
    _lstm_with_head(fore_ref, f_wih_ref, f_whh_ref, f_b_ref,
                    f_hw_ref, f_hb_ref, out_ref,
                    f_gates_sc, f_hseq_sc, hn, cn)


def google_lstm_model(history, forecasts, params):
    """Returns (out, hind_out) = Google_LSTMModel(history, forecasts)."""
    B, T_h, _ = history.shape
    _, T_f, _ = forecasts.shape
    H = params["hind_w_hh"].shape[0]
    O = params["hind_head_w"].shape[1]

    vmem = pl.BlockSpec(memory_space=pltpu.MemorySpace.VMEM)  # whole array in VMEM
    out, hind_out = pl.pallas_call(
        _google_lstm_kernel,
        out_shape=(jax.ShapeDtypeStruct((B, T_f, O), forecasts.dtype),
                   jax.ShapeDtypeStruct((B, T_h, O), history.dtype)),
        in_specs=[vmem] * 12,
        out_specs=(vmem, vmem),
        scratch_shapes=[
            pltpu.VMEM((B * T_h, 4 * H), jnp.float32),   # hindcast precomputed gates
            pltpu.VMEM((B * T_h, H), jnp.float32),       # hindcast hidden states
            pltpu.VMEM((B * T_f, 4 * H), jnp.float32),   # forecast precomputed gates
            pltpu.VMEM((B * T_f, H), jnp.float32),       # forecast hidden states
        ],
        compiler_params=pltpu.CompilerParams(
            # Explicit VMEM budget (tiny here; keeps headroom under v7x's 64 MiB when
            # hidden sizes are scaled up).
            vmem_limit_bytes=32 * 1024 * 1024,
        ),
    )(history, forecasts,
      params["hind_w_ih"], params["hind_w_hh"], params["hind_b"],
      params["hind_head_w"], params["hind_head_b"],
      params["fore_w_ih"], params["fore_w_hh"], params["fore_b"],
      params["fore_head_w"], params["fore_head_b"])
    return out, hind_out


def init_params(key, d_hist, d_fore, hidden, out_dim, dtype=jnp.float32):
    ks = jax.random.split(key, 10)
    s = 1.0 / jnp.sqrt(hidden)
    u = lambda k, shape: jax.random.uniform(k, shape, dtype, -s, s)
    return {
        "hind_w_ih": u(ks[0], (d_hist, 4 * hidden)),
        "hind_w_hh": u(ks[1], (hidden, 4 * hidden)),
        "hind_b":    u(ks[2], (1, 4 * hidden)),          # combined b_ih + b_hh
        "hind_head_w": u(ks[3], (hidden, out_dim)),
        "hind_head_b": u(ks[4], (1, out_dim)),
        "fore_w_ih": u(ks[5], (d_fore, 4 * hidden)),
        "fore_w_hh": u(ks[6], (hidden, 4 * hidden)),
        "fore_b":    u(ks[7], (1, 4 * hidden)),
        "fore_head_w": u(ks[8], (hidden, out_dim)),
        "fore_head_b": u(ks[9], (1, out_dim)),
    }


# ----------------------------------------------------------------------------
# Pure-JAX reference (same math, plain XLA) for a correctness check.
# ----------------------------------------------------------------------------
def _reference(history, forecasts, params):
    def lstm(x, w_ih, w_hh, b, h, c):
        T = x.shape[1]
        H = w_hh.shape[0]
        hs = []
        for t in range(T):
            g = x[:, t, :] @ w_ih + h @ w_hh + b
            i_g = jax.nn.sigmoid(g[:, 0 * H:1 * H])
            f_g = jax.nn.sigmoid(g[:, 1 * H:2 * H])
            g_g = jnp.tanh(g[:, 2 * H:3 * H])
            o_g = jax.nn.sigmoid(g[:, 3 * H:4 * H])
            c = f_g * c + i_g * g_g
            h = o_g * jnp.tanh(c)
            hs.append(h)
        return jnp.stack(hs, axis=1), h, c

    B = history.shape[0]
    H = params["hind_w_hh"].shape[0]
    h0 = jnp.zeros((B, H), jnp.float32)
    c0 = jnp.zeros((B, H), jnp.float32)
    hs_h, hn, cn = lstm(history, params["hind_w_ih"], params["hind_w_hh"],
                        params["hind_b"], h0, c0)
    hind_out = hs_h @ params["hind_head_w"] + params["hind_head_b"]
    hs_f, _, _ = lstm(forecasts, params["fore_w_ih"], params["fore_w_hh"],
                      params["fore_b"], hn, cn)
    out = hs_f @ params["fore_head_w"] + params["fore_head_b"]
    return out, hind_out


if __name__ == "__main__":
    jax.config.update("jax_default_matmul_precision", "highest")

    B, T_HIST, T_FORE = 2, 8, 8
    D_HIST, D_FORE, HIDDEN, OUT_DIM = 8, 4, 32, 1

    key = jax.random.PRNGKey(0)
    k_par, k_hist, k_fore = jax.random.split(key, 3)

    params = init_params(k_par, D_HIST, D_FORE, HIDDEN, OUT_DIM)
    history = jax.random.normal(k_hist, (B, T_HIST, D_HIST), jnp.float32)
    forecasts = jax.random.normal(k_fore, (B, T_FORE, D_FORE), jnp.float32)

    out, hind_out = jax.jit(google_lstm_model)(history, forecasts, params)
    jax.block_until_ready((out, hind_out))

    assert out.shape == (B, T_FORE, OUT_DIM)
    assert hind_out.shape == (B, T_HIST, OUT_DIM)

    ref_out, ref_hind = _reference(history, forecasts, params)
    assert jnp.allclose(out, ref_out, atol=1e-4, rtol=1e-4)
    assert jnp.allclose(hind_out, ref_hind, atol=1e-4, rtol=1e-4)

    print("KERNEL_OK")
</pallas_src>

<mosaic_0001>
module attributes {stable_mosaic.version = 11 : i64} {
  func.func @_google_lstm_kernel(%arg0: memref<2x8x8xf32, #tpu.memory_space<vmem>>, %arg1: memref<2x8x4xf32, #tpu.memory_space<vmem>>, %arg2: memref<8x128xf32, #tpu.memory_space<vmem>>, %arg3: memref<32x128xf32, #tpu.memory_space<vmem>>, %arg4: memref<1x128xf32, #tpu.memory_space<vmem>>, %arg5: memref<32x1xf32, #tpu.memory_space<vmem>>, %arg6: memref<1x1xf32, #tpu.memory_space<vmem>>, %arg7: memref<4x128xf32, #tpu.memory_space<vmem>>, %arg8: memref<32x128xf32, #tpu.memory_space<vmem>>, %arg9: memref<1x128xf32, #tpu.memory_space<vmem>>, %arg10: memref<32x1xf32, #tpu.memory_space<vmem>>, %arg11: memref<1x1xf32, #tpu.memory_space<vmem>>, %arg12: memref<2x8x1xf32, #tpu.memory_space<vmem>>, %arg13: memref<2x8x1xf32, #tpu.memory_space<vmem>>, %arg14: memref<16x128xf32, #tpu.memory_space<vmem>>, %arg15: memref<16x32xf32, #tpu.memory_space<vmem>>, %arg16: memref<16x128xf32, #tpu.memory_space<vmem>>, %arg17: memref<16x32xf32, #tpu.memory_space<vmem>>) attributes {dimension_semantics = [], scalar_prefetch = 0 : i64, scratch_operands = 4 : i64, tpu.core_type = #tpu.core_type<tc>} {
    %cst = arith.constant 0.000000e+00 : f32
    %0 = vector.broadcast %cst : f32 to vector<2x32xf32>
    %cst_0 = arith.constant 0.000000e+00 : f32
    %1 = vector.broadcast %cst_0 : f32 to vector<2x32xf32>
    %c0 = arith.constant 0 : index
    %c0_1 = arith.constant 0 : index
    %c0_2 = arith.constant 0 : index
    %2 = vector.load %arg0[%c0, %c0_1, %c0_2] : memref<2x8x8xf32, #tpu.memory_space<vmem>>, vector<2x8x8xf32>
    %3 = vector.shape_cast %2 : vector<2x8x8xf32> to vector<16x8xf32>
    %c0_3 = arith.constant 0 : index
    %c0_4 = arith.constant 0 : index
    %4 = vector.load %arg2[%c0_3, %c0_4] : memref<8x128xf32, #tpu.memory_space<vmem>>, vector<8x128xf32>
    %cst_5 = arith.constant dense<0.000000e+00> : vector<16x128xf32>
    %5 = tpu.matmul %3, %4, %cst_5 {dimension_numbers = #tpu.dot_dimension_numbers<[1], [0], [0], [1], [0, 0, 1, 1], [], []>, precision = #tpu.contract_precision<fp32>} : vector<16x8xf32>, vector<8x128xf32>, vector<16x128xf32> -> vector<16x128xf32>
    %c0_6 = arith.constant 0 : index
    %c0_7 = arith.constant 0 : index
    %6 = vector.load %arg4[%c0_6, %c0_7] : memref<1x128xf32, #tpu.memory_space<vmem>>, vector<1x128xf32>
    %7 = vector.broadcast %6 : vector<1x128xf32> to vector<16x128xf32>
    %8 = arith.addf %5, %7 : vector<16x128xf32>
    %c0_8 = arith.constant 0 : index
    %c0_9 = arith.constant 0 : index
    %9 = vector.load %arg14[%c0_8, %c0_9] : memref<16x128xf32, #tpu.memory_space<vmem>>, vector<16x128xf32>
    tpu.vector_store %arg14[%c0_8, %c0_9], %8 {strides = array<i32>} : memref<16x128xf32, #tpu.memory_space<vmem>>, vector<16x128xf32>,
    %c0_10 = arith.constant 0 : index
    %c0_11 = arith.constant 0 : index
    %10 = vector.load %arg3[%c0_10, %c0_11] : memref<32x128xf32, #tpu.memory_space<vmem>>, vector<32x128xf32>
    %c0_i32 = arith.constant 0 : i32
    %c0_i32_12 = arith.constant 0 : i32
    %11 = arith.addi %c0_i32_12, %c0_i32 : i32
    %12 = arith.index_cast %11 : i32 to index
    %c0_13 = arith.constant 0 : index
    %13 = vector.load %arg14[%12, %c0_13] : memref<16x128xf32, #tpu.memory_space<vmem>>, vector<1x128xf32>
    %c8_i32 = arith.constant 8 : i32
    %14 = arith.addi %c8_i32, %c0_i32 : i32
    %15 = arith.index_cast %14 : i32 to index
    %c0_14 = arith.constant 0 : index
    %16 = vector.load %arg14[%15, %c0_14] : memref<16x128xf32, #tpu.memory_space<vmem>>, vector<1x128xf32>
    %17 = tpu.concatenate %13, %16 in 0 : vector<1x128xf32>, vector<1x128xf32> -> vector<2x128xf32>
    %cst_15 = arith.constant dense<0.000000e+00> : vector<2x128xf32>
    %18 = tpu.matmul %0, %10, %cst_15 {dimension_numbers = #tpu.dot_dimension_numbers<[1], [0], [0], [1], [0, 0, 1, 1], [], []>, precision = #tpu.contract_precision<fp32>} : vector<2x32xf32>, vector<32x128xf32>, vector<2x128xf32> -> vector<2x128xf32>
    %19 = arith.addf %17, %18 : vector<2x128xf32>
    %20 = vector.extract_strided_slice %19 {offsets = [0, 0], sizes = [2, 32], strides = [1, 1]} : vector<2x128xf32> to vector<2x32xf32>
    %21 = arith.negf %20 : vector<2x32xf32>
    %22 = math.exp %21 : vector<2x32xf32>
    %cst_16 = arith.constant 1.000000e+00 : f32
    %23 = vector.broadcast %cst_16 : f32 to vector<2x32xf32>
    %24 = arith.addf %23, %22 : vector<2x32xf32>
    %25 = arith.divf %23, %24 : vector<2x32xf32>
    %26 = vector.extract_strided_slice %19 {offsets = [0, 32], sizes = [2, 32], strides = [1, 1]} : vector<2x128xf32> to vector<2x32xf32>
    %27 = arith.negf %26 : vector<2x32xf32>
    %28 = math.exp %27 : vector<2x32xf32>
    %cst_17 = arith.constant 1.000000e+00 : f32
    %29 = vector.broadcast %cst_17 : f32 to vector<2x32xf32>
    %30 = arith.addf %29, %28 : vector<2x32xf32>
    %31 = arith.divf %29, %30 : vector<2x32xf32>
    %32 = vector.extract_strided_slice %19 {offsets = [0, 64], sizes = [2, 32], strides = [1, 1]} : vector<2x128xf32> to vector<2x32xf32>
    %33 = math.tanh %32 : vector<2x32xf32>
    %34 = vector.extract_strided_slice %19 {offsets = [0, 96], sizes = [2, 32], strides = [1, 1]} : vector<2x128xf32> to vector<2x32xf32>
    %35 = arith.negf %34 : vector<2x32xf32>
    %36 = math.exp %35 : vector<2x32xf32>
    %cst_18 = arith.constant 1.000000e+00 : f32
    %37 = vector.broadcast %cst_18 : f32 to vector<2x32xf32>
    %38 = arith.addf %37, %36 : vector<2x32xf32>
    %39 = arith.divf %37, %38 : vector<2x32xf32>
    %40 = arith.mulf %31, %1 : vector<2x32xf32>
    %41 = arith.mulf %25, %33 : vector<2x32xf32>
    %42 = arith.addf %40, %41 : vector<2x32xf32>
    %43 = math.tanh %42 : vector<2x32xf32>
    %44 = arith.mulf %39, %43 : vector<2x32xf32>
    %45 = vector.extract_strided_slice %44 {offsets = [0, 0], sizes = [1, 32], strides = [1, 1]} : vector<2x32xf32> to vector<1x32xf32>
    %c0_i32_19 = arith.constant 0 : i32
    %46 = arith.addi %c0_i32_19, %c0_i32 : i32
    %47 = arith.index_cast %46 : i32 to index
    %c0_20 = arith.constant 0 : index
    %48 = vector.load %arg15[%47, %c0_20] : memref<16x32xf32, #tpu.memory_space<vmem>>, vector<1x32xf32>
    tpu.vector_store %arg15[%47, %c0_20], %45 {strides = array<i32>} : memref<16x32xf32, #tpu.memory_space<vmem>>, vector<1x32xf32>,
    %49 = vector.extract_strided_slice %44 {offsets = [1, 0], sizes = [1, 32], strides = [1, 1]} : vector<2x32xf32> to vector<1x32xf32>
    %c8_i32_21 = arith.constant 8 : i32
    %50 = arith.addi %c8_i32_21, %c0_i32 : i32
    %51 = arith.index_cast %50 : i32 to index
    %c0_22 = arith.constant 0 : index
    %52 = vector.load %arg15[%51, %c0_22] : memref<16x32xf32, #tpu.memory_space<vmem>>, vector<1x32xf32>
    tpu.vector_store %arg15[%51, %c0_22], %49 {strides = array<i32>} : memref<16x32xf32, #tpu.memory_space<vmem>>, vector<1x32xf32>,
    %c1_i32 = arith.constant 1 : i32
    %c0_i32_23 = arith.constant 0 : i32
    %53 = arith.addi %c0_i32_23, %c1_i32 : i32
    %54 = arith.index_cast %53 : i32 to index
    %c0_24 = arith.constant 0 : index
    %55 = vector.load %arg14[%54, %c0_24] : memref<16x128xf32, #tpu.memory_space<vmem>>, vector<1x128xf32>
    %c8_i32_25 = arith.constant 8 : i32
    %56 = arith.addi %c8_i32_25, %c1_i32 : i32
    %57 = arith.index_cast %56 : i32 to index
    %c0_26 = arith.constant 0 : index
    %58 = vector.load %arg14[%57, %c0_26] : memref<16x128xf32, #tpu.memory_space<vmem>>, vector<1x128xf32>
    %59 = tpu.concatenate %55, %58 in 0 : vector<1x128xf32>, vector<1x128xf32> -> vector<2x128xf32>
    %cst_27 = arith.constant dense<0.000000e+00> : vector<2x128xf32>
    %60 = tpu.matmul %44, %10, %cst_27 {dimension_numbers = #tpu.dot_dimension_numbers<[1], [0], [0], [1], [0, 0, 1, 1], [], []>, precision = #tpu.contract_precision<fp32>} : vector<2x32xf32>, vector<32x128xf32>, vector<2x128xf32> -> vector<2x128xf32>
    %61 = arith.addf %59, %60 : vector<2x128xf32>
    %62 = vector.extract_strided_slice %61 {offsets = [0, 0], sizes = [2, 32], strides = [1, 1]} : vector<2x128xf32> to vector<2x32xf32>
    %63 = arith.negf %62 : vector<2x32xf32>
    %64 = math.exp %63 : vector<2x32xf32>
    %cst_28 = arith.constant 1.000000e+00 : f32
    %65 = vector.broadcast %cst_28 : f32 to vector<2x32xf32>
    %66 = arith.addf %65, %64 : vector<2x32xf32>
    %67 = arith.divf %65, %66 : vector<2x32xf32>
    %68 = vector.extract_strided_slice %61 {offsets = [0, 32], sizes = [2, 32], strides = [1, 1]} : vector<2x128xf32> to vector<2x32xf32>
    %69 = arith.negf %68 : vector<2x32xf32>
    %70 = math.exp %69 : vector<2x32xf32>
    %cst_29 = arith.constant 1.000000e+00 : f32
    %71 = vector.broadcast %cst_29 : f32 to vector<2x32xf32>
    %72 = arith.addf %71, %70 : vector<2x32xf32>
    %73 = arith.divf %71, %72 : vector<2x32xf32>
    %74 = vector.extract_strided_slice %61 {offsets = [0, 64], sizes = [2, 32], strides = [1, 1]} : vector<2x128xf32> to vector<2x32xf32>
    %75 = math.tanh %74 : vector<2x32xf32>
    %76 = vector.extract_strided_slice %61 {offsets = [0, 96], sizes = [2, 32], strides = [1, 1]} : vector<2x128xf32> to vector<2x32xf32>
    %77 = arith.negf %76 : vector<2x32xf32>
    %78 = math.exp %77 : vector<2x32xf32>
    %cst_30 = arith.constant 1.000000e+00 : f32
    %79 = vector.broadcast %cst_30 : f32 to vector<2x32xf32>
    %80 = arith.addf %79, %78 : vector<2x32xf32>
    %81 = arith.divf %79, %80 : vector<2x32xf32>
    %82 = arith.mulf %73, %42 : vector<2x32xf32>
    %83 = arith.mulf %67, %75 : vector<2x32xf32>
    %84 = arith.addf %82, %83 : vector<2x32xf32>
    %85 = math.tanh %84 : vector<2x32xf32>
    %86 = arith.mulf %81, %85 : vector<2x32xf32>
    %87 = vector.extract_strided_slice %86 {offsets = [0, 0], sizes = [1, 32], strides = [1, 1]} : vector<2x32xf32> to vector<1x32xf32>
    %c0_i32_31 = arith.constant 0 : i32
    %88 = arith.addi %c0_i32_31, %c1_i32 : i32
    %89 = arith.index_cast %88 : i32 to index
    %c0_32 = arith.constant 0 : index
    %90 = vector.load %arg15[%89, %c0_32] : memref<16x32xf32, #tpu.memory_space<vmem>>, vector<1x32xf32>
    tpu.vector_store %arg15[%89, %c0_32], %87 {strides = array<i32>} : memref<16x32xf32, #tpu.memory_space<vmem>>, vector<1x32xf32>,
    %91 = vector.extract_strided_slice %86 {offsets = [1, 0], sizes = [1, 32], strides = [1, 1]} : vector<2x32xf32> to vector<1x32xf32>
    %c8_i32_33 = arith.constant 8 : i32
    %92 = arith.addi %c8_i32_33, %c1_i32 : i32
    %93 = arith.index_cast %92 : i32 to index
    %c0_34 = arith.constant 0 : index
    %94 = vector.load %arg15[%93, %c0_34] : memref<16x32xf32, #tpu.memory_space<vmem>>, vector<1x32xf32>
    tpu.vector_store %arg15[%93, %c0_34], %91 {strides = array<i32>} : memref<16x32xf32, #tpu.memory_space<vmem>>, vector<1x32xf32>,
    %c2_i32 = arith.constant 2 : i32
    %c0_i32_35 = arith.constant 0 : i32
    %95 = arith.addi %c0_i32_35, %c2_i32 : i32
    %96 = arith.index_cast %95 : i32 to index
    %c0_36 = arith.constant 0 : index
    %97 = vector.load %arg14[%96, %c0_36] : memref<16x128xf32, #tpu.memory_space<vmem>>, vector<1x128xf32>
    %c8_i32_37 = arith.constant 8 : i32
    %98 = arith.addi %c8_i32_37, %c2_i32 : i32
    %99 = arith.index_cast %98 : i32 to index
    %c0_38 = arith.constant 0 : index
    %100 = vector.load %arg14[%99, %c0_38] : memref<16x128xf32, #tpu.memory_space<vmem>>, vector<1x128xf32>
    %101 = tpu.concatenate %97, %100 in 0 : vector<1x128xf32>, vector<1x128xf32> -> vector<2x128xf32>
    %cst_39 = arith.constant dense<0.000000e+00> : vector<2x128xf32>
    %102 = tpu.matmul %86, %10, %cst_39 {dimension_numbers = #tpu.dot_dimension_numbers<[1], [0], [0], [1], [0, 0, 1, 1], [], []>, precision = #tpu.contract_precision<fp32>} : vector<2x32xf32>, vector<32x128xf32>, vector<2x128xf32> -> vector<2x128xf32>
    %103 = arith.addf %101, %102 : vector<2x128xf32>
    %104 = vector.extract_strided_slice %103 {offsets = [0, 0], sizes = [2, 32], strides = [1, 1]} : vector<2x128xf32> to vector<2x32xf32>
    %105 = arith.negf %104 : vector<2x32xf32>
    %106 = math.exp %105 : vector<2x32xf32>
    %cst_40 = arith.constant 1.000000e+00 : f32
    %107 = vector.broadcast %cst_40 : f32 to vector<2x32xf32>
    %108 = arith.addf %107, %106 : vector<2x32xf32>
    %109 = arith.divf %107, %108 : vector<2x32xf32>
    %110 = vector.extract_strided_slice %103 {offsets = [0, 32], sizes = [2, 32], strides = [1, 1]} : vector<2x128xf32> to vector<2x32xf32>
    %111 = arith.negf %110 : vector<2x32xf32>
    %112 = math.exp %111 : vector<2x32xf32>
    %cst_41 = arith.constant 1.000000e+00 : f32
    %113 = vector.broadcast %cst_41 : f32 to vector<2x32xf32>
    %114 = arith.addf %113, %112 : vector<2x32xf32>
    %115 = arith.divf %113, %114 : vector<2x32xf32>
    %116 = vector.extract_strided_slice %103 {offsets = [0, 64], sizes = [2, 32], strides = [1, 1]} : vector<2x128xf32> to vector<2x32xf32>
    %117 = math.tanh %116 : vector<2x32xf32>
    %118 = vector.extract_strided_slice %103 {offsets = [0, 96], sizes = [2, 32], strides = [1, 1]} : vector<2x128xf32> to vector<2x32xf32>
    %119 = arith.negf %118 : vector<2x32xf32>
    %120 = math.exp %119 : vector<2x32xf32>
    %cst_42 = arith.constant 1.000000e+00 : f32
    %121 = vector.broadcast %cst_42 : f32 to vector<2x32xf32>
    %122 = arith.addf %121, %120 : vector<2x32xf32>
    %123 = arith.divf %121, %122 : vector<2x32xf32>
    %124 = arith.mulf %115, %84 : vector<2x32xf32>
    %125 = arith.mulf %109, %117 : vector<2x32xf32>
    %126 = arith.addf %124, %125 : vector<2x32xf32>
    %127 = math.tanh %126 : vector<2x32xf32>
    %128 = arith.mulf %123, %127 : vector<2x32xf32>
    %129 = vector.extract_strided_slice %128 {offsets = [0, 0], sizes = [1, 32], strides = [1, 1]} : vector<2x32xf32> to vector<1x32xf32>
    %c0_i32_43 = arith.constant 0 : i32
    %130 = arith.addi %c0_i32_43, %c2_i32 : i32
    %131 = arith.index_cast %130 : i32 to index
    %c0_44 = arith.constant 0 : index
    %132 = vector.load %arg15[%131, %c0_44] : memref<16x32xf32, #tpu.memory_space<vmem>>, vector<1x32xf32>
    tpu.vector_store %arg15[%131, %c0_44], %129 {strides = array<i32>} : memref<16x32xf32, #tpu.memory_space<vmem>>, vector<1x32xf32>,
    %133 = vector.extract_strided_slice %128 {offsets = [1, 0], sizes = [1, 32], strides = [1, 1]} : vector<2x32xf32> to vector<1x32xf32>
    %c8_i32_45 = arith.constant 8 : i32
    %134 = arith.addi %c8_i32_45, %c2_i32 : i32
    %135 = arith.index_cast %134 : i32 to index
    %c0_46 = arith.constant 0 : index
    %136 = vector.load %arg15[%135, %c0_46] : memref<16x32xf32, #tpu.memory_space<vmem>>, vector<1x32xf32>
    tpu.vector_store %arg15[%135, %c0_46], %133 {strides = array<i32>} : memref<16x32xf32, #tpu.memory_space<vmem>>, vector<1x32xf32>,
    %c3_i32 = arith.constant 3 : i32
    %c0_i32_47 = arith.constant 0 : i32
    %137 = arith.addi %c0_i32_47, %c3_i32 : i32
    %138 = arith.index_cast %137 : i32 to index
    %c0_48 = arith.constant 0 : index
    %139 = vector.load %arg14[%138, %c0_48] : memref<16x128xf32, #tpu.memory_space<vmem>>, vector<1x128xf32>
    %c8_i32_49 = arith.constant 8 : i32
    %140 = arith.addi %c8_i32_49, %c3_i32 : i32
    %141 = arith.index_cast %140 : i32 to index
    %c0_50 = arith.constant 0 : index
    %142 = vector.load %arg14[%141, %c0_50] : memref<16x128xf32, #tpu.memory_space<vmem>>, vector<1x128xf32>
    %143 = tpu.concatenate %139, %142 in 0 : vector<1x128xf32>, vector<1x128xf32> -> vector<2x128xf32>
    %cst_51 = arith.constant dense<0.000000e+00> : vector<2x128xf32>
    %144 = tpu.matmul %128, %10, %cst_51 {dimension_numbers = #tpu.dot_dimension_numbers<[1], [0], [0], [1], [0, 0, 1, 1], [], []>, precision = #tpu.contract_precision<fp32>} : vector<2x32xf32>, vector<32x128xf32>, vector<2x128xf32> -> vector<2x128xf32>
    %145 = arith.addf %143, %144 : vector<2x128xf32>
    %146 = vector.extract_strided_slice %145 {offsets = [0, 0], sizes = [2, 32], strides = [1, 1]} : vector<2x128xf32> to vector<2x32xf32>
    %147 = arith.negf %146 : vector<2x32xf32>
    %148 = math.exp %147 : vector<2x32xf32>
    %cst_52 = arith.constant 1.000000e+00 : f32
    %149 = vector.broadcast %cst_52 : f32 to vector<2x32xf32>
    %150 = arith.addf %149, %148 : vector<2x32xf32>
    %151 = arith.divf %149, %150 : vector<2x32xf32>
    %152 = vector.extract_strided_slice %145 {offsets = [0, 32], sizes = [2, 32], strides = [1, 1]} : vector<2x128xf32> to vector<2x32xf32>
    %153 = arith.negf %152 : vector<2x32xf32>
    %154 = math.exp %153 : vector<2x32xf32>
    %cst_53 = arith.constant 1.000000e+00 : f32
    %155 = vector.broadcast %cst_53 : f32 to vector<2x32xf32>
    %156 = arith.addf %155, %154 : vector<2x32xf32>
    %157 = arith.divf %155, %156 : vector<2x32xf32>
    %158 = vector.extract_strided_slice %145 {offsets = [0, 64], sizes = [2, 32], strides = [1, 1]} : vector<2x128xf32> to vector<2x32xf32>
    %159 = math.tanh %158 : vector<2x32xf32>
    %160 = vector.extract_strided_slice %145 {offsets = [0, 96], sizes = [2, 32], strides = [1, 1]} : vector<2x128xf32> to vector<2x32xf32>
    %161 = arith.negf %160 : vector<2x32xf32>
    %162 = math.exp %161 : vector<2x32xf32>
    %cst_54 = arith.constant 1.000000e+00 : f32
    %163 = vector.broadcast %cst_54 : f32 to vector<2x32xf32>
    %164 = arith.addf %163, %162 : vector<2x32xf32>
    %165 = arith.divf %163, %164 : vector<2x32xf32>
    %166 = arith.mulf %157, %126 : vector<2x32xf32>
    %167 = arith.mulf %151, %159 : vector<2x32xf32>
    %168 = arith.addf %166, %167 : vector<2x32xf32>
    %169 = math.tanh %168 : vector<2x32xf32>
    %170 = arith.mulf %165, %169 : vector<2x32xf32>
    %171 = vector.extract_strided_slice %170 {offsets = [0, 0], sizes = [1, 32], strides = [1, 1]} : vector<2x32xf32> to vector<1x32xf32>
    %c0_i32_55 = arith.constant 0 : i32
    %172 = arith.addi %c0_i32_55, %c3_i32 : i32
    %173 = arith.index_cast %172 : i32 to index
    %c0_56 = arith.constant 0 : index
    %174 = vector.load %arg15[%173, %c0_56] : memref<16x32xf32, #tpu.memory_space<vmem>>, vector<1x32xf32>
    tpu.vector_store %arg15[%173, %c0_56], %171 {strides = array<i32>} : memref<16x32xf32, #tpu.memory_space<vmem>>, vector<1x32xf32>,
    %175 = vector.extract_strided_slice %170 {offsets = [1, 0], sizes = [1, 32], strides = [1, 1]} : vector<2x32xf32> to vector<1x32xf32>
    %c8_i32_57 = arith.constant 8 : i32
    %176 = arith.addi %c8_i32_57, %c3_i32 : i32
    %177 = arith.index_cast %176 : i32 to index
    %c0_58 = arith.constant 0 : index
    %178 = vector.load %arg15[%177, %c0_58] : memref<16x32xf32, #tpu.memory_space<vmem>>, vector<1x32xf32>
    tpu.vector_store %arg15[%177, %c0_58], %175 {strides = array<i32>} : memref<16x32xf32, #tpu.memory_space<vmem>>, vector<1x32xf32>,
    %c4_i32 = arith.constant 4 : i32
    %c0_i32_59 = arith.constant 0 : i32
    %179 = arith.addi %c0_i32_59, %c4_i32 : i32
    %180 = arith.index_cast %179 : i32 to index
    %c0_60 = arith.constant 0 : index
    %181 = vector.load %arg14[%180, %c0_60] : memref<16x128xf32, #tpu.memory_space<vmem>>, vector<1x128xf32>
    %c8_i32_61 = arith.constant 8 : i32
    %182 = arith.addi %c8_i32_61, %c4_i32 : i32
    %183 = arith.index_cast %182 : i32 to index
    %c0_62 = arith.constant 0 : index
    %184 = vector.load %arg14[%183, %c0_62] : memref<16x128xf32, #tpu.memory_space<vmem>>, vector<1x128xf32>
    %185 = tpu.concatenate %181, %184 in 0 : vector<1x128xf32>, vector<1x128xf32> -> vector<2x128xf32>
    %cst_63 = arith.constant dense<0.000000e+00> : vector<2x128xf32>
    %186 = tpu.matmul %170, %10, %cst_63 {dimension_numbers = #tpu.dot_dimension_numbers<[1], [0], [0], [1], [0, 0, 1, 1], [], []>, precision = #tpu.contract_precision<fp32>} : vector<2x32xf32>, vector<32x128xf32>, vector<2x128xf32> -> vector<2x128xf32>
    %187 = arith.addf %185, %186 : vector<2x128xf32>
    %188 = vector.extract_strided_slice %187 {offsets = [0, 0], sizes = [2, 32], strides = [1, 1]} : vector<2x128xf32> to vector<2x32xf32>
    %189 = arith.negf %188 : vector<2x32xf32>
    %190 = math.exp %189 : vector<2x32xf32>
    %cst_64 = arith.constant 1.000000e+00 : f32
    %191 = vector.broadcast %cst_64 : f32 to vector<2x32xf32>
    %192 = arith.addf %191, %190 : vector<2x32xf32>
    %193 = arith.divf %191, %192 : vector<2x32xf32>
    %194 = vector.extract_strided_slice %187 {offsets = [0, 32], sizes = [2, 32], strides = [1, 1]} : vector<2x128xf32> to vector<2x32xf32>
    %195 = arith.negf %194 : vector<2x32xf32>
    %196 = math.exp %195 : vector<2x32xf32>
    %cst_65 = arith.constant 1.000000e+00 : f32
    %197 = vector.broadcast %cst_65 : f32 to vector<2x32xf32>
    %198 = arith.addf %197, %196 : vector<2x32xf32>
    %199 = arith.divf %197, %198 : vector<2x32xf32>
    %200 = vector.extract_strided_slice %187 {offsets = [0, 64], sizes = [2, 32], strides = [1, 1]} : vector<2x128xf32> to vector<2x32xf32>
    %201 = math.tanh %200 : vector<2x32xf32>
    %202 = vector.extract_strided_slice %187 {offsets = [0, 96], sizes = [2, 32], strides = [1, 1]} : vector<2x128xf32> to vector<2x32xf32>
    %203 = arith.negf %202 : vector<2x32xf32>
    %204 = math.exp %203 : vector<2x32xf32>
    %cst_66 = arith.constant 1.000000e+00 : f32
    %205 = vector.broadcast %cst_66 : f32 to vector<2x32xf32>
    %206 = arith.addf %205, %204 : vector<2x32xf32>
    %207 = arith.divf %205, %206 : vector<2x32xf32>
    %208 = arith.mulf %199, %168 : vector<2x32xf32>
    %209 = arith.mulf %193, %201 : vector<2x32xf32>
    %210 = arith.addf %208, %209 : vector<2x32xf32>
    %211 = math.tanh %210 : vector<2x32xf32>
    %212 = arith.mulf %207, %211 : vector<2x32xf32>
    %213 = vector.extract_strided_slice %212 {offsets = [0, 0], sizes = [1, 32], strides = [1, 1]} : vector<2x32xf32> to vector<1x32xf32>
    %c0_i32_67 = arith.constant 0 : i32
    %214 = arith.addi %c0_i32_67, %c4_i32 : i32
    %215 = arith.index_cast %214 : i32 to index
    %c0_68 = arith.constant 0 : index
    %216 = vector.load %arg15[%215, %c0_68] : memref<16x32xf32, #tpu.memory_space<vmem>>, vector<1x32xf32>
    tpu.vector_store %arg15[%215, %c0_68], %213 {strides = array<i32>} : memref<16x32xf32, #tpu.memory_space<vmem>>, vector<1x32xf32>,
    %217 = vector.extract_strided_slice %212 {offsets = [1, 0], sizes = [1, 32], strides = [1, 1]} : vector<2x32xf32> to vector<1x32xf32>
    %c8_i32_69 = arith.constant 8 : i32
    %218 = arith.addi %c8_i32_69, %c4_i32 : i32
    %219 = arith.index_cast %218 : i32 to index
    %c0_70 = arith.constant 0 : index
    %220 = vector.load %arg15[%219, %c0_70] : memref<16x32xf32, #tpu.memory_space<vmem>>, vector<1x32xf32>
    tpu.vector_store %arg15[%219, %c0_70], %217 {strides = array<i32>} : memref<16x32xf32, #tpu.memory_space<vmem>>, vector<1x32xf32>,
    %c5_i32 = arith.constant 5 : i32
    %c0_i32_71 = arith.constant 0 : i32
    %221 = arith.addi %c0_i32_71, %c5_i32 : i32
    %222 = arith.index_cast %221 : i32 to index
    %c0_72 = arith.constant 0 : index
    %223 = vector.load %arg14[%222, %c0_72] : memref<16x128xf32, #tpu.memory_space<vmem>>, vector<1x128xf32>
    %c8_i32_73 = arith.constant 8 : i32
    %224 = arith.addi %c8_i32_73, %c5_i32 : i32
    %225 = arith.index_cast %224 : i32 to index
    %c0_74 = arith.constant 0 : index
    %226 = vector.load %arg14[%225, %c0_74] : memref<16x128xf32, #tpu.memory_space<vmem>>, vector<1x128xf32>
    %227 = tpu.concatenate %223, %226 in 0 : vector<1x128xf32>, vector<1x128xf32> -> vector<2x128xf32>
    %cst_75 = arith.constant dense<0.000000e+00> : vector<2x128xf32>
    %228 = tpu.matmul %212, %10, %cst_75 {dimension_numbers = #tpu.dot_dimension_numbers<[1], [0], [0], [1], [0, 0, 1, 1], [], []>, precision = #tpu.contract_precision<fp32>} : vector<2x32xf32>, vector<32x128xf32>, vector<2x128xf32> -> vector<2x128xf32>
    %229 = arith.addf %227, %228 : vector<2x128xf32>
    %230 = vector.extract_strided_slice %229 {offsets = [0, 0], sizes = [2, 32], strides = [1, 1]} : vector<2x128xf32> to vector<2x32xf32>
    %231 = arith.negf %230 : vector<2x32xf32>
    %232 = math.exp %231 : vector<2x32xf32>
    %cst_76 = arith.constant 1.000000e+00 : f32
    %233 = vector.broadcast %cst_76 : f32 to vector<2x32xf32>
    %234 = arith.addf %233, %232 : vector<2x32xf32>
    %235 = arith.divf %233, %234 : vector<2x32xf32>
    %236 = vector.extract_strided_slice %229 {offsets = [0, 32], sizes = [2, 32], strides = [1, 1]} : vector<2x128xf32> to vector<2x32xf32>
    %237 = arith.negf %236 : vector<2x32xf32>
    %238 = math.exp %237 : vector<2x32xf32>
    %cst_77 = arith.constant 1.000000e+00 : f32
    %239 = vector.broadcast %cst_77 : f32 to vector<2x32xf32>
    %240 = arith.addf %239, %238 : vector<2x32xf32>
    %241 = arith.divf %239, %240 : vector<2x32xf32>
    %242 = vector.extract_strided_slice %229 {offsets = [0, 64], sizes = [2, 32], strides = [1, 1]} : vector<2x128xf32> to vector<2x32xf32>
    %243 = math.tanh %242 : vector<2x32xf32>
    %244 = vector.extract_strided_slice %229 {offsets = [0, 96], sizes = [2, 32], strides = [1, 1]} : vector<2x128xf32> to vector<2x32xf32>
    %245 = arith.negf %244 : vector<2x32xf32>
    %246 = math.exp %245 : vector<2x32xf32>
    %cst_78 = arith.constant 1.000000e+00 : f32
    %247 = vector.broadcast %cst_78 : f32 to vector<2x32xf32>
    %248 = arith.addf %247, %246 : vector<2x32xf32>
    %249 = arith.divf %247, %248 : vector<2x32xf32>
    %250 = arith.mulf %241, %210 : vector<2x32xf32>
    %251 = arith.mulf %235, %243 : vector<2x32xf32>
    %252 = arith.addf %250, %251 : vector<2x32xf32>
    %253 = math.tanh %252 : vector<2x32xf32>
    %254 = arith.mulf %249, %253 : vector<2x32xf32>
    %255 = vector.extract_strided_slice %254 {offsets = [0, 0], sizes = [1, 32], strides = [1, 1]} : vector<2x32xf32> to vector<1x32xf32>
    %c0_i32_79 = arith.constant 0 : i32
    %256 = arith.addi %c0_i32_79, %c5_i32 : i32
    %257 = arith.index_cast %256 : i32 to index
    %c0_80 = arith.constant 0 : index
    %258 = vector.load %arg15[%257, %c0_80] : memref<16x32xf32, #tpu.memory_space<vmem>>, vector<1x32xf32>
    tpu.vector_store %arg15[%257, %c0_80], %255 {strides = array<i32>} : memref<16x32xf32, #tpu.memory_space<vmem>>, vector<1x32xf32>,
    %259 = vector.extract_strided_slice %254 {offsets = [1, 0], sizes = [1, 32], strides = [1, 1]} : vector<2x32xf32> to vector<1x32xf32>
    %c8_i32_81 = arith.constant 8 : i32
    %260 = arith.addi %c8_i32_81, %c5_i32 : i32
    %261 = arith.index_cast %260 : i32 to index
    %c0_82 = arith.constant 0 : index
    %262 = vector.load %arg15[%261, %c0_82] : memref<16x32xf32, #tpu.memory_space<vmem>>, vector<1x32xf32>
    tpu.vector_store %arg15[%261, %c0_82], %259 {strides = array<i32>} : memref<16x32xf32, #tpu.memory_space<vmem>>, vector<1x32xf32>,
    %c6_i32 = arith.constant 6 : i32
    %c0_i32_83 = arith.constant 0 : i32
    %263 = arith.addi %c0_i32_83, %c6_i32 : i32
    %264 = arith.index_cast %263 : i32 to index
    %c0_84 = arith.constant 0 : index
    %265 = vector.load %arg14[%264, %c0_84] : memref<16x128xf32, #tpu.memory_space<vmem>>, vector<1x128xf32>
    %c8_i32_85 = arith.constant 8 : i32
    %266 = arith.addi %c8_i32_85, %c6_i32 : i32
    %267 = arith.index_cast %266 : i32 to index
    %c0_86 = arith.constant 0 : index
    %268 = vector.load %arg14[%267, %c0_86] : memref<16x128xf32, #tpu.memory_space<vmem>>, vector<1x128xf32>
    %269 = tpu.concatenate %265, %268 in 0 : vector<1x128xf32>, vector<1x128xf32> -> vector<2x128xf32>
    %cst_87 = arith.constant dense<0.000000e+00> : vector<2x128xf32>
    %270 = tpu.matmul %254, %10, %cst_87 {dimension_numbers = #tpu.dot_dimension_numbers<[1], [0], [0], [1], [0, 0, 1, 1], [], []>, precision = #tpu.contract_precision<fp32>} : vector<2x32xf32>, vector<32x128xf32>, vector<2x128xf32> -> vector<2x128xf32>
    %271 = arith.addf %269, %270 : vector<2x128xf32>
    %272 = vector.extract_strided_slice %271 {offsets = [0, 0], sizes = [2, 32], strides = [1, 1]} : vector<2x128xf32> to vector<2x32xf32>
    %273 = arith.negf %272 : vector<2x32xf32>
    %274 = math.exp %273 : vector<2x32xf32>
    %cst_88 = arith.constant 1.000000e+00 : f32
    %275 = vector.broadcast %cst_88 : f32 to vector<2x32xf32>
    %276 = arith.addf %275, %274 : vector<2x32xf32>
    %277 = arith.divf %275, %276 : vector<2x32xf32>
    %278 = vector.extract_strided_slice %271 {offsets = [0, 32], sizes = [2, 32], strides = [1, 1]} : vector<2x128xf32> to vector<2x32xf32>
    %279 = arith.negf %278 : vector<2x32xf32>
    %280 = math.exp %279 : vector<2x32xf32>
    %cst_89 = arith.constant 1.000000e+00 : f32
    %281 = vector.broadcast %cst_89 : f32 to vector<2x32xf32>
    %282 = arith.addf %281, %280 : vector<2x32xf32>
    %283 = arith.divf %281, %282 : vector<2x32xf32>
    %284 = vector.extract_strided_slice %271 {offsets = [0, 64], sizes = [2, 32], strides = [1, 1]} : vector<2x128xf32> to vector<2x32xf32>
    %285 = math.tanh %284 : vector<2x32xf32>
    %286 = vector.extract_strided_slice %271 {offsets = [0, 96], sizes = [2, 32], strides = [1, 1]} : vector<2x128xf32> to vector<2x32xf32>
    %287 = arith.negf %286 : vector<2x32xf32>
    %288 = math.exp %287 : vector<2x32xf32>
    %cst_90 = arith.constant 1.000000e+00 : f32
    %289 = vector.broadcast %cst_90 : f32 to vector<2x32xf32>
    %290 = arith.addf %289, %288 : vector<2x32xf32>
    %291 = arith.divf %289, %290 : vector<2x32xf32>
    %292 = arith.mulf %283, %252 : vector<2x32xf32>
    %293 = arith.mulf %277, %285 : vector<2x32xf32>
    %294 = arith.addf %292, %293 : vector<2x32xf32>
    %295 = math.tanh %294 : vector<2x32xf32>
    %296 = arith.mulf %291, %295 : vector<2x32xf32>
    %297 = vector.extract_strided_slice %296 {offsets = [0, 0], sizes = [1, 32], strides = [1, 1]} : vector<2x32xf32> to vector<1x32xf32>
    %c0_i32_91 = arith.constant 0 : i32
    %298 = arith.addi %c0_i32_91, %c6_i32 : i32
    %299 = arith.index_cast %298 : i32 to index
    %c0_92 = arith.constant 0 : index
    %300 = vector.load %arg15[%299, %c0_92] : memref<16x32xf32, #tpu.memory_space<vmem>>, vector<1x32xf32>
    tpu.vector_store %arg15[%299, %c0_92], %297 {strides = array<i32>} : memref<16x32xf32, #tpu.memory_space<vmem>>, vector<1x32xf32>,
    %301 = vector.extract_strided_slice %296 {offsets = [1, 0], sizes = [1, 32], strides = [1, 1]} : vector<2x32xf32> to vector<1x32xf32>
    %c8_i32_93 = arith.constant 8 : i32
    %302 = arith.addi %c8_i32_93, %c6_i32 : i32
    %303 = arith.index_cast %302 : i32 to index
    %c0_94 = arith.constant 0 : index
    %304 = vector.load %arg15[%303, %c0_94] : memref<16x32xf32, #tpu.memory_space<vmem>>, vector<1x32xf32>
    tpu.vector_store %arg15[%303, %c0_94], %301 {strides = array<i32>} : memref<16x32xf32, #tpu.memory_space<vmem>>, vector<1x32xf32>,
    %c7_i32 = arith.constant 7 : i32
    %c0_i32_95 = arith.constant 0 : i32
    %305 = arith.addi %c0_i32_95, %c7_i32 : i32
    %306 = arith.index_cast %305 : i32 to index
    %c0_96 = arith.constant 0 : index
    %307 = vector.load %arg14[%306, %c0_96] : memref<16x128xf32, #tpu.memory_space<vmem>>, vector<1x128xf32>
    %c8_i32_97 = arith.constant 8 : i32
    %308 = arith.addi %c8_i32_97, %c7_i32 : i32
    %309 = arith.index_cast %308 : i32 to index
    %c0_98 = arith.constant 0 : index
    %310 = vector.load %arg14[%309, %c0_98] : memref<16x128xf32, #tpu.memory_space<vmem>>, vector<1x128xf32>
    %311 = tpu.concatenate %307, %310 in 0 : vector<1x128xf32>, vector<1x128xf32> -> vector<2x128xf32>
    %cst_99 = arith.constant dense<0.000000e+00> : vector<2x128xf32>
    %312 = tpu.matmul %296, %10, %cst_99 {dimension_numbers = #tpu.dot_dimension_numbers<[1], [0], [0], [1], [0, 0, 1, 1], [], []>, precision = #tpu.contract_precision<fp32>} : vector<2x32xf32>, vector<32x128xf32>, vector<2x128xf32> -> vector<2x128xf32>
    %313 = arith.addf %311, %312 : vector<2x128xf32>
    %314 = vector.extract_strided_slice %313 {offsets = [0, 0], sizes = [2, 32], strides = [1, 1]} : vector<2x128xf32> to vector<2x32xf32>
    %315 = arith.negf %314 : vector<2x32xf32>
    %316 = math.exp %315 : vector<2x32xf32>
    %cst_100 = arith.constant 1.000000e+00 : f32
    %317 = vector.broadcast %cst_100 : f32 to vector<2x32xf32>
    %318 = arith.addf %317, %316 : vector<2x32xf32>
    %319 = arith.divf %317, %318 : vector<2x32xf32>
    %320 = vector.extract_strided_slice %313 {offsets = [0, 32], sizes = [2, 32], strides = [1, 1]} : vector<2x128xf32> to vector<2x32xf32>
    %321 = arith.negf %320 : vector<2x32xf32>
    %322 = math.exp %321 : vector<2x32xf32>
    %cst_101 = arith.constant 1.000000e+00 : f32
    %323 = vector.broadcast %cst_101 : f32 to vector<2x32xf32>
    %324 = arith.addf %323, %322 : vector<2x32xf32>
    %325 = arith.divf %323, %324 : vector<2x32xf32>
    %326 = vector.extract_strided_slice %313 {offsets = [0, 64], sizes = [2, 32], strides = [1, 1]} : vector<2x128xf32> to vector<2x32xf32>
    %327 = math.tanh %326 : vector<2x32xf32>
    %328 = vector.extract_strided_slice %313 {offsets = [0, 96], sizes = [2, 32], strides = [1, 1]} : vector<2x128xf32> to vector<2x32xf32>
    %329 = arith.negf %328 : vector<2x32xf32>
    %330 = math.exp %329 : vector<2x32xf32>
    %cst_102 = arith.constant 1.000000e+00 : f32
    %331 = vector.broadcast %cst_102 : f32 to vector<2x32xf32>
    %332 = arith.addf %331, %330 : vector<2x32xf32>
    %333 = arith.divf %331, %332 : vector<2x32xf32>
    %334 = arith.mulf %325, %294 : vector<2x32xf32>
    %335 = arith.mulf %319, %327 : vector<2x32xf32>
    %336 = arith.addf %334, %335 : vector<2x32xf32>
    %337 = math.tanh %336 : vector<2x32xf32>
    %338 = arith.mulf %333, %337 : vector<2x32xf32>
    %339 = vector.extract_strided_slice %338 {offsets = [0, 0], sizes = [1, 32], strides = [1, 1]} : vector<2x32xf32> to vector<1x32xf32>
    %c0_i32_103 = arith.constant 0 : i32
    %340 = arith.addi %c0_i32_103, %c7_i32 : i32
    %341 = arith.index_cast %340 : i32 to index
    %c0_104 = arith.constant 0 : index
    %342 = vector.load %arg15[%341, %c0_104] : memref<16x32xf32, #tpu.memory_space<vmem>>, vector<1x32xf32>
    tpu.vector_store %arg15[%341, %c0_104], %339 {strides = array<i32>} : memref<16x32xf32, #tpu.memory_space<vmem>>, vector<1x32xf32>,
    %343 = vector.extract_strided_slice %338 {offsets = [1, 0], sizes = [1, 32], strides = [1, 1]} : vector<2x32xf32> to vector<1x32xf32>
    %c8_i32_105 = arith.constant 8 : i32
    %344 = arith.addi %c8_i32_105, %c7_i32 : i32
    %345 = arith.index_cast %344 : i32 to index
    %c0_106 = arith.constant 0 : index
    %346 = vector.load %arg15[%345, %c0_106] : memref<16x32xf32, #tpu.memory_space<vmem>>, vector<1x32xf32>
    tpu.vector_store %arg15[%345, %c0_106], %343 {strides = array<i32>} : memref<16x32xf32, #tpu.memory_space<vmem>>, vector<1x32xf32>,
    %c8_i32_107 = arith.constant 8 : i32
    %c0_108 = arith.constant 0 : index
    %c0_109 = arith.constant 0 : index
    %347 = vector.load %arg15[%c0_108, %c0_109] : memref<16x32xf32, #tpu.memory_space<vmem>>, vector<16x32xf32>
    %c0_110 = arith.constant 0 : index
    %c0_111 = arith.constant 0 : index
    %348 = vector.load %arg5[%c0_110, %c0_111] : memref<32x1xf32, #tpu.memory_space<vmem>>, vector<32x1xf32>
    %cst_112 = arith.constant dense<0.000000e+00> : vector<16x1xf32>
    %349 = tpu.matmul %347, %348, %cst_112 {dimension_numbers = #tpu.dot_dimension_numbers<[1], [0], [0], [1], [0, 0, 1, 1], [], []>, precision = #tpu.contract_precision<fp32>} : vector<16x32xf32>, vector<32x1xf32>, vector<16x1xf32> -> vector<16x1xf32>
    %c0_113 = arith.constant 0 : index
    %c0_114 = arith.constant 0 : index
    %350 = vector.load %arg6[%c0_113, %c0_114] : memref<1x1xf32, #tpu.memory_space<vmem>>, vector<1x1xf32>
    %351 = vector.broadcast %350 : vector<1x1xf32> to vector<16x1xf32>
    %352 = arith.addf %349, %351 : vector<16x1xf32>
    %353 = vector.shape_cast %352 : vector<16x1xf32> to vector<2x8x1xf32>
    %c0_115 = arith.constant 0 : index
    %c0_116 = arith.constant 0 : index
    %c0_117 = arith.constant 0 : index
    %354 = vector.load %arg13[%c0_115, %c0_116, %c0_117] : memref<2x8x1xf32, #tpu.memory_space<vmem>>, vector<2x8x1xf32>
    tpu.vector_store %arg13[%c0_115, %c0_116, %c0_117], %353 {strides = array<i32>} : memref<2x8x1xf32, #tpu.memory_space<vmem>>, vector<2x8x1xf32>,
    %c0_118 = arith.constant 0 : index
    %c0_119 = arith.constant 0 : index
    %c0_120 = arith.constant 0 : index
    %355 = vector.load %arg1[%c0_118, %c0_119, %c0_120] : memref<2x8x4xf32, #tpu.memory_space<vmem>>, vector<2x8x4xf32>
    %356 = vector.shape_cast %355 : vector<2x8x4xf32> to vector<16x4xf32>
    %c0_121 = arith.constant 0 : index
    %c0_122 = arith.constant 0 : index
    %357 = vector.load %arg7[%c0_121, %c0_122] : memref<4x128xf32, #tpu.memory_space<vmem>>, vector<4x128xf32>
    %cst_123 = arith.constant dense<0.000000e+00> : vector<16x128xf32>
    %358 = tpu.matmul %356, %357, %cst_123 {dimension_numbers = #tpu.dot_dimension_numbers<[1], [0], [0], [1], [0, 0, 1, 1], [], []>, precision = #tpu.contract_precision<fp32>} : vector<16x4xf32>, vector<4x128xf32>, vector<16x128xf32> -> vector<16x128xf32>
    %c0_124 = arith.constant 0 : index
    %c0_125 = arith.constant 0 : index
    %359 = vector.load %arg9[%c0_124, %c0_125] : memref<1x128xf32, #tpu.memory_space<vmem>>, vector<1x128xf32>
    %360 = vector.broadcast %359 : vector<1x128xf32> to vector<16x128xf32>
    %361 = arith.addf %358, %360 : vector<16x128xf32>
    %c0_126 = arith.constant 0 : index
    %c0_127 = arith.constant 0 : index
    %362 = vector.load %arg16[%c0_126, %c0_127] : memref<16x128xf32, #tpu.memory_space<vmem>>, vector<16x128xf32>
    tpu.vector_store %arg16[%c0_126, %c0_127], %361 {strides = array<i32>} : memref<16x128xf32, #tpu.memory_space<vmem>>, vector<16x128xf32>,
    %c0_128 = arith.constant 0 : index
    %c0_129 = arith.constant 0 : index
    %363 = vector.load %arg8[%c0_128, %c0_129] : memref<32x128xf32, #tpu.memory_space<vmem>>, vector<32x128xf32>
    %c0_i32_130 = arith.constant 0 : i32
    %c0_i32_131 = arith.constant 0 : i32
    %364 = arith.addi %c0_i32_131, %c0_i32_130 : i32
    %365 = arith.index_cast %364 : i32 to index
    %c0_132 = arith.constant 0 : index
    %366 = vector.load %arg16[%365, %c0_132] : memref<16x128xf32, #tpu.memory_space<vmem>>, vector<1x128xf32>
    %c8_i32_133 = arith.constant 8 : i32
    %367 = arith.addi %c8_i32_133, %c0_i32_130 : i32
    %368 = arith.index_cast %367 : i32 to index
    %c0_134 = arith.constant 0 : index
    %369 = vector.load %arg16[%368, %c0_134] : memref<16x128xf32, #tpu.memory_space<vmem>>, vector<1x128xf32>
    %370 = tpu.concatenate %366, %369 in 0 : vector<1x128xf32>, vector<1x128xf32> -> vector<2x128xf32>
    %cst_135 = arith.constant dense<0.000000e+00> : vector<2x128xf32>
    %371 = tpu.matmul %338, %363, %cst_135 {dimension_numbers = #tpu.dot_dimension_numbers<[1], [0], [0], [1], [0, 0, 1, 1], [], []>, precision = #tpu.contract_precision<fp32>} : vector<2x32xf32>, vector<32x128xf32>, vector<2x128xf32> -> vector<2x128xf32>
    %372 = arith.addf %370, %371 : vector<2x128xf32>
    %373 = vector.extract_strided_slice %372 {offsets = [0, 0], sizes = [2, 32], strides = [1, 1]} : vector<2x128xf32> to vector<2x32xf32>
    %374 = arith.negf %373 : vector<2x32xf32>
    %375 = math.exp %374 : vector<2x32xf32>
    %cst_136 = arith.constant 1.000000e+00 : f32
    %376 = vector.broadcast %cst_136 : f32 to vector<2x32xf32>
    %377 = arith.addf %376, %375 : vector<2x32xf32>
    %378 = arith.divf %376, %377 : vector<2x32xf32>
    %379 = vector.extract_strided_slice %372 {offsets = [0, 32], sizes = [2, 32], strides = [1, 1]} : vector<2x128xf32> to vector<2x32xf32>
    %380 = arith.negf %379 : vector<2x32xf32>
    %381 = math.exp %380 : vector<2x32xf32>
    %cst_137 = arith.constant 1.000000e+00 : f32
    %382 = vector.broadcast %cst_137 : f32 to vector<2x32xf32>
    %383 = arith.addf %382, %381 : vector<2x32xf32>
    %384 = arith.divf %382, %383 : vector<2x32xf32>
    %385 = vector.extract_strided_slice %372 {offsets = [0, 64], sizes = [2, 32], strides = [1, 1]} : vector<2x128xf32> to vector<2x32xf32>
    %386 = math.tanh %385 : vector<2x32xf32>
    %387 = vector.extract_strided_slice %372 {offsets = [0, 96], sizes = [2, 32], strides = [1, 1]} : vector<2x128xf32> to vector<2x32xf32>
    %388 = arith.negf %387 : vector<2x32xf32>
    %389 = math.exp %388 : vector<2x32xf32>
    %cst_138 = arith.constant 1.000000e+00 : f32
    %390 = vector.broadcast %cst_138 : f32 to vector<2x32xf32>
    %391 = arith.addf %390, %389 : vector<2x32xf32>
    %392 = arith.divf %390, %391 : vector<2x32xf32>
    %393 = arith.mulf %384, %336 : vector<2x32xf32>
    %394 = arith.mulf %378, %386 : vector<2x32xf32>
    %395 = arith.addf %393, %394 : vector<2x32xf32>
    %396 = math.tanh %395 : vector<2x32xf32>
    %397 = arith.mulf %392, %396 : vector<2x32xf32>
    %398 = vector.extract_strided_slice %397 {offsets = [0, 0], sizes = [1, 32], strides = [1, 1]} : vector<2x32xf32> to vector<1x32xf32>
    %c0_i32_139 = arith.constant 0 : i32
    %399 = arith.addi %c0_i32_139, %c0_i32_130 : i32
    %400 = arith.index_cast %399 : i32 to index
    %c0_140 = arith.constant 0 : index
    %401 = vector.load %arg17[%400, %c0_140] : memref<16x32xf32, #tpu.memory_space<vmem>>, vector<1x32xf32>
    tpu.vector_store %arg17[%400, %c0_140], %398 {strides = array<i32>} : memref<16x32xf32, #tpu.memory_space<vmem>>, vector<1x32xf32>,
    %402 = vector.extract_strided_slice %397 {offsets = [1, 0], sizes = [1, 32], strides = [1, 1]} : vector<2x32xf32> to vector<1x32xf32>
    %c8_i32_141 = arith.constant 8 : i32
    %403 = arith.addi %c8_i32_141, %c0_i32_130 : i32
    %404 = arith.index_cast %403 : i32 to index
    %c0_142 = arith.constant 0 : index
    %405 = vector.load %arg17[%404, %c0_142] : memref<16x32xf32, #tpu.memory_space<vmem>>, vector<1x32xf32>
    tpu.vector_store %arg17[%404, %c0_142], %402 {strides = array<i32>} : memref<16x32xf32, #tpu.memory_space<vmem>>, vector<1x32xf32>,
    %c1_i32_143 = arith.constant 1 : i32
    %c0_i32_144 = arith.constant 0 : i32
    %406 = arith.addi %c0_i32_144, %c1_i32_143 : i32
    %407 = arith.index_cast %406 : i32 to index
    %c0_145 = arith.constant 0 : index
    %408 = vector.load %arg16[%407, %c0_145] : memref<16x128xf32, #tpu.memory_space<vmem>>, vector<1x128xf32>
    %c8_i32_146 = arith.constant 8 : i32
    %409 = arith.addi %c8_i32_146, %c1_i32_143 : i32
    %410 = arith.index_cast %409 : i32 to index
    %c0_147 = arith.constant 0 : index
    %411 = vector.load %arg16[%410, %c0_147] : memref<16x128xf32, #tpu.memory_space<vmem>>, vector<1x128xf32>
    %412 = tpu.concatenate %408, %411 in 0 : vector<1x128xf32>, vector<1x128xf32> -> vector<2x128xf32>
    %cst_148 = arith.constant dense<0.000000e+00> : vector<2x128xf32>
    %413 = tpu.matmul %397, %363, %cst_148 {dimension_numbers = #tpu.dot_dimension_numbers<[1], [0], [0], [1], [0, 0, 1, 1], [], []>, precision = #tpu.contract_precision<fp32>} : vector<2x32xf32>, vector<32x128xf32>, vector<2x128xf32> -> vector<2x128xf32>
    %414 = arith.addf %412, %413 : vector<2x128xf32>
    %415 = vector.extract_strided_slice %414 {offsets = [0, 0], sizes = [2, 32], strides = [1, 1]} : vector<2x128xf32> to vector<2x32xf32>
    %416 = arith.negf %415 : vector<2x32xf32>
    %417 = math.exp %416 : vector<2x32xf32>
    %cst_149 = arith.constant 1.000000e+00 : f32
    %418 = vector.broadcast %cst_149 : f32 to vector<2x32xf32>
    %419 = arith.addf %418, %417 : vector<2x32xf32>
    %420 = arith.divf %418, %419 : vector<2x32xf32>
    %421 = vector.extract_strided_slice %414 {offsets = [0, 32], sizes = [2, 32], strides = [1, 1]} : vector<2x128xf32> to vector<2x32xf32>
    %422 = arith.negf %421 : vector<2x32xf32>
    %423 = math.exp %422 : vector<2x32xf32>
    %cst_150 = arith.constant 1.000000e+00 : f32
    %424 = vector.broadcast %cst_150 : f32 to vector<2x32xf32>
    %425 = arith.addf %424, %423 : vector<2x32xf32>
    %426 = arith.divf %424, %425 : vector<2x32xf32>
    %427 = vector.extract_strided_slice %414 {offsets = [0, 64], sizes = [2, 32], strides = [1, 1]} : vector<2x128xf32> to vector<2x32xf32>
    %428 = math.tanh %427 : vector<2x32xf32>
    %429 = vector.extract_strided_slice %414 {offsets = [0, 96], sizes = [2, 32], strides = [1, 1]} : vector<2x128xf32> to vector<2x32xf32>
    %430 = arith.negf %429 : vector<2x32xf32>
    %431 = math.exp %430 : vector<2x32xf32>
    %cst_151 = arith.constant 1.000000e+00 : f32
    %432 = vector.broadcast %cst_151 : f32 to vector<2x32xf32>
    %433 = arith.addf %432, %431 : vector<2x32xf32>
    %434 = arith.divf %432, %433 : vector<2x32xf32>
    %435 = arith.mulf %426, %395 : vector<2x32xf32>
    %436 = arith.mulf %420, %428 : vector<2x32xf32>
    %437 = arith.addf %435, %436 : vector<2x32xf32>
    %438 = math.tanh %437 : vector<2x32xf32>
    %439 = arith.mulf %434, %438 : vector<2x32xf32>
    %440 = vector.extract_strided_slice %439 {offsets = [0, 0], sizes = [1, 32], strides = [1, 1]} : vector<2x32xf32> to vector<1x32xf32>
    %c0_i32_152 = arith.constant 0 : i32
    %441 = arith.addi %c0_i32_152, %c1_i32_143 : i32
    %442 = arith.index_cast %441 : i32 to index
    %c0_153 = arith.constant 0 : index
    %443 = vector.load %arg17[%442, %c0_153] : memref<16x32xf32, #tpu.memory_space<vmem>>, vector<1x32xf32>
    tpu.vector_store %arg17[%442, %c0_153], %440 {strides = array<i32>} : memref<16x32xf32, #tpu.memory_space<vmem>>, vector<1x32xf32>,
    %444 = vector.extract_strided_slice %439 {offsets = [1, 0], sizes = [1, 32], strides = [1, 1]} : vector<2x32xf32> to vector<1x32xf32>
    %c8_i32_154 = arith.constant 8 : i32
    %445 = arith.addi %c8_i32_154, %c1_i32_143 : i32
    %446 = arith.index_cast %445 : i32 to index
    %c0_155 = arith.constant 0 : index
    %447 = vector.load %arg17[%446, %c0_155] : memref<16x32xf32, #tpu.memory_space<vmem>>, vector<1x32xf32>
    tpu.vector_store %arg17[%446, %c0_155], %444 {strides = array<i32>} : memref<16x32xf32, #tpu.memory_space<vmem>>, vector<1x32xf32>,
    %c2_i32_156 = arith.constant 2 : i32
    %c0_i32_157 = arith.constant 0 : i32
    %448 = arith.addi %c0_i32_157, %c2_i32_156 : i32
    %449 = arith.index_cast %448 : i32 to index
    %c0_158 = arith.constant 0 : index
    %450 = vector.load %arg16[%449, %c0_158] : memref<16x128xf32, #tpu.memory_space<vmem>>, vector<1x128xf32>
    %c8_i32_159 = arith.constant 8 : i32
    %451 = arith.addi %c8_i32_159, %c2_i32_156 : i32
    %452 = arith.index_cast %451 : i32 to index
    %c0_160 = arith.constant 0 : index
    %453 = vector.load %arg16[%452, %c0_160] : memref<16x128xf32, #tpu.memory_space<vmem>>, vector<1x128xf32>
    %454 = tpu.concatenate %450, %453 in 0 : vector<1x128xf32>, vector<1x128xf32> -> vector<2x128xf32>
    %cst_161 = arith.constant dense<0.000000e+00> : vector<2x128xf32>
    %455 = tpu.matmul %439, %363, %cst_161 {dimension_numbers = #tpu.dot_dimension_numbers<[1], [0], [0], [1], [0, 0, 1, 1], [], []>, precision = #tpu.contract_precision<fp32>} : vector<2x32xf32>, vector<32x128xf32>, vector<2x128xf32> -> vector<2x128xf32>
    %456 = arith.addf %454, %455 : vector<2x128xf32>
    %457 = vector.extract_strided_slice %456 {offsets = [0, 0], sizes = [2, 32], strides = [1, 1]} : vector<2x128xf32> to vector<2x32xf32>
    %458 = arith.negf %457 : vector<2x32xf32>
    %459 = math.exp %458 : vector<2x32xf32>
    %cst_162 = arith.constant 1.000000e+00 : f32
    %460 = vector.broadcast %cst_162 : f32 to vector<2x32xf32>
    %461 = arith.addf %460, %459 : vector<2x32xf32>
    %462 = arith.divf %460, %461 : vector<2x32xf32>
    %463 = vector.extract_strided_slice %456 {offsets = [0, 32], sizes = [2, 32], strides = [1, 1]} : vector<2x128xf32> to vector<2x32xf32>
    %464 = arith.negf %463 : vector<2x32xf32>
    %465 = math.exp %464 : vector<2x32xf32>
    %cst_163 = arith.constant 1.000000e+00 : f32
    %466 = vector.broadcast %cst_163 : f32 to vector<2x32xf32>
    %467 = arith.addf %466, %465 : vector<2x32xf32>
    %468 = arith.divf %466, %467 : vector<2x32xf32>
    %469 = vector.extract_strided_slice %456 {offsets = [0, 64], sizes = [2, 32], strides = [1, 1]} : vector<2x128xf32> to vector<2x32xf32>
    %470 = math.tanh %469 : vector<2x32xf32>
    %471 = vector.extract_strided_slice %456 {offsets = [0, 96], sizes = [2, 32], strides = [1, 1]} : vector<2x128xf32> to vector<2x32xf32>
    %472 = arith.negf %471 : vector<2x32xf32>
    %473 = math.exp %472 : vector<2x32xf32>
    %cst_164 = arith.constant 1.000000e+00 : f32
    %474 = vector.broadcast %cst_164 : f32 to vector<2x32xf32>
    %475 = arith.addf %474, %473 : vector<2x32xf32>
    %476 = arith.divf %474, %475 : vector<2x32xf32>
    %477 = arith.mulf %468, %437 : vector<2x32xf32>
    %478 = arith.mulf %462, %470 : vector<2x32xf32>
    %479 = arith.addf %477, %478 : vector<2x32xf32>
    %480 = math.tanh %479 : vector<2x32xf32>
    %481 = arith.mulf %476, %480 : vector<2x32xf32>
    %482 = vector.extract_strided_slice %481 {offsets = [0, 0], sizes = [1, 32], strides = [1, 1]} : vector<2x32xf32> to vector<1x32xf32>
    %c0_i32_165 = arith.constant 0 : i32
    %483 = arith.addi %c0_i32_165, %c2_i32_156 : i32
    %484 = arith.index_cast %483 : i32 to index
    %c0_166 = arith.constant 0 : index
    %485 = vector.load %arg17[%484, %c0_166] : memref<16x32xf32, #tpu.memory_space<vmem>>, vector<1x32xf32>
    tpu.vector_store %arg17[%484, %c0_166], %482 {strides = array<i32>} : memref<16x32xf32, #tpu.memory_space<vmem>>, vector<1x32xf32>,
    %486 = vector.extract_strided_slice %481 {offsets = [1, 0], sizes = [1, 32], strides = [1, 1]} : vector<2x32xf32> to vector<1x32xf32>
    %c8_i32_167 = arith.constant 8 : i32
    %487 = arith.addi %c8_i32_167, %c2_i32_156 : i32
    %488 = arith.index_cast %487 : i32 to index
    %c0_168 = arith.constant 0 : index
    %489 = vector.load %arg17[%488, %c0_168] : memref<16x32xf32, #tpu.memory_space<vmem>>, vector<1x32xf32>
    tpu.vector_store %arg17[%488, %c0_168], %486 {strides = array<i32>} : memref<16x32xf32, #tpu.memory_space<vmem>>, vector<1x32xf32>,
    %c3_i32_169 = arith.constant 3 : i32
    %c0_i32_170 = arith.constant 0 : i32
    %490 = arith.addi %c0_i32_170, %c3_i32_169 : i32
    %491 = arith.index_cast %490 : i32 to index
    %c0_171 = arith.constant 0 : index
    %492 = vector.load %arg16[%491, %c0_171] : memref<16x128xf32, #tpu.memory_space<vmem>>, vector<1x128xf32>
    %c8_i32_172 = arith.constant 8 : i32
    %493 = arith.addi %c8_i32_172, %c3_i32_169 : i32
    %494 = arith.index_cast %493 : i32 to index
    %c0_173 = arith.constant 0 : index
    %495 = vector.load %arg16[%494, %c0_173] : memref<16x128xf32, #tpu.memory_space<vmem>>, vector<1x128xf32>
    %496 = tpu.concatenate %492, %495 in 0 : vector<1x128xf32>, vector<1x128xf32> -> vector<2x128xf32>
    %cst_174 = arith.constant dense<0.000000e+00> : vector<2x128xf32>
    %497 = tpu.matmul %481, %363, %cst_174 {dimension_numbers = #tpu.dot_dimension_numbers<[1], [0], [0], [1], [0, 0, 1, 1], [], []>, precision = #tpu.contract_precision<fp32>} : vector<2x32xf32>, vector<32x128xf32>, vector<2x128xf32> -> vector<2x128xf32>
    %498 = arith.addf %496, %497 : vector<2x128xf32>
    %499 = vector.extract_strided_slice %498 {offsets = [0, 0], sizes = [2, 32], strides = [1, 1]} : vector<2x128xf32> to vector<2x32xf32>
    %500 = arith.negf %499 : vector<2x32xf32>
    %501 = math.exp %500 : vector<2x32xf32>
    %cst_175 = arith.constant 1.000000e+00 : f32
    %502 = vector.broadcast %cst_175 : f32 to vector<2x32xf32>
    %503 = arith.addf %502, %501 : vector<2x32xf32>
    %504 = arith.divf %502, %503 : vector<2x32xf32>
    %505 = vector.extract_strided_slice %498 {offsets = [0, 32], sizes = [2, 32], strides = [1, 1]} : vector<2x128xf32> to vector<2x32xf32>
    %506 = arith.negf %505 : vector<2x32xf32>
    %507 = math.exp %506 : vector<2x32xf32>
    %cst_176 = arith.constant 1.000000e+00 : f32
    %508 = vector.broadcast %cst_176 : f32 to vector<2x32xf32>
    %509 = arith.addf %508, %507 : vector<2x32xf32>
    %510 = arith.divf %508, %509 : vector<2x32xf32>
    %511 = vector.extract_strided_slice %498 {offsets = [0, 64], sizes = [2, 32], strides = [1, 1]} : vector<2x128xf32> to vector<2x32xf32>
    %512 = math.tanh %511 : vector<2x32xf32>
    %513 = vector.extract_strided_slice %498 {offsets = [0, 96], sizes = [2, 32], strides = [1, 1]} : vector<2x128xf32> to vector<2x32xf32>
    %514 = arith.negf %513 : vector<2x32xf32>
    %515 = math.exp %514 : vector<2x32xf32>
    %cst_177 = arith.constant 1.000000e+00 : f32
    %516 = vector.broadcast %cst_177 : f32 to vector<2x32xf32>
    %517 = arith.addf %516, %515 : vector<2x32xf32>
    %518 = arith.divf %516, %517 : vector<2x32xf32>
    %519 = arith.mulf %510, %479 : vector<2x32xf32>
    %520 = arith.mulf %504, %512 : vector<2x32xf32>
    %521 = arith.addf %519, %520 : vector<2x32xf32>
    %522 = math.tanh %521 : vector<2x32xf32>
    %523 = arith.mulf %518, %522 : vector<2x32xf32>
    %524 = vector.extract_strided_slice %523 {offsets = [0, 0], sizes = [1, 32], strides = [1, 1]} : vector<2x32xf32> to vector<1x32xf32>
    %c0_i32_178 = arith.constant 0 : i32
    %525 = arith.addi %c0_i32_178, %c3_i32_169 : i32
    %526 = arith.index_cast %525 : i32 to index
    %c0_179 = arith.constant 0 : index
    %527 = vector.load %arg17[%526, %c0_179] : memref<16x32xf32, #tpu.memory_space<vmem>>, vector<1x32xf32>
    tpu.vector_store %arg17[%526, %c0_179], %524 {strides = array<i32>} : memref<16x32xf32, #tpu.memory_space<vmem>>, vector<1x32xf32>,
    %528 = vector.extract_strided_slice %523 {offsets = [1, 0], sizes = [1, 32], strides = [1, 1]} : vector<2x32xf32> to vector<1x32xf32>
    %c8_i32_180 = arith.constant 8 : i32
    %529 = arith.addi %c8_i32_180, %c3_i32_169 : i32
    %530 = arith.index_cast %529 : i32 to index
    %c0_181 = arith.constant 0 : index
    %531 = vector.load %arg17[%530, %c0_181] : memref<16x32xf32, #tpu.memory_space<vmem>>, vector<1x32xf32>
    tpu.vector_store %arg17[%530, %c0_181], %528 {strides = array<i32>} : memref<16x32xf32, #tpu.memory_space<vmem>>, vector<1x32xf32>,
    %c4_i32_182 = arith.constant 4 : i32
    %c0_i32_183 = arith.constant 0 : i32
    %532 = arith.addi %c0_i32_183, %c4_i32_182 : i32
    %533 = arith.index_cast %532 : i32 to index
    %c0_184 = arith.constant 0 : index
    %534 = vector.load %arg16[%533, %c0_184] : memref<16x128xf32, #tpu.memory_space<vmem>>, vector<1x128xf32>
    %c8_i32_185 = arith.constant 8 : i32
    %535 = arith.addi %c8_i32_185, %c4_i32_182 : i32
    %536 = arith.index_cast %535 : i32 to index
    %c0_186 = arith.constant 0 : index
    %537 = vector.load %arg16[%536, %c0_186] : memref<16x128xf32, #tpu.memory_space<vmem>>, vector<1x128xf32>
    %538 = tpu.concatenate %534, %537 in 0 : vector<1x128xf32>, vector<1x128xf32> -> vector<2x128xf32>
    %cst_187 = arith.constant dense<0.000000e+00> : vector<2x128xf32>
    %539 = tpu.matmul %523, %363, %cst_187 {dimension_numbers = #tpu.dot_dimension_numbers<[1], [0], [0], [1], [0, 0, 1, 1], [], []>, precision = #tpu.contract_precision<fp32>} : vector<2x32xf32>, vector<32x128xf32>, vector<2x128xf32> -> vector<2x128xf32>
    %540 = arith.addf %538, %539 : vector<2x128xf32>
    %541 = vector.extract_strided_slice %540 {offsets = [0, 0], sizes = [2, 32], strides = [1, 1]} : vector<2x128xf32> to vector<2x32xf32>
    %542 = arith.negf %541 : vector<2x32xf32>
    %543 = math.exp %542 : vector<2x32xf32>
    %cst_188 = arith.constant 1.000000e+00 : f32
    %544 = vector.broadcast %cst_188 : f32 to vector<2x32xf32>
    %545 = arith.addf %544, %543 : vector<2x32xf32>
    %546 = arith.divf %544, %545 : vector<2x32xf32>
    %547 = vector.extract_strided_slice %540 {offsets = [0, 32], sizes = [2, 32], strides = [1, 1]} : vector<2x128xf32> to vector<2x32xf32>
    %548 = arith.negf %547 : vector<2x32xf32>
    %549 = math.exp %548 : vector<2x32xf32>
    %cst_189 = arith.constant 1.000000e+00 : f32
    %550 = vector.broadcast %cst_189 : f32 to vector<2x32xf32>
    %551 = arith.addf %550, %549 : vector<2x32xf32>
    %552 = arith.divf %550, %551 : vector<2x32xf32>
    %553 = vector.extract_strided_slice %540 {offsets = [0, 64], sizes = [2, 32], strides = [1, 1]} : vector<2x128xf32> to vector<2x32xf32>
    %554 = math.tanh %553 : vector<2x32xf32>
    %555 = vector.extract_strided_slice %540 {offsets = [0, 96], sizes = [2, 32], strides = [1, 1]} : vector<2x128xf32> to vector<2x32xf32>
    %556 = arith.negf %555 : vector<2x32xf32>
    %557 = math.exp %556 : vector<2x32xf32>
    %cst_190 = arith.constant 1.000000e+00 : f32
    %558 = vector.broadcast %cst_190 : f32 to vector<2x32xf32>
    %559 = arith.addf %558, %557 : vector<2x32xf32>
    %560 = arith.divf %558, %559 : vector<2x32xf32>
    %561 = arith.mulf %552, %521 : vector<2x32xf32>
    %562 = arith.mulf %546, %554 : vector<2x32xf32>
    %563 = arith.addf %561, %562 : vector<2x32xf32>
    %564 = math.tanh %563 : vector<2x32xf32>
    %565 = arith.mulf %560, %564 : vector<2x32xf32>
    %566 = vector.extract_strided_slice %565 {offsets = [0, 0], sizes = [1, 32], strides = [1, 1]} : vector<2x32xf32> to vector<1x32xf32>
    %c0_i32_191 = arith.constant 0 : i32
    %567 = arith.addi %c0_i32_191, %c4_i32_182 : i32
    %568 = arith.index_cast %567 : i32 to index
    %c0_192 = arith.constant 0 : index
    %569 = vector.load %arg17[%568, %c0_192] : memref<16x32xf32, #tpu.memory_space<vmem>>, vector<1x32xf32>
    tpu.vector_store %arg17[%568, %c0_192], %566 {strides = array<i32>} : memref<16x32xf32, #tpu.memory_space<vmem>>, vector<1x32xf32>,
    %570 = vector.extract_strided_slice %565 {offsets = [1, 0], sizes = [1, 32], strides = [1, 1]} : vector<2x32xf32> to vector<1x32xf32>
    %c8_i32_193 = arith.constant 8 : i32
    %571 = arith.addi %c8_i32_193, %c4_i32_182 : i32
    %572 = arith.index_cast %571 : i32 to index
    %c0_194 = arith.constant 0 : index
    %573 = vector.load %arg17[%572, %c0_194] : memref<16x32xf32, #tpu.memory_space<vmem>>, vector<1x32xf32>
    tpu.vector_store %arg17[%572, %c0_194], %570 {strides = array<i32>} : memref<16x32xf32, #tpu.memory_space<vmem>>, vector<1x32xf32>,
    %c5_i32_195 = arith.constant 5 : i32
    %c0_i32_196 = arith.constant 0 : i32
    %574 = arith.addi %c0_i32_196, %c5_i32_195 : i32
    %575 = arith.index_cast %574 : i32 to index
    %c0_197 = arith.constant 0 : index
    %576 = vector.load %arg16[%575, %c0_197] : memref<16x128xf32, #tpu.memory_space<vmem>>, vector<1x128xf32>
    %c8_i32_198 = arith.constant 8 : i32
    %577 = arith.addi %c8_i32_198, %c5_i32_195 : i32
    %578 = arith.index_cast %577 : i32 to index
    %c0_199 = arith.constant 0 : index
    %579 = vector.load %arg16[%578, %c0_199] : memref<16x128xf32, #tpu.memory_space<vmem>>, vector<1x128xf32>
    %580 = tpu.concatenate %576, %579 in 0 : vector<1x128xf32>, vector<1x128xf32> -> vector<2x128xf32>
    %cst_200 = arith.constant dense<0.000000e+00> : vector<2x128xf32>
    %581 = tpu.matmul %565, %363, %cst_200 {dimension_numbers = #tpu.dot_dimension_numbers<[1], [0], [0], [1], [0, 0, 1, 1], [], []>, precision = #tpu.contract_precision<fp32>} : vector<2x32xf32>, vector<32x128xf32>, vector<2x128xf32> -> vector<2x128xf32>
    %582 = arith.addf %580, %581 : vector<2x128xf32>
    %583 = vector.extract_strided_slice %582 {offsets = [0, 0], sizes = [2, 32], strides = [1, 1]} : vector<2x128xf32> to vector<2x32xf32>
    %584 = arith.negf %583 : vector<2x32xf32>
    %585 = math.exp %584 : vector<2x32xf32>
    %cst_201 = arith.constant 1.000000e+00 : f32
    %586 = vector.broadcast %cst_201 : f32 to vector<2x32xf32>
    %587 = arith.addf %586, %585 : vector<2x32xf32>
    %588 = arith.divf %586, %587 : vector<2x32xf32>
    %589 = vector.extract_strided_slice %582 {offsets = [0, 32], sizes = [2, 32], strides = [1, 1]} : vector<2x128xf32> to vector<2x32xf32>
    %590 = arith.negf %589 : vector<2x32xf32>
    %591 = math.exp %590 : vector<2x32xf32>
    %cst_202 = arith.constant 1.000000e+00 : f32
    %592 = vector.broadcast %cst_202 : f32 to vector<2x32xf32>
    %593 = arith.addf %592, %591 : vector<2x32xf32>
    %594 = arith.divf %592, %593 : vector<2x32xf32>
    %595 = vector.extract_strided_slice %582 {offsets = [0, 64], sizes = [2, 32], strides = [1, 1]} : vector<2x128xf32> to vector<2x32xf32>
    %596 = math.tanh %595 : vector<2x32xf32>
    %597 = vector.extract_strided_slice %582 {offsets = [0, 96], sizes = [2, 32], strides = [1, 1]} : vector<2x128xf32> to vector<2x32xf32>
    %598 = arith.negf %597 : vector<2x32xf32>
    %599 = math.exp %598 : vector<2x32xf32>
    %cst_203 = arith.constant 1.000000e+00 : f32
    %600 = vector.broadcast %cst_203 : f32 to vector<2x32xf32>
    %601 = arith.addf %600, %599 : vector<2x32xf32>
    %602 = arith.divf %600, %601 : vector<2x32xf32>
    %603 = arith.mulf %594, %563 : vector<2x32xf32>
    %604 = arith.mulf %588, %596 : vector<2x32xf32>
    %605 = arith.addf %603, %604 : vector<2x32xf32>
    %606 = math.tanh %605 : vector<2x32xf32>
    %607 = arith.mulf %602, %606 : vector<2x32xf32>
    %608 = vector.extract_strided_slice %607 {offsets = [0, 0], sizes = [1, 32], strides = [1, 1]} : vector<2x32xf32> to vector<1x32xf32>
    %c0_i32_204 = arith.constant 0 : i32
    %609 = arith.addi %c0_i32_204, %c5_i32_195 : i32
    %610 = arith.index_cast %609 : i32 to index
    %c0_205 = arith.constant 0 : index
    %611 = vector.load %arg17[%610, %c0_205] : memref<16x32xf32, #tpu.memory_space<vmem>>, vector<1x32xf32>
    tpu.vector_store %arg17[%610, %c0_205], %608 {strides = array<i32>} : memref<16x32xf32, #tpu.memory_space<vmem>>, vector<1x32xf32>,
    %612 = vector.extract_strided_slice %607 {offsets = [1, 0], sizes = [1, 32], strides = [1, 1]} : vector<2x32xf32> to vector<1x32xf32>
    %c8_i32_206 = arith.constant 8 : i32
    %613 = arith.addi %c8_i32_206, %c5_i32_195 : i32
    %614 = arith.index_cast %613 : i32 to index
    %c0_207 = arith.constant 0 : index
    %615 = vector.load %arg17[%614, %c0_207] : memref<16x32xf32, #tpu.memory_space<vmem>>, vector<1x32xf32>
    tpu.vector_store %arg17[%614, %c0_207], %612 {strides = array<i32>} : memref<16x32xf32, #tpu.memory_space<vmem>>, vector<1x32xf32>,
    %c6_i32_208 = arith.constant 6 : i32
    %c0_i32_209 = arith.constant 0 : i32
    %616 = arith.addi %c0_i32_209, %c6_i32_208 : i32
    %617 = arith.index_cast %616 : i32 to index
    %c0_210 = arith.constant 0 : index
    %618 = vector.load %arg16[%617, %c0_210] : memref<16x128xf32, #tpu.memory_space<vmem>>, vector<1x128xf32>
    %c8_i32_211 = arith.constant 8 : i32
    %619 = arith.addi %c8_i32_211, %c6_i32_208 : i32
    %620 = arith.index_cast %619 : i32 to index
    %c0_212 = arith.constant 0 : index
    %621 = vector.load %arg16[%620, %c0_212] : memref<16x128xf32, #tpu.memory_space<vmem>>, vector<1x128xf32>
    %622 = tpu.concatenate %618, %621 in 0 : vector<1x128xf32>, vector<1x128xf32> -> vector<2x128xf32>
    %cst_213 = arith.constant dense<0.000000e+00> : vector<2x128xf32>
    %623 = tpu.matmul %607, %363, %cst_213 {dimension_numbers = #tpu.dot_dimension_numbers<[1], [0], [0], [1], [0, 0, 1, 1], [], []>, precision = #tpu.contract_precision<fp32>} : vector<2x32xf32>, vector<32x128xf32>, vector<2x128xf32> -> vector<2x128xf32>
    %624 = arith.addf %622, %623 : vector<2x128xf32>
    %625 = vector.extract_strided_slice %624 {offsets = [0, 0], sizes = [2, 32], strides = [1, 1]} : vector<2x128xf32> to vector<2x32xf32>
    %626 = arith.negf %625 : vector<2x32xf32>
    %627 = math.exp %626 : vector<2x32xf32>
    %cst_214 = arith.constant 1.000000e+00 : f32
    %628 = vector.broadcast %cst_214 : f32 to vector<2x32xf32>
    %629 = arith.addf %628, %627 : vector<2x32xf32>
    %630 = arith.divf %628, %629 : vector<2x32xf32>
    %631 = vector.extract_strided_slice %624 {offsets = [0, 32], sizes = [2, 32], strides = [1, 1]} : vector<2x128xf32> to vector<2x32xf32>
    %632 = arith.negf %631 : vector<2x32xf32>
    %633 = math.exp %632 : vector<2x32xf32>
    %cst_215 = arith.constant 1.000000e+00 : f32
    %634 = vector.broadcast %cst_215 : f32 to vector<2x32xf32>
    %635 = arith.addf %634, %633 : vector<2x32xf32>
    %636 = arith.divf %634, %635 : vector<2x32xf32>
    %637 = vector.extract_strided_slice %624 {offsets = [0, 64], sizes = [2, 32], strides = [1, 1]} : vector<2x128xf32> to vector<2x32xf32>
    %638 = math.tanh %637 : vector<2x32xf32>
    %639 = vector.extract_strided_slice %624 {offsets = [0, 96], sizes = [2, 32], strides = [1, 1]} : vector<2x128xf32> to vector<2x32xf32>
    %640 = arith.negf %639 : vector<2x32xf32>
    %641 = math.exp %640 : vector<2x32xf32>
    %cst_216 = arith.constant 1.000000e+00 : f32
    %642 = vector.broadcast %cst_216 : f32 to vector<2x32xf32>
    %643 = arith.addf %642, %641 : vector<2x32xf32>
    %644 = arith.divf %642, %643 : vector<2x32xf32>
    %645 = arith.mulf %636, %605 : vector<2x32xf32>
    %646 = arith.mulf %630, %638 : vector<2x32xf32>
    %647 = arith.addf %645, %646 : vector<2x32xf32>
    %648 = math.tanh %647 : vector<2x32xf32>
    %649 = arith.mulf %644, %648 : vector<2x32xf32>
    %650 = vector.extract_strided_slice %649 {offsets = [0, 0], sizes = [1, 32], strides = [1, 1]} : vector<2x32xf32> to vector<1x32xf32>
    %c0_i32_217 = arith.constant 0 : i32
    %651 = arith.addi %c0_i32_217, %c6_i32_208 : i32
    %652 = arith.index_cast %651 : i32 to index
    %c0_218 = arith.constant 0 : index
    %653 = vector.load %arg17[%652, %c0_218] : memref<16x32xf32, #tpu.memory_space<vmem>>, vector<1x32xf32>
    tpu.vector_store %arg17[%652, %c0_218], %650 {strides = array<i32>} : memref<16x32xf32, #tpu.memory_space<vmem>>, vector<1x32xf32>,
    %654 = vector.extract_strided_slice %649 {offsets = [1, 0], sizes = [1, 32], strides = [1, 1]} : vector<2x32xf32> to vector<1x32xf32>
    %c8_i32_219 = arith.constant 8 : i32
    %655 = arith.addi %c8_i32_219, %c6_i32_208 : i32
    %656 = arith.index_cast %655 : i32 to index
    %c0_220 = arith.constant 0 : index
    %657 = vector.load %arg17[%656, %c0_220] : memref<16x32xf32, #tpu.memory_space<vmem>>, vector<1x32xf32>
    tpu.vector_store %arg17[%656, %c0_220], %654 {strides = array<i32>} : memref<16x32xf32, #tpu.memory_space<vmem>>, vector<1x32xf32>,
    %c7_i32_221 = arith.constant 7 : i32
    %c0_i32_222 = arith.constant 0 : i32
    %658 = arith.addi %c0_i32_222, %c7_i32_221 : i32
    %659 = arith.index_cast %658 : i32 to index
    %c0_223 = arith.constant 0 : index
    %660 = vector.load %arg16[%659, %c0_223] : memref<16x128xf32, #tpu.memory_space<vmem>>, vector<1x128xf32>
    %c8_i32_224 = arith.constant 8 : i32
    %661 = arith.addi %c8_i32_224, %c7_i32_221 : i32
    %662 = arith.index_cast %661 : i32 to index
    %c0_225 = arith.constant 0 : index
    %663 = vector.load %arg16[%662, %c0_225] : memref<16x128xf32, #tpu.memory_space<vmem>>, vector<1x128xf32>
    %664 = tpu.concatenate %660, %663 in 0 : vector<1x128xf32>, vector<1x128xf32> -> vector<2x128xf32>
    %cst_226 = arith.constant dense<0.000000e+00> : vector<2x128xf32>
    %665 = tpu.matmul %649, %363, %cst_226 {dimension_numbers = #tpu.dot_dimension_numbers<[1], [0], [0], [1], [0, 0, 1, 1], [], []>, precision = #tpu.contract_precision<fp32>} : vector<2x32xf32>, vector<32x128xf32>, vector<2x128xf32> -> vector<2x128xf32>
    %666 = arith.addf %664, %665 : vector<2x128xf32>
    %667 = vector.extract_strided_slice %666 {offsets = [0, 0], sizes = [2, 32], strides = [1, 1]} : vector<2x128xf32> to vector<2x32xf32>
    %668 = arith.negf %667 : vector<2x32xf32>
    %669 = math.exp %668 : vector<2x32xf32>
    %cst_227 = arith.constant 1.000000e+00 : f32
    %670 = vector.broadcast %cst_227 : f32 to vector<2x32xf32>
    %671 = arith.addf %670, %669 : vector<2x32xf32>
    %672 = arith.divf %670, %671 : vector<2x32xf32>
    %673 = vector.extract_strided_slice %666 {offsets = [0, 32], sizes = [2, 32], strides = [1, 1]} : vector<2x128xf32> to vector<2x32xf32>
    %674 = arith.negf %673 : vector<2x32xf32>
    %675 = math.exp %674 : vector<2x32xf32>
    %cst_228 = arith.constant 1.000000e+00 : f32
    %676 = vector.broadcast %cst_228 : f32 to vector<2x32xf32>
    %677 = arith.addf %676, %675 : vector<2x32xf32>
    %678 = arith.divf %676, %677 : vector<2x32xf32>
    %679 = vector.extract_strided_slice %666 {offsets = [0, 64], sizes = [2, 32], strides = [1, 1]} : vector<2x128xf32> to vector<2x32xf32>
    %680 = math.tanh %679 : vector<2x32xf32>
    %681 = vector.extract_strided_slice %666 {offsets = [0, 96], sizes = [2, 32], strides = [1, 1]} : vector<2x128xf32> to vector<2x32xf32>
    %682 = arith.negf %681 : vector<2x32xf32>
    %683 = math.exp %682 : vector<2x32xf32>
    %cst_229 = arith.constant 1.000000e+00 : f32
    %684 = vector.broadcast %cst_229 : f32 to vector<2x32xf32>
    %685 = arith.addf %684, %683 : vector<2x32xf32>
    %686 = arith.divf %684, %685 : vector<2x32xf32>
    %687 = arith.mulf %678, %647 : vector<2x32xf32>
    %688 = arith.mulf %672, %680 : vector<2x32xf32>
    %689 = arith.addf %687, %688 : vector<2x32xf32>
    %690 = math.tanh %689 : vector<2x32xf32>
    %691 = arith.mulf %686, %690 : vector<2x32xf32>
    %692 = vector.extract_strided_slice %691 {offsets = [0, 0], sizes = [1, 32], strides = [1, 1]} : vector<2x32xf32> to vector<1x32xf32>
    %c0_i32_230 = arith.constant 0 : i32
    %693 = arith.addi %c0_i32_230, %c7_i32_221 : i32
    %694 = arith.index_cast %693 : i32 to index
    %c0_231 = arith.constant 0 : index
    %695 = vector.load %arg17[%694, %c0_231] : memref<16x32xf32, #tpu.memory_space<vmem>>, vector<1x32xf32>
    tpu.vector_store %arg17[%694, %c0_231], %692 {strides = array<i32>} : memref<16x32xf32, #tpu.memory_space<vmem>>, vector<1x32xf32>,
    %696 = vector.extract_strided_slice %691 {offsets = [1, 0], sizes = [1, 32], strides = [1, 1]} : vector<2x32xf32> to vector<1x32xf32>
    %c8_i32_232 = arith.constant 8 : i32
    %697 = arith.addi %c8_i32_232, %c7_i32_221 : i32
    %698 = arith.index_cast %697 : i32 to index
    %c0_233 = arith.constant 0 : index
    %699 = vector.load %arg17[%698, %c0_233] : memref<16x32xf32, #tpu.memory_space<vmem>>, vector<1x32xf32>
    tpu.vector_store %arg17[%698, %c0_233], %696 {strides = array<i32>} : memref<16x32xf32, #tpu.memory_space<vmem>>, vector<1x32xf32>,
    %c8_i32_234 = arith.constant 8 : i32
    %c0_235 = arith.constant 0 : index
    %c0_236 = arith.constant 0 : index
    %700 = vector.load %arg17[%c0_235, %c0_236] : memref<16x32xf32, #tpu.memory_space<vmem>>, vector<16x32xf32>
    %c0_237 = arith.constant 0 : index
    %c0_238 = arith.constant 0 : index
    %701 = vector.load %arg10[%c0_237, %c0_238] : memref<32x1xf32, #tpu.memory_space<vmem>>, vector<32x1xf32>
    %cst_239 = arith.constant dense<0.000000e+00> : vector<16x1xf32>
    %702 = tpu.matmul %700, %701, %cst_239 {dimension_numbers = #tpu.dot_dimension_numbers<[1], [0], [0], [1], [0, 0, 1, 1], [], []>, precision = #tpu.contract_precision<fp32>} : vector<16x32xf32>, vector<32x1xf32>, vector<16x1xf32> -> vector<16x1xf32>
    %c0_240 = arith.constant 0 : index
    %c0_241 = arith.constant 0 : index
    %703 = vector.load %arg11[%c0_240, %c0_241] : memref<1x1xf32, #tpu.memory_space<vmem>>, vector<1x1xf32>
    %704 = vector.broadcast %703 : vector<1x1xf32> to vector<16x1xf32>
    %705 = arith.addf %702, %704 : vector<16x1xf32>
    %706 = vector.shape_cast %705 : vector<16x1xf32> to vector<2x8x1xf32>
    %c0_242 = arith.constant 0 : index
    %c0_243 = arith.constant 0 : index
    %c0_244 = arith.constant 0 : index
    %707 = vector.load %arg12[%c0_242, %c0_243, %c0_244] : memref<2x8x1xf32, #tpu.memory_space<vmem>>, vector<2x8x1xf32>
    tpu.vector_store %arg12[%c0_242, %c0_243, %c0_244], %706 {strides = array<i32>} : memref<2x8x1xf32, #tpu.memory_space<vmem>>, vector<2x8x1xf32>,
    return
  }
}

</mosaic_0001>

<llo_original>
// kernel: google_lstm_model.1
$region0: #{google_lstm_model.1}
  #allocation0 [shape = 'u32[]', space=smem, size = 0x4, offset = 0x4, fixed_abs, tag = 'smem constant byte address 0x4 - core index']
  #allocation1 [shape = 'u32[144,128]{1,0:T(1,128)}', space=vmem, size = 0x12000, scoped, tag = 'internal scratch']
  #allocation2 [shape = 'f32[16,128]{1,0:T(8,128)}', space=vmem, size = 0x2000, scoped, tag = 'scratch operand']
  #allocation3 [shape = 'f32[16,32]{1,0:T(8,128)}', space=vmem, size = 0x2000, scoped, tag = 'scratch operand']
  #allocation4 [shape = 'f32[16,128]{1,0:T(8,128)}', space=vmem, size = 0x2000, scoped, tag = 'scratch operand']
  #allocation5 [shape = 'f32[16,32]{1,0:T(8,128)}', space=vmem, size = 0x2000, scoped, tag = 'scratch operand']
  #allocation6 [shape = 'f32[1,1]{1,0:T(1,128)S(1)}', space=vmem, size = 0x200, scoped, tag = 'scoped memory for google_lstm_model.1']
  #allocation7 [shape = 'f32[1,1]{1,0:T(1,128)S(1)}', space=vmem, size = 0x200, scoped, tag = 'scoped memory for google_lstm_model.1']
  %s0 = inlined_call_operand.vmem [shape: f32[2,8,8], index: 0, kind: input, shape index: {}]
  %s1 = inlined_call_operand.vmem [shape: f32[2,8,4], index: 1, kind: input, shape index: {}]
  %s2 = inlined_call_operand.vmem [shape: f32[8,128], index: 2, kind: input, shape index: {}]
  %s3 = inlined_call_operand.vmem [shape: f32[32,128], index: 3, kind: input, shape index: {}]
  %s4 = inlined_call_operand.vmem [shape: f32[1,128], index: 4, kind: input, shape index: {}]
  %s5 = inlined_call_operand.vmem [shape: f32[32,1], index: 5, kind: input, shape index: {}]
  %s6 = inlined_call_operand.<no memory space> [shape: f32[1,1], index: 6, kind: input, shape index: {}]
  %s7 = inlined_call_operand.vmem [shape: f32[4,128], index: 7, kind: input, shape index: {}]
  %s8 = inlined_call_operand.vmem [shape: f32[32,128], index: 8, kind: input, shape index: {}]
  %s9 = inlined_call_operand.vmem [shape: f32[1,128], index: 9, kind: input, shape index: {}]
  %s10 = inlined_call_operand.vmem [shape: f32[32,1], index: 10, kind: input, shape index: {}]
  %s11 = inlined_call_operand.<no memory space> [shape: f32[1,1], index: 11, kind: input, shape index: {}]
  %s12 = inlined_call_operand.vmem [shape: f32[2,8,1], index: 12, kind: output, shape index: {0}]
  %s13 = inlined_call_operand.vmem [shape: f32[2,8,1], index: 13, kind: output, shape index: {1}]
  %14 = xla_tuple %s12, %s13
  %s15 = sld [smem:[#allocation0]]
  $region66: #{google_lstm_model.1} parent=0
    _
  %s17 = ssub.s32 1, %s15
  %s18 = scalar_select 0, %s17, %s15
  %v19 = vstv %s6
  %20 = vst [vmem:[#allocation6] sm:$0x1] %v19
  %v21 = vstv %s11
  %22 = vst [vmem:[#allocation7] sm:$0x1] %v21
  // Predicated region
  $region2: #{google_lstm_model.1} parent=0 // pred_check
    _
  $region3: #{google_lstm_model.1} parent=0 // pred_check_branch
    %24 = sbr.rel (0) target = $region5
  $region4: #{google_lstm_model.1} parent=0 // pred_region
    _
  $region5: #{google_lstm_model.1} parent=0 // pred_fallthru
    _
  // Predicated region
  $region6: #{google_lstm_model.1} parent=0 // pred_check
    _
  $region7: #{google_lstm_model.1} parent=0 // pred_check_branch
    %26 = sbr.rel (0) target = $region9
  $region8: #{google_lstm_model.1} parent=0 // pred_region
    _
  $region9: #{google_lstm_model.1} parent=0 // pred_fallthru
    _
  // Predicated region
  $region10: #{google_lstm_model.1} parent=0 // pred_check
    _
  $region11: #{google_lstm_model.1} parent=0 // pred_check_branch
    %28 = sbr.rel (0) target = $region13
  $region12: #{google_lstm_model.1} parent=0 // pred_region
    _
  $region13: #{google_lstm_model.1} parent=0 // pred_fallthru
    _
  // Predicated region
  $region14: #{google_lstm_model.1} parent=0 // pred_check
    _
  $region15: #{google_lstm_model.1} parent=0 // pred_check_branch
    %30 = sbr.rel (0) target = $region17
  $region16: #{google_lstm_model.1} parent=0 // pred_region
    _
  $region17: #{google_lstm_model.1} parent=0 // pred_fallthru
    _
  // Predicated region
  $region18: #{google_lstm_model.1} parent=0 // pred_check
    _
  $region19: #{google_lstm_model.1} parent=0 // pred_check_branch
    %32 = sbr.rel (0) target = $region21
  $region20: #{google_lstm_model.1} parent=0 // pred_region
    _
  $region21: #{google_lstm_model.1} parent=0 // pred_fallthru
    _
  // Predicated region
  $region22: #{google_lstm_model.1} parent=0 // pred_check
    _
  $region23: #{google_lstm_model.1} parent=0 // pred_check_branch
    %34 = sbr.rel (0) target = $region25
  $region24: #{google_lstm_model.1} parent=0 // pred_region
    _
  $region25: #{google_lstm_model.1} parent=0 // pred_fallthru
    _
  // Predicated region
  $region26: #{google_lstm_model.1} parent=0 // pred_check
    _
  $region27: #{google_lstm_model.1} parent=0 // pred_check_branch
    %36 = sbr.rel (0) target = $region29
  $region28: #{google_lstm_model.1} parent=0 // pred_region
    _
  $region29: #{google_lstm_model.1} parent=0 // pred_fallthru
    _
  // Predicated region
  $region30: #{google_lstm_model.1} parent=0 // pred_check
    _
  $region31: #{google_lstm_model.1} parent=0 // pred_check_branch
    %38 = sbr.rel (0) target = $region33
  $region32: #{google_lstm_model.1} parent=0 // pred_region
    _
  $region33: #{google_lstm_model.1} parent=0 // pred_fallthru
    _
  // Predicated region
  $region34: #{google_lstm_model.1} parent=0 // pred_check
    _
  $region35: #{google_lstm_model.1} parent=0 // pred_check_branch
    %40 = sbr.rel (0) target = $region37
  $region36: #{google_lstm_model.1} parent=0 // pred_region
    _
  $region37: #{google_lstm_model.1} parent=0 // pred_fallthru
    _
  // Predicated region
  $region38: #{google_lstm_model.1} parent=0 // pred_check
    _
  $region39: #{google_lstm_model.1} parent=0 // pred_check_branch
    %42 = sbr.rel (0) target = $region41
  $region40: #{google_lstm_model.1} parent=0 // pred_region
    _
  $region41: #{google_lstm_model.1} parent=0 // pred_fallthru
    _
  // Predicated region
  $region42: #{google_lstm_model.1} parent=0 // pred_check
    _
  $region43: #{google_lstm_model.1} parent=0 // pred_check_branch
    %44 = sbr.rel (0) target = $region45
  $region44: #{google_lstm_model.1} parent=0 // pred_region
    _
  $region45: #{google_lstm_model.1} parent=0 // pred_fallthru
    _
  // Predicated region
  $region46: #{google_lstm_model.1} parent=0 // pred_check
    _
  $region47: #{google_lstm_model.1} parent=0 // pred_check_branch
    %46 = sbr.rel (0) target = $region49
  $region48: #{google_lstm_model.1} parent=0 // pred_region
    _
  $region49: #{google_lstm_model.1} parent=0 // pred_fallthru
    _
  %v47 = vld [vmem:[%s0] sm:$0xff]
  %v48 = vld [vmem:[%s0 + $0x8] sm:$0xff]
  %v49 = vld [vmem:[%s2] sm:$0xff]
  %v50 = vld [vmem:[%s4] sm:$0x1]
  %v52 = vlaneseq
  %v53 = vshrl.u32 %v52, 7
  %v54 = vsub.s32 0, %v53
  %v55 = vrot.slane %v50, %v54
  %vm57 = vcmask 64512
  %v59 = vsel %vm57, %v47, 0
  %v62 = vsel %vm57, %v48, 0
  %64 = vmatprep.subr.mxu0 0.0
  %v65 = vand.u32 %v49, 4294901760
  %66 = vmatpush1.msra.mxu0 %v65
  %67 = vmatprep.subr.mxu0 0.0
  %68 = vmatpush1.msra.mxu0 0.0
  %69 = vmatprep.subr.mxu0 0.0
  %70 = vmatpush1.msra.mxu0 0.0
  %71 = vmatprep.subr.mxu0 0.0
  %72 = vmatpush1.msra.mxu0 0.0
  %73 = vmatprep.subr.mxu0 0.0
  %74 = vmatpush1.msra.mxu0 0.0
  %75 = vmatprep.subr.mxu0 0.0
  %76 = vmatpush1.msra.mxu0 0.0
  %77 = vmatprep.subr.mxu0 0.0
  %78 = vmatpush1.msra.mxu0 0.0
  %79 = vmatprep.subr.mxu0 0.0
  %80 = vmatpush1.msra.mxu0 0.0
  %81 = vmatprep.subr.mxu0 0.0
  %82 = vmatpush1.msra.mxu0 0.0
  %83 = vmatprep.subr.mxu0 0.0
  %84 = vmatpush1.msra.mxu0 0.0
  %85 = vmatprep.subr.mxu0 0.0
  %86 = vmatpush1.msra.mxu0 0.0
  %87 = vmatprep.subr.mxu0 0.0
  %88 = vmatpush1.msra.mxu0 0.0
  %89 = vmatprep.subr.mxu0 0.0
  %90 = vmatpush1.msra.mxu0 0.0
  %91 = vmatprep.subr.mxu0 0.0
  %92 = vmatpush1.msra.mxu0 0.0
  %93 = vmatprep.subr.mxu0 0.0
  %94 = vmatpush1.msra.mxu0 0.0
  %95 = vmatprep.subr.mxu0 0.0
  %96 = vmatpush1.msra.mxu0 0.0
  %97 = vmatprep.subr.mxu0 0.0
  %98 = vmatpush1.msra.mxu0 0.0
  %99 = vmatprep.subr.mxu0 0.0
  %100 = vmatpush1.msra.mxu0 0.0
  %101 = vmatprep.subr.mxu0 0.0
  %102 = vmatpush1.msra.mxu0 0.0
  %103 = vmatprep.subr.mxu0 0.0
  %104 = vmatpush1.msra.mxu0 0.0
  %105 = vmatprep.subr.mxu0 0.0
  %106 = vmatpush1.msra.mxu0 0.0
  %107 = vmatprep.subr.mxu0 0.0
  %108 = vmatpush1.msra.mxu0 0.0
  %109 = vmatprep.subr.mxu0 0.0
  %110 = vmatpush1.msra.mxu0 0.0
  %111 = vmatprep.subr.mxu0 0.0
  %112 = vmatpush1.msra.mxu0 0.0
  %113 = vmatprep.subr.mxu0 0.0
  %114 = vmatpush1.msra.mxu0 0.0
  %115 = vmatprep.subr.mxu0 0.0
  %116 = vmatpush1.msra.mxu0 0.0
  %117 = vmatprep.subr.mxu0 0.0
  %118 = vmatpush1.msra.mxu0 0.0
  %119 = vmatprep.subr.mxu0 0.0
  %120 = vmatpush1.msra.mxu0 0.0
  %121 = vmatprep.subr.mxu0 0.0
  %122 = vmatpush1.msra.mxu0 0.0
  %123 = vmatprep.subr.mxu0 0.0
  %124 = vmatpush1.msra.mxu0 0.0
  %125 = vmatprep.subr.mxu0 0.0
  %126 = vmatpush1.msra.mxu0 0.0
  %127 = vmatprep.subr.mxu0 0.0
  %128 = vmatpush1.msra.mxu0 0.0
  %129 = vmatprep.mubr.f32.mxu0 0.0
  %v130 = vand.u32 %v59, 4294901760
  %v131 = vsub.f32 %v59, %v130
  %v132 = vand.u32 %v131, 4294901760
  %v133 = vsub.f32 %v131, %v132
  %v134 = vand.u32 %v133, 4294901760
  %135 = vmatmul.mubr.f32.gmra.mrb[0].mxu0 %v134
  %v136 = vpop.f32.mrb[0].mxu0
  %v137 = vadd.f32 %v55, %v136
  %v138 = vpop.f32.mrb[0].mxu0
  %139 = vmatprep.mubr.f32.mxu0 0.0
  %v140 = vand.u32 %v62, 4294901760
  %v141 = vsub.f32 %v62, %v140
  %v142 = vand.u32 %v141, 4294901760
  %v143 = vsub.f32 %v141, %v142
  %v144 = vand.u32 %v143, 4294901760
  %145 = vmatmul.mubr.f32.gmra.mrb[0].mxu0 %v144
  %v146 = vpop.f32.mrb[0].mxu0
  %v147 = vadd.f32 %v55, %v146
  %v148 = vpop.f32.mrb[0].mxu0
  %149 = vdwg.mxu0
  %150 = vmatprep.subr.mxu0 0.0
  %v151 = vand.u32 %v49, 4294901760
  %v152 = vsub.f32 %v49, %v151
  %v153 = vand.u32 %v152, 4294901760
  %v154 = vsub.f32 %v152, %v153
  %v155 = vand.u32 %v154, 4294901760
  %156 = vmatpush1.msra.mxu0 %v155
  %157 = vmatprep.subr.mxu0 0.0
  %158 = vmatpush1.msra.mxu0 0.0
  %159 = vmatprep.subr.mxu0 0.0
  %160 = vmatpush1.msra.mxu0 0.0
  %161 = vmatprep.subr.mxu0 0.0
  %162 = vmatpush1.msra.mxu0 0.0
  %163 = vmatprep.subr.mxu0 0.0
  %164 = vmatpush1.msra.mxu0 0.0
  %165 = vmatprep.subr.mxu0 0.0
  %166 = vmatpush1.msra.mxu0 0.0
  %167 = vmatprep.subr.mxu0 0.0
  %168 = vmatpush1.msra.mxu0 0.0
  %169 = vmatprep.subr.mxu0 0.0
  %170 = vmatpush1.msra.mxu0 0.0
  %171 = vmatprep.subr.mxu0 0.0
  %172 = vmatpush1.msra.mxu0 0.0
  %173 = vmatprep.subr.mxu0 0.0
  %174 = vmatpush1.msra.mxu0 0.0
  %175 = vmatprep.subr.mxu0 0.0
  %176 = vmatpush1.msra.mxu0 0.0
  %177 = vmatprep.subr.mxu0 0.0
  %178 = vmatpush1.msra.mxu0 0.0
  %179 = vmatprep.subr.mxu0 0.0
  %180 = vmatpush1.msra.mxu0 0.0
  %181 = vmatprep.subr.mxu0 0.0
  %182 = vmatpush1.msra.mxu0 0.0
  %183 = vmatprep.subr.mxu0 0.0
  %184 = vmatpush1.msra.mxu0 0.0
  %185 = vmatprep.subr.mxu0 0.0
  %186 = vmatpush1.msra.mxu0 0.0
  %187 = vmatprep.subr.mxu0 0.0
  %188 = vmatpush1.msra.mxu0 0.0
  %189 = vmatprep.subr.mxu0 0.0
  %190 = vmatpush1.msra.mxu0 0.0
  %191 = vmatprep.subr.mxu0 0.0
  %192 = vmatpush1.msra.mxu0 0.0
  %193 = vmatprep.subr.mxu0 0.0
  %194 = vmatpush1.msra.mxu0 0.0
  %195 = vmatprep.subr.mxu0 0.0
  %196 = vmatpush1.msra.mxu0 0.0
  %197 = vmatprep.subr.mxu0 0.0
  %198 = vmatpush1.msra.mxu0 0.0
  %199 = vmatprep.subr.mxu0 0.0
  %200 = vmatpush1.msra.mxu0 0.0
  %201 = vmatprep.subr.mxu0 0.0
  %202 = vmatpush1.msra.mxu0 0.0
  %203 = vmatprep.subr.mxu0 0.0
  %204 = vmatpush1.msra.mxu0 0.0
  %205 = vmatprep.subr.mxu0 0.0
  %206 = vmatpush1.msra.mxu0 0.0
  %207 = vmatprep.subr.mxu0 0.0
  %208 = vmatpush1.msra.mxu0 0.0
  %209 = vmatprep.subr.mxu0 0.0
  %210 = vmatpush1.msra.mxu0 0.0
  %211 = vmatprep.subr.mxu0 0.0
  %212 = vmatpush1.msra.mxu0 0.0
  %213 = vmatprep.subr.mxu0 0.0
  %214 = vmatpush1.msra.mxu0 0.0
  %215 = vmatprep.subr.mxu0 0.0
  %216 = vmatpush1.msra.mxu0 0.0
  %217 = vmatprep.subr.mxu0 0.0
  %218 = vmatpush1.msra.mxu0 0.0
  %219 = vmatprep.mubr.f32.mxu0 0.0
  %v220 = vand.u32 %v59, 4294901760
  %221 = vmatmul.mubr.f32.gmra.mrb[0].mxu0 %v220
  %v222 = vpop.f32.mrb[0].mxu0
  %v223 = vadd.f32 %v137, %v222
  %v224 = vpop.f32.mrb[0].mxu0
  %225 = vmatprep.mubr.f32.mxu0 0.0
  %v226 = vand.u32 %v62, 4294901760
  %227 = vmatmul.mubr.f32.gmra.mrb[0].mxu0 %v226
  %v228 = vpop.f32.mrb[0].mxu0
  %v229 = vadd.f32 %v147, %v228
  %v230 = vpop.f32.mrb[0].mxu0
  %231 = vdwg.mxu0
  %232 = vmatprep.subr.mxu0 0.0
  %v233 = vand.u32 %v49, 4294901760
  %v234 = vsub.f32 %v49, %v233
  %235 = vmatpush1.msra.mxu0 %v234
  %236 = vmatprep.subr.mxu0 0.0
  %237 = vmatpush1.msra.mxu0 0.0
  %238 = vmatprep.subr.mxu0 0.0
  %239 = vmatpush1.msra.mxu0 0.0
  %240 = vmatprep.subr.mxu0 0.0
  %241 = vmatpush1.msra.mxu0 0.0
  %242 = vmatprep.subr.mxu0 0.0
  %243 = vmatpush1.msra.mxu0 0.0
  %244 = vmatprep.subr.mxu0 0.0
  %245 = vmatpush1.msra.mxu0 0.0
  %246 = vmatprep.subr.mxu0 0.0
  %247 = vmatpush1.msra.mxu0 0.0
  %248 = vmatprep.subr.mxu0 0.0
  %249 = vmatpush1.msra.mxu0 0.0
  %250 = vmatprep.subr.mxu0 0.0
  %251 = vmatpush1.msra.mxu0 0.0
  %252 = vmatprep.subr.mxu0 0.0
  %253 = vmatpush1.msra.mxu0 0.0
  %254 = vmatprep.subr.mxu0 0.0
  %255 = vmatpush1.msra.mxu0 0.0
  %256 = vmatprep.subr.mxu0 0.0
  %257 = vmatpush1.msra.mxu0 0.0
  %258 = vmatprep.subr.mxu0 0.0
  %259 = vmatpush1.msra.mxu0 0.0
  %260 = vmatprep.subr.mxu0 0.0
  %261 = vmatpush1.msra.mxu0 0.0
  %262 = vmatprep.subr.mxu0 0.0
  %263 = vmatpush1.msra.mxu0 0.0
  %264 = vmatprep.subr.mxu0 0.0
  %265 = vmatpush1.msra.mxu0 0.0
  %266 = vmatprep.subr.mxu0 0.0
  %267 = vmatpush1.msra.mxu0 0.0
  %268 = vmatprep.subr.mxu0 0.0
  %269 = vmatpush1.msra.mxu0 0.0
  %270 = vmatprep.subr.mxu0 0.0
  %271 = vmatpush1.msra.mxu0 0.0
  %272 = vmatprep.subr.mxu0 0.0
  %273 = vmatpush1.msra.mxu0 0.0
  %274 = vmatprep.subr.mxu0 0.0
  %275 = vmatpush1.msra.mxu0 0.0
  %276 = vmatprep.subr.mxu0 0.0
  %277 = vmatpush1.msra.mxu0 0.0
  %278 = vmatprep.subr.mxu0 0.0
  %279 = vmatpush1.msra.mxu0 0.0
  %280 = vmatprep.subr.mxu0 0.0
  %281 = vmatpush1.msra.mxu0 0.0
  %282 = vmatprep.subr.mxu0 0.0
  %283 = vmatpush1.msra.mxu0 0.0
  %284 = vmatprep.subr.mxu0 0.0
  %285 = vmatpush1.msra.mxu0 0.0
  %286 = vmatprep.subr.mxu0 0.0
  %287 = vmatpush1.msra.mxu0 0.0
  %288 = vmatprep.subr.mxu0 0.0
  %289 = vmatpush1.msra.mxu0 0.0
  %290 = vmatprep.subr.mxu0 0.0
  %291 = vmatpush1.msra.mxu0 0.0
  %292 = vmatprep.subr.mxu0 0.0
  %293 = vmatpush1.msra.mxu0 0.0
  %294 = vmatprep.subr.mxu0 0.0
  %295 = vmatpush1.msra.mxu0 0.0
  %296 = vmatprep.subr.mxu0 0.0
  %297 = vmatpush1.msra.mxu0 0.0
  %298 = vmatprep.mubr.f32.mxu0 0.0
  %v299 = vand.u32 %v59, 4294901760
  %v300 = vsub.f32 %v59, %v299
  %301 = vmatmul.mubr.f32.gmra.mrb[0].mxu0 %v300
  %v302 = vpop.f32.mrb[0].mxu0
  %v303 = vadd.f32 %v223, %v302
  %v304 = vpop.f32.mrb[0].mxu0
  %305 = vmatprep.mubr.f32.mxu0 0.0
  %v306 = vand.u32 %v62, 4294901760
  %v307 = vsub.f32 %v62, %v306
  %308 = vmatmul.mubr.f32.gmra.mrb[0].mxu0 %v307
  %v309 = vpop.f32.mrb[0].mxu0
  %v310 = vadd.f32 %v229, %v309
  %v311 = vpop.f32.mrb[0].mxu0
  %312 = vdwg.mxu0
  %313 = vmatprep.subr.mxu0 0.0
  %v314 = vand.u32 %v49, 4294901760
  %315 = vmatpush1.msra.mxu0 %v314
  %316 = vmatprep.subr.mxu0 0.0
  %317 = vmatpush1.msra.mxu0 0.0
  %318 = vmatprep.subr.mxu0 0.0
  %319 = vmatpush1.msra.mxu0 0.0
  %320 = vmatprep.subr.mxu0 0.0
  %321 = vmatpush1.msra.mxu0 0.0
  %322 = vmatprep.subr.mxu0 0.0
  %323 = vmatpush1.msra.mxu0 0.0
  %324 = vmatprep.subr.mxu0 0.0
  %325 = vmatpush1.msra.mxu0 0.0
  %326 = vmatprep.subr.mxu0 0.0
  %327 = vmatpush1.msra.mxu0 0.0
  %328 = vmatprep.subr.mxu0 0.0
  %329 = vmatpush1.msra.mxu0 0.0
  %330 = vmatprep.subr.mxu0 0.0
  %331 = vmatpush1.msra.mxu0 0.0
  %332 = vmatprep.subr.mxu0 0.0
  %333 = vmatpush1.msra.mxu0 0.0
  %334 = vmatprep.subr.mxu0 0.0
  %335 = vmatpush1.msra.mxu0 0.0
  %336 = vmatprep.subr.mxu0 0.0
  %337 = vmatpush1.msra.mxu0 0.0
  %338 = vmatprep.subr.mxu0 0.0
  %339 = vmatpush1.msra.mxu0 0.0
  %340 = vmatprep.subr.mxu0 0.0
  %341 = vmatpush1.msra.mxu0 0.0
  %342 = vmatprep.subr.mxu0 0.0
  %343 = vmatpush1.msra.mxu0 0.0
  %344 = vmatprep.subr.mxu0 0.0
  %345 = vmatpush1.msra.mxu0 0.0
  %346 = vmatprep.subr.mxu0 0.0
  %347 = vmatpush1.msra.mxu0 0.0
  %348 = vmatprep.subr.mxu0 0.0
  %349 = vmatpush1.msra.mxu0 0.0
  %350 = vmatprep.subr.mxu0 0.0
  %351 = vmatpush1.msra.mxu0 0.0
  %352 = vmatprep.subr.mxu0 0.0
  %353 = vmatpush1.msra.mxu0 0.0
  %354 = vmatprep.subr.mxu0 0.0
  %355 = vmatpush1.msra.mxu0 0.0
  %356 = vmatprep.subr.mxu0 0.0
  %357 = vmatpush1.msra.mxu0 0.0
  %358 = vmatprep.subr.mxu0 0.0
  %359 = vmatpush1.msra.mxu0 0.0
  %360 = vmatprep.subr.mxu0 0.0
  %361 = vmatpush1.msra.mxu0 0.0
  %362 = vmatprep.subr.mxu0 0.0
  %363 = vmatpush1.msra.mxu0 0.0
  %364 = vmatprep.subr.mxu0 0.0
  %365 = vmatpush1.msra.mxu0 0.0
  %366 = vmatprep.subr.mxu0 0.0
  %367 = vmatpush1.msra.mxu0 0.0
  %368 = vmatprep.subr.mxu0 0.0
  %369 = vmatpush1.msra.mxu0 0.0
  %370 = vmatprep.subr.mxu0 0.0
  %371 = vmatpush1.msra.mxu0 0.0
  %372 = vmatprep.subr.mxu0 0.0
  %373 = vmatpush1.msra.mxu0 0.0
  %374 = vmatprep.subr.mxu0 0.0
  %375 = vmatpush1.msra.mxu0 0.0
  %376 = vmatprep.subr.mxu0 0.0
  %377 = vmatpush1.msra.mxu0 0.0
  %378 = vmatprep.mubr.f32.mxu0 0.0
  %v379 = vand.u32 %v59, 4294901760
  %v380 = vsub.f32 %v59, %v379
  %v381 = vand.u32 %v380, 4294901760
  %382 = vmatmul.mubr.f32.gmra.mrb[0].mxu0 %v381
  %v383 = vpop.f32.mrb[0].mxu0
  %v384 = vadd.f32 %v303, %v383
  %v385 = vpop.f32.mrb[0].mxu0
  %386 = vmatprep.mubr.f32.mxu0 0.0
  %v387 = vand.u32 %v62, 4294901760
  %v388 = vsub.f32 %v62, %v387
  %v389 = vand.u32 %v388, 4294901760
  %390 = vmatmul.mubr.f32.gmra.mrb[0].mxu0 %v389
  %v391 = vpop.f32.mrb[0].mxu0
  %v392 = vadd.f32 %v310, %v391
  %v393 = vpop.f32.mrb[0].mxu0
  %394 = vdwg.mxu0
  %395 = vmatprep.subr.mxu0 0.0
  %v396 = vand.u32 %v49, 4294901760
  %v397 = vsub.f32 %v49, %v396
  %v398 = vand.u32 %v397, 4294901760
  %399 = vmatpush1.msra.mxu0 %v398
  %400 = vmatprep.subr.mxu0 0.0
  %401 = vmatpush1.msra.mxu0 0.0
  %402 = vmatprep.subr.mxu0 0.0
  %403 = vmatpush1.msra.mxu0 0.0
  %404 = vmatprep.subr.mxu0 0.0
  %405 = vmatpush1.msra.mxu0 0.0
  %406 = vmatprep.subr.mxu0 0.0
  %407 = vmatpush1.msra.mxu0 0.0
  %408 = vmatprep.subr.mxu0 0.0
  %409 = vmatpush1.msra.mxu0 0.0
  %410 = vmatprep.subr.mxu0 0.0
  %411 = vmatpush1.msra.mxu0 0.0
  %412 = vmatprep.subr.mxu0 0.0
  %413 = vmatpush1.msra.mxu0 0.0
  %414 = vmatprep.subr.mxu0 0.0
  %415 = vmatpush1.msra.mxu0 0.0
  %416 = vmatprep.subr.mxu0 0.0
  %417 = vmatpush1.msra.mxu0 0.0
  %418 = vmatprep.subr.mxu0 0.0
  %419 = vmatpush1.msra.mxu0 0.0
  %420 = vmatprep.subr.mxu0 0.0
  %421 = vmatpush1.msra.mxu0 0.0
  %422 = vmatprep.subr.mxu0 0.0
  %423 = vmatpush1.msra.mxu0 0.0
  %424 = vmatprep.subr.mxu0 0.0
  %425 = vmatpush1.msra.mxu0 0.0
  %426 = vmatprep.subr.mxu0 0.0
  %427 = vmatpush1.msra.mxu0 0.0
  %428 = vmatprep.subr.mxu0 0.0
  %429 = vmatpush1.msra.mxu0 0.0
  %430 = vmatprep.subr.mxu0 0.0
  %431 = vmatpush1.msra.mxu0 0.0
  %432 = vmatprep.subr.mxu0 0.0
  %433 = vmatpush1.msra.mxu0 0.0
  %434 = vmatprep.subr.mxu0 0.0
  %435 = vmatpush1.msra.mxu0 0.0
  %436 = vmatprep.subr.mxu0 0.0
  %437 = vmatpush1.msra.mxu0 0.0
  %438 = vmatprep.subr.mxu0 0.0
  %439 = vmatpush1.msra.mxu0 0.0
  %440 = vmatprep.subr.mxu0 0.0
  %441 = vmatpush1.msra.mxu0 0.0
  %442 = vmatprep.subr.mxu0 0.0
  %443 = vmatpush1.msra.mxu0 0.0
  %444 = vmatprep.subr.mxu0 0.0
  %445 = vmatpush1.msra.mxu0 0.0
  %446 = vmatprep.subr.mxu0 0.0
  %447 = vmatpush1.msra.mxu0 0.0
  %448 = vmatprep.subr.mxu0 0.0
  %449 = vmatpush1.msra.mxu0 0.0
  %450 = vmatprep.subr.mxu0 0.0
  %451 = vmatpush1.msra.mxu0 0.0
  %452 = vmatprep.subr.mxu0 0.0
  %453 = vmatpush1.msra.mxu0 0.0
  %454 = vmatprep.subr.mxu0 0.0
  %455 = vmatpush1.msra.mxu0 0.0
  %456 = vmatprep.subr.mxu0 0.0
  %457 = vmatpush1.msra.mxu0 0.0
  %458 = vmatprep.subr.mxu0 0.0
  %459 = vmatpush1.msra.mxu0 0.0
  %460 = vmatprep.subr.mxu0 0.0
  %461 = vmatpush1.msra.mxu0 0.0
  %462 = vmatprep.mubr.f32.mxu0 0.0
  %v463 = vand.u32 %v59, 4294901760
  %464 = vmatmul.mubr.f32.gmra.mrb[0].mxu0 %v463
  %v465 = vpop.f32.mrb[0].mxu0
  %v466 = vadd.f32 %v384, %v465
  %v467 = vpop.f32.mrb[0].mxu0
  %468 = vmatprep.mubr.f32.mxu0 0.0
  %v469 = vand.u32 %v62, 4294901760
  %470 = vmatmul.mubr.f32.gmra.mrb[0].mxu0 %v469
  %v471 = vpop.f32.mrb[0].mxu0
  %v472 = vadd.f32 %v392, %v471
  %v473 = vpop.f32.mrb[0].mxu0
  %474 = vdwg.mxu0
  %475 = vmatprep.subr.mxu0 0.0
  %v476 = vand.u32 %v49, 4294901760
  %477 = vmatpush1.msra.mxu0 %v476
  %478 = vmatprep.subr.mxu0 0.0
  %479 = vmatpush1.msra.mxu0 0.0
  %480 = vmatprep.subr.mxu0 0.0
  %481 = vmatpush1.msra.mxu0 0.0
  %482 = vmatprep.subr.mxu0 0.0
  %483 = vmatpush1.msra.mxu0 0.0
  %484 = vmatprep.subr.mxu0 0.0
  %485 = vmatpush1.msra.mxu0 0.0
  %486 = vmatprep.subr.mxu0 0.0
  %487 = vmatpush1.msra.mxu0 0.0
  %488 = vmatprep.subr.mxu0 0.0
  %489 = vmatpush1.msra.mxu0 0.0
  %490 = vmatprep.subr.mxu0 0.0
  %491 = vmatpush1.msra.mxu0 0.0
  %492 = vmatprep.subr.mxu0 0.0
  %493 = vmatpush1.msra.mxu0 0.0
  %494 = vmatprep.subr.mxu0 0.0
  %495 = vmatpush1.msra.mxu0 0.0
  %496 = vmatprep.subr.mxu0 0.0
  %497 = vmatpush1.msra.mxu0 0.0
  %498 = vmatprep.subr.mxu0 0.0
  %499 = vmatpush1.msra.mxu0 0.0
  %500 = vmatprep.subr.mxu0 0.0
  %501 = vmatpush1.msra.mxu0 0.0
  %502 = vmatprep.subr.mxu0 0.0
  %503 = vmatpush1.msra.mxu0 0.0
  %504 = vmatprep.subr.mxu0 0.0
  %505 = vmatpush1.msra.mxu0 0.0
  %506 = vmatprep.subr.mxu0 0.0
  %507 = vmatpush1.msra.mxu0 0.0
  %508 = vmatprep.subr.mxu0 0.0
  %509 = vmatpush1.msra.mxu0 0.0
  %510 = vmatprep.subr.mxu0 0.0
  %511 = vmatpush1.msra.mxu0 0.0
  %512 = vmatprep.subr.mxu0 0.0
  %513 = vmatpush1.msra.mxu0 0.0
  %514 = vmatprep.subr.mxu0 0.0
  %515 = vmatpush1.msra.mxu0 0.0
  %516 = vmatprep.subr.mxu0 0.0
  %517 = vmatpush1.msra.mxu0 0.0
  %518 = vmatprep.subr.mxu0 0.0
  %519 = vmatpush1.msra.mxu0 0.0
  %520 = vmatprep.subr.mxu0 0.0
  %521 = vmatpush1.msra.mxu0 0.0
  %522 = vmatprep.subr.mxu0 0.0
  %523 = vmatpush1.msra.mxu0 0.0
  %524 = vmatprep.subr.mxu0 0.0
  %525 = vmatpush1.msra.mxu0 0.0
  %526 = vmatprep.subr.mxu0 0.0
  %527 = vmatpush1.msra.mxu0 0.0
  %528 = vmatprep.subr.mxu0 0.0
  %529 = vmatpush1.msra.mxu0 0.0
  %530 = vmatprep.subr.mxu0 0.0
  %531 = vmatpush1.msra.mxu0 0.0
  %532 = vmatprep.subr.mxu0 0.0
  %533 = vmatpush1.msra.mxu0 0.0
  %534 = vmatprep.subr.mxu0 0.0
  %535 = vmatpush1.msra.mxu0 0.0
  %536 = vmatprep.subr.mxu0 0.0
  %537 = vmatpush1.msra.mxu0 0.0
  %538 = vmatprep.subr.mxu0 0.0
  %539 = vmatpush1.msra.mxu0 0.0
  %540 = vmatprep.mubr.f32.mxu0 0.0
  %v541 = vand.u32 %v59, 4294901760
  %542 = vmatmul.mubr.f32.gmra.mrb[0].mxu0 %v541
  %v543 = vpop.f32.mrb[0].mxu0
  %v544 = vadd.f32 %v466, %v543
  %v545 = vpop.f32.mrb[0].mxu0
  %546 = vmatprep.mubr.f32.mxu0 0.0
  %v547 = vand.u32 %v62, 4294901760
  %548 = vmatmul.mubr.f32.gmra.mrb[0].mxu0 %v547
  %v549 = vpop.f32.mrb[0].mxu0
  %v550 = vadd.f32 %v472, %v549
  %v551 = vpop.f32.mrb[0].mxu0
  %552 = vdwg.mxu0
  %553 = vst [vmem:[#allocation2] sm:$0xff] %v544
  %554 = vst [vmem:[#allocation2 + $0x8] sm:$0xff] %v550
  %v555 = vld [vmem:[%s3] sm:$0xff]
  %v556 = vld [vmem:[%s3 + $0x8] sm:$0xff]
  %v557 = vld [vmem:[%s3 + $0x10] sm:$0xff]
  %v558 = vld [vmem:[%s3 + $0x18] sm:$0xff]
  %v559 = vld [vmem:[#allocation2] sm:$0x1]
  %v560 = vld [vmem:[#allocation2 + $0x8] sm:$0x1]
  %v562 = vrot.slane %v560, 7
  %vm564 = vcmask 1040384
  %v565 = vsel %vm564, %v559, %v562
  %vm566 = vcmask 261120
  %v568 = vsel %vm566, 0.0, 0
  %570 = vmatprep.subr.mxu0 0.0
  %v571 = vand.u32 %v555, 4294901760
  %572 = vmatpush1.msra.mxu0 %v571
  %573 = vmatprep.subr.mxu0 0.0
  %v574 = vand.u32 %v556, 4294901760
  %575 = vmatpush1.msra.mxu0 %v574
  %576 = vmatprep.subr.mxu0 0.0
  %v577 = vand.u32 %v557, 4294901760
  %578 = vmatpush1.msra.mxu0 %v577
  %579 = vmatprep.subr.mxu0 0.0
  %v580 = vand.u32 %v558, 4294901760
  %581 = vmatpush1.msra.mxu0 %v580
  %582 = vmatprep.subr.mxu0 0.0
  %583 = vmatpush1.msra.mxu0 0.0
  %584 = vmatprep.subr.mxu0 0.0
  %585 = vmatpush1.msra.mxu0 0.0
  %586 = vmatprep.subr.mxu0 0.0
  %587 = vmatpush1.msra.mxu0 0.0
  %588 = vmatprep.subr.mxu0 0.0
  %589 = vmatpush1.msra.mxu0 0.0
  %590 = vmatprep.subr.mxu0 0.0
  %591 = vmatpush1.msra.mxu0 0.0
  %592 = vmatprep.subr.mxu0 0.0
  %593 = vmatpush1.msra.mxu0 0.0
  %594 = vmatprep.subr.mxu0 0.0
  %595 = vmatpush1.msra.mxu0 0.0
  %596 = vmatprep.subr.mxu0 0.0
  %597 = vmatpush1.msra.mxu0 0.0
  %598 = vmatprep.subr.mxu0 0.0
  %599 = vmatpush1.msra.mxu0 0.0
  %600 = vmatprep.subr.mxu0 0.0
  %601 = vmatpush1.msra.mxu0 0.0
  %602 = vmatprep.subr.mxu0 0.0
  %603 = vmatpush1.msra.mxu0 0.0
  %604 = vmatprep.subr.mxu0 0.0
  %605 = vmatpush1.msra.mxu0 0.0
  %606 = vmatprep.subr.mxu0 0.0
  %607 = vmatpush1.msra.mxu0 0.0
  %608 = vmatprep.subr.mxu0 0.0
  %609 = vmatpush1.msra.mxu0 0.0
  %610 = vmatprep.subr.mxu0 0.0
  %611 = vmatpush1.msra.mxu0 0.0
  %612 = vmatprep.subr.mxu0 0.0
  %613 = vmatpush1.msra.mxu0 0.0
  %614 = vmatprep.subr.mxu0 0.0
  %615 = vmatpush1.msra.mxu0 0.0
  %616 = vmatprep.subr.mxu0 0.0
  %617 = vmatpush1.msra.mxu0 0.0
  %618 = vmatprep.subr.mxu0 0.0
  %619 = vmatpush1.msra.mxu0 0.0
  %620 = vmatprep.subr.mxu0 0.0
  %621 = vmatpush1.msra.mxu0 0.0
  %622 = vmatprep.subr.mxu0 0.0
  %623 = vmatpush1.msra.mxu0 0.0
  %624 = vmatprep.subr.mxu0 0.0
  %625 = vmatpush1.msra.mxu0 0.0
  %626 = vmatprep.subr.mxu0 0.0
  %627 = vmatpush1.msra.mxu0 0.0
  %628 = vmatprep.subr.mxu0 0.0
  %629 = vmatpush1.msra.mxu0 0.0
  %630 = vmatprep.subr.mxu0 0.0
  %631 = vmatpush1.msra.mxu0 0.0
  %632 = vmatprep.subr.mxu0 0.0
  %633 = vmatpush1.msra.mxu0 0.0
  %634 = vmatprep.subr.mxu0 0.0
  %635 = vmatpush1.msra.mxu0 0.0
  %636 = vmatprep.subr.mxu0 0.0
  %637 = vmatpush1.msra.mxu0 0.0
  %638 = vmatprep.mubr.f32.mxu0 0.0
  %v639 = vand.u32 %v568, 4294901760
  %v640 = vsub.f32 %v568, %v639
  %v641 = vand.u32 %v640, 4294901760
  %v642 = vsub.f32 %v640, %v641
  %v643 = vand.u32 %v642, 4294901760
  %644 = vmatmul.mubr.f32.gmra.mrb[0].mxu0 %v643
  %v645 = vpop.f32.mrb[0].mxu0
  %v646 = vadd.f32 0.0, %v645
  %v647 = vpop.f32.mrb[0].mxu0
  %648 = vdwg.mxu0
  %649 = vmatprep.subr.mxu0 0.0
  %v650 = vand.u32 %v555, 4294901760
  %v651 = vsub.f32 %v555, %v650
  %v652 = vand.u32 %v651, 4294901760
  %v653 = vsub.f32 %v651, %v652
  %v654 = vand.u32 %v653, 4294901760
  %655 = vmatpush1.msra.mxu0 %v654
  %656 = vmatprep.subr.mxu0 0.0
  %v657 = vand.u32 %v556, 4294901760
  %v658 = vsub.f32 %v556, %v657
  %v659 = vand.u32 %v658, 4294901760
  %v660 = vsub.f32 %v658, %v659
  %v661 = vand.u32 %v660, 4294901760
  %662 = vmatpush1.msra.mxu0 %v661
  %663 = vmatprep.subr.mxu0 0.0
  %v664 = vand.u32 %v557, 4294901760
  %v665 = vsub.f32 %v557, %v664
  %v666 = vand.u32 %v665, 4294901760
  %v667 = vsub.f32 %v665, %v666
  %v668 = vand.u32 %v667, 4294901760
  %669 = vmatpush1.msra.mxu0 %v668
  %670 = vmatprep.subr.mxu0 0.0
  %v671 = vand.u32 %v558, 4294901760
  %v672 = vsub.f32 %v558, %v671
  %v673 = vand.u32 %v672, 4294901760
  %v674 = vsub.f32 %v672, %v673
  %v675 = vand.u32 %v674, 4294901760
  %676 = vmatpush1.msra.mxu0 %v675
  %677 = vmatprep.subr.mxu0 0.0
  %678 = vmatpush1.msra.mxu0 0.0
  %679 = vmatprep.subr.mxu0 0.0
  %680 = vmatpush1.msra.mxu0 0.0
  %681 = vmatprep.subr.mxu0 0.0
  %682 = vmatpush1.msra.mxu0 0.0
  %683 = vmatprep.subr.mxu0 0.0
  %684 = vmatpush1.msra.mxu0 0.0
  %685 = vmatprep.subr.mxu0 0.0
  %686 = vmatpush1.msra.mxu0 0.0
  %687 = vmatprep.subr.mxu0 0.0
  %688 = vmatpush1.msra.mxu0 0.0
  %689 = vmatprep.subr.mxu0 0.0
  %690 = vmatpush1.msra.mxu0 0.0
  %691 = vmatprep.subr.mxu0 0.0
  %692 = vmatpush1.msra.mxu0 0.0
  %693 = vmatprep.subr.mxu0 0.0
  %694 = vmatpush1.msra.mxu0 0.0
  %695 = vmatprep.subr.mxu0 0.0
  %696 = vmatpush1.msra.mxu0 0.0
  %697 = vmatprep.subr.mxu0 0.0
  %698 = vmatpush1.msra.mxu0 0.0
  %699 = vmatprep.subr.mxu0 0.0
  %700 = vmatpush1.msra.mxu0 0.0
  %701 = vmatprep.subr.mxu0 0.0
  %702 = vmatpush1.msra.mxu0 0.0
  %703 = vmatprep.subr.mxu0 0.0
  %704 = vmatpush1.msra.mxu0 0.0
  %705 = vmatprep.subr.mxu0 0.0
  %706 = vmatpush1.msra.mxu0 0.0
  %707 = vmatprep.subr.mxu0 0.0
  %708 = vmatpush1.msra.mxu0 0.0
  %709 = vmatprep.subr.mxu0 0.0
  %710 = vmatpush1.msra.mxu0 0.0
  %711 = vmatprep.subr.mxu0 0.0
  %712 = vmatpush1.msra.mxu0 0.0
  %713 = vmatprep.subr.mxu0 0.0
  %714 = vmatpush1.msra.mxu0 0.0
  %715 = vmatprep.subr.mxu0 0.0
  %716 = vmatpush1.msra.mxu0 0.0
  %717 = vmatprep.subr.mxu0 0.0
  %718 = vmatpush1.msra.mxu0 0.0
  %719 = vmatprep.subr.mxu0 0.0
  %720 = vmatpush1.msra.mxu0 0.0
  %721 = vmatprep.subr.mxu0 0.0
  %722 = vmatpush1.msra.mxu0 0.0
  %723 = vmatprep.subr.mxu0 0.0
  %724 = vmatpush1.msra.mxu0 0.0
  %725 = vmatprep.subr.mxu0 0.0
  %726 = vmatpush1.msra.mxu0 0.0
  %727 = vmatprep.subr.mxu0 0.0
  %728 = vmatpush1.msra.mxu0 0.0
  %729 = vmatprep.subr.mxu0 0.0
  %730 = vmatpush1.msra.mxu0 0.0
  %731 = vmatprep.subr.mxu0 0.0
  %732 = vmatpush1.msra.mxu0 0.0
  %733 = vmatprep.mubr.f32.mxu0 0.0
  %v734 = vand.u32 %v568, 4294901760
  %735 = vmatmul.mubr.f32.gmra.mrb[0].mxu0 %v734
  %v736 = vpop.f32.mrb[0].mxu0
  %v737 = vadd.f32 %v646, %v736
  %v738 = vpop.f32.mrb[0].mxu0
  %739 = vdwg.mxu0
  %740 = vmatprep.subr.mxu0 0.0
  %v741 = vand.u32 %v555, 4294901760
  %v742 = vsub.f32 %v555, %v741
  %743 = vmatpush1.msra.mxu0 %v742
  %744 = vmatprep.subr.mxu0 0.0
  %v745 = vand.u32 %v556, 4294901760
  %v746 = vsub.f32 %v556, %v745
  %747 = vmatpush1.msra.mxu0 %v746
  %748 = vmatprep.subr.mxu0 0.0
  %v749 = vand.u32 %v557, 4294901760
  %v750 = vsub.f32 %v557, %v749
  %751 = vmatpush1.msra.mxu0 %v750
  %752 = vmatprep.subr.mxu0 0.0
  %v753 = vand.u32 %v558, 4294901760
  %v754 = vsub.f32 %v558, %v753
  %755 = vmatpush1.msra.mxu0 %v754
  %756 = vmatprep.subr.mxu0 0.0
  %757 = vmatpush1.msra.mxu0 0.0
  %758 = vmatprep.subr.mxu0 0.0
  %759 = vmatpush1.msra.mxu0 0.0
  %760 = vmatprep.subr.mxu0 0.0
  %761 = vmatpush1.msra.mxu0 0.0
  %762 = vmatprep.subr.mxu0 0.0
  %763 = vmatpush1.msra.mxu0 0.0
  %764 = vmatprep.subr.mxu0 0.0
  %765 = vmatpush1.msra.mxu0 0.0
  %766 = vmatprep.subr.mxu0 0.0
  %767 = vmatpush1.msra.mxu0 0.0
  %768 = vmatprep.subr.mxu0 0.0
  %769 = vmatpush1.msra.mxu0 0.0
  %770 = vmatprep.subr.mxu0 0.0
  %771 = vmatpush1.msra.mxu0 0.0
  %772 = vmatprep.subr.mxu0 0.0
  %773 = vmatpush1.msra.mxu0 0.0
  %774 = vmatprep.subr.mxu0 0.0
  %775 = vmatpush1.msra.mxu0 0.0
  %776 = vmatprep.subr.mxu0 0.0
  %777 = vmatpush1.msra.mxu0 0.0
  %778 = vmatprep.subr.mxu0 0.0
  %779 = vmatpush1.msra.mxu0 0.0
  %780 = vmatprep.subr.mxu0 0.0
  %781 = vmatpush1.msra.mxu0 0.0
  %782 = vmatprep.subr.mxu0 0.0
  %783 = vmatpush1.msra.mxu0 0.0
  %784 = vmatprep.subr.mxu0 0.0
  %785 = vmatpush1.msra.mxu0 0.0
  %786 = vmatprep.subr.mxu0 0.0
  %787 = vmatpush1.msra.mxu0 0.0
  %788 = vmatprep.subr.mxu0 0.0
  %789 = vmatpush1.msra.mxu0 0.0
  %790 = vmatprep.subr.mxu0 0.0
  %791 = vmatpush1.msra.mxu0 0.0
  %792 = vmatprep.subr.mxu0 0.0
  %793 = vmatpush1.msra.mxu0 0.0
  %794 = vmatprep.subr.mxu0 0.0
  %795 = vmatpush1.msra.mxu0 0.0
  %796 = vmatprep.subr.mxu0 0.0
  %797 = vmatpush1.msra.mxu0 0.0
  %798 = vmatprep.subr.mxu0 0.0
  %799 = vmatpush1.msra.mxu0 0.0
  %800 = vmatprep.subr.mxu0 0.0
  %801 = vmatpush1.msra.mxu0 0.0
  %802 = vmatprep.subr.mxu0 0.0
  %803 = vmatpush1.msra.mxu0 0.0
  %804 = vmatprep.subr.mxu0 0.0
  %805 = vmatpush1.msra.mxu0 0.0
  %806 = vmatprep.subr.mxu0 0.0
  %807 = vmatpush1.msra.mxu0 0.0
  %808 = vmatprep.subr.mxu0 0.0
  %809 = vmatpush1.msra.mxu0 0.0
  %810 = vmatprep.subr.mxu0 0.0
  %811 = vmatpush1.msra.mxu0 0.0
  %812 = vmatprep.mubr.f32.mxu0 0.0
  %v813 = vand.u32 %v568, 4294901760
  %v814 = vsub.f32 %v568, %v813
  %815 = vmatmul.mubr.f32.gmra.mrb[0].mxu0 %v814
  %v816 = vpop.f32.mrb[0].mxu0
  %v817 = vadd.f32 %v737, %v816
  %v818 = vpop.f32.mrb[0].mxu0
  %819 = vdwg.mxu0
  %820 = vmatprep.subr.mxu0 0.0
  %v821 = vand.u32 %v555, 4294901760
  %822 = vmatpush1.msra.mxu0 %v821
  %823 = vmatprep.subr.mxu0 0.0
  %v824 = vand.u32 %v556, 4294901760
  %825 = vmatpush1.msra.mxu0 %v824
  %826 = vmatprep.subr.mxu0 0.0
  %v827 = vand.u32 %v557, 4294901760
  %828 = vmatpush1.msra.mxu0 %v827
  %829 = vmatprep.subr.mxu0 0.0
  %v830 = vand.u32 %v558, 4294901760
  %831 = vmatpush1.msra.mxu0 %v830
  %832 = vmatprep.subr.mxu0 0.0
  %833 = vmatpush1.msra.mxu0 0.0
  %834 = vmatprep.subr.mxu0 0.0
  %835 = vmatpush1.msra.mxu0 0.0
  %836 = vmatprep.subr.mxu0 0.0
  %837 = vmatpush1.msra.mxu0 0.0
  %838 = vmatprep.subr.mxu0 0.0
  %839 = vmatpush1.msra.mxu0 0.0
  %840 = vmatprep.subr.mxu0 0.0
  %841 = vmatpush1.msra.mxu0 0.0
  %842 = vmatprep.subr.mxu0 0.0
  %843 = vmatpush1.msra.mxu0 0.0
  %844 = vmatprep.subr.mxu0 0.0
  %845 = vmatpush1.msra.mxu0 0.0
  %846 = vmatprep.subr.mxu0 0.0
  %847 = vmatpush1.msra.mxu0 0.0
  %848 = vmatprep.subr.mxu0 0.0
  %849 = vmatpush1.msra.mxu0 0.0
  %850 = vmatprep.subr.mxu0 0.0
  %851 = vmatpush1.msra.mxu0 0.0
  %852 = vmatprep.subr.mxu0 0.0
  %853 = vmatpush1.msra.mxu0 0.0
  %854 = vmatprep.subr.mxu0 0.0
  %855 = vmatpush1.msra.mxu0 0.0
  %856 = vmatprep.subr.mxu0 0.0
  %857 = vmatpush1.msra.mxu0 0.0
  %858 = vmatprep.subr.mxu0 0.0
  %859 = vmatpush1.msra.mxu0 0.0
  %860 = vmatprep.subr.mxu0 0.0
  %861 = vmatpush1.msra.mxu0 0.0
  %862 = vmatprep.subr.mxu0 0.0
  %863 = vmatpush1.msra.mxu0 0.0
  %864 = vmatprep.subr.mxu0 0.0
  %865 = vmatpush1.msra.mxu0 0.0
  %866 = vmatprep.subr.mxu0 0.0
  %867 = vmatpush1.msra.mxu0 0.0
  %868 = vmatprep.subr.mxu0 0.0
  %869 = vmatpush1.msra.mxu0 0.0
  %870 = vmatprep.subr.mxu0 0.0
  %871 = vmatpush1.msra.mxu0 0.0
  %872 = vmatprep.subr.mxu0 0.0
  %873 = vmatpush1.msra.mxu0 0.0
  %874 = vmatprep.subr.mxu0 0.0
  %875 = vmatpush1.msra.mxu0 0.0
  %876 = vmatprep.subr.mxu0 0.0
  %877 = vmatpush1.msra.mxu0 0.0
  %878 = vmatprep.subr.mxu0 0.0
  %879 = vmatpush1.msra.mxu0 0.0
  %880 = vmatprep.subr.mxu0 0.0
  %881 = vmatpush1.msra.mxu0 0.0
  %882 = vmatprep.subr.mxu0 0.0
  %883 = vmatpush1.msra.mxu0 0.0
  %884 = vmatprep.subr.mxu0 0.0
  %885 = vmatpush1.msra.mxu0 0.0
  %886 = vmatprep.subr.mxu0 0.0
  %887 = vmatpush1.msra.mxu0 0.0
  %888 = vmatprep.mubr.f32.mxu0 0.0
  %v889 = vand.u32 %v568, 4294901760
  %v890 = vsub.f32 %v568, %v889
  %v891 = vand.u32 %v890, 4294901760
  %892 = vmatmul.mubr.f32.gmra.mrb[0].mxu0 %v891
  %v893 = vpop.f32.mrb[0].mxu0
  %v894 = vadd.f32 %v817, %v893
  %v895 = vpop.f32.mrb[0].mxu0
  %896 = vdwg.mxu0
  %897 = vmatprep.subr.mxu0 0.0
  %v898 = vand.u32 %v555, 4294901760
  %v899 = vsub.f32 %v555, %v898
  %v900 = vand.u32 %v899, 4294901760
  %901 = vmatpush1.msra.mxu0 %v900
  %902 = vmatprep.subr.mxu0 0.0
  %v903 = vand.u32 %v556, 4294901760
  %v904 = vsub.f32 %v556, %v903
  %v905 = vand.u32 %v904, 4294901760
  %906 = vmatpush1.msra.mxu0 %v905
  %907 = vmatprep.subr.mxu0 0.0
  %v908 = vand.u32 %v557, 4294901760
  %v909 = vsub.f32 %v557, %v908
  %v910 = vand.u32 %v909, 4294901760
  %911 = vmatpush1.msra.mxu0 %v910
  %912 = vmatprep.subr.mxu0 0.0
  %v913 = vand.u32 %v558, 4294901760
  %v914 = vsub.f32 %v558, %v913
  %v915 = vand.u32 %v914, 4294901760
  %916 = vmatpush1.msra.mxu0 %v915
  %917 = vmatprep.subr.mxu0 0.0
  %918 = vmatpush1.msra.mxu0 0.0
  %919 = vmatprep.subr.mxu0 0.0
  %920 = vmatpush1.msra.mxu0 0.0
  %921 = vmatprep.subr.mxu0 0.0
  %922 = vmatpush1.msra.mxu0 0.0
  %923 = vmatprep.subr.mxu0 0.0
  %924 = vmatpush1.msra.mxu0 0.0
  %925 = vmatprep.subr.mxu0 0.0
  %926 = vmatpush1.msra.mxu0 0.0
  %927 = vmatprep.subr.mxu0 0.0
  %928 = vmatpush1.msra.mxu0 0.0
  %929 = vmatprep.subr.mxu0 0.0
  %930 = vmatpush1.msra.mxu0 0.0
  %931 = vmatprep.subr.mxu0 0.0
  %932 = vmatpush1.msra.mxu0 0.0
  %933 = vmatprep.subr.mxu0 0.0
  %934 = vmatpush1.msra.mxu0 0.0
  %935 = vmatprep.subr.mxu0 0.0
  %936 = vmatpush1.msra.mxu0 0.0
  %937 = vmatprep.subr.mxu0 0.0
  %938 = vmatpush1.msra.mxu0 0.0
  %939 = vmatprep.subr.mxu0 0.0
  %940 = vmatpush1.msra.mxu0 0.0
  %941 = vmatprep.subr.mxu0 0.0
  %942 = vmatpush1.msra.mxu0 0.0
  %943 = vmatprep.subr.mxu0 0.0
  %944 = vmatpush1.msra.mxu0 0.0
  %945 = vmatprep.subr.mxu0 0.0
  %946 = vmatpush1.msra.mxu0 0.0
  %947 = vmatprep.subr.mxu0 0.0
  %948 = vmatpush1.msra.mxu0 0.0
  %949 = vmatprep.subr.mxu0 0.0
  %950 = vmatpush1.msra.mxu0 0.0
  %951 = vmatprep.subr.mxu0 0.0
  %952 = vmatpush1.msra.mxu0 0.0
  %953 = vmatprep.subr.mxu0 0.0
  %954 = vmatpush1.msra.mxu0 0.0
  %955 = vmatprep.subr.mxu0 0.0
  %956 = vmatpush1.msra.mxu0 0.0
  %957 = vmatprep.subr.mxu0 0.0
  %958 = vmatpush1.msra.mxu0 0.0
  %959 = vmatprep.subr.mxu0 0.0
  %960 = vmatpush1.msra.mxu0 0.0
  %961 = vmatprep.subr.mxu0 0.0
  %962 = vmatpush1.msra.mxu0 0.0
  %963 = vmatprep.subr.mxu0 0.0
  %964 = vmatpush1.msra.mxu0 0.0
  %965 = vmatprep.subr.mxu0 0.0
  %966 = vmatpush1.msra.mxu0 0.0
  %967 = vmatprep.subr.mxu0 0.0
  %968 = vmatpush1.msra.mxu0 0.0
  %969 = vmatprep.subr.mxu0 0.0
  %970 = vmatpush1.msra.mxu0 0.0
  %971 = vmatprep.subr.mxu0 0.0
  %972 = vmatpush1.msra.mxu0 0.0
  %973 = vmatprep.mubr.f32.mxu0 0.0
  %v974 = vand.u32 %v568, 4294901760
  %975 = vmatmul.mubr.f32.gmra.mrb[0].mxu0 %v974
  %v976 = vpop.f32.mrb[0].mxu0
  %v977 = vadd.f32 %v894, %v976
  %v978 = vpop.f32.mrb[0].mxu0
  %979 = vdwg.mxu0
  %980 = vmatprep.subr.mxu0 0.0
  %v981 = vand.u32 %v555, 4294901760
  %982 = vmatpush1.msra.mxu0 %v981
  %983 = vmatprep.subr.mxu0 0.0
  %v984 = vand.u32 %v556, 4294901760
  %985 = vmatpush1.msra.mxu0 %v984
  %986 = vmatprep.subr.mxu0 0.0
  %v987 = vand.u32 %v557, 4294901760
  %988 = vmatpush1.msra.mxu0 %v987
  %989 = vmatprep.subr.mxu0 0.0
  %v990 = vand.u32 %v558, 4294901760
  %991 = vmatpush1.msra.mxu0 %v990
  %992 = vmatprep.subr.mxu0 0.0
  %993 = vmatpush1.msra.mxu0 0.0
  %994 = vmatprep.subr.mxu0 0.0
  %995 = vmatpush1.msra.mxu0 0.0
  %996 = vmatprep.subr.mxu0 0.0
  %997 = vmatpush1.msra.mxu0 0.0
  %998 = vmatprep.subr.mxu0 0.0
  %999 = vmatpush1.msra.mxu0 0.0
  %1000 = vmatprep.subr.mxu0 0.0
  %1001 = vmatpush1.msra.mxu0 0.0
  %1002 = vmatprep.subr.mxu0 0.0
  %1003 = vmatpush1.msra.mxu0 0.0
  %1004 = vmatprep.subr.mxu0 0.0
  %1005 = vmatpush1.msra.mxu0 0.0
  %1006 = vmatprep.subr.mxu0 0.0
  %1007 = vmatpush1.msra.mxu0 0.0
  %1008 = vmatprep.subr.mxu0 0.0
  %1009 = vmatpush1.msra.mxu0 0.0
  %1010 = vmatprep.subr.mxu0 0.0
  %1011 = vmatpush1.msra.mxu0 0.0
  %1012 = vmatprep.subr.mxu0 0.0
  %1013 = vmatpush1.msra.mxu0 0.0
  %1014 = vmatprep.subr.mxu0 0.0
  %1015 = vmatpush1.msra.mxu0 0.0
  %1016 = vmatprep.subr.mxu0 0.0
  %1017 = vmatpush1.msra.mxu0 0.0
  %1018 = vmatprep.subr.mxu0 0.0
  %1019 = vmatpush1.msra.mxu0 0.0
  %1020 = vmatprep.subr.mxu0 0.0
  %1021 = vmatpush1.msra.mxu0 0.0
  %1022 = vmatprep.subr.mxu0 0.0
  %1023 = vmatpush1.msra.mxu0 0.0
  %1024 = vmatprep.subr.mxu0 0.0
  %1025 = vmatpush1.msra.mxu0 0.0
  %1026 = vmatprep.subr.mxu0 0.0
  %1027 = vmatpush1.msra.mxu0 0.0
  %1028 = vmatprep.subr.mxu0 0.0
  %1029 = vmatpush1.msra.mxu0 0.0
  %1030 = vmatprep.subr.mxu0 0.0
  %1031 = vmatpush1.msra.mxu0 0.0
  %1032 = vmatprep.subr.mxu0 0.0
  %1033 = vmatpush1.msra.mxu0 0.0
  %1034 = vmatprep.subr.mxu0 0.0
  %1035 = vmatpush1.msra.mxu0 0.0
  %1036 = vmatprep.subr.mxu0 0.0
  %1037 = vmatpush1.msra.mxu0 0.0
  %1038 = vmatprep.subr.mxu0 0.0
  %1039 = vmatpush1.msra.mxu0 0.0
  %1040 = vmatprep.subr.mxu0 0.0
  %1041 = vmatpush1.msra.mxu0 0.0
  %1042 = vmatprep.subr.mxu0 0.0
  %1043 = vmatpush1.msra.mxu0 0.0
  %1044 = vmatprep.subr.mxu0 0.0
  %1045 = vmatpush1.msra.mxu0 0.0
  %1046 = vmatprep.subr.mxu0 0.0
  %1047 = vmatpush1.msra.mxu0 0.0
  %1048 = vmatprep.mubr.f32.mxu0 0.0
  %v1049 = vand.u32 %v568, 4294901760
  %1050 = vmatmul.mubr.f32.gmra.mrb[0].mxu0 %v1049
  %v1051 = vpop.f32.mrb[0].mxu0
  %v1052 = vadd.f32 %v977, %v1051
  %v1053 = vpop.f32.mrb[0].mxu0
  %1054 = vdwg.mxu0
  %v1055 = vadd.f32 %v565, %v1052
  %v1056 = vxor.u32 %v1055, 2147483648
  %v1057 = vmul.f32 %v1056, 1.442695
  %v1058 = vpow.pop %v1057
  %v1059 = vadd.f32 %v1058, 1.0
  %v1060 = vrcp.pop %v1059
  %v1061 = vmul.f32 1.0, %v1060
  %v1062 = vtanh.pop %v1055
  %v1063 = vmul.f32 %v1061, 0.0
  %1065 = vrot.lane.b32.xlu0 %v1062, 64
  %v1066 = vpop.permute.xlu0 %1065
  %v1068 = vmul.f32 %v1061, %v1066
  %1070 = vrot.lane.b32.xlu0 %v1068, 32
  %v1071 = vpop.permute.xlu0 %1070
  %v1073 = vadd.f32 %v1063, %v1071
  %v1074 = vtanh.pop %v1073
  %1076 = vrot.lane.b32.xlu0 %v1074, 64
  %v1077 = vpop.permute.xlu0 %1076
  %v1079 = vmul.f32 %v1061, %v1077
  %1081 = vrot.lane.b32.xlu0 %v1079, 32
  %v1082 = vpop.permute.xlu0 %1081
  %vm1084 = vcmask 253952
  %1085 = vst.msk [vmem:[#allocation3] sm:$0x1] %vm1084, %v1082
  %vm1086 = vcmask 254977
  %1087 = vst.msk [vmem:[#allocation3 + $0x7] sm:$0x2] %vm1086, %v1082
  %v1088 = vld [vmem:[#allocation2 + $0x1] sm:$0x1]
  %v1089 = vld [vmem:[#allocation2 + $0x9] sm:$0x1]
  %v1091 = vrot.slane %v1089, 7
  %v1093 = vsel %vm564, %v1088, %v1091
  %v1094 = vsel %vm566, %v1082, 0
  %1096 = vmatprep.subr.mxu0 0.0
  %v1097 = vand.u32 %v555, 4294901760
  %1098 = vmatpush1.msra.mxu0 %v1097
  %1099 = vmatprep.subr.mxu0 0.0
  %v1100 = vand.u32 %v556, 4294901760
  %1101 = vmatpush1.msra.mxu0 %v1100
  %1102 = vmatprep.subr.mxu0 0.0
  %v1103 = vand.u32 %v557, 4294901760
  %1104 = vmatpush1.msra.mxu0 %v1103
  %1105 = vmatprep.subr.mxu0 0.0
  %v1106 = vand.u32 %v558, 4294901760
  %1107 = vmatpush1.msra.mxu0 %v1106
  %1108 = vmatprep.subr.mxu0 0.0
  %1109 = vmatpush1.msra.mxu0 0.0
  %1110 = vmatprep.subr.mxu0 0.0
  %1111 = vmatpush1.msra.mxu0 0.0
  %1112 = vmatprep.subr.mxu0 0.0
  %1113 = vmatpush1.msra.mxu0 0.0
  %1114 = vmatprep.subr.mxu0 0.0
  %1115 = vmatpush1.msra.mxu0 0.0
  %1116 = vmatprep.subr.mxu0 0.0
  %1117 = vmatpush1.msra.mxu0 0.0
  %1118 = vmatprep.subr.mxu0 0.0
  %1119 = vmatpush1.msra.mxu0 0.0
  %1120 = vmatprep.subr.mxu0 0.0
  %1121 = vmatpush1.msra.mxu0 0.0
  %1122 = vmatprep.subr.mxu0 0.0
  %1123 = vmatpush1.msra.mxu0 0.0
  %1124 = vmatprep.subr.mxu0 0.0
  %1125 = vmatpush1.msra.mxu0 0.0
  %1126 = vmatprep.subr.mxu0 0.0
  %1127 = vmatpush1.msra.mxu0 0.0
  %1128 = vmatprep.subr.mxu0 0.0
  %1129 = vmatpush1.msra.mxu0 0.0
  %1130 = vmatprep.subr.mxu0 0.0
  %1131 = vmatpush1.msra.mxu0 0.0
  %1132 = vmatprep.subr.mxu0 0.0
  %1133 = vmatpush1.msra.mxu0 0.0
  %1134 = vmatprep.subr.mxu0 0.0
  %1135 = vmatpush1.msra.mxu0 0.0
  %1136 = vmatprep.subr.mxu0 0.0
  %1137 = vmatpush1.msra.mxu0 0.0
  %1138 = vmatprep.subr.mxu0 0.0
  %1139 = vmatpush1.msra.mxu0 0.0
  %1140 = vmatprep.subr.mxu0 0.0
  %1141 = vmatpush1.msra.mxu0 0.0
  %1142 = vmatprep.subr.mxu0 0.0
  %1143 = vmatpush1.msra.mxu0 0.0
  %1144 = vmatprep.subr.mxu0 0.0
  %1145 = vmatpush1.msra.mxu0 0.0
  %1146 = vmatprep.subr.mxu0 0.0
  %1147 = vmatpush1.msra.mxu0 0.0
  %1148 = vmatprep.subr.mxu0 0.0
  %1149 = vmatpush1.msra.mxu0 0.0
  %1150 = vmatprep.subr.mxu0 0.0
  %1151 = vmatpush1.msra.mxu0 0.0
  %1152 = vmatprep.subr.mxu0 0.0
  %1153 = vmatpush1.msra.mxu0 0.0
  %1154 = vmatprep.subr.mxu0 0.0
  %1155 = vmatpush1.msra.mxu0 0.0
  %1156 = vmatprep.subr.mxu0 0.0
  %1157 = vmatpush1.msra.mxu0 0.0
  %1158 = vmatprep.subr.mxu0 0.0
  %1159 = vmatpush1.msra.mxu0 0.0
  %1160 = vmatprep.subr.mxu0 0.0
  %1161 = vmatpush1.msra.mxu0 0.0
  %1162 = vmatprep.subr.mxu0 0.0
  %1163 = vmatpush1.msra.mxu0 0.0
  %1164 = vmatprep.mubr.f32.mxu0 0.0
  %v1165 = vand.u32 %v1094, 4294901760
  %v1166 = vsub.f32 %v1094, %v1165
  %v1167 = vand.u32 %v1166, 4294901760
  %v1168 = vsub.f32 %v1166, %v1167
  %v1169 = vand.u32 %v1168, 4294901760
  %1170 = vmatmul.mubr.f32.gmra.mrb[0].mxu0 %v1169
  %v1171 = vpop.f32.mrb[0].mxu0
  %v1172 = vadd.f32 0.0, %v1171
  %v1173 = vpop.f32.mrb[0].mxu0
  %1174 = vdwg.mxu0
  %1175 = vmatprep.subr.mxu0 0.0
  %v1176 = vand.u32 %v555, 4294901760
  %v1177 = vsub.f32 %v555, %v1176
  %v1178 = vand.u32 %v1177, 4294901760
  %v1179 = vsub.f32 %v1177, %v1178
  %v1180 = vand.u32 %v1179, 4294901760
  %1181 = vmatpush1.msra.mxu0 %v1180
  %1182 = vmatprep.subr.mxu0 0.0
  %v1183 = vand.u32 %v556, 4294901760
  %v1184 = vsub.f32 %v556, %v1183
  %v1185 = vand.u32 %v1184, 4294901760
  %v1186 = vsub.f32 %v1184, %v1185
  %v1187 = vand.u32 %v1186, 4294901760
  %1188 = vmatpush1.msra.mxu0 %v1187
  %1189 = vmatprep.subr.mxu0 0.0
  %v1190 = vand.u32 %v557, 4294901760
  %v1191 = vsub.f32 %v557, %v1190
  %v1192 = vand.u32 %v1191, 4294901760
  %v1193 = vsub.f32 %v1191, %v1192
  %v1194 = vand.u32 %v1193, 4294901760
  %1195 = vmatpush1.msra.mxu0 %v1194
  %1196 = vmatprep.subr.mxu0 0.0
  %v1197 = vand.u32 %v558, 4294901760
  %v1198 = vsub.f32 %v558, %v1197
  %v1199 = vand.u32 %v1198, 4294901760
  %v1200 = vsub.f32 %v1198, %v1199
  %v1201 = vand.u32 %v1200, 4294901760
  %1202 = vmatpush1.msra.mxu0 %v1201
  %1203 = vmatprep.subr.mxu0 0.0
  %1204 = vmatpush1.msra.mxu0 0.0
  %1205 = vmatprep.subr.mxu0 0.0
  %1206 = vmatpush1.msra.mxu0 0.0
  %1207 = vmatprep.subr.mxu0 0.0
  %1208 = vmatpush1.msra.mxu0 0.0
  %1209 = vmatprep.subr.mxu0 0.0
  %1210 = vmatpush1.msra.mxu0 0.0
  %1211 = vmatprep.subr.mxu0 0.0
  %1212 = vmatpush1.msra.mxu0 0.0
  %1213 = vmatprep.subr.mxu0 0.0
  %1214 = vmatpush1.msra.mxu0 0.0
  %1215 = vmatprep.subr.mxu0 0.0
  %1216 = vmatpush1.msra.mxu0 0.0
  %1217 = vmatprep.subr.mxu0 0.0
  %1218 = vmatpush1.msra.mxu0 0.0
  %1219 = vmatprep.subr.mxu0 0.0
  %1220 = vmatpush1.msra.mxu0 0.0
  %1221 = vmatprep.subr.mxu0 0.0
  %1222 = vmatpush1.msra.mxu0 0.0
  %1223 = vmatprep.subr.mxu0 0.0
  %1224 = vmatpush1.msra.mxu0 0.0
  %1225 = vmatprep.subr.mxu0 0.0
  %1226 = vmatpush1.msra.mxu0 0.0
  %1227 = vmatprep.subr.mxu0 0.0
  %1228 = vmatpush1.msra.mxu0 0.0
  %1229 = vmatprep.subr.mxu0 0.0
  %1230 = vmatpush1.msra.mxu0 0.0
  %1231 = vmatprep.subr.mxu0 0.0
  %1232 = vmatpush1.msra.mxu0 0.0
  %1233 = vmatprep.subr.mxu0 0.0
  %1234 = vmatpush1.msra.mxu0 0.0
  %1235 = vmatprep.subr.mxu0 0.0
  %1236 = vmatpush1.msra.mxu0 0.0
  %1237 = vmatprep.subr.mxu0 0.0
  %1238 = vmatpush1.msra.mxu0 0.0
  %1239 = vmatprep.subr.mxu0 0.0
  %1240 = vmatpush1.msra.mxu0 0.0
  %1241 = vmatprep.subr.mxu0 0.0
  %1242 = vmatpush1.msra.mxu0 0.0
  %1243 = vmatprep.subr.mxu0 0.0
  %1244 = vmatpush1.msra.mxu0 0.0
  %1245 = vmatprep.subr.mxu0 0.0
  %1246 = vmatpush1.msra.mxu0 0.0
  %1247 = vmatprep.subr.mxu0 0.0
  %1248 = vmatpush1.msra.mxu0 0.0
  %1249 = vmatprep.subr.mxu0 0.0
  %1250 = vmatpush1.msra.mxu0 0.0
  %1251 = vmatprep.subr.mxu0 0.0
  %1252 = vmatpush1.msra.mxu0 0.0
  %1253 = vmatprep.subr.mxu0 0.0
  %1254 = vmatpush1.msra.mxu0 0.0
  %1255 = vmatprep.subr.mxu0 0.0
  %1256 = vmatpush1.msra.mxu0 0.0
  %1257 = vmatprep.subr.mxu0 0.0
  %1258 = vmatpush1.msra.mxu0 0.0
  %1259 = vmatprep.mubr.f32.mxu0 0.0
  %v1260 = vand.u32 %v1094, 4294901760
  %1261 = vmatmul.mubr.f32.gmra.mrb[0].mxu0 %v1260
  %v1262 = vpop.f32.mrb[0].mxu0
  %v1263 = vadd.f32 %v1172, %v1262
  %v1264 = vpop.f32.mrb[0].mxu0
  %1265 = vdwg.mxu0
  %1266 = vmatprep.subr.mxu0 0.0
  %v1267 = vand.u32 %v555, 4294901760
  %v1268 = vsub.f32 %v555, %v1267
  %1269 = vmatpush1.msra.mxu0 %v1268
  %1270 = vmatprep.subr.mxu0 0.0
  %v1271 = vand.u32 %v556, 4294901760
  %v1272 = vsub.f32 %v556, %v1271
  %1273 = vmatpush1.msra.mxu0 %v1272
  %1274 = vmatprep.subr.mxu0 0.0
  %v1275 = vand.u32 %v557, 4294901760
  %v1276 = vsub.f32 %v557, %v1275
  %1277 = vmatpush1.msra.mxu0 %v1276
  %1278 = vmatprep.subr.mxu0 0.0
  %v1279 = vand.u32 %v558, 4294901760
  %v1280 = vsub.f32 %v558, %v1279
  %1281 = vmatpush1.msra.mxu0 %v1280
  %1282 = vmatprep.subr.mxu0 0.0
  %1283 = vmatpush1.msra.mxu0 0.0
  %1284 = vmatprep.subr.mxu0 0.0
  %1285 = vmatpush1.msra.mxu0 0.0
  %1286 = vmatprep.subr.mxu0 0.0
  %1287 = vmatpush1.msra.mxu0 0.0
  %1288 = vmatprep.subr.mxu0 0.0
  %1289 = vmatpush1.msra.mxu0 0.0
  %1290 = vmatprep.subr.mxu0 0.0
  %1291 = vmatpush1.msra.mxu0 0.0
  %1292 = vmatprep.subr.mxu0 0.0
  %1293 = vmatpush1.msra.mxu0 0.0
  %1294 = vmatprep.subr.mxu0 0.0
  %1295 = vmatpush1.msra.mxu0 0.0
  %1296 = vmatprep.subr.mxu0 0.0
  %1297 = vmatpush1.msra.mxu0 0.0
  %1298 = vmatprep.subr.mxu0 0.0
  %1299 = vmatpush1.msra.mxu0 0.0
  %1300 = vmatprep.subr.mxu0 0.0
  %1301 = vmatpush1.msra.mxu0 0.0
  %1302 = vmatprep.subr.mxu0 0.0
  %1303 = vmatpush1.msra.mxu0 0.0
  %1304 = vmatprep.subr.mxu0 0.0
  %1305 = vmatpush1.msra.mxu0 0.0
  %1306 = vmatprep.subr.mxu0 0.0
  %1307 = vmatpush1.msra.mxu0 0.0
  %1308 = vmatprep.subr.mxu0 0.0
  %1309 = vmatpush1.msra.mxu0 0.0
  %1310 = vmatprep.subr.mxu0 0.0
  %1311 = vmatpush1.msra.mxu0 0.0
  %1312 = vmatprep.subr.mxu0 0.0
  %1313 = vmatpush1.msra.mxu0 0.0
  %1314 = vmatprep.subr.mxu0 0.0
  %1315 = vmatpush1.msra.mxu0 0.0
  %1316 = vmatprep.subr.mxu0 0.0
  %1317 = vmatpush1.msra.mxu0 0.0
  %1318 = vmatprep.subr.mxu0 0.0
  %1319 = vmatpush1.msra.mxu0 0.0
  %1320 = vmatprep.subr.mxu0 0.0
  %1321 = vmatpush1.msra.mxu0 0.0
  %1322 = vmatprep.subr.mxu0 0.0
  %1323 = vmatpush1.msra.mxu0 0.0
  %1324 = vmatprep.subr.mxu0 0.0
  %1325 = vmatpush1.msra.mxu0 0.0
  %1326 = vmatprep.subr.mxu0 0.0
  %1327 = vmatpush1.msra.mxu0 0.0
  %1328 = vmatprep.subr.mxu0 0.0
  %1329 = vmatpush1.msra.mxu0 0.0
  %1330 = vmatprep.subr.mxu0 0.0
  %1331 = vmatpush1.msra.mxu0 0.0
  %1332 = vmatprep.subr.mxu0 0.0
  %1333 = vmatpush1.msra.mxu0 0.0
  %1334 = vmatprep.subr.mxu0 0.0
  %1335 = vmatpush1.msra.mxu0 0.0
  %1336 = vmatprep.subr.mxu0 0.0
  %1337 = vmatpush1.msra.mxu0 0.0
  %1338 = vmatprep.mubr.f32.mxu0 0.0
  %v1339 = vand.u32 %v1094, 4294901760
  %v1340 = vsub.f32 %v1094, %v1339
  %1341 = vmatmul.mubr.f32.gmra.mrb[0].mxu0 %v1340
  %v1342 = vpop.f32.mrb[0].mxu0
  %v1343 = vadd.f32 %v1263, %v1342
  %v1344 = vpop.f32.mrb[0].mxu0
  %1345 = vdwg.mxu0
  %1346 = vmatprep.subr.mxu0 0.0
  %v1347 = vand.u32 %v555, 4294901760
  %1348 = vmatpush1.msra.mxu0 %v1347
  %1349 = vmatprep.subr.mxu0 0.0
  %v1350 = vand.u32 %v556, 4294901760
  %1351 = vmatpush1.msra.mxu0 %v1350
  %1352 = vmatprep.subr.mxu0 0.0
  %v1353 = vand.u32 %v557, 4294901760
  %1354 = vmatpush1.msra.mxu0 %v1353
  %1355 = vmatprep.subr.mxu0 0.0
  %v1356 = vand.u32 %v558, 4294901760
  %1357 = vmatpush1.msra.mxu0 %v1356
  %1358 = vmatprep.subr.mxu0 0.0
  %1359 = vmatpush1.msra.mxu0 0.0
  %1360 = vmatprep.subr.mxu0 0.0
  %1361 = vmatpush1.msra.mxu0 0.0
  %1362 = vmatprep.subr.mxu0 0.0
  %1363 = vmatpush1.msra.mxu0 0.0
  %1364 = vmatprep.subr.mxu0 0.0
  %1365 = vmatpush1.msra.mxu0 0.0
  %1366 = vmatprep.subr.mxu0 0.0
  %1367 = vmatpush1.msra.mxu0 0.0
  %1368 = vmatprep.subr.mxu0 0.0
  %1369 = vmatpush1.msra.mxu0 0.0
  %1370 = vmatprep.subr.mxu0 0.0
  %1371 = vmatpush1.msra.mxu0 0.0
  %1372 = vmatprep.subr.mxu0 0.0
  %1373 = vmatpush1.msra.mxu0 0.0
  %1374 = vmatprep.subr.mxu0 0.0
  %1375 = vmatpush1.msra.mxu0 0.0
  %1376 = vmatprep.subr.mxu0 0.0
  %1377 = vmatpush1.msra.mxu0 0.0
  %1378 = vmatprep.subr.mxu0 0.0
  %1379 = vmatpush1.msra.mxu0 0.0
  %1380 = vmatprep.subr.mxu0 0.0
  %1381 = vmatpush1.msra.mxu0 0.0
  %1382 = vmatprep.subr.mxu0 0.0
  %1383 = vmatpush1.msra.mxu0 0.0
  %1384 = vmatprep.subr.mxu0 0.0
  %1385 = vmatpush1.msra.mxu0 0.0
  %1386 = vmatprep.subr.mxu0 0.0
  %1387 = vmatpush1.msra.mxu0 0.0
  %1388 = vmatprep.subr.mxu0 0.0
  %1389 = vmatpush1.msra.mxu0 0.0
  %1390 = vmatprep.subr.mxu0 0.0
  %1391 = vmatpush1.msra.mxu0 0.0
  %1392 = vmatprep.subr.mxu0 0.0
  %1393 = vmatpush1.msra.mxu0 0.0
  %1394 = vmatprep.subr.mxu0 0.0
  %1395 = vmatpush1.msra.mxu0 0.0
  %1396 = vmatprep.subr.mxu0 0.0
  %1397 = vmatpush1.msra.mxu0 0.0
  %1398 = vmatprep.subr.mxu0 0.0
  %1399 = vmatpush1.msra.mxu0 0.0
  %1400 = vmatprep.subr.mxu0 0.0
  %1401 = vmatpush1.msra.mxu0 0.0
  %1402 = vmatprep.subr.mxu0 0.0
  %1403 = vmatpush1.msra.mxu0 0.0
  %1404 = vmatprep.subr.mxu0 0.0
  %1405 = vmatpush1.msra.mxu0 0.0
  %1406 = vmatprep.subr.mxu0 0.0
  %1407 = vmatpush1.msra.mxu0 0.0
  %1408 = vmatprep.subr.mxu0 0.0
  %1409 = vmatpush1.msra.mxu0 0.0
  %1410 = vmatprep.subr.mxu0 0.0
  %1411 = vmatpush1.msra.mxu0 0.0
  %1412 = vmatprep.subr.mxu0 0.0
  %1413 = vmatpush1.msra.mxu0 0.0
  %1414 = vmatprep.mubr.f32.mxu0 0.0
  %v1415 = vand.u32 %v1094, 4294901760
  %v1416 = vsub.f32 %v1094, %v1415
  %v1417 = vand.u32 %v1416, 4294901760
  %1418 = vmatmul.mubr.f32.gmra.mrb[0].mxu0 %v1417
  %v1419 = vpop.f32.mrb[0].mxu0
  %v1420 = vadd.f32 %v1343, %v1419
  %v1421 = vpop.f32.mrb[0].mxu0
  %1422 = vdwg.mxu0
  %1423 = vmatprep.subr.mxu0 0.0
  %v1424 = vand.u32 %v555, 4294901760
  %v1425 = vsub.f32 %v555, %v1424
  %v1426 = vand.u32 %v1425, 4294901760
  %1427 = vmatpush1.msra.mxu0 %v1426
  %1428 = vmatprep.subr.mxu0 0.0
  %v1429 = vand.u32 %v556, 4294901760
  %v1430 = vsub.f32 %v556, %v1429
  %v1431 = vand.u32 %v1430, 4294901760
  %1432 = vmatpush1.msra.mxu0 %v1431
  %1433 = vmatprep.subr.mxu0 0.0
  %v1434 = vand.u32 %v557, 4294901760
  %v1435 = vsub.f32 %v557, %v1434
  %v1436 = vand.u32 %v1435, 4294901760
  %1437 = vmatpush1.msra.mxu0 %v1436
  %1438 = vmatprep.subr.mxu0 0.0
  %v1439 = vand.u32 %v558, 4294901760
  %v1440 = vsub.f32 %v558, %v1439
  %v1441 = vand.u32 %v1440, 4294901760
  %1442 = vmatpush1.msra.mxu0 %v1441
  %1443 = vmatprep.subr.mxu0 0.0
  %1444 = vmatpush1.msra.mxu0 0.0
  %1445 = vmatprep.subr.mxu0 0.0
  %1446 = vmatpush1.msra.mxu0 0.0
  %1447 = vmatprep.subr.mxu0 0.0
  %1448 = vmatpush1.msra.mxu0 0.0
  %1449 = vmatprep.subr.mxu0 0.0
  %1450 = vmatpush1.msra.mxu0 0.0
  %1451 = vmatprep.subr.mxu0 0.0
  %1452 = vmatpush1.msra.mxu0 0.0
  %1453 = vmatprep.subr.mxu0 0.0
  %1454 = vmatpush1.msra.mxu0 0.0
  %1455 = vmatprep.subr.mxu0 0.0
  %1456 = vmatpush1.msra.mxu0 0.0
  %1457 = vmatprep.subr.mxu0 0.0
  %1458 = vmatpush1.msra.mxu0 0.0
  %1459 = vmatprep.subr.mxu0 0.0
  %1460 = vmatpush1.msra.mxu0 0.0
  %1461 = vmatprep.subr.mxu0 0.0
  %1462 = vmatpush1.msra.mxu0 0.0
  %1463 = vmatprep.subr.mxu0 0.0
  %1464 = vmatpush1.msra.mxu0 0.0
  %1465 = vmatprep.subr.mxu0 0.0
  %1466 = vmatpush1.msra.mxu0 0.0
  %1467 = vmatprep.subr.mxu0 0.0
  %1468 = vmatpush1.msra.mxu0 0.0
  %1469 = vmatprep.subr.mxu0 0.0
  %1470 = vmatpush1.msra.mxu0 0.0
  %1471 = vmatprep.subr.mxu0 0.0
  %1472 = vmatpush1.msra.mxu0 0.0
  %1473 = vmatprep.subr.mxu0 0.0
  %1474 = vmatpush1.msra.mxu0 0.0
  %1475 = vmatprep.subr.mxu0 0.0
  %1476 = vmatpush1.msra.mxu0 0.0
  %1477 = vmatprep.subr.mxu0 0.0
  %1478 = vmatpush1.msra.mxu0 0.0
  %1479 = vmatprep.subr.mxu0 0.0
  %1480 = vmatpush1.msra.mxu0 0.0
  %1481 = vmatprep.subr.mxu0 0.0
  %1482 = vmatpush1.msra.mxu0 0.0
  %1483 = vmatprep.subr.mxu0 0.0
  %1484 = vmatpush1.msra.mxu0 0.0
  %1485 = vmatprep.subr.mxu0 0.0
  %1486 = vmatpush1.msra.mxu0 0.0
  %1487 = vmatprep.subr.mxu0 0.0
  %1488 = vmatpush1.msra.mxu0 0.0
  %1489 = vmatprep.subr.mxu0 0.0
  %1490 = vmatpush1.msra.mxu0 0.0
  %1491 = vmatprep.subr.mxu0 0.0
  %1492 = vmatpush1.msra.mxu0 0.0
  %1493 = vmatprep.subr.mxu0 0.0
  %1494 = vmatpush1.msra.mxu0 0.0
  %1495 = vmatprep.subr.mxu0 0.0
  %1496 = vmatpush1.msra.mxu0 0.0
  %1497 = vmatprep.subr.mxu0 0.0
  %1498 = vmatpush1.msra.mxu0 0.0
  %1499 = vmatprep.mubr.f32.mxu0 0.0
  %v1500 = vand.u32 %v1094, 4294901760
  %1501 = vmatmul.mubr.f32.gmra.mrb[0].mxu0 %v1500
  %v1502 = vpop.f32.mrb[0].mxu0
  %v1503 = vadd.f32 %v1420, %v1502
  %v1504 = vpop.f32.mrb[0].mxu0
  %1505 = vdwg.mxu0
  %1506 = vmatprep.subr.mxu0 0.0
  %v1507 = vand.u32 %v555, 4294901760
  %1508 = vmatpush1.msra.mxu0 %v1507
  %1509 = vmatprep.subr.mxu0 0.0
  %v1510 = vand.u32 %v556, 4294901760
  %1511 = vmatpush1.msra.mxu0 %v1510
  %1512 = vmatprep.subr.mxu0 0.0
  %v1513 = vand.u32 %v557, 4294901760
  %1514 = vmatpush1.msra.mxu0 %v1513
  %1515 = vmatprep.subr.mxu0 0.0
  %v1516 = vand.u32 %v558, 4294901760
  %1517 = vmatpush1.msra.mxu0 %v1516
  %1518 = vmatprep.subr.mxu0 0.0
  %1519 = vmatpush1.msra.mxu0 0.0
  %1520 = vmatprep.subr.mxu0 0.0
  %1521 = vmatpush1.msra.mxu0 0.0
  %1522 = vmatprep.subr.mxu0 0.0
  %1523 = vmatpush1.msra.mxu0 0.0
  %1524 = vmatprep.subr.mxu0 0.0
  %1525 = vmatpush1.msra.mxu0 0.0
  %1526 = vmatprep.subr.mxu0 0.0
  %1527 = vmatpush1.msra.mxu0 0.0
  %1528 = vmatprep.subr.mxu0 0.0
  %1529 = vmatpush1.msra.mxu0 0.0
  %1530 = vmatprep.subr.mxu0 0.0
  %1531 = vmatpush1.msra.mxu0 0.0
  %1532 = vmatprep.subr.mxu0 0.0
  %1533 = vmatpush1.msra.mxu0 0.0
  %1534 = vmatprep.subr.mxu0 0.0
  %1535 = vmatpush1.msra.mxu0 0.0
  %1536 = vmatprep.subr.mxu0 0.0
  %1537 = vmatpush1.msra.mxu0 0.0
  %1538 = vmatprep.subr.mxu0 0.0
  %1539 = vmatpush1.msra.mxu0 0.0
  %1540 = vmatprep.subr.mxu0 0.0
  %1541 = vmatpush1.msra.mxu0 0.0
  %1542 = vmatprep.subr.mxu0 0.0
  %1543 = vmatpush1.msra.mxu0 0.0
  %1544 = vmatprep.subr.mxu0 0.0
  %1545 = vmatpush1.msra.mxu0 0.0
  %1546 = vmatprep.subr.mxu0 0.0
  %1547 = vmatpush1.msra.mxu0 0.0
  %1548 = vmatprep.subr.mxu0 0.0
  %1549 = vmatpush1.msra.mxu0 0.0
  %1550 = vmatprep.subr.mxu0 0.0
  %1551 = vmatpush1.msra.mxu0 0.0
  %1552 = vmatprep.subr.mxu0 0.0
  %1553 = vmatpush1.msra.mxu0 0.0
  %1554 = vmatprep.subr.mxu0 0.0
  %1555 = vmatpush1.msra.mxu0 0.0
  %1556 = vmatprep.subr.mxu0 0.0
  %1557 = vmatpush1.msra.mxu0 0.0
  %1558 = vmatprep.subr.mxu0 0.0
  %1559 = vmatpush1.msra.mxu0 0.0
  %1560 = vmatprep.subr.mxu0 0.0
  %1561 = vmatpush1.msra.mxu0 0.0
  %1562 = vmatprep.subr.mxu0 0.0
  %1563 = vmatpush1.msra.mxu0 0.0
  %1564 = vmatprep.subr.mxu0 0.0
  %1565 = vmatpush1.msra.mxu0 0.0
  %1566 = vmatprep.subr.mxu0 0.0
  %1567 = vmatpush1.msra.mxu0 0.0
  %1568 = vmatprep.subr.mxu0 0.0
  %1569 = vmatpush1.msra.mxu0 0.0
  %1570 = vmatprep.subr.mxu0 0.0
  %1571 = vmatpush1.msra.mxu0 0.0
  %1572 = vmatprep.subr.mxu0 0.0
  %1573 = vmatpush1.msra.mxu0 0.0
  %1574 = vmatprep.mubr.f32.mxu0 0.0
  %v1575 = vand.u32 %v1094, 4294901760
  %1576 = vmatmul.mubr.f32.gmra.mrb[0].mxu0 %v1575
  %v1577 = vpop.f32.mrb[0].mxu0
  %v1578 = vadd.f32 %v1503, %v1577
  %v1579 = vpop.f32.mrb[0].mxu0
  %1580 = vdwg.mxu0
  %v1581 = vadd.f32 %v1093, %v1578
  %v1582 = vxor.u32 %v1581, 2147483648
  %v1583 = vmul.f32 %v1582, 1.442695
  %v1584 = vpow.pop %v1583
  %v1585 = vadd.f32 %v1584, 1.0
  %v1586 = vrcp.pop %v1585
  %v1587 = vmul.f32 1.0, %v1586
  %v1588 = vtanh.pop %v1581
  %v1589 = vmul.f32 %v1587, %v1073
  %1591 = vrot.lane.b32.xlu0 %v1588, 64
  %v1592 = vpop.permute.xlu0 %1591
  %v1594 = vmul.f32 %v1587, %v1592
  %1596 = vrot.lane.b32.xlu0 %v1594, 32
  %v1597 = vpop.permute.xlu0 %1596
  %v1599 = vadd.f32 %v1589, %v1597
  %v1600 = vtanh.pop %v1599
  %1602 = vrot.lane.b32.xlu0 %v1600, 64
  %v1603 = vpop.permute.xlu0 %1602
  %v1605 = vmul.f32 %v1587, %v1603
  %1607 = vrot.lane.b32.xlu0 %v1605, 32
  %v1608 = vpop.permute.xlu0 %1607
  %1610 = vst.msk [vmem:[#allocation3 + $0x1] sm:$0x1] %vm1084, %v1608
  %1611 = vst.msk [vmem:[#allocation3 + $0x8] sm:$0x2] %vm1086, %v1608
  %v1612 = vld [vmem:[#allocation2 + $0x2] sm:$0x1]
  %v1613 = vld [vmem:[#allocation2 + $0xa] sm:$0x1]
  %v1615 = vrot.slane %v1613, 7
  %v1617 = vsel %vm564, %v1612, %v1615
  %v1618 = vsel %vm566, %v1608, 0
  %1620 = vmatprep.subr.mxu0 0.0
  %v1621 = vand.u32 %v555, 4294901760
  %1622 = vmatpush1.msra.mxu0 %v1621
  %1623 = vmatprep.subr.mxu0 0.0
  %v1624 = vand.u32 %v556, 4294901760
  %1625 = vmatpush1.msra.mxu0 %v1624
  %1626 = vmatprep.subr.mxu0 0.0
  %v1627 = vand.u32 %v557, 4294901760
  %1628 = vmatpush1.msra.mxu0 %v1627
  %1629 = vmatprep.subr.mxu0 0.0
  %v1630 = vand.u32 %v558, 4294901760
  %1631 = vmatpush1.msra.mxu0 %v1630
  %1632 = vmatprep.subr.mxu0 0.0
  %1633 = vmatpush1.msra.mxu0 0.0
  %1634 = vmatprep.subr.mxu0 0.0
  %1635 = vmatpush1.msra.mxu0 0.0
  %1636 = vmatprep.subr.mxu0 0.0
  %1637 = vmatpush1.msra.mxu0 0.0
  %1638 = vmatprep.subr.mxu0 0.0
  %1639 = vmatpush1.msra.mxu0 0.0
  %1640 = vmatprep.subr.mxu0 0.0
  %1641 = vmatpush1.msra.mxu0 0.0
  %1642 = vmatprep.subr.mxu0 0.0
  %1643 = vmatpush1.msra.mxu0 0.0
  %1644 = vmatprep.subr.mxu0 0.0
  %1645 = vmatpush1.msra.mxu0 0.0
  %1646 = vmatprep.subr.mxu0 0.0
  %1647 = vmatpush1.msra.mxu0 0.0
  %1648 = vmatprep.subr.mxu0 0.0
  %1649 = vmatpush1.msra.mxu0 0.0
  %1650 = vmatprep.subr.mxu0 0.0
  %1651 = vmatpush1.msra.mxu0 0.0
  %1652 = vmatprep.subr.mxu0 0.0
  %1653 = vmatpush1.msra.mxu0 0.0
  %1654 = vmatprep.subr.mxu0 0.0
  %1655 = vmatpush1.msra.mxu0 0.0
  %1656 = vmatprep.subr.mxu0 0.0
  %1657 = vmatpush1.msra.mxu0 0.0
  %1658 = vmatprep.subr.mxu0 0.0
  %1659 = vmatpush1.msra.mxu0 0.0
  %1660 = vmatprep.subr.mxu0 0.0
  %1661 = vmatpush1.msra.mxu0 0.0
  %1662 = vmatprep.subr.mxu0 0.0
  %1663 = vmatpush1.msra.mxu0 0.0
  %1664 = vmatprep.subr.mxu0 0.0
  %1665 = vmatpush1.msra.mxu0 0.0
  %1666 = vmatprep.subr.mxu0 0.0
  %1667 = vmatpush1.msra.mxu0 0.0
  %1668 = vmatprep.subr.mxu0 0.0
  %1669 = vmatpush1.msra.mxu0 0.0
  %1670 = vmatprep.subr.mxu0 0.0
  %1671 = vmatpush1.msra.mxu0 0.0
  %1672 = vmatprep.subr.mxu0 0.0
  %1673 = vmatpush1.msra.mxu0 0.0
  %1674 = vmatprep.subr.mxu0 0.0
  %1675 = vmatpush1.msra.mxu0 0.0
  %1676 = vmatprep.subr.mxu0 0.0
  %1677 = vmatpush1.msra.mxu0 0.0
  %1678 = vmatprep.subr.mxu0 0.0
  %1679 = vmatpush1.msra.mxu0 0.0
  %1680 = vmatprep.subr.mxu0 0.0
  %1681 = vmatpush1.msra.mxu0 0.0
  %1682 = vmatprep.subr.mxu0 0.0
  %1683 = vmatpush1.msra.mxu0 0.0
  %1684 = vmatprep.subr.mxu0 0.0
  %1685 = vmatpush1.msra.mxu0 0.0
  %1686 = vmatprep.subr.mxu0 0.0
  %1687 = vmatpush1.msra.mxu0 0.0
  %1688 = vmatprep.mubr.f32.mxu0 0.0
  %v1689 = vand.u32 %v1618, 4294901760
  %v1690 = vsub.f32 %v1618, %v1689
  %v1691 = vand.u32 %v1690, 4294901760
  %v1692 = vsub.f32 %v1690, %v1691
  %v1693 = vand.u32 %v1692, 4294901760
  %1694 = vmatmul.mubr.f32.gmra.mrb[0].mxu0 %v1693
  %v1695 = vpop.f32.mrb[0].mxu0
  %v1696 = vadd.f32 0.0, %v1695
  %v1697 = vpop.f32.mrb[0].mxu0
  %1698 = vdwg.mxu0
  %1699 = vmatprep.subr.mxu0 0.0
  %v1700 = vand.u32 %v555, 4294901760
  %v1701 = vsub.f32 %v555, %v1700
  %v1702 = vand.u32 %v1701, 4294901760
  %v1703 = vsub.f32 %v1701, %v1702
  %v1704 = vand.u32 %v1703, 4294901760
  %1705 = vmatpush1.msra.mxu0 %v1704
  %1706 = vmatprep.subr.mxu0 0.0
  %v1707 = vand.u32 %v556, 4294901760
  %v1708 = vsub.f32 %v556, %v1707
  %v1709 = vand.u32 %v1708, 4294901760
  %v1710 = vsub.f32 %v1708, %v1709
  %v1711 = vand.u32 %v1710, 4294901760
  %1712 = vmatpush1.msra.mxu0 %v1711
  %1713 = vmatprep.subr.mxu0 0.0
  %v1714 = vand.u32 %v557, 4294901760
  %v1715 = vsub.f32 %v557, %v1714
  %v1716 = vand.u32 %v1715, 4294901760
  %v1717 = vsub.f32 %v1715, %v1716
  %v1718 = vand.u32 %v1717, 4294901760
  %1719 = vmatpush1.msra.mxu0 %v1718
  %1720 = vmatprep.subr.mxu0 0.0
  %v1721 = vand.u32 %v558, 4294901760
  %v1722 = vsub.f32 %v558, %v1721
  %v1723 = vand.u32 %v1722, 4294901760
  %v1724 = vsub.f32 %v1722, %v1723
  %v1725 = vand.u32 %v1724, 4294901760
  %1726 = vmatpush1.msra.mxu0 %v1725
  %1727 = vmatprep.subr.mxu0 0.0
  %1728 = vmatpush1.msra.mxu0 0.0
  %1729 = vmatprep.subr.mxu0 0.0
  %1730 = vmatpush1.msra.mxu0 0.0
  %1731 = vmatprep.subr.mxu0 0.0
  %1732 = vmatpush1.msra.mxu0 0.0
  %1733 = vmatprep.subr.mxu0 0.0
  %1734 = vmatpush1.msra.mxu0 0.0
  %1735 = vmatprep.subr.mxu0 0.0
  %1736 = vmatpush1.msra.mxu0 0.0
  %1737 = vmatprep.subr.mxu0 0.0
  %1738 = vmatpush1.msra.mxu0 0.0
  %1739 = vmatprep.subr.mxu0 0.0
  %1740 = vmatpush1.msra.mxu0 0.0
  %1741 = vmatprep.subr.mxu0 0.0
  %1742 = vmatpush1.msra.mxu0 0.0
  %1743 = vmatprep.subr.mxu0 0.0
  %1744 = vmatpush1.msra.mxu0 0.0
  %1745 = vmatprep.subr.mxu0 0.0
  %1746 = vmatpush1.msra.mxu0 0.0
  %1747 = vmatprep.subr.mxu0 0.0
  %1748 = vmatpush1.msra.mxu0 0.0
  %1749 = vmatprep.subr.mxu0 0.0
  %1750 = vmatpush1.msra.mxu0 0.0
  %1751 = vmatprep.subr.mxu0 0.0
  %1752 = vmatpush1.msra.mxu0 0.0
  %1753 = vmatprep.subr.mxu0 0.0
  %1754 = vmatpush1.msra.mxu0 0.0
  %1755 = vmatprep.subr.mxu0 0.0
  %1756 = vmatpush1.msra.mxu0 0.0
  %1757 = vmatprep.subr.mxu0 0.0
  %1758 = vmatpush1.msra.mxu0 0.0
  %1759 = vmatprep.subr.mxu0 0.0
  %1760 = vmatpush1.msra.mxu0 0.0
  %1761 = vmatprep.subr.mxu0 0.0
  %1762 = vmatpush1.msra.mxu0 0.0
  %1763 = vmatprep.subr.mxu0 0.0
  %1764 = vmatpush1.msra.mxu0 0.0
  %1765 = vmatprep.subr.mxu0 0.0
  %1766 = vmatpush1.msra.mxu0 0.0
  %1767 = vmatprep.subr.mxu0 0.0
  %1768 = vmatpush1.msra.mxu0 0.0
  %1769 = vmatprep.subr.mxu0 0.0
  %1770 = vmatpush1.msra.mxu0 0.0
  %1771 = vmatprep.subr.mxu0 0.0
  %1772 = vmatpush1.msra.mxu0 0.0
  %1773 = vmatprep.subr.mxu0 0.0
  %1774 = vmatpush1.msra.mxu0 0.0
  %1775 = vmatprep.subr.mxu0 0.0
  %1776 = vmatpush1.msra.mxu0 0.0
  %1777 = vmatprep.subr.mxu0 0.0
  %1778 = vmatpush1.msra.mxu0 0.0
  %1779 = vmatprep.subr.mxu0 0.0
  %1780 = vmatpush1.msra.mxu0 0.0
  %1781 = vmatprep.subr.mxu0 0.0
  %1782 = vmatpush1.msra.mxu0 0.0
  %1783 = vmatprep.mubr.f32.mxu0 0.0
  %v1784 = vand.u32 %v1618, 4294901760
  %1785 = vmatmul.mubr.f32.gmra.mrb[0].mxu0 %v1784
  %v1786 = vpop.f32.mrb[0].mxu0
  %v1787 = vadd.f32 %v1696, %v1786
  %v1788 = vpop.f32.mrb[0].mxu0
  %1789 = vdwg.mxu0
  %1790 = vmatprep.subr.mxu0 0.0
  %v1791 = vand.u32 %v555, 4294901760
  %v1792 = vsub.f32 %v555, %v1791
  %1793 = vmatpush1.msra.mxu0 %v1792
  %1794 = vmatprep.subr.mxu0 0.0
  %v1795 = vand.u32 %v556, 4294901760
  %v1796 = vsub.f32 %v556, %v1795
  %1797 = vmatpush1.msra.mxu0 %v1796
  %1798 = vmatprep.subr.mxu0 0.0
  %v1799 = vand.u32 %v557, 4294901760
  %v1800 = vsub.f32 %v557, %v1799
  %1801 = vmatpush1.msra.mxu0 %v1800
  %1802 = vmatprep.subr.mxu0 0.0
  %v1803 = vand.u32 %v558, 4294901760
  %v1804 = vsub.f32 %v558, %v1803
  %1805 = vmatpush1.msra.mxu0 %v1804
  %1806 = vmatprep.subr.mxu0 0.0
  %1807 = vmatpush1.msra.mxu0 0.0
  %1808 = vmatprep.subr.mxu0 0.0
  %1809 = vmatpush1.msra.mxu0 0.0
  %1810 = vmatprep.subr.mxu0 0.0
  %1811 = vmatpush1.msra.mxu0 0.0
  %1812 = vmatprep.subr.mxu0 0.0
  %1813 = vmatpush1.msra.mxu0 0.0
  %1814 = vmatprep.subr.mxu0 0.0
  %1815 = vmatpush1.msra.mxu0 0.0
  %1816 = vmatprep.subr.mxu0 0.0
  %1817 = vmatpush1.msra.mxu0 0.0
  %1818 = vmatprep.subr.mxu0 0.0
  %1819 = vmatpush1.msra.mxu0 0.0
  %1820 = vmatprep.subr.mxu0 0.0
  %1821 = vmatpush1.msra.mxu0 0.0
  %1822 = vmatprep.subr.mxu0 0.0
  %1823 = vmatpush1.msra.mxu0 0.0
  %1824 = vmatprep.subr.mxu0 0.0
  %1825 = vmatpush1.msra.mxu0 0.0
  %1826 = vmatprep.subr.mxu0 0.0
  %1827 = vmatpush1.msra.mxu0 0.0
  %1828 = vmatprep.subr.mxu0 0.0
  %1829 = vmatpush1.msra.mxu0 0.0
  %1830 = vmatprep.subr.mxu0 0.0
  %1831 = vmatpush1.msra.mxu0 0.0
  %1832 = vmatprep.subr.mxu0 0.0
  %1833 = vmatpush1.msra.mxu0 0.0
  %1834 = vmatprep.subr.mxu0 0.0
  %1835 = vmatpush1.msra.mxu0 0.0
  %1836 = vmatprep.subr.mxu0 0.0
  %1837 = vmatpush1.msra.mxu0 0.0
  %1838 = vmatprep.subr.mxu0 0.0
  %1839 = vmatpush1.msra.mxu0 0.0
  %1840 = vmatprep.subr.mxu0 0.0
  %1841 = vmatpush1.msra.mxu0 0.0
  %1842 = vmatprep.subr.mxu0 0.0
  %1843 = vmatpush1.msra.mxu0 0.0
  %1844 = vmatprep.subr.mxu0 0.0
  %1845 = vmatpush1.msra.mxu0 0.0
  %1846 = vmatprep.subr.mxu0 0.0
  %1847 = vmatpush1.msra.mxu0 0.0
  %1848 = vmatprep.subr.mxu0 0.0
  %1849 = vmatpush1.msra.mxu0 0.0
  %1850 = vmatprep.subr.mxu0 0.0
  %1851 = vmatpush1.msra.mxu0 0.0
  %1852 = vmatprep.subr.mxu0 0.0
  %1853 = vmatpush1.msra.mxu0 0.0
  %1854 = vmatprep.subr.mxu0 0.0
  %1855 = vmatpush1.msra.mxu0 0.0
  %1856 = vmatprep.subr.mxu0 0.0
  %1857 = vmatpush1.msra.mxu0 0.0
  %1858 = vmatprep.subr.mxu0 0.0
  %1859 = vmatpush1.msra.mxu0 0.0
  %1860 = vmatprep.subr.mxu0 0.0
  %1861 = vmatpush1.msra.mxu0 0.0
  %1862 = vmatprep.mubr.f32.mxu0 0.0
  %v1863 = vand.u32 %v1618, 4294901760
  %v1864 = vsub.f32 %v1618, %v1863
  %1865 = vmatmul.mubr.f32.gmra.mrb[0].mxu0 %v1864
  %v1866 = vpop.f32.mrb[0].mxu0
  %v1867 = vadd.f32 %v1787, %v1866
  %v1868 = vpop.f32.mrb[0].mxu0
  %1869 = vdwg.mxu0
  %1870 = vmatprep.subr.mxu0 0.0
  %v1871 = vand.u32 %v555, 4294901760
  %1872 = vmatpush1.msra.mxu0 %v1871
  %1873 = vmatprep.subr.mxu0 0.0
  %v1874 = vand.u32 %v556, 4294901760
  %1875 = vmatpush1.msra.mxu0 %v1874
  %1876 = vmatprep.subr.mxu0 0.0
  %v1877 = vand.u32 %v557, 4294901760
  %1878 = vmatpush1.msra.mxu0 %v1877
  %1879 = vmatprep.subr.mxu0 0.0
  %v1880 = vand.u32 %v558, 4294901760
  %1881 = vmatpush1.msra.mxu0 %v1880
  %1882 = vmatprep.subr.mxu0 0.0
  %1883 = vmatpush1.msra.mxu0 0.0
  %1884 = vmatprep.subr.mxu0 0.0
  %1885 = vmatpush1.msra.mxu0 0.0
  %1886 = vmatprep.subr.mxu0 0.0
  %1887 = vmatpush1.msra.mxu0 0.0
  %1888 = vmatprep.subr.mxu0 0.0
  %1889 = vmatpush1.msra.mxu0 0.0
  %1890 = vmatprep.subr.mxu0 0.0
  %1891 = vmatpush1.msra.mxu0 0.0
  %1892 = vmatprep.subr.mxu0 0.0
  %1893 = vmatpush1.msra.mxu0 0.0
  %1894 = vmatprep.subr.mxu0 0.0
  %1895 = vmatpush1.msra.mxu0 0.0
  %1896 = vmatprep.subr.mxu0 0.0
  %1897 = vmatpush1.msra.mxu0 0.0
  %1898 = vmatprep.subr.mxu0 0.0
  %1899 = vmatpush1.msra.mxu0 0.0
  %1900 = vmatprep.subr.mxu0 0.0
  %1901 = vmatpush1.msra.mxu0 0.0
  %1902 = vmatprep.subr.mxu0 0.0
  %1903 = vmatpush1.msra.mxu0 0.0
  %1904 = vmatprep.subr.mxu0 0.0
  %1905 = vmatpush1.msra.mxu0 0.0
  %1906 = vmatprep.subr.mxu0 0.0
  %1907 = vmatpush1.msra.mxu0 0.0
  %1908 = vmatprep.subr.mxu0 0.0
  %1909 = vmatpush1.msra.mxu0 0.0
  %1910 = vmatprep.subr.mxu0 0.0
  %1911 = vmatpush1.msra.mxu0 0.0
  %1912 = vmatprep.subr.mxu0 0.0
  %1913 = vmatpush1.msra.mxu0 0.0
  %1914 = vmatprep.subr.mxu0 0.0
  %1915 = vmatpush1.msra.mxu0 0.0
  %1916 = vmatprep.subr.mxu0 0.0
  %1917 = vmatpush1.msra.mxu0 0.0
  %1918 = vmatprep.subr.mxu0 0.0
  %1919 = vmatpush1.msra.mxu0 0.0
  %1920 = vmatprep.subr.mxu0 0.0
  %1921 = vmatpush1.msra.mxu0 0.0
  %1922 = vmatprep.subr.mxu0 0.0
  %1923 = vmatpush1.msra.mxu0 0.0
  %1924 = vmatprep.subr.mxu0 0.0
  %1925 = vmatpush1.msra.mxu0 0.0
  %1926 = vmatprep.subr.mxu0 0.0
  %1927 = vmatpush1.msra.mxu0 0.0
  %1928 = vmatprep.subr.mxu0 0.0
  %1929 = vmatpush1.msra.mxu0 0.0
  %1930 = vmatprep.subr.mxu0 0.0
  %1931 = vmatpush1.msra.mxu0 0.0
  %1932 = vmatprep.subr.mxu0 0.0
  %1933 = vmatpush1.msra.mxu0 0.0
  %1934 = vmatprep.subr.mxu0 0.0
  %1935 = vmatpush1.msra.mxu0 0.0
  %1936 = vmatprep.subr.mxu0 0.0
  %1937 = vmatpush1.msra.mxu0 0.0
  %1938 = vmatprep.mubr.f32.mxu0 0.0
  %v1939 = vand.u32 %v1618, 4294901760
  %v1940 = vsub.f32 %v1618, %v1939
  %v1941 = vand.u32 %v1940, 4294901760
  %1942 = vmatmul.mubr.f32.gmra.mrb[0].mxu0 %v1941
  %v1943 = vpop.f32.mrb[0].mxu0
  %v1944 = vadd.f32 %v1867, %v1943
  %v1945 = vpop.f32.mrb[0].mxu0
  %1946 = vdwg.mxu0
  %1947 = vmatprep.subr.mxu0 0.0
  %v1948 = vand.u32 %v555, 4294901760
  %v1949 = vsub.f32 %v555, %v1948
  %v1950 = vand.u32 %v1949, 4294901760
  %1951 = vmatpush1.msra.mxu0 %v1950
  %1952 = vmatprep.subr.mxu0 0.0
  %v1953 = vand.u32 %v556, 4294901760
  %v1954 = vsub.f32 %v556, %v1953
  %v1955 = vand.u32 %v1954, 4294901760
  %1956 = vmatpush1.msra.mxu0 %v1955
  %1957 = vmatprep.subr.mxu0 0.0
  %v1958 = vand.u32 %v557, 4294901760
  %v1959 = vsub.f32 %v557, %v1958
  %v1960 = vand.u32 %v1959, 4294901760
  %1961 = vmatpush1.msra.mxu0 %v1960
  %1962 = vmatprep.subr.mxu0 0.0
  %v1963 = vand.u32 %v558, 4294901760
  %v1964 = vsub.f32 %v558, %v1963
  %v1965 = vand.u32 %v1964, 4294901760
  %1966 = vmatpush1.msra.mxu0 %v1965
  %1967 = vmatprep.subr.mxu0 0.0
  %1968 = vmatpush1.msra.mxu0 0.0
  %1969 = vmatprep.subr.mxu0 0.0
  %1970 = vmatpush1.msra.mxu0 0.0
  %1971 = vmatprep.subr.mxu0 0.0
  %1972 = vmatpush1.msra.mxu0 0.0
  %1973 = vmatprep.subr.mxu0 0.0
  %1974 = vmatpush1.msra.mxu0 0.0
  %1975 = vmatprep.subr.mxu0 0.0
  %1976 = vmatpush1.msra.mxu0 0.0
  %1977 = vmatprep.subr.mxu0 0.0
  %1978 = vmatpush1.msra.mxu0 0.0
  %1979 = vmatprep.subr.mxu0 0.0
  %1980 = vmatpush1.msra.mxu0 0.0
  %1981 = vmatprep.subr.mxu0 0.0
  %1982 = vmatpush1.msra.mxu0 0.0
  %1983 = vmatprep.subr.mxu0 0.0
  %1984 = vmatpush1.msra.mxu0 0.0
  %1985 = vmatprep.subr.mxu0 0.0
  %1986 = vmatpush1.msra.mxu0 0.0
  %1987 = vmatprep.subr.mxu0 0.0
  %1988 = vmatpush1.msra.mxu0 0.0
  %1989 = vmatprep.subr.mxu0 0.0
  %1990 = vmatpush1.msra.mxu0 0.0
  %1991 = vmatprep.subr.mxu0 0.0
  %1992 = vmatpush1.msra.mxu0 0.0
  %1993 = vmatprep.subr.mxu0 0.0
  %1994 = vmatpush1.msra.mxu0 0.0
  %1995 = vmatprep.subr.mxu0 0.0
  %1996 = vmatpush1.msra.mxu0 0.0
  %1997 = vmatprep.subr.mxu0 0.0
  %1998 = vmatpush1.msra.mxu0 0.0
  %1999 = vmatprep.subr.mxu0 0.0
  %2000 = vmatpush1.msra.mxu0 0.0
  %2001 = vmatprep.subr.mxu0 0.0
  %2002 = vmatpush1.msra.mxu0 0.0
  %2003 = vmatprep.subr.mxu0 0.0
  %2004 = vmatpush1.msra.mxu0 0.0
  %2005 = vmatprep.subr.mxu0 0.0
  %2006 = vmatpush1.msra.mxu0 0.0
  %2007 = vmatprep.subr.mxu0 0.0
  %2008 = vmatpush1.msra.mxu0 0.0
  %2009 = vmatprep.subr.mxu0 0.0
  %2010 = vmatpush1.msra.mxu0 0.0
  %2011 = vmatprep.subr.mxu0 0.0
  %2012 = vmatpush1.msra.mxu0 0.0
  %2013 = vmatprep.subr.mxu0 0.0
  %2014 = vmatpush1.msra.mxu0 0.0
  %2015 = vmatprep.subr.mxu0 0.0
  %2016 = vmatpush1.msra.mxu0 0.0
  %2017 = vmatprep.subr.mxu0 0.0
  %2018 = vmatpush1.msra.mxu0 0.0
  %2019 = vmatprep.subr.mxu0 0.0
  %2020 = vmatpush1.msra.mxu0 0.0
  %2021 = vmatprep.subr.mxu0 0.0
  %2022 = vmatpush1.msra.mxu0 0.0
  %2023 = vmatprep.mubr.f32.mxu0 0.0
  %v2024 = vand.u32 %v1618, 4294901760
  %2025 = vmatmul.mubr.f32.gmra.mrb[0].mxu0 %v2024
  %v2026 = vpop.f32.mrb[0].mxu0
  %v2027 = vadd.f32 %v1944, %v2026
  %v2028 = vpop.f32.mrb[0].mxu0
  %2029 = vdwg.mxu0
  %2030 = vmatprep.subr.mxu0 0.0
  %v2031 = vand.u32 %v555, 4294901760
  %2032 = vmatpush1.msra.mxu0 %v2031
  %2033 = vmatprep.subr.mxu0 0.0
  %v2034 = vand.u32 %v556, 4294901760
  %2035 = vmatpush1.msra.mxu0 %v2034
  %2036 = vmatprep.subr.mxu0 0.0
  %v2037 = vand.u32 %v557, 4294901760
  %2038 = vmatpush1.msra.mxu0 %v2037
  %2039 = vmatprep.subr.mxu0 0.0
  %v2040 = vand.u32 %v558, 4294901760
  %2041 = vmatpush1.msra.mxu0 %v2040
  %2042 = vmatprep.subr.mxu0 0.0
  %2043 = vmatpush1.msra.mxu0 0.0
  %2044 = vmatprep.subr.mxu0 0.0
  %2045 = vmatpush1.msra.mxu0 0.0
  %2046 = vmatprep.subr.mxu0 0.0
  %2047 = vmatpush1.msra.mxu0 0.0
  %2048 = vmatprep.subr.mxu0 0.0
  %2049 = vmatpush1.msra.mxu0 0.0
  %2050 = vmatprep.subr.mxu0 0.0
  %2051 = vmatpush1.msra.mxu0 0.0
  %2052 = vmatprep.subr.mxu0 0.0
  %2053 = vmatpush1.msra.mxu0 0.0
  %2054 = vmatprep.subr.mxu0 0.0
  %2055 = vmatpush1.msra.mxu0 0.0
  %2056 = vmatprep.subr.mxu0 0.0
  %2057 = vmatpush1.msra.mxu0 0.0
  %2058 = vmatprep.subr.mxu0 0.0
  %2059 = vmatpush1.msra.mxu0 0.0
  %2060 = vmatprep.subr.mxu0 0.0
  %2061 = vmatpush1.msra.mxu0 0.0
  %2062 = vmatprep.subr.mxu0 0.0
  %2063 = vmatpush1.msra.mxu0 0.0
  %2064 = vmatprep.subr.mxu0 0.0
  %2065 = vmatpush1.msra.mxu0 0.0
  %2066 = vmatprep.subr.mxu0 0.0
  %2067 = vmatpush1.msra.mxu0 0.0
  %2068 = vmatprep.subr.mxu0 0.0
  %2069 = vmatpush1.msra.mxu0 0.0
  %2070 = vmatprep.subr.mxu0 0.0
  %2071 = vmatpush1.msra.mxu0 0.0
  %2072 = vmatprep.subr.mxu0 0.0
  %2073 = vmatpush1.msra.mxu0 0.0
  %2074 = vmatprep.subr.mxu0 0.0
  %2075 = vmatpush1.msra.mxu0 0.0
  %2076 = vmatprep.subr.mxu0 0.0
  %2077 = vmatpush1.msra.mxu0 0.0
  %2078 = vmatprep.subr.mxu0 0.0
  %2079 = vmatpush1.msra.mxu0 0.0
  %2080 = vmatprep.subr.mxu0 0.0
  %2081 = vmatpush1.msra.mxu0 0.0
  %2082 = vmatprep.subr.mxu0 0.0
  %2083 = vmatpush1.msra.mxu0 0.0
  %2084 = vmatprep.subr.mxu0 0.0
  %2085 = vmatpush1.msra.mxu0 0.0
  %2086 = vmatprep.subr.mxu0 0.0
  %2087 = vmatpush1.msra.mxu0 0.0
  %2088 = vmatprep.subr.mxu0 0.0
  %2089 = vmatpush1.msra.mxu0 0.0
  %2090 = vmatprep.subr.mxu0 0.0
  %2091 = vmatpush1.msra.mxu0 0.0
  %2092 = vmatprep.subr.mxu0 0.0
  %2093 = vmatpush1.msra.mxu0 0.0
  %2094 = vmatprep.subr.mxu0 0.0
  %2095 = vmatpush1.msra.mxu0 0.0
  %2096 = vmatprep.subr.mxu0 0.0
  %2097 = vmatpush1.msra.mxu0 0.0
  %2098 = vmatprep.mubr.f32.mxu0 0.0
  %v2099 = vand.u32 %v1618, 4294901760
  %2100 = vmatmul.mubr.f32.gmra.mrb[0].mxu0 %v2099
  %v2101 = vpop.f32.mrb[0].mxu0
  %v2102 = vadd.f32 %v2027, %v2101
  %v2103 = vpop.f32.mrb[0].mxu0
  %2104 = vdwg.mxu0
  %v2105 = vadd.f32 %v1617, %v2102
  %v2106 = vxor.u32 %v2105, 2147483648
  %v2107 = vmul.f32 %v2106, 1.442695
  %v2108 = vpow.pop %v2107
  %v2109 = vadd.f32 %v2108, 1.0
  %v2110 = vrcp.pop %v2109
  %v2111 = vmul.f32 1.0, %v2110
  %v2112 = vtanh.pop %v2105
  %v2113 = vmul.f32 %v2111, %v1599
  %2115 = vrot.lane.b32.xlu0 %v2112, 64
  %v2116 = vpop.permute.xlu0 %2115
  %v2118 = vmul.f32 %v2111, %v2116
  %2120 = vrot.lane.b32.xlu0 %v2118, 32
  %v2121 = vpop.permute.xlu0 %2120
  %v2123 = vadd.f32 %v2113, %v2121
  %v2124 = vtanh.pop %v2123
  %2126 = vrot.lane.b32.xlu0 %v2124, 64
  %v2127 = vpop.permute.xlu0 %2126
  %v2129 = vmul.f32 %v2111, %v2127
  %2131 = vrot.lane.b32.xlu0 %v2129, 32
  %v2132 = vpop.permute.xlu0 %2131
  %2134 = vst.msk [vmem:[#allocation3 + $0x2] sm:$0x1] %vm1084, %v2132
  %2135 = vst.msk [vmem:[#allocation3 + $0x9] sm:$0x2] %vm1086, %v2132
  %v2136 = vld [vmem:[#allocation2 + $0x3] sm:$0x1]
  %v2137 = vld [vmem:[#allocation2 + $0xb] sm:$0x1]
  %v2139 = vrot.slane %v2137, 7
  %v2141 = vsel %vm564, %v2136, %v2139
  %v2142 = vsel %vm566, %v2132, 0
  %2144 = vmatprep.subr.mxu0 0.0
  %v2145 = vand.u32 %v555, 4294901760
  %2146 = vmatpush1.msra.mxu0 %v2145
  %2147 = vmatprep.subr.mxu0 0.0
  %v2148 = vand.u32 %v556, 4294901760
  %2149 = vmatpush1.msra.mxu0 %v2148
  %2150 = vmatprep.subr.mxu0 0.0
  %v2151 = vand.u32 %v557, 4294901760
  %2152 = vmatpush1.msra.mxu0 %v2151
  %2153 = vmatprep.subr.mxu0 0.0
  %v2154 = vand.u32 %v558, 4294901760
  %2155 = vmatpush1.msra.mxu0 %v2154
  %2156 = vmatprep.subr.mxu0 0.0
  %2157 = vmatpush1.msra.mxu0 0.0
  %2158 = vmatprep.subr.mxu0 0.0
  %2159 = vmatpush1.msra.mxu0 0.0
  %2160 = vmatprep.subr.mxu0 0.0
  %2161 = vmatpush1.msra.mxu0 0.0
  %2162 = vmatprep.subr.mxu0 0.0
  %2163 = vmatpush1.msra.mxu0 0.0
  %2164 = vmatprep.subr.mxu0 0.0
  %2165 = vmatpush1.msra.mxu0 0.0
  %2166 = vmatprep.subr.mxu0 0.0
  %2167 = vmatpush1.msra.mxu0 0.0
  %2168 = vmatprep.subr.mxu0 0.0
  %2169 = vmatpush1.msra.mxu0 0.0
  %2170 = vmatprep.subr.mxu0 0.0
  %2171 = vmatpush1.msra.mxu0 0.0
  %2172 = vmatprep.subr.mxu0 0.0
  %2173 = vmatpush1.msra.mxu0 0.0
  %2174 = vmatprep.subr.mxu0 0.0
  %2175 = vmatpush1.msra.mxu0 0.0
  %2176 = vmatprep.subr.mxu0 0.0
  %2177 = vmatpush1.msra.mxu0 0.0
  %2178 = vmatprep.subr.mxu0 0.0
  %2179 = vmatpush1.msra.mxu0 0.0
  %2180 = vmatprep.subr.mxu0 0.0
  %2181 = vmatpush1.msra.mxu0 0.0
  %2182 = vmatprep.subr.mxu0 0.0
  %2183 = vmatpush1.msra.mxu0 0.0
  %2184 = vmatprep.subr.mxu0 0.0
  %2185 = vmatpush1.msra.mxu0 0.0
  %2186 = vmatprep.subr.mxu0 0.0
  %2187 = vmatpush1.msra.mxu0 0.0
  %2188 = vmatprep.subr.mxu0 0.0
  %2189 = vmatpush1.msra.mxu0 0.0
  %2190 = vmatprep.subr.mxu0 0.0
  %2191 = vmatpush1.msra.mxu0 0.0
  %2192 = vmatprep.subr.mxu0 0.0
  %2193 = vmatpush1.msra.mxu0 0.0
  %2194 = vmatprep.subr.mxu0 0.0
  %2195 = vmatpush1.msra.mxu0 0.0
  %2196 = vmatprep.subr.mxu0 0.0
  %2197 = vmatpush1.msra.mxu0 0.0
  %2198 = vmatprep.subr.mxu0 0.0
  %2199 = vmatpush1.msra.mxu0 0.0
  %2200 = vmatprep.subr.mxu0 0.0
  %2201 = vmatpush1.msra.mxu0 0.0
  %2202 = vmatprep.subr.mxu0 0.0
  %2203 = vmatpush1.msra.mxu0 0.0
  %2204 = vmatprep.subr.mxu0 0.0
  %2205 = vmatpush1.msra.mxu0 0.0
  %2206 = vmatprep.subr.mxu0 0.0
  %2207 = vmatpush1.msra.mxu0 0.0
  %2208 = vmatprep.subr.mxu0 0.0
  %2209 = vmatpush1.msra.mxu0 0.0
  %2210 = vmatprep.subr.mxu0 0.0
  %2211 = vmatpush1.msra.mxu0 0.0
  %2212 = vmatprep.mubr.f32.mxu0 0.0
  %v2213 = vand.u32 %v2142, 4294901760
  %v2214 = vsub.f32 %v2142, %v2213
  %v2215 = vand.u32 %v2214, 4294901760
  %v2216 = vsub.f32 %v2214, %v2215
  %v2217 = vand.u32 %v2216, 4294901760
  %2218 = vmatmul.mubr.f32.gmra.mrb[0].mxu0 %v2217
  %v2219 = vpop.f32.mrb[0].mxu0
  %v2220 = vadd.f32 0.0, %v2219
  %v2221 = vpop.f32.mrb[0].mxu0
  %2222 = vdwg.mxu0
  %2223 = vmatprep.subr.mxu0 0.0
  %v2224 = vand.u32 %v555, 4294901760
  %v2225 = vsub.f32 %v555, %v2224
  %v2226 = vand.u32 %v2225, 4294901760
  %v2227 = vsub.f32 %v2225, %v2226
  %v2228 = vand.u32 %v2227, 4294901760
  %2229 = vmatpush1.msra.mxu0 %v2228
  %2230 = vmatprep.subr.mxu0 0.0
  %v2231 = vand.u32 %v556, 4294901760
  %v2232 = vsub.f32 %v556, %v2231
  %v2233 = vand.u32 %v2232, 4294901760
  %v2234 = vsub.f32 %v2232, %v2233
  %v2235 = vand.u32 %v2234, 4294901760
  %2236 = vmatpush1.msra.mxu0 %v2235
  %2237 = vmatprep.subr.mxu0 0.0
  %v2238 = vand.u32 %v557, 4294901760
  %v2239 = vsub.f32 %v557, %v2238
  %v2240 = vand.u32 %v2239, 4294901760
  %v2241 = vsub.f32 %v2239, %v2240
  %v2242 = vand.u32 %v2241, 4294901760
  %2243 = vmatpush1.msra.mxu0 %v2242
  %2244 = vmatprep.subr.mxu0 0.0
  %v2245 = vand.u32 %v558, 4294901760
  %v2246 = vsub.f32 %v558, %v2245
  %v2247 = vand.u32 %v2246, 4294901760
  %v2248 = vsub.f32 %v2246, %v2247
  %v2249 = vand.u32 %v2248, 4294901760
  %2250 = vmatpush1.msra.mxu0 %v2249
  %2251 = vmatprep.subr.mxu0 0.0
  %2252 = vmatpush1.msra.mxu0 0.0
  %2253 = vmatprep.subr.mxu0 0.0
  %2254 = vmatpush1.msra.mxu0 0.0
  %2255 = vmatprep.subr.mxu0 0.0
  %2256 = vmatpush1.msra.mxu0 0.0
  %2257 = vmatprep.subr.mxu0 0.0
  %2258 = vmatpush1.msra.mxu0 0.0
  %2259 = vmatprep.subr.mxu0 0.0
  %2260 = vmatpush1.msra.mxu0 0.0
  %2261 = vmatprep.subr.mxu0 0.0
  %2262 = vmatpush1.msra.mxu0 0.0
  %2263 = vmatprep.subr.mxu0 0.0
  %2264 = vmatpush1.msra.mxu0 0.0
  %2265 = vmatprep.subr.mxu0 0.0
  %2266 = vmatpush1.msra.mxu0 0.0
  %2267 = vmatprep.subr.mxu0 0.0
  %2268 = vmatpush1.msra.mxu0 0.0
  %2269 = vmatprep.subr.mxu0 0.0
  %2270 = vmatpush1.msra.mxu0 0.0
  %2271 = vmatprep.subr.mxu0 0.0
  %2272 = vmatpush1.msra.mxu0 0.0
  %2273 = vmatprep.subr.mxu0 0.0
  %2274 = vmatpush1.msra.mxu0 0.0
  %2275 = vmatprep.subr.mxu0 0.0
  %2276 = vmatpush1.msra.mxu0 0.0
  %2277 = vmatprep.subr.mxu0 0.0
  %2278 = vmatpush1.msra.mxu0 0.0
  %2279 = vmatprep.subr.mxu0 0.0
  %2280 = vmatpush1.msra.mxu0 0.0
  %2281 = vmatprep.subr.mxu0 0.0
  %2282 = vmatpush1.msra.mxu0 0.0
  %2283 = vmatprep.subr.mxu0 0.0
  %2284 = vmatpush1.msra.mxu0 0.0
  %2285 = vmatprep.subr.mxu0 0.0
  %2286 = vmatpush1.msra.mxu0 0.0
  %2287 = vmatprep.subr.mxu0 0.0
  %2288 = vmatpush1.msra.mxu0 0.0
  %2289 = vmatprep.subr.mxu0 0.0
  %2290 = vmatpush1.msra.mxu0 0.0
  %2291 = vmatprep.subr.mxu0 0.0
  %2292 = vmatpush1.msra.mxu0 0.0
  %2293 = vmatprep.subr.mxu0 0.0
  %2294 = vmatpush1.msra.mxu0 0.0
  %2295 = vmatprep.subr.mxu0 0.0
  %2296 = vmatpush1.msra.mxu0 0.0
  %2297 = vmatprep.subr.mxu0 0.0
  %2298 = vmatpush1.msra.mxu0 0.0
  %2299 = vmatprep.subr.mxu0 0.0
  %2300 = vmatpush1.msra.mxu0 0.0
  %2301 = vmatprep.subr.mxu0 0.0
  %2302 = vmatpush1.msra.mxu0 0.0
  %2303 = vmatprep.subr.mxu0 0.0
  %2304 = vmatpush1.msra.mxu0 0.0
  %2305 = vmatprep.subr.mxu0 0.0
  %2306 = vmatpush1.msra.mxu0 0.0
  %2307 = vmatprep.mubr.f32.mxu0 0.0
  %v2308 = vand.u32 %v2142, 4294901760
  %2309 = vmatmul.mubr.f32.gmra.mrb[0].mxu0 %v2308
  %v2310 = vpop.f32.mrb[0].mxu0
  %v2311 = vadd.f32 %v2220, %v2310
  %v2312 = vpop.f32.mrb[0].mxu0
  %2313 = vdwg.mxu0
  %2314 = vmatprep.subr.mxu0 0.0
  %v2315 = vand.u32 %v555, 4294901760
  %v2316 = vsub.f32 %v555, %v2315
  %2317 = vmatpush1.msra.mxu0 %v2316
  %2318 = vmatprep.subr.mxu0 0.0
  %v2319 = vand.u32 %v556, 4294901760
  %v2320 = vsub.f32 %v556, %v2319
  %2321 = vmatpush1.msra.mxu0 %v2320
  %2322 = vmatprep.subr.mxu0 0.0
  %v2323 = vand.u32 %v557, 4294901760
  %v2324 = vsub.f32 %v557, %v2323
  %2325 = vmatpush1.msra.mxu0 %v2324
  %2326 = vmatprep.subr.mxu0 0.0
  %v2327 = vand.u32 %v558, 4294901760
  %v2328 = vsub.f32 %v558, %v2327
  %2329 = vmatpush1.msra.mxu0 %v2328
  %2330 = vmatprep.subr.mxu0 0.0
  %2331 = vmatpush1.msra.mxu0 0.0
  %2332 = vmatprep.subr.mxu0 0.0
  %2333 = vmatpush1.msra.mxu0 0.0
  %2334 = vmatprep.subr.mxu0 0.0
  %2335 = vmatpush1.msra.mxu0 0.0
  %2336 = vmatprep.subr.mxu0 0.0
  %2337 = vmatpush1.msra.mxu0 0.0
  %2338 = vmatprep.subr.mxu0 0.0
  %2339 = vmatpush1.msra.mxu0 0.0
  %2340 = vmatprep.subr.mxu0 0.0
  %2341 = vmatpush1.msra.mxu0 0.0
  %2342 = vmatprep.subr.mxu0 0.0
  %2343 = vmatpush1.msra.mxu0 0.0
  %2344 = vmatprep.subr.mxu0 0.0
  %2345 = vmatpush1.msra.mxu0 0.0
  %2346 = vmatprep.subr.mxu0 0.0
  %2347 = vmatpush1.msra.mxu0 0.0
  %2348 = vmatprep.subr.mxu0 0.0
  %2349 = vmatpush1.msra.mxu0 0.0
  %2350 = vmatprep.subr.mxu0 0.0
  %2351 = vmatpush1.msra.mxu0 0.0
  %2352 = vmatprep.subr.mxu0 0.0
  %2353 = vmatpush1.msra.mxu0 0.0
  %2354 = vmatprep.subr.mxu0 0.0
  %2355 = vmatpush1.msra.mxu0 0.0
  %2356 = vmatprep.subr.mxu0 0.0
  %2357 = vmatpush1.msra.mxu0 0.0
  %2358 = vmatprep.subr.mxu0 0.0
  %2359 = vmatpush1.msra.mxu0 0.0
  %2360 = vmatprep.subr.mxu0 0.0
  %2361 = vmatpush1.msra.mxu0 0.0
  %2362 = vmatprep.subr.mxu0 0.0
  %2363 = vmatpush1.msra.mxu0 0.0
  %2364 = vmatprep.subr.mxu0 0.0
  %2365 = vmatpush1.msra.mxu0 0.0
  %2366 = vmatprep.subr.mxu0 0.0
  %2367 = vmatpush1.msra.mxu0 0.0
  %2368 = vmatprep.subr.mxu0 0.0
  %2369 = vmatpush1.msra.mxu0 0.0
  %2370 = vmatprep.subr.mxu0 0.0
  %2371 = vmatpush1.msra.mxu0 0.0
  %2372 = vmatprep.subr.mxu0 0.0
  %2373 = vmatpush1.msra.mxu0 0.0
  %2374 = vmatprep.subr.mxu0 0.0
  %2375 = vmatpush1.msra.mxu0 0.0
  %2376 = vmatprep.subr.mxu0 0.0
  %2377 = vmatpush1.msra.mxu0 0.0
  %2378 = vmatprep.subr.mxu0 0.0
  %2379 = vmatpush1.msra.mxu0 0.0
  %2380 = vmatprep.subr.mxu0 0.0
  %2381 = vmatpush1.msra.mxu0 0.0
  %2382 = vmatprep.subr.mxu0 0.0
  %2383 = vmatpush1.msra.mxu0 0.0
  %2384 = vmatprep.subr.mxu0 0.0
  %2385 = vmatpush1.msra.mxu0 0.0
  %2386 = vmatprep.mubr.f32.mxu0 0.0
  %v2387 = vand.u32 %v2142, 4294901760
  %v2388 = vsub.f32 %v2142, %v2387
  %2389 = vmatmul.mubr.f32.gmra.mrb[0].mxu0 %v2388
  %v2390 = vpop.f32.mrb[0].mxu0
  %v2391 = vadd.f32 %v2311, %v2390
  %v2392 = vpop.f32.mrb[0].mxu0
  %2393 = vdwg.mxu0
  %2394 = vmatprep.subr.mxu0 0.0
  %v2395 = vand.u32 %v555, 4294901760
  %2396 = vmatpush1.msra.mxu0 %v2395
  %2397 = vmatprep.subr.mxu0 0.0
  %v2398 = vand.u32 %v556, 4294901760
  %2399 = vmatpush1.msra.mxu0 %v2398
  %2400 = vmatprep.subr.mxu0 0.0
  %v2401 = vand.u32 %v557, 4294901760
  %2402 = vmatpush1.msra.mxu0 %v2401
  %2403 = vmatprep.subr.mxu0 0.0
  %v2404 = vand.u32 %v558, 4294901760
  %2405 = vmatpush1.msra.mxu0 %v2404
  %2406 = vmatprep.subr.mxu0 0.0
  %2407 = vmatpush1.msra.mxu0 0.0
  %2408 = vmatprep.subr.mxu0 0.0
  %2409 = vmatpush1.msra.mxu0 0.0
  %2410 = vmatprep.subr.mxu0 0.0
  %2411 = vmatpush1.msra.mxu0 0.0
  %2412 = vmatprep.subr.mxu0 0.0
  %2413 = vmatpush1.msra.mxu0 0.0
  %2414 = vmatprep.subr.mxu0 0.0
  %2415 = vmatpush1.msra.mxu0 0.0
  %2416 = vmatprep.subr.mxu0 0.0
  %2417 = vmatpush1.msra.mxu0 0.0
  %2418 = vmatprep.subr.mxu0 0.0
  %2419 = vmatpush1.msra.mxu0 0.0
  %2420 = vmatprep.subr.mxu0 0.0
  %2421 = vmatpush1.msra.mxu0 0.0
  %2422 = vmatprep.subr.mxu0 0.0
  %2423 = vmatpush1.msra.mxu0 0.0
  %2424 = vmatprep.subr.mxu0 0.0
  %2425 = vmatpush1.msra.mxu0 0.0
  %2426 = vmatprep.subr.mxu0 0.0
  %2427 = vmatpush1.msra.mxu0 0.0
  %2428 = vmatprep.subr.mxu0 0.0
  %2429 = vmatpush1.msra.mxu0 0.0
  %2430 = vmatprep.subr.mxu0 0.0
  %2431 = vmatpush1.msra.mxu0 0.0
  %2432 = vmatprep.subr.mxu0 0.0
  %2433 = vmatpush1.msra.mxu0 0.0
  %2434 = vmatprep.subr.mxu0 0.0
  %2435 = vmatpush1.msra.mxu0 0.0
  %2436 = vmatprep.subr.mxu0 0.0
  %2437 = vmatpush1.msra.mxu0 0.0
  %2438 = vmatprep.subr.mxu0 0.0
  %2439 = vmatpush1.msra.mxu0 0.0
  %2440 = vmatprep.subr.mxu0 0.0
  %2441 = vmatpush1.msra.mxu0 0.0
  %2442 = vmatprep.subr.mxu0 0.0
  %2443 = vmatpush1.msra.mxu0 0.0
  %2444 = vmatprep.subr.mxu0 0.0
  %2445 = vmatpush1.msra.mxu0 0.0
  %2446 = vmatprep.subr.mxu0 0.0
  %2447 = vmatpush1.msra.mxu0 0.0
  %2448 = vmatprep.subr.mxu0 0.0
  %2449 = vmatpush1.msra.mxu0 0.0
  %2450 = vmatprep.subr.mxu0 0.0
  %2451 = vmatpush1.msra.mxu0 0.0
  %2452 = vmatprep.subr.mxu0 0.0
  %2453 = vmatpush1.msra.mxu0 0.0
  %2454 = vmatprep.subr.mxu0 0.0
  %2455 = vmatpush1.msra.mxu0 0.0
  %2456 = vmatprep.subr.mxu0 0.0
  %2457 = vmatpush1.msra.mxu0 0.0
  %2458 = vmatprep.subr.mxu0 0.0
  %2459 = vmatpush1.msra.mxu0 0.0
  %2460 = vmatprep.subr.mxu0 0.0
  %2461 = vmatpush1.msra.mxu0 0.0
  %2462 = vmatprep.mubr.f32.mxu0 0.0
  %v2463 = vand.u32 %v2142, 4294901760
  %v2464 = vsub.f32 %v2142, %v2463
  %v2465 = vand.u32 %v2464, 4294901760
  %2466 = vmatmul.mubr.f32.gmra.mrb[0].mxu0 %v2465
  %v2467 = vpop.f32.mrb[0].mxu0
  %v2468 = vadd.f32 %v2391, %v2467
  %v2469 = vpop.f32.mrb[0].mxu0
  %2470 = vdwg.mxu0
  %2471 = vmatprep.subr.mxu0 0.0
  %v2472 = vand.u32 %v555, 4294901760
  %v2473 = vsub.f32 %v555, %v2472
  %v2474 = vand.u32 %v2473, 4294901760
  %2475 = vmatpush1.msra.mxu0 %v2474
  %2476 = vmatprep.subr.mxu0 0.0
  %v2477 = vand.u32 %v556, 4294901760
  %v2478 = vsub.f32 %v556, %v2477
  %v2479 = vand.u32 %v2478, 4294901760
  %2480 = vmatpush1.msra.mxu0 %v2479
  %2481 = vmatprep.subr.mxu0 0.0
  %v2482 = vand.u32 %v557, 4294901760
  %v2483 = vsub.f32 %v557, %v2482
  %v2484 = vand.u32 %v2483, 4294901760
  %2485 = vmatpush1.msra.mxu0 %v2484
  %2486 = vmatprep.subr.mxu0 0.0
  %v2487 = vand.u32 %v558, 4294901760
  %v2488 = vsub.f32 %v558, %v2487
  %v2489 = vand.u32 %v2488, 4294901760
  %2490 = vmatpush1.msra.mxu0 %v2489
  %2491 = vmatprep.subr.mxu0 0.0
  %2492 = vmatpush1.msra.mxu0 0.0
  %2493 = vmatprep.subr.mxu0 0.0
  %2494 = vmatpush1.msra.mxu0 0.0
  %2495 = vmatprep.subr.mxu0 0.0
  %2496 = vmatpush1.msra.mxu0 0.0
  %2497 = vmatprep.subr.mxu0 0.0
  %2498 = vmatpush1.msra.mxu0 0.0
  %2499 = vmatprep.subr.mxu0 0.0
  %2500 = vmatpush1.msra.mxu0 0.0
  %2501 = vmatprep.subr.mxu0 0.0
  %2502 = vmatpush1.msra.mxu0 0.0
  %2503 = vmatprep.subr.mxu0 0.0
  %2504 = vmatpush1.msra.mxu0 0.0
  %2505 = vmatprep.subr.mxu0 0.0
  %2506 = vmatpush1.msra.mxu0 0.0
  %2507 = vmatprep.subr.mxu0 0.0
  %2508 = vmatpush1.msra.mxu0 0.0
  %2509 = vmatprep.subr.mxu0 0.0
  %2510 = vmatpush1.msra.mxu0 0.0
  %2511 = vmatprep.subr.mxu0 0.0
  %2512 = vmatpush1.msra.mxu0 0.0
  %2513 = vmatprep.subr.mxu0 0.0
  %2514 = vmatpush1.msra.mxu0 0.0
  %2515 = vmatprep.subr.mxu0 0.0
  %2516 = vmatpush1.msra.mxu0 0.0
  %2517 = vmatprep.subr.mxu0 0.0
  %2518 = vmatpush1.msra.mxu0 0.0
  %2519 = vmatprep.subr.mxu0 0.0
  %2520 = vmatpush1.msra.mxu0 0.0
  %2521 = vmatprep.subr.mxu0 0.0
  %2522 = vmatpush1.msra.mxu0 0.0
  %2523 = vmatprep.subr.mxu0 0.0
  %2524 = vmatpush1.msra.mxu0 0.0
  %2525 = vmatprep.subr.mxu0 0.0
  %2526 = vmatpush1.msra.mxu0 0.0
  %2527 = vmatprep.subr.mxu0 0.0
  %2528 = vmatpush1.msra.mxu0 0.0
  %2529 = vmatprep.subr.mxu0 0.0
  %2530 = vmatpush1.msra.mxu0 0.0
  %2531 = vmatprep.subr.mxu0 0.0
  %2532 = vmatpush1.msra.mxu0 0.0
  %2533 = vmatprep.subr.mxu0 0.0
  %2534 = vmatpush1.msra.mxu0 0.0
  %2535 = vmatprep.subr.mxu0 0.0
  %2536 = vmatpush1.msra.mxu0 0.0
  %2537 = vmatprep.subr.mxu0 0.0
  %2538 = vmatpush1.msra.mxu0 0.0
  %2539 = vmatprep.subr.mxu0 0.0
  %2540 = vmatpush1.msra.mxu0 0.0
  %2541 = vmatprep.subr.mxu0 0.0
  %2542 = vmatpush1.msra.mxu0 0.0
  %2543 = vmatprep.subr.mxu0 0.0
  %2544 = vmatpush1.msra.mxu0 0.0
  %2545 = vmatprep.subr.mxu0 0.0
  %2546 = vmatpush1.msra.mxu0 0.0
  %2547 = vmatprep.mubr.f32.mxu0 0.0
  %v2548 = vand.u32 %v2142, 4294901760
  %2549 = vmatmul.mubr.f32.gmra.mrb[0].mxu0 %v2548
  %v2550 = vpop.f32.mrb[0].mxu0
  %v2551 = vadd.f32 %v2468, %v2550
  %v2552 = vpop.f32.mrb[0].mxu0
  %2553 = vdwg.mxu0
  %2554 = vmatprep.subr.mxu0 0.0
  %v2555 = vand.u32 %v555, 4294901760
  %2556 = vmatpush1.msra.mxu0 %v2555
  %2557 = vmatprep.subr.mxu0 0.0
  %v2558 = vand.u32 %v556, 4294901760
  %2559 = vmatpush1.msra.mxu0 %v2558
  %2560 = vmatprep.subr.mxu0 0.0
  %v2561 = vand.u32 %v557, 4294901760
  %2562 = vmatpush1.msra.mxu0 %v2561
  %2563 = vmatprep.subr.mxu0 0.0
  %v2564 = vand.u32 %v558, 4294901760
  %2565 = vmatpush1.msra.mxu0 %v2564
  %2566 = vmatprep.subr.mxu0 0.0
  %2567 = vmatpush1.msra.mxu0 0.0
  %2568 = vmatprep.subr.mxu0 0.0
  %2569 = vmatpush1.msra.mxu0 0.0
  %2570 = vmatprep.subr.mxu0 0.0
  %2571 = vmatpush1.msra.mxu0 0.0
  %2572 = vmatprep.subr.mxu0 0.0
  %2573 = vmatpush1.msra.mxu0 0.0
  %2574 = vmatprep.subr.mxu0 0.0
  %2575 = vmatpush1.msra.mxu0 0.0
  %2576 = vmatprep.subr.mxu0 0.0
  %2577 = vmatpush1.msra.mxu0 0.0
  %2578 = vmatprep.subr.mxu0 0.0
  %2579 = vmatpush1.msra.mxu0 0.0
  %2580 = vmatprep.subr.mxu0 0.0
  %2581 = vmatpush1.msra.mxu0 0.0
  %2582 = vmatprep.subr.mxu0 0.0
  %2583 = vmatpush1.msra.mxu0 0.0
  %2584 = vmatprep.subr.mxu0 0.0
  %2585 = vmatpush1.msra.mxu0 0.0
  %2586 = vmatprep.subr.mxu0 0.0
  %2587 = vmatpush1.msra.mxu0 0.0
  %2588 = vmatprep.subr.mxu0 0.0
  %2589 = vmatpush1.msra.mxu0 0.0
  %2590 = vmatprep.subr.mxu0 0.0
  %2591 = vmatpush1.msra.mxu0 0.0
  %2592 = vmatprep.subr.mxu0 0.0
  %2593 = vmatpush1.msra.mxu0 0.0
  %2594 = vmatprep.subr.mxu0 0.0
  %2595 = vmatpush1.msra.mxu0 0.0
  %2596 = vmatprep.subr.mxu0 0.0
  %2597 = vmatpush1.msra.mxu0 0.0
  %2598 = vmatprep.subr.mxu0 0.0
  %2599 = vmatpush1.msra.mxu0 0.0
  %2600 = vmatprep.subr.mxu0 0.0
  %2601 = vmatpush1.msra.mxu0 0.0
  %2602 = vmatprep.subr.mxu0 0.0
  %2603 = vmatpush1.msra.mxu0 0.0
  %2604 = vmatprep.subr.mxu0 0.0
  %2605 = vmatpush1.msra.mxu0 0.0
  %2606 = vmatprep.subr.mxu0 0.0
  %2607 = vmatpush1.msra.mxu0 0.0
  %2608 = vmatprep.subr.mxu0 0.0
  %2609 = vmatpush1.msra.mxu0 0.0
  %2610 = vmatprep.subr.mxu0 0.0
  %2611 = vmatpush1.msra.mxu0 0.0
  %2612 = vmatprep.subr.mxu0 0.0
  %2613 = vmatpush1.msra.mxu0 0.0
  %2614 = vmatprep.subr.mxu0 0.0
  %2615 = vmatpush1.msra.mxu0 0.0
  %2616 = vmatprep.subr.mxu0 0.0
  %2617 = vmatpush1.msra.mxu0 0.0
  %2618 = vmatprep.subr.mxu0 0.0
  %2619 = vmatpush1.msra.mxu0 0.0
  %2620 = vmatprep.subr.mxu0 0.0
  %2621 = vmatpush1.msra.mxu0 0.0
  %2622 = vmatprep.mubr.f32.mxu0 0.0
  %v2623 = vand.u32 %v2142, 4294901760
  %2624 = vmatmul.mubr.f32.gmra.mrb[0].mxu0 %v2623
  %v2625 = vpop.f32.mrb[0].mxu0
  %v2626 = vadd.f32 %v2551, %v2625
  %v2627 = vpop.f32.mrb[0].mxu0
  %2628 = vdwg.mxu0
  %v2629 = vadd.f32 %v2141, %v2626
  %v2630 = vxor.u32 %v2629, 2147483648
  %v2631 = vmul.f32 %v2630, 1.442695
  %v2632 = vpow.pop %v2631
  %v2633 = vadd.f32 %v2632, 1.0
  %v2634 = vrcp.pop %v2633
  %v2635 = vmul.f32 1.0, %v2634
  %v2636 = vtanh.pop %v2629
  %v2637 = vmul.f32 %v2635, %v2123
  %2639 = vrot.lane.b32.xlu0 %v2636, 64
  %v2640 = vpop.permute.xlu0 %2639
  %v2642 = vmul.f32 %v2635, %v2640
  %2644 = vrot.lane.b32.xlu0 %v2642, 32
  %v2645 = vpop.permute.xlu0 %2644
  %v2647 = vadd.f32 %v2637, %v2645
  %v2648 = vtanh.pop %v2647
  %2650 = vrot.lane.b32.xlu0 %v2648, 64
  %v2651 = vpop.permute.xlu0 %2650
  %v2653 = vmul.f32 %v2635, %v2651
  %2655 = vrot.lane.b32.xlu0 %v2653, 32
  %v2656 = vpop.permute.xlu0 %2655
  %2658 = vst.msk [vmem:[#allocation3 + $0x3] sm:$0x1] %vm1084, %v2656
  %2659 = vst.msk [vmem:[#allocation3 + $0xa] sm:$0x2] %vm1086, %v2656
  %v2660 = vld [vmem:[#allocation2 + $0x4] sm:$0x1]
  %v2661 = vld [vmem:[#allocation2 + $0xc] sm:$0x1]
  %v2663 = vrot.slane %v2661, 7
  %v2665 = vsel %vm564, %v2660, %v2663
  %v2666 = vsel %vm566, %v2656, 0
  %2668 = vmatprep.subr.mxu0 0.0
  %v2669 = vand.u32 %v555, 4294901760
  %2670 = vmatpush1.msra.mxu0 %v2669
  %2671 = vmatprep.subr.mxu0 0.0
  %v2672 = vand.u32 %v556, 4294901760
  %2673 = vmatpush1.msra.mxu0 %v2672
  %2674 = vmatprep.subr.mxu0 0.0
  %v2675 = vand.u32 %v557, 4294901760
  %2676 = vmatpush1.msra.mxu0 %v2675
  %2677 = vmatprep.subr.mxu0 0.0
  %v2678 = vand.u32 %v558, 4294901760
  %2679 = vmatpush1.msra.mxu0 %v2678
  %2680 = vmatprep.subr.mxu0 0.0
  %2681 = vmatpush1.msra.mxu0 0.0
  %2682 = vmatprep.subr.mxu0 0.0
  %2683 = vmatpush1.msra.mxu0 0.0
  %2684 = vmatprep.subr.mxu0 0.0
  %2685 = vmatpush1.msra.mxu0 0.0
  %2686 = vmatprep.subr.mxu0 0.0
  %2687 = vmatpush1.msra.mxu0 0.0
  %2688 = vmatprep.subr.mxu0 0.0
  %2689 = vmatpush1.msra.mxu0 0.0
  %2690 = vmatprep.subr.mxu0 0.0
  %2691 = vmatpush1.msra.mxu0 0.0
  %2692 = vmatprep.subr.mxu0 0.0
  %2693 = vmatpush1.msra.mxu0 0.0
  %2694 = vmatprep.subr.mxu0 0.0
  %2695 = vmatpush1.msra.mxu0 0.0
  %2696 = vmatprep.subr.mxu0 0.0
  %2697 = vmatpush1.msra.mxu0 0.0
  %2698 = vmatprep.subr.mxu0 0.0
  %2699 = vmatpush1.msra.mxu0 0.0
  %2700 = vmatprep.subr.mxu0 0.0
  %2701 = vmatpush1.msra.mxu0 0.0
  %2702 = vmatprep.subr.mxu0 0.0
  %2703 = vmatpush1.msra.mxu0 0.0
  %2704 = vmatprep.subr.mxu0 0.0
  %2705 = vmatpush1.msra.mxu0 0.0
  %2706 = vmatprep.subr.mxu0 0.0
  %2707 = vmatpush1.msra.mxu0 0.0
  %2708 = vmatprep.subr.mxu0 0.0
  %2709 = vmatpush1.msra.mxu0 0.0
  %2710 = vmatprep.subr.mxu0 0.0
  %2711 = vmatpush1.msra.mxu0 0.0
  %2712 = vmatprep.subr.mxu0 0.0
  %2713 = vmatpush1.msra.mxu0 0.0
  %2714 = vmatprep.subr.mxu0 0.0
  %2715 = vmatpush1.msra.mxu0 0.0
  %2716 = vmatprep.subr.mxu0 0.0
  %2717 = vmatpush1.msra.mxu0 0.0
  %2718 = vmatprep.subr.mxu0 0.0
  %2719 = vmatpush1.msra.mxu0 0.0
  %2720 = vmatprep.subr.mxu0 0.0
  %2721 = vmatpush1.msra.mxu0 0.0
  %2722 = vmatprep.subr.mxu0 0.0
  %2723 = vmatpush1.msra.mxu0 0.0
  %2724 = vmatprep.subr.mxu0 0.0
  %2725 = vmatpush1.msra.mxu0 0.0
  %2726 = vmatprep.subr.mxu0 0.0
  %2727 = vmatpush1.msra.mxu0 0.0
  %2728 = vmatprep.subr.mxu0 0.0
  %2729 = vmatpush1.msra.mxu0 0.0
  %2730 = vmatprep.subr.mxu0 0.0
  %2731 = vmatpush1.msra.mxu0 0.0
  %2732 = vmatprep.subr.mxu0 0.0
  %2733 = vmatpush1.msra.mxu0 0.0
  %2734 = vmatprep.subr.mxu0 0.0
  %2735 = vmatpush1.msra.mxu0 0.0
  %2736 = vmatprep.mubr.f32.mxu0 0.0
  %v2737 = vand.u32 %v2666, 4294901760
  %v2738 = vsub.f32 %v2666, %v2737
  %v2739 = vand.u32 %v2738, 4294901760
  %v2740 = vsub.f32 %v2738, %v2739
  %v2741 = vand.u32 %v2740, 4294901760
  %2742 = vmatmul.mubr.f32.gmra.mrb[0].mxu0 %v2741
  %v2743 = vpop.f32.mrb[0].mxu0
  %v2744 = vadd.f32 0.0, %v2743
  %v2745 = vpop.f32.mrb[0].mxu0
  %2746 = vdwg.mxu0
  %2747 = vmatprep.subr.mxu0 0.0
  %v2748 = vand.u32 %v555, 4294901760
  %v2749 = vsub.f32 %v555, %v2748
  %v2750 = vand.u32 %v2749, 4294901760
  %v2751 = vsub.f32 %v2749, %v2750
  %v2752 = vand.u32 %v2751, 4294901760
  %2753 = vmatpush1.msra.mxu0 %v2752
  %2754 = vmatprep.subr.mxu0 0.0
  %v2755 = vand.u32 %v556, 4294901760
  %v2756 = vsub.f32 %v556, %v2755
  %v2757 = vand.u32 %v2756, 4294901760
  %v2758 = vsub.f32 %v2756, %v2757
  %v2759 = vand.u32 %v2758, 4294901760
  %2760 = vmatpush1.msra.mxu0 %v2759
  %2761 = vmatprep.subr.mxu0 0.0
  %v2762 = vand.u32 %v557, 4294901760
  %v2763 = vsub.f32 %v557, %v2762
  %v2764 = vand.u32 %v2763, 4294901760
  %v2765 = vsub.f32 %v2763, %v2764
  %v2766 = vand.u32 %v2765, 4294901760
  %2767 = vmatpush1.msra.mxu0 %v2766
  %2768 = vmatprep.subr.mxu0 0.0
  %v2769 = vand.u32 %v558, 4294901760
  %v2770 = vsub.f32 %v558, %v2769
  %v2771 = vand.u32 %v2770, 4294901760
  %v2772 = vsub.f32 %v2770, %v2771
  %v2773 = vand.u32 %v2772, 4294901760
  %2774 = vmatpush1.msra.mxu0 %v2773
  %2775 = vmatprep.subr.mxu0 0.0
  %2776 = vmatpush1.msra.mxu0 0.0
  %2777 = vmatprep.subr.mxu0 0.0
  %2778 = vmatpush1.msra.mxu0 0.0
  %2779 = vmatprep.subr.mxu0 0.0
  %2780 = vmatpush1.msra.mxu0 0.0
  %2781 = vmatprep.subr.mxu0 0.0
  %2782 = vmatpush1.msra.mxu0 0.0
  %2783 = vmatprep.subr.mxu0 0.0
  %2784 = vmatpush1.msra.mxu0 0.0
  %2785 = vmatprep.subr.mxu0 0.0
  %2786 = vmatpush1.msra.mxu0 0.0
  %2787 = vmatprep.subr.mxu0 0.0
  %2788 = vmatpush1.msra.mxu0 0.0
  %2789 = vmatprep.subr.mxu0 0.0
  %2790 = vmatpush1.msra.mxu0 0.0
  %2791 = vmatprep.subr.mxu0 0.0
  %2792 = vmatpush1.msra.mxu0 0.0
  %2793 = vmatprep.subr.mxu0 0.0
  %2794 = vmatpush1.msra.mxu0 0.0
  %2795 = vmatprep.subr.mxu0 0.0
  %2796 = vmatpush1.msra.mxu0 0.0
  %2797 = vmatprep.subr.mxu0 0.0
  %2798 = vmatpush1.msra.mxu0 0.0
  %2799 = vmatprep.subr.mxu0 0.0
  %2800 = vmatpush1.msra.mxu0 0.0
  %2801 = vmatprep.subr.mxu0 0.0
  %2802 = vmatpush1.msra.mxu0 0.0
  %2803 = vmatprep.subr.mxu0 0.0
  %2804 = vmatpush1.msra.mxu0 0.0
  %2805 = vmatprep.subr.mxu0 0.0
  %2806 = vmatpush1.msra.mxu0 0.0
  %2807 = vmatprep.subr.mxu0 0.0
  %2808 = vmatpush1.msra.mxu0 0.0
  %2809 = vmatprep.subr.mxu0 0.0
  %2810 = vmatpush1.msra.mxu0 0.0
  %2811 = vmatprep.subr.mxu0 0.0
  %2812 = vmatpush1.msra.mxu0 0.0
  %2813 = vmatprep.subr.mxu0 0.0
  %2814 = vmatpush1.msra.mxu0 0.0
  %2815 = vmatprep.subr.mxu0 0.0
  %2816 = vmatpush1.msra.mxu0 0.0
  %2817 = vmatprep.subr.mxu0 0.0
  %2818 = vmatpush1.msra.mxu0 0.0
  %2819 = vmatprep.subr.mxu0 0.0
  %2820 = vmatpush1.msra.mxu0 0.0
  %2821 = vmatprep.subr.mxu0 0.0
  %2822 = vmatpush1.msra.mxu0 0.0
  %2823 = vmatprep.subr.mxu0 0.0
  %2824 = vmatpush1.msra.mxu0 0.0
  %2825 = vmatprep.subr.mxu0 0.0
  %2826 = vmatpush1.msra.mxu0 0.0
  %2827 = vmatprep.subr.mxu0 0.0
  %2828 = vmatpush1.msra.mxu0 0.0
  %2829 = vmatprep.subr.mxu0 0.0
  %2830 = vmatpush1.msra.mxu0 0.0
  %2831 = vmatprep.mubr.f32.mxu0 0.0
  %v2832 = vand.u32 %v2666, 4294901760
  %2833 = vmatmul.mubr.f32.gmra.mrb[0].mxu0 %v2832
  %v2834 = vpop.f32.mrb[0].mxu0
  %v2835 = vadd.f32 %v2744, %v2834
  %v2836 = vpop.f32.mrb[0].mxu0
  %2837 = vdwg.mxu0
  %2838 = vmatprep.subr.mxu0 0.0
  %v2839 = vand.u32 %v555, 4294901760
  %v2840 = vsub.f32 %v555, %v2839
  %2841 = vmatpush1.msra.mxu0 %v2840
  %2842 = vmatprep.subr.mxu0 0.0
  %v2843 = vand.u32 %v556, 4294901760
  %v2844 = vsub.f32 %v556, %v2843
  %2845 = vmatpush1.msra.mxu0 %v2844
  %2846 = vmatprep.subr.mxu0 0.0
  %v2847 = vand.u32 %v557, 4294901760
  %v2848 = vsub.f32 %v557, %v2847
  %2849 = vmatpush1.msra.mxu0 %v2848
  %2850 = vmatprep.subr.mxu0 0.0
  %v2851 = vand.u32 %v558, 4294901760
  %v2852 = vsub.f32 %v558, %v2851
  %2853 = vmatpush1.msra.mxu0 %v2852
  %2854 = vmatprep.subr.mxu0 0.0
  %2855 = vmatpush1.msra.mxu0 0.0
  %2856 = vmatprep.subr.mxu0 0.0
  %2857 = vmatpush1.msra.mxu0 0.0
  %2858 = vmatprep.subr.mxu0 0.0
  %2859 = vmatpush1.msra.mxu0 0.0
  %2860 = vmatprep.subr.mxu0 0.0
  %2861 = vmatpush1.msra.mxu0 0.0
  %2862 = vmatprep.subr.mxu0 0.0
  %2863 = vmatpush1.msra.mxu0 0.0
  %2864 = vmatprep.subr.mxu0 0.0
  %2865 = vmatpush1.msra.mxu0 0.0
  %2866 = vmatprep.subr.mxu0 0.0
  %2867 = vmatpush1.msra.mxu0 0.0
  %2868 = vmatprep.subr.mxu0 0.0
  %2869 = vmatpush1.msra.mxu0 0.0
  %2870 = vmatprep.subr.mxu0 0.0
  %2871 = vmatpush1.msra.mxu0 0.0
  %2872 = vmatprep.subr.mxu0 0.0
  %2873 = vmatpush1.msra.mxu0 0.0
  %2874 = vmatprep.subr.mxu0 0.0
  %2875 = vmatpush1.msra.mxu0 0.0
  %2876 = vmatprep.subr.mxu0 0.0
  %2877 = vmatpush1.msra.mxu0 0.0
  %2878 = vmatprep.subr.mxu0 0.0
  %2879 = vmatpush1.msra.mxu0 0.0
  %2880 = vmatprep.subr.mxu0 0.0
  %2881 = vmatpush1.msra.mxu0 0.0
  %2882 = vmatprep.subr.mxu0 0.0
  %2883 = vmatpush1.msra.mxu0 0.0
  %2884 = vmatprep.subr.mxu0 0.0
  %2885 = vmatpush1.msra.mxu0 0.0
  %2886 = vmatprep.subr.mxu0 0.0
  %2887 = vmatpush1.msra.mxu0 0.0
  %2888 = vmatprep.subr.mxu0 0.0
  %2889 = vmatpush1.msra.mxu0 0.0
  %2890 = vmatprep.subr.mxu0 0.0
  %2891 = vmatpush1.msra.mxu0 0.0
  %2892 = vmatprep.subr.mxu0 0.0
  %2893 = vmatpush1.msra.mxu0 0.0
  %2894 = vmatprep.subr.mxu0 0.0
  %2895 = vmatpush1.msra.mxu0 0.0
  %2896 = vmatprep.subr.mxu0 0.0
  %2897 = vmatpush1.msra.mxu0 0.0
  %2898 = vmatprep.subr.mxu0 0.0
  %2899 = vmatpush1.msra.mxu0 0.0
  %2900 = vmatprep.subr.mxu0 0.0
  %2901 = vmatpush1.msra.mxu0 0.0
  %2902 = vmatprep.subr.mxu0 0.0
  %2903 = vmatpush1.msra.mxu0 0.0
  %2904 = vmatprep.subr.mxu0 0.0
  %2905 = vmatpush1.msra.mxu0 0.0
  %2906 = vmatprep.subr.mxu0 0.0
  %2907 = vmatpush1.msra.mxu0 0.0
  %2908 = vmatprep.subr.mxu0 0.0
  %2909 = vmatpush1.msra.mxu0 0.0
  %2910 = vmatprep.mubr.f32.mxu0 0.0
  %v2911 = vand.u32 %v2666, 4294901760
  %v2912 = vsub.f32 %v2666, %v2911
  %2913 = vmatmul.mubr.f32.gmra.mrb[0].mxu0 %v2912
  %v2914 = vpop.f32.mrb[0].mxu0
  %v2915 = vadd.f32 %v2835, %v2914
  %v2916 = vpop.f32.mrb[0].mxu0
  %2917 = vdwg.mxu0
  %2918 = vmatprep.subr.mxu0 0.0
  %v2919 = vand.u32 %v555, 4294901760
  %2920 = vmatpush1.msra.mxu0 %v2919
  %2921 = vmatprep.subr.mxu0 0.0
  %v2922 = vand.u32 %v556, 4294901760
  %2923 = vmatpush1.msra.mxu0 %v2922
  %2924 = vmatprep.subr.mxu0 0.0
  %v2925 = vand.u32 %v557, 4294901760
  %2926 = vmatpush1.msra.mxu0 %v2925
  %2927 = vmatprep.subr.mxu0 0.0
  %v2928 = vand.u32 %v558, 4294901760
  %2929 = vmatpush1.msra.mxu0 %v2928
  %2930 = vmatprep.subr.mxu0 0.0
  %2931 = vmatpush1.msra.mxu0 0.0
  %2932 = vmatprep.subr.mxu0 0.0
  %2933 = vmatpush1.msra.mxu0 0.0
  %2934 = vmatprep.subr.mxu0 0.0
  %2935 = vmatpush1.msra.mxu0 0.0
  %2936 = vmatprep.subr.mxu0 0.0
  %2937 = vmatpush1.msra.mxu0 0.0
  %2938 = vmatprep.subr.mxu0 0.0
  %2939 = vmatpush1.msra.mxu0 0.0
  %2940 = vmatprep.subr.mxu0 0.0
  %2941 = vmatpush1.msra.mxu0 0.0
  %2942 = vmatprep.subr.mxu0 0.0
  %2943 = vmatpush1.msra.mxu0 0.0
  %2944 = vmatprep.subr.mxu0 0.0
  %2945 = vmatpush1.msra.mxu0 0.0
  %2946 = vmatprep.subr.mxu0 0.0
  %2947 = vmatpush1.msra.mxu0 0.0
  %2948 = vmatprep.subr.mxu0 0.0
  %2949 = vmatpush1.msra.mxu0 0.0
  %2950 = vmatprep.subr.mxu0 0.0
  %2951 = vmatpush1.msra.mxu0 0.0
  %2952 = vmatprep.subr.mxu0 0.0
  %2953 = vmatpush1.msra.mxu0 0.0
  %2954 = vmatprep.subr.mxu0 0.0
  %2955 = vmatpush1.msra.mxu0 0.0
  %2956 = vmatprep.subr.mxu0 0.0
  %2957 = vmatpush1.msra.mxu0 0.0
  %2958 = vmatprep.subr.mxu0 0.0
  %2959 = vmatpush1.msra.mxu0 0.0
  %2960 = vmatprep.subr.mxu0 0.0
  %2961 = vmatpush1.msra.mxu0 0.0
  %2962 = vmatprep.subr.mxu0 0.0
  %2963 = vmatpush1.msra.mxu0 0.0
  %2964 = vmatprep.subr.mxu0 0.0
  %2965 = vmatpush1.msra.mxu0 0.0
  %2966 = vmatprep.subr.mxu0 0.0
  %2967 = vmatpush1.msra.mxu0 0.0
  %2968 = vmatprep.subr.mxu0 0.0
  %2969 = vmatpush1.msra.mxu0 0.0
  %2970 = vmatprep.subr.mxu0 0.0
  %2971 = vmatpush1.msra.mxu0 0.0
  %2972 = vmatprep.subr.mxu0 0.0
  %2973 = vmatpush1.msra.mxu0 0.0
  %2974 = vmatprep.subr.mxu0 0.0
  %2975 = vmatpush1.msra.mxu0 0.0
  %2976 = vmatprep.subr.mxu0 0.0
  %2977 = vmatpush1.msra.mxu0 0.0
  %2978 = vmatprep.subr.mxu0 0.0
  %2979 = vmatpush1.msra.mxu0 0.0
  %2980 = vmatprep.subr.mxu0 0.0
  %2981 = vmatpush1.msra.mxu0 0.0
  %2982 = vmatprep.subr.mxu0 0.0
  %2983 = vmatpush1.msra.mxu0 0.0
  %2984 = vmatprep.subr.mxu0 0.0
  %2985 = vmatpush1.msra.mxu0 0.0
  %2986 = vmatprep.mubr.f32.mxu0 0.0
  %v2987 = vand.u32 %v2666, 4294901760
  %v2988 = vsub.f32 %v2666, %v2987
  %v2989 = vand.u32 %v2988, 4294901760
  %2990 = vmatmul.mubr.f32.gmra.mrb[0].mxu0 %v2989
  %v2991 = vpop.f32.mrb[0].mxu0
  %v2992 = vadd.f32 %v2915, %v2991
  %v2993 = vpop.f32.mrb[0].mxu0
  %2994 = vdwg.mxu0
  %2995 = vmatprep.subr.mxu0 0.0
  %v2996 = vand.u32 %v555, 4294901760
  %v2997 = vsub.f32 %v555, %v2996
  %v2998 = vand.u32 %v2997, 4294901760
  %2999 = vmatpush1.msra.mxu0 %v2998
  %3000 = vmatprep.subr.mxu0 0.0
  %v3001 = vand.u32 %v556, 4294901760
  %v3002 = vsub.f32 %v556, %v3001
  %v3003 = vand.u32 %v3002, 4294901760
  %3004 = vmatpush1.msra.mxu0 %v3003
  %3005 = vmatprep.subr.mxu0 0.0
  %v3006 = vand.u32 %v557, 4294901760
  %v3007 = vsub.f32 %v557, %v3006
  %v3008 = vand.u32 %v3007, 4294901760
  %3009 = vmatpush1.msra.mxu0 %v3008
  %3010 = vmatprep.subr.mxu0 0.0
  %v3011 = vand.u32 %v558, 4294901760
  %v3012 = vsub.f32 %v558, %v3011
  %v3013 = vand.u32 %v3012, 4294901760
  %3014 = vmatpush1.msra.mxu0 %v3013
  %3015 = vmatprep.subr.mxu0 0.0
  %3016 = vmatpush1.msra.mxu0 0.0
  %3017 = vmatprep.subr.mxu0 0.0
  %3018 = vmatpush1.msra.mxu0 0.0
  %3019 = vmatprep.subr.mxu0 0.0
  %3020 = vmatpush1.msra.mxu0 0.0
  %3021 = vmatprep.subr.mxu0 0.0
  %3022 = vmatpush1.msra.mxu0 0.0
  %3023 = vmatprep.subr.mxu0 0.0
  %3024 = vmatpush1.msra.mxu0 0.0
  %3025 = vmatprep.subr.mxu0 0.0
  %3026 = vmatpush1.msra.mxu0 0.0
  %3027 = vmatprep.subr.mxu0 0.0
  %3028 = vmatpush1.msra.mxu0 0.0
  %3029 = vmatprep.subr.mxu0 0.0
  %3030 = vmatpush1.msra.mxu0 0.0
  %3031 = vmatprep.subr.mxu0 0.0
  %3032 = vmatpush1.msra.mxu0 0.0
  %3033 = vmatprep.subr.mxu0 0.0
  %3034 = vmatpush1.msra.mxu0 0.0
  %3035 = vmatprep.subr.mxu0 0.0
  %3036 = vmatpush1.msra.mxu0 0.0
  %3037 = vmatprep.subr.mxu0 0.0
  %3038 = vmatpush1.msra.mxu0 0.0
  %3039 = vmatprep.subr.mxu0 0.0
  %3040 = vmatpush1.msra.mxu0 0.0
  %3041 = vmatprep.subr.mxu0 0.0
  %3042 = vmatpush1.msra.mxu0 0.0
  %3043 = vmatprep.subr.mxu0 0.0
  %3044 = vmatpush1.msra.mxu0 0.0
  %3045 = vmatprep.subr.mxu0 0.0
  %3046 = vmatpush1.msra.mxu0 0.0
  %3047 = vmatprep.subr.mxu0 0.0
  %3048 = vmatpush1.msra.mxu0 0.0
  %3049 = vmatprep.subr.mxu0 0.0
  %3050 = vmatpush1.msra.mxu0 0.0
  %3051 = vmatprep.subr.mxu0 0.0
  %3052 = vmatpush1.msra.mxu0 0.0
  %3053 = vmatprep.subr.mxu0 0.0
  %3054 = vmatpush1.msra.mxu0 0.0
  %3055 = vmatprep.subr.mxu0 0.0
  %3056 = vmatpush1.msra.mxu0 0.0
  %3057 = vmatprep.subr.mxu0 0.0
  %3058 = vmatpush1.msra.mxu0 0.0
  %3059 = vmatprep.subr.mxu0 0.0
  %3060 = vmatpush1.msra.mxu0 0.0
  %3061 = vmatprep.subr.mxu0 0.0
  %3062 = vmatpush1.msra.mxu0 0.0
  %3063 = vmatprep.subr.mxu0 0.0
  %3064 = vmatpush1.msra.mxu0 0.0
  %3065 = vmatprep.subr.mxu0 0.0
  %3066 = vmatpush1.msra.mxu0 0.0
  %3067 = vmatprep.subr.mxu0 0.0
  %3068 = vmatpush1.msra.mxu0 0.0
  %3069 = vmatprep.subr.mxu0 0.0
  %3070 = vmatpush1.msra.mxu0 0.0
  %3071 = vmatprep.mubr.f32.mxu0 0.0
  %v3072 = vand.u32 %v2666, 4294901760
  %3073 = vmatmul.mubr.f32.gmra.mrb[0].mxu0 %v3072
  %v3074 = vpop.f32.mrb[0].mxu0
  %v3075 = vadd.f32 %v2992, %v3074
  %v3076 = vpop.f32.mrb[0].mxu0
  %3077 = vdwg.mxu0
  %3078 = vmatprep.subr.mxu0 0.0
  %v3079 = vand.u32 %v555, 4294901760
  %3080 = vmatpush1.msra.mxu0 %v3079
  %3081 = vmatprep.subr.mxu0 0.0
  %v3082 = vand.u32 %v556, 4294901760
  %3083 = vmatpush1.msra.mxu0 %v3082
  %3084 = vmatprep.subr.mxu0 0.0
  %v3085 = vand.u32 %v557, 4294901760
  %3086 = vmatpush1.msra.mxu0 %v3085
  %3087 = vmatprep.subr.mxu0 0.0
  %v3088 = vand.u32 %v558, 4294901760
  %3089 = vmatpush1.msra.mxu0 %v3088
  %3090 = vmatprep.subr.mxu0 0.0
  %3091 = vmatpush1.msra.mxu0 0.0
  %3092 = vmatprep.subr.mxu0 0.0
  %3093 = vmatpush1.msra.mxu0 0.0
  %3094 = vmatprep.subr.mxu0 0.0
  %3095 = vmatpush1.msra.mxu0 0.0
  %3096 = vmatprep.subr.mxu0 0.0
  %3097 = vmatpush1.msra.mxu0 0.0
  %3098 = vmatprep.subr.mxu0 0.0
  %3099 = vmatpush1.msra.mxu0 0.0
  %3100 = vmatprep.subr.mxu0 0.0
  %3101 = vmatpush1.msra.mxu0 0.0
  %3102 = vmatprep.subr.mxu0 0.0
  %3103 = vmatpush1.msra.mxu0 0.0
  %3104 = vmatprep.subr.mxu0 0.0
  %3105 = vmatpush1.msra.mxu0 0.0
  %3106 = vmatprep.subr.mxu0 0.0
  %3107 = vmatpush1.msra.mxu0 0.0
  %3108 = vmatprep.subr.mxu0 0.0
  %3109 = vmatpush1.msra.mxu0 0.0
  %3110 = vmatprep.subr.mxu0 0.0
  %3111 = vmatpush1.msra.mxu0 0.0
  %3112 = vmatprep.subr.mxu0 0.0
  %3113 = vmatpush1.msra.mxu0 0.0
  %3114 = vmatprep.subr.mxu0 0.0
  %3115 = vmatpush1.msra.mxu0 0.0
  %3116 = vmatprep.subr.mxu0 0.0
  %3117 = vmatpush1.msra.mxu0 0.0
  %3118 = vmatprep.subr.mxu0 0.0
  %3119 = vmatpush1.msra.mxu0 0.0
  %3120 = vmatprep.subr.mxu0 0.0
  %3121 = vmatpush1.msra.mxu0 0.0
  %3122 = vmatprep.subr.mxu0 0.0
  %3123 = vmatpush1.msra.mxu0 0.0
  %3124 = vmatprep.subr.mxu0 0.0
  %3125 = vmatpush1.msra.mxu0 0.0
  %3126 = vmatprep.subr.mxu0 0.0
  %3127 = vmatpush1.msra.mxu0 0.0
  %3128 = vmatprep.subr.mxu0 0.0
  %3129 = vmatpush1.msra.mxu0 0.0
  %3130 = vmatprep.subr.mxu0 0.0
  %3131 = vmatpush1.msra.mxu0 0.0
  %3132 = vmatprep.subr.mxu0 0.0
  %3133 = vmatpush1.msra.mxu0 0.0
  %3134 = vmatprep.subr.mxu0 0.0
  %3135 = vmatpush1.msra.mxu0 0.0
  %3136 = vmatprep.subr.mxu0 0.0
  %3137 = vmatpush1.msra.mxu0 0.0
  %3138 = vmatprep.subr.mxu0 0.0
  %3139 = vmatpush1.msra.mxu0 0.0
  %3140 = vmatprep.subr.mxu0 0.0
  %3141 = vmatpush1.msra.mxu0 0.0
  %3142 = vmatprep.subr.mxu0 0.0
  %3143 = vmatpush1.msra.mxu0 0.0
  %3144 = vmatprep.subr.mxu0 0.0
  %3145 = vmatpush1.msra.mxu0 0.0
  %3146 = vmatprep.mubr.f32.mxu0 0.0
  %v3147 = vand.u32 %v2666, 4294901760
  %3148 = vmatmul.mubr.f32.gmra.mrb[0].mxu0 %v3147
  %v3149 = vpop.f32.mrb[0].mxu0
  %v3150 = vadd.f32 %v3075, %v3149
  %v3151 = vpop.f32.mrb[0].mxu0
  %3152 = vdwg.mxu0
  %v3153 = vadd.f32 %v2665, %v3150
  %v3154 = vxor.u32 %v3153, 2147483648
  %v3155 = vmul.f32 %v3154, 1.442695
  %v3156 = vpow.pop %v3155
  %v3157 = vadd.f32 %v3156, 1.0
  %v3158 = vrcp.pop %v3157
  %v3159 = vmul.f32 1.0, %v3158
  %v3160 = vtanh.pop %v3153
  %v3161 = vmul.f32 %v3159, %v2647
  %3163 = vrot.lane.b32.xlu0 %v3160, 64
  %v3164 = vpop.permute.xlu0 %3163
  %v3166 = vmul.f32 %v3159, %v3164
  %3168 = vrot.lane.b32.xlu0 %v3166, 32
  %v3169 = vpop.permute.xlu0 %3168
  %v3171 = vadd.f32 %v3161, %v3169
  %v3172 = vtanh.pop %v3171
  %3174 = vrot.lane.b32.xlu0 %v3172, 64
  %v3175 = vpop.permute.xlu0 %3174
  %v3177 = vmul.f32 %v3159, %v3175
  %3179 = vrot.lane.b32.xlu0 %v3177, 32
  %v3180 = vpop.permute.xlu0 %3179
  %3182 = vst.msk [vmem:[#allocation3 + $0x4] sm:$0x1] %vm1084, %v3180
  %3183 = vst.msk [vmem:[#allocation3 + $0xb] sm:$0x2] %vm1086, %v3180
  %v3184 = vld [vmem:[#allocation2 + $0x5] sm:$0x1]
  %v3185 = vld [vmem:[#allocation2 + $0xd] sm:$0x1]
  %v3187 = vrot.slane %v3185, 7
  %v3189 = vsel %vm564, %v3184, %v3187
  %v3190 = vsel %vm566, %v3180, 0
  %3192 = vmatprep.subr.mxu0 0.0
  %v3193 = vand.u32 %v555, 4294901760
  %3194 = vmatpush1.msra.mxu0 %v3193
  %3195 = vmatprep.subr.mxu0 0.0
  %v3196 = vand.u32 %v556, 4294901760
  %3197 = vmatpush1.msra.mxu0 %v3196
  %3198 = vmatprep.subr.mxu0 0.0
  %v3199 = vand.u32 %v557, 4294901760
  %3200 = vmatpush1.msra.mxu0 %v3199
  %3201 = vmatprep.subr.mxu0 0.0
  %v3202 = vand.u32 %v558, 4294901760
  %3203 = vmatpush1.msra.mxu0 %v3202
  %3204 = vmatprep.subr.mxu0 0.0
  %3205 = vmatpush1.msra.mxu0 0.0
  %3206 = vmatprep.subr.mxu0 0.0
  %3207 = vmatpush1.msra.mxu0 0.0
  %3208 = vmatprep.subr.mxu0 0.0
  %3209 = vmatpush1.msra.mxu0 0.0
  %3210 = vmatprep.subr.mxu0 0.0
  %3211 = vmatpush1.msra.mxu0 0.0
  %3212 = vmatprep.subr.mxu0 0.0
  %3213 = vmatpush1.msra.mxu0 0.0
  %3214 = vmatprep.subr.mxu0 0.0
  %3215 = vmatpush1.msra.mxu0 0.0
  %3216 = vmatprep.subr.mxu0 0.0
  %3217 = vmatpush1.msra.mxu0 0.0
  %3218 = vmatprep.subr.mxu0 0.0
  %3219 = vmatpush1.msra.mxu0 0.0
  %3220 = vmatprep.subr.mxu0 0.0
  %3221 = vmatpush1.msra.mxu0 0.0
  %3222 = vmatprep.subr.mxu0 0.0
  %3223 = vmatpush1.msra.mxu0 0.0
  %3224 = vmatprep.subr.mxu0 0.0
  %3225 = vmatpush1.msra.mxu0 0.0
  %3226 = vmatprep.subr.mxu0 0.0
  %3227 = vmatpush1.msra.mxu0 0.0
  %3228 = vmatprep.subr.mxu0 0.0
  %3229 = vmatpush1.msra.mxu0 0.0
  %3230 = vmatprep.subr.mxu0 0.0
  %3231 = vmatpush1.msra.mxu0 0.0
  %3232 = vmatprep.subr.mxu0 0.0
  %3233 = vmatpush1.msra.mxu0 0.0
  %3234 = vmatprep.subr.mxu0 0.0
  %3235 = vmatpush1.msra.mxu0 0.0
  %3236 = vmatprep.subr.mxu0 0.0
  %3237 = vmatpush1.msra.mxu0 0.0
  %3238 = vmatprep.subr.mxu0 0.0
  %3239 = vmatpush1.msra.mxu0 0.0
  %3240 = vmatprep.subr.mxu0 0.0
  %3241 = vmatpush1.msra.mxu0 0.0
  %3242 = vmatprep.subr.mxu0 0.0
  %3243 = vmatpush1.msra.mxu0 0.0
  %3244 = vmatprep.subr.mxu0 0.0
  %3245 = vmatpush1.msra.mxu0 0.0
  %3246 = vmatprep.subr.mxu0 0.0
  %3247 = vmatpush1.msra.mxu0 0.0
  %3248 = vmatprep.subr.mxu0 0.0
  %3249 = vmatpush1.msra.mxu0 0.0
  %3250 = vmatprep.subr.mxu0 0.0
  %3251 = vmatpush1.msra.mxu0 0.0
  %3252 = vmatprep.subr.mxu0 0.0
  %3253 = vmatpush1.msra.mxu0 0.0
  %3254 = vmatprep.subr.mxu0 0.0
  %3255 = vmatpush1.msra.mxu0 0.0
  %3256 = vmatprep.subr.mxu0 0.0
  %3257 = vmatpush1.msra.mxu0 0.0
  %3258 = vmatprep.subr.mxu0 0.0
  %3259 = vmatpush1.msra.mxu0 0.0
  %3260 = vmatprep.mubr.f32.mxu0 0.0
  %v3261 = vand.u32 %v3190, 4294901760
  %v3262 = vsub.f32 %v3190, %v3261
  %v3263 = vand.u32 %v3262, 4294901760
  %v3264 = vsub.f32 %v3262, %v3263
  %v3265 = vand.u32 %v3264, 4294901760
  %3266 = vmatmul.mubr.f32.gmra.mrb[0].mxu0 %v3265
  %v3267 = vpop.f32.mrb[0].mxu0
  %v3268 = vadd.f32 0.0, %v3267
  %v3269 = vpop.f32.mrb[0].mxu0
  %3270 = vdwg.mxu0
  %3271 = vmatprep.subr.mxu0 0.0
  %v3272 = vand.u32 %v555, 4294901760
  %v3273 = vsub.f32 %v555, %v3272
  %v3274 = vand.u32 %v3273, 4294901760
  %v3275 = vsub.f32 %v3273, %v3274
  %v3276 = vand.u32 %v3275, 4294901760
  %3277 = vmatpush1.msra.mxu0 %v3276
  %3278 = vmatprep.subr.mxu0 0.0
  %v3279 = vand.u32 %v556, 4294901760
  %v3280 = vsub.f32 %v556, %v3279
  %v3281 = vand.u32 %v3280, 4294901760
  %v3282 = vsub.f32 %v3280, %v3281
  %v3283 = vand.u32 %v3282, 4294901760
  %3284 = vmatpush1.msra.mxu0 %v3283
  %3285 = vmatprep.subr.mxu0 0.0
  %v3286 = vand.u32 %v557, 4294901760
  %v3287 = vsub.f32 %v557, %v3286
  %v3288 = vand.u32 %v3287, 4294901760
  %v3289 = vsub.f32 %v3287, %v3288
  %v3290 = vand.u32 %v3289, 4294901760
  %3291 = vmatpush1.msra.mxu0 %v3290
  %3292 = vmatprep.subr.mxu0 0.0
  %v3293 = vand.u32 %v558, 4294901760
  %v3294 = vsub.f32 %v558, %v3293
  %v3295 = vand.u32 %v3294, 4294901760
  %v3296 = vsub.f32 %v3294, %v3295
  %v3297 = vand.u32 %v3296, 4294901760
  %3298 = vmatpush1.msra.mxu0 %v3297
  %3299 = vmatprep.subr.mxu0 0.0
  %3300 = vmatpush1.msra.mxu0 0.0
  %3301 = vmatprep.subr.mxu0 0.0
  %3302 = vmatpush1.msra.mxu0 0.0
  %3303 = vmatprep.subr.mxu0 0.0
  %3304 = vmatpush1.msra.mxu0 0.0
  %3305 = vmatprep.subr.mxu0 0.0
  %3306 = vmatpush1.msra.mxu0 0.0
  %3307 = vmatprep.subr.mxu0 0.0
  %3308 = vmatpush1.msra.mxu0 0.0
  %3309 = vmatprep.subr.mxu0 0.0
  %3310 = vmatpush1.msra.mxu0 0.0
  %3311 = vmatprep.subr.mxu0 0.0
  %3312 = vmatpush1.msra.mxu0 0.0
  %3313 = vmatprep.subr.mxu0 0.0
  %3314 = vmatpush1.msra.mxu0 0.0
  %3315 = vmatprep.subr.mxu0 0.0
  %3316 = vmatpush1.msra.mxu0 0.0
  %3317 = vmatprep.subr.mxu0 0.0
  %3318 = vmatpush1.msra.mxu0 0.0
  %3319 = vmatprep.subr.mxu0 0.0
  %3320 = vmatpush1.msra.mxu0 0.0
  %3321 = vmatprep.subr.mxu0 0.0
  %3322 = vmatpush1.msra.mxu0 0.0
  %3323 = vmatprep.subr.mxu0 0.0
  %3324 = vmatpush1.msra.mxu0 0.0
  %3325 = vmatprep.subr.mxu0 0.0
  %3326 = vmatpush1.msra.mxu0 0.0
  %3327 = vmatprep.subr.mxu0 0.0
  %3328 = vmatpush1.msra.mxu0 0.0
  %3329 = vmatprep.subr.mxu0 0.0
  %3330 = vmatpush1.msra.mxu0 0.0
  %3331 = vmatprep.subr.mxu0 0.0
  %3332 = vmatpush1.msra.mxu0 0.0
  %3333 = vmatprep.subr.mxu0 0.0
  %3334 = vmatpush1.msra.mxu0 0.0
  %3335 = vmatprep.subr.mxu0 0.0
  %3336 = vmatpush1.msra.mxu0 0.0
  %3337 = vmatprep.subr.mxu0 0.0
  %3338 = vmatpush1.msra.mxu0 0.0
  %3339 = vmatprep.subr.mxu0 0.0
  %3340 = vmatpush1.msra.mxu0 0.0
  %3341 = vmatprep.subr.mxu0 0.0
  %3342 = vmatpush1.msra.mxu0 0.0
  %3343 = vmatprep.subr.mxu0 0.0
  %3344 = vmatpush1.msra.mxu0 0.0
  %3345 = vmatprep.subr.mxu0 0.0
  %3346 = vmatpush1.msra.mxu0 0.0
  %3347 = vmatprep.subr.mxu0 0.0
  %3348 = vmatpush1.msra.mxu0 0.0
  %3349 = vmatprep.subr.mxu0 0.0
  %3350 = vmatpush1.msra.mxu0 0.0
  %3351 = vmatprep.subr.mxu0 0.0
  %3352 = vmatpush1.msra.mxu0 0.0
  %3353 = vmatprep.subr.mxu0 0.0
  %3354 = vmatpush1.msra.mxu0 0.0
  %3355 = vmatprep.mubr.f32.mxu0 0.0
  %v3356 = vand.u32 %v3190, 4294901760
  %3357 = vmatmul.mubr.f32.gmra.mrb[0].mxu0 %v3356
  %v3358 = vpop.f32.mrb[0].mxu0
  %v3359 = vadd.f32 %v3268, %v3358
  %v3360 = vpop.f32.mrb[0].mxu0
  %3361 = vdwg.mxu0
  %3362 = vmatprep.subr.mxu0 0.0
  %v3363 = vand.u32 %v555, 4294901760
  %v3364 = vsub.f32 %v555, %v3363
  %3365 = vmatpush1.msra.mxu0 %v3364
  %3366 = vmatprep.subr.mxu0 0.0
  %v3367 = vand.u32 %v556, 4294901760
  %v3368 = vsub.f32 %v556, %v3367
  %3369 = vmatpush1.msra.mxu0 %v3368
  %3370 = vmatprep.subr.mxu0 0.0
  %v3371 = vand.u32 %v557, 4294901760
  %v3372 = vsub.f32 %v557, %v3371
  %3373 = vmatpush1.msra.mxu0 %v3372
  %3374 = vmatprep.subr.mxu0 0.0
  %v3375 = vand.u32 %v558, 4294901760
  %v3376 = vsub.f32 %v558, %v3375
  %3377 = vmatpush1.msra.mxu0 %v3376
  %3378 = vmatprep.subr.mxu0 0.0
  %3379 = vmatpush1.msra.mxu0 0.0
  %3380 = vmatprep.subr.mxu0 0.0
  %3381 = vmatpush1.msra.mxu0 0.0
  %3382 = vmatprep.subr.mxu0 0.0
  %3383 = vmatpush1.msra.mxu0 0.0
  %3384 = vmatprep.subr.mxu0 0.0
  %3385 = vmatpush1.msra.mxu0 0.0
  %3386 = vmatprep.subr.mxu0 0.0
  %3387 = vmatpush1.msra.mxu0 0.0
  %3388 = vmatprep.subr.mxu0 0.0
  %3389 = vmatpush1.msra.mxu0 0.0
  %3390 = vmatprep.subr.mxu0 0.0
  %3391 = vmatpush1.msra.mxu0 0.0
  %3392 = vmatprep.subr.mxu0 0.0
  %3393 = vmatpush1.msra.mxu0 0.0
  %3394 = vmatprep.subr.mxu0 0.0
  %3395 = vmatpush1.msra.mxu0 0.0
  %3396 = vmatprep.subr.mxu0 0.0
  %3397 = vmatpush1.msra.mxu0 0.0
  %3398 = vmatprep.subr.mxu0 0.0
  %3399 = vmatpush1.msra.mxu0 0.0
  %3400 = vmatprep.subr.mxu0 0.0
  %3401 = vmatpush1.msra.mxu0 0.0
  %3402 = vmatprep.subr.mxu0 0.0
  %3403 = vmatpush1.msra.mxu0 0.0
  %3404 = vmatprep.subr.mxu0 0.0
  %3405 = vmatpush1.msra.mxu0 0.0
  %3406 = vmatprep.subr.mxu0 0.0
  %3407 = vmatpush1.msra.mxu0 0.0
  %3408 = vmatprep.subr.mxu0 0.0
  %3409 = vmatpush1.msra.mxu0 0.0
  %3410 = vmatprep.subr.mxu0 0.0
  %3411 = vmatpush1.msra.mxu0 0.0
  %3412 = vmatprep.subr.mxu0 0.0
  %3413 = vmatpush1.msra.mxu0 0.0
  %3414 = vmatprep.subr.mxu0 0.0
  %3415 = vmatpush1.msra.mxu0 0.0
  %3416 = vmatprep.subr.mxu0 0.0
  %3417 = vmatpush1.msra.mxu0 0.0
  %3418 = vmatprep.subr.mxu0 0.0
  %3419 = vmatpush1.msra.mxu0 0.0
  %3420 = vmatprep.subr.mxu0 0.0
  %3421 = vmatpush1.msra.mxu0 0.0
  %3422 = vmatprep.subr.mxu0 0.0
  %3423 = vmatpush1.msra.mxu0 0.0
  %3424 = vmatprep.subr.mxu0 0.0
  %3425 = vmatpush1.msra.mxu0 0.0
  %3426 = vmatprep.subr.mxu0 0.0
  %3427 = vmatpush1.msra.mxu0 0.0
  %3428 = vmatprep.subr.mxu0 0.0
  %3429 = vmatpush1.msra.mxu0 0.0
  %3430 = vmatprep.subr.mxu0 0.0
  %3431 = vmatpush1.msra.mxu0 0.0
  %3432 = vmatprep.subr.mxu0 0.0
  %3433 = vmatpush1.msra.mxu0 0.0
  %3434 = vmatprep.mubr.f32.mxu0 0.0
  %v3435 = vand.u32 %v3190, 4294901760
  %v3436 = vsub.f32 %v3190, %v3435
  %3437 = vmatmul.mubr.f32.gmra.mrb[0].mxu0 %v3436
  %v3438 = vpop.f32.mrb[0].mxu0
  %v3439 = vadd.f32 %v3359, %v3438
  %v3440 = vpop.f32.mrb[0].mxu0
  %3441 = vdwg.mxu0
  %3442 = vmatprep.subr.mxu0 0.0
  %v3443 = vand.u32 %v555, 4294901760
  %3444 = vmatpush1.msra.mxu0 %v3443
  %3445 = vmatprep.subr.mxu0 0.0
  %v3446 = vand.u32 %v556, 4294901760
  %3447 = vmatpush1.msra.mxu0 %v3446
  %3448 = vmatprep.subr.mxu0 0.0
  %v3449 = vand.u32 %v557, 4294901760
  %3450 = vmatpush1.msra.mxu0 %v3449
  %3451 = vmatprep.subr.mxu0 0.0
  %v3452 = vand.u32 %v558, 4294901760
  %3453 = vmatpush1.msra.mxu0 %v3452
  %3454 = vmatprep.subr.mxu0 0.0
  %3455 = vmatpush1.msra.mxu0 0.0
  %3456 = vmatprep.subr.mxu0 0.0
  %3457 = vmatpush1.msra.mxu0 0.0
  %3458 = vmatprep.subr.mxu0 0.0
  %3459 = vmatpush1.msra.mxu0 0.0
  %3460 = vmatprep.subr.mxu0 0.0
  %3461 = vmatpush1.msra.mxu0 0.0
  %3462 = vmatprep.subr.mxu0 0.0
  %3463 = vmatpush1.msra.mxu0 0.0
  %3464 = vmatprep.subr.mxu0 0.0
  %3465 = vmatpush1.msra.mxu0 0.0
  %3466 = vmatprep.subr.mxu0 0.0
  %3467 = vmatpush1.msra.mxu0 0.0
  %3468 = vmatprep.subr.mxu0 0.0
  %3469 = vmatpush1.msra.mxu0 0.0
  %3470 = vmatprep.subr.mxu0 0.0
  %3471 = vmatpush1.msra.mxu0 0.0
  %3472 = vmatprep.subr.mxu0 0.0
  %3473 = vmatpush1.msra.mxu0 0.0
  %3474 = vmatprep.subr.mxu0 0.0
  %3475 = vmatpush1.msra.mxu0 0.0
  %3476 = vmatprep.subr.mxu0 0.0
  %3477 = vmatpush1.msra.mxu0 0.0
  %3478 = vmatprep.subr.mxu0 0.0
  %3479 = vmatpush1.msra.mxu0 0.0
  %3480 = vmatprep.subr.mxu0 0.0
  %3481 = vmatpush1.msra.mxu0 0.0
  %3482 = vmatprep.subr.mxu0 0.0
  %3483 = vmatpush1.msra.mxu0 0.0
  %3484 = vmatprep.subr.mxu0 0.0
  %3485 = vmatpush1.msra.mxu0 0.0
  %3486 = vmatprep.subr.mxu0 0.0
  %3487 = vmatpush1.msra.mxu0 0.0
  %3488 = vmatprep.subr.mxu0 0.0
  %3489 = vmatpush1.msra.mxu0 0.0
  %3490 = vmatprep.subr.mxu0 0.0
  %3491 = vmatpush1.msra.mxu0 0.0
  %3492 = vmatprep.subr.mxu0 0.0
  %3493 = vmatpush1.msra.mxu0 0.0
  %3494 = vmatprep.subr.mxu0 0.0
  %3495 = vmatpush1.msra.mxu0 0.0
  %3496 = vmatprep.subr.mxu0 0.0
  %3497 = vmatpush1.msra.mxu0 0.0
  %3498 = vmatprep.subr.mxu0 0.0
  %3499 = vmatpush1.msra.mxu0 0.0
  %3500 = vmatprep.subr.mxu0 0.0
  %3501 = vmatpush1.msra.mxu0 0.0
  %3502 = vmatprep.subr.mxu0 0.0
  %3503 = vmatpush1.msra.mxu0 0.0
  %3504 = vmatprep.subr.mxu0 0.0
  %3505 = vmatpush1.msra.mxu0 0.0
  %3506 = vmatprep.subr.mxu0 0.0
  %3507 = vmatpush1.msra.mxu0 0.0
  %3508 = vmatprep.subr.mxu0 0.0
  %3509 = vmatpush1.msra.mxu0 0.0
  %3510 = vmatprep.mubr.f32.mxu0 0.0
  %v3511 = vand.u32 %v3190, 4294901760
  %v3512 = vsub.f32 %v3190, %v3511
  %v3513 = vand.u32 %v3512, 4294901760
  %3514 = vmatmul.mubr.f32.gmra.mrb[0].mxu0 %v3513
  %v3515 = vpop.f32.mrb[0].mxu0
  %v3516 = vadd.f32 %v3439, %v3515
  %v3517 = vpop.f32.mrb[0].mxu0
  %3518 = vdwg.mxu0
  %3519 = vmatprep.subr.mxu0 0.0
  %v3520 = vand.u32 %v555, 4294901760
  %v3521 = vsub.f32 %v555, %v3520
  %v3522 = vand.u32 %v3521, 4294901760
  %3523 = vmatpush1.msra.mxu0 %v3522
  %3524 = vmatprep.subr.mxu0 0.0
  %v3525 = vand.u32 %v556, 4294901760
  %v3526 = vsub.f32 %v556, %v3525
  %v3527 = vand.u32 %v3526, 4294901760
  %3528 = vmatpush1.msra.mxu0 %v3527
  %3529 = vmatprep.subr.mxu0 0.0
  %v3530 = vand.u32 %v557, 4294901760
  %v3531 = vsub.f32 %v557, %v3530
  %v3532 = vand.u32 %v3531, 4294901760
  %3533 = vmatpush1.msra.mxu0 %v3532
  %3534 = vmatprep.subr.mxu0 0.0
  %v3535 = vand.u32 %v558, 4294901760
  %v3536 = vsub.f32 %v558, %v3535
  %v3537 = vand.u32 %v3536, 4294901760
  %3538 = vmatpush1.msra.mxu0 %v3537
  %3539 = vmatprep.subr.mxu0 0.0
  %3540 = vmatpush1.msra.mxu0 0.0
  %3541 = vmatprep.subr.mxu0 0.0
  %3542 = vmatpush1.msra.mxu0 0.0
  %3543 = vmatprep.subr.mxu0 0.0
  %3544 = vmatpush1.msra.mxu0 0.0
  %3545 = vmatprep.subr.mxu0 0.0
  %3546 = vmatpush1.msra.mxu0 0.0
  %3547 = vmatprep.subr.mxu0 0.0
  %3548 = vmatpush1.msra.mxu0 0.0
  %3549 = vmatprep.subr.mxu0 0.0
  %3550 = vmatpush1.msra.mxu0 0.0
  %3551 = vmatprep.subr.mxu0 0.0
  %3552 = vmatpush1.msra.mxu0 0.0
  %3553 = vmatprep.subr.mxu0 0.0
  %3554 = vmatpush1.msra.mxu0 0.0
  %3555 = vmatprep.subr.mxu0 0.0
  %3556 = vmatpush1.msra.mxu0 0.0
  %3557 = vmatprep.subr.mxu0 0.0
  %3558 = vmatpush1.msra.mxu0 0.0
  %3559 = vmatprep.subr.mxu0 0.0
  %3560 = vmatpush1.msra.mxu0 0.0
  %3561 = vmatprep.subr.mxu0 0.0
  %3562 = vmatpush1.msra.mxu0 0.0
  %3563 = vmatprep.subr.mxu0 0.0
  %3564 = vmatpush1.msra.mxu0 0.0
  %3565 = vmatprep.subr.mxu0 0.0
  %3566 = vmatpush1.msra.mxu0 0.0
  %3567 = vmatprep.subr.mxu0 0.0
  %3568 = vmatpush1.msra.mxu0 0.0
  %3569 = vmatprep.subr.mxu0 0.0
  %3570 = vmatpush1.msra.mxu0 0.0
  %3571 = vmatprep.subr.mxu0 0.0
  %3572 = vmatpush1.msra.mxu0 0.0
  %3573 = vmatprep.subr.mxu0 0.0
  %3574 = vmatpush1.msra.mxu0 0.0
  %3575 = vmatprep.subr.mxu0 0.0
  %3576 = vmatpush1.msra.mxu0 0.0
  %3577 = vmatprep.subr.mxu0 0.0
  %3578 = vmatpush1.msra.mxu0 0.0
  %3579 = vmatprep.subr.mxu0 0.0
  %3580 = vmatpush1.msra.mxu0 0.0
  %3581 = vmatprep.subr.mxu0 0.0
  %3582 = vmatpush1.msra.mxu0 0.0
  %3583 = vmatprep.subr.mxu0 0.0
  %3584 = vmatpush1.msra.mxu0 0.0
  %3585 = vmatprep.subr.mxu0 0.0
  %3586 = vmatpush1.msra.mxu0 0.0
  %3587 = vmatprep.subr.mxu0 0.0
  %3588 = vmatpush1.msra.mxu0 0.0
  %3589 = vmatprep.subr.mxu0 0.0
  %3590 = vmatpush1.msra.mxu0 0.0
  %3591 = vmatprep.subr.mxu0 0.0
  %3592 = vmatpush1.msra.mxu0 0.0
  %3593 = vmatprep.subr.mxu0 0.0
  %3594 = vmatpush1.msra.mxu0 0.0
  %3595 = vmatprep.mubr.f32.mxu0 0.0
  %v3596 = vand.u32 %v3190, 4294901760
  %3597 = vmatmul.mubr.f32.gmra.mrb[0].mxu0 %v3596
  %v3598 = vpop.f32.mrb[0].mxu0
  %v3599 = vadd.f32 %v3516, %v3598
  %v3600 = vpop.f32.mrb[0].mxu0
  %3601 = vdwg.mxu0
  %3602 = vmatprep.subr.mxu0 0.0
  %v3603 = vand.u32 %v555, 4294901760
  %3604 = vmatpush1.msra.mxu0 %v3603
  %3605 = vmatprep.subr.mxu0 0.0
  %v3606 = vand.u32 %v556, 4294901760
  %3607 = vmatpush1.msra.mxu0 %v3606
  %3608 = vmatprep.subr.mxu0 0.0
  %v3609 = vand.u32 %v557, 4294901760
  %3610 = vmatpush1.msra.mxu0 %v3609
  %3611 = vmatprep.subr.mxu0 0.0
  %v3612 = vand.u32 %v558, 4294901760
  %3613 = vmatpush1.msra.mxu0 %v3612
  %3614 = vmatprep.subr.mxu0 0.0
  %3615 = vmatpush1.msra.mxu0 0.0
  %3616 = vmatprep.subr.mxu0 0.0
  %3617 = vmatpush1.msra.mxu0 0.0
  %3618 = vmatprep.subr.mxu0 0.0
  %3619 = vmatpush1.msra.mxu0 0.0
  %3620 = vmatprep.subr.mxu0 0.0
  %3621 = vmatpush1.msra.mxu0 0.0
  %3622 = vmatprep.subr.mxu0 0.0
  %3623 = vmatpush1.msra.mxu0 0.0
  %3624 = vmatprep.subr.mxu0 0.0
  %3625 = vmatpush1.msra.mxu0 0.0
  %3626 = vmatprep.subr.mxu0 0.0
  %3627 = vmatpush1.msra.mxu0 0.0
  %3628 = vmatprep.subr.mxu0 0.0
  %3629 = vmatpush1.msra.mxu0 0.0
  %3630 = vmatprep.subr.mxu0 0.0
  %3631 = vmatpush1.msra.mxu0 0.0
  %3632 = vmatprep.subr.mxu0 0.0
  %3633 = vmatpush1.msra.mxu0 0.0
  %3634 = vmatprep.subr.mxu0 0.0
  %3635 = vmatpush1.msra.mxu0 0.0
  %3636 = vmatprep.subr.mxu0 0.0
  %3637 = vmatpush1.msra.mxu0 0.0
  %3638 = vmatprep.subr.mxu0 0.0
  %3639 = vmatpush1.msra.mxu0 0.0
  %3640 = vmatprep.subr.mxu0 0.0
  %3641 = vmatpush1.msra.mxu0 0.0
  %3642 = vmatprep.subr.mxu0 0.0
  %3643 = vmatpush1.msra.mxu0 0.0
  %3644 = vmatprep.subr.mxu0 0.0
  %3645 = vmatpush1.msra.mxu0 0.0
  %3646 = vmatprep.subr.mxu0 0.0
  %3647 = vmatpush1.msra.mxu0 0.0
  %3648 = vmatprep.subr.mxu0 0.0
  %3649 = vmatpush1.msra.mxu0 0.0
  %3650 = vmatprep.subr.mxu0 0.0
  %3651 = vmatpush1.msra.mxu0 0.0
  %3652 = vmatprep.subr.mxu0 0.0
  %3653 = vmatpush1.msra.mxu0 0.0
  %3654 = vmatprep.subr.mxu0 0.0
  %3655 = vmatpush1.msra.mxu0 0.0
  %3656 = vmatprep.subr.mxu0 0.0
  %3657 = vmatpush1.msra.mxu0 0.0
  %3658 = vmatprep.subr.mxu0 0.0
  %3659 = vmatpush1.msra.mxu0 0.0
  %3660 = vmatprep.subr.mxu0 0.0
  %3661 = vmatpush1.msra.mxu0 0.0
  %3662 = vmatprep.subr.mxu0 0.0
  %3663 = vmatpush1.msra.mxu0 0.0
  %3664 = vmatprep.subr.mxu0 0.0
  %3665 = vmatpush1.msra.mxu0 0.0
  %3666 = vmatprep.subr.mxu0 0.0
  %3667 = vmatpush1.msra.mxu0 0.0
  %3668 = vmatprep.subr.mxu0 0.0
  %3669 = vmatpush1.msra.mxu0 0.0
  %3670 = vmatprep.mubr.f32.mxu0 0.0
  %v3671 = vand.u32 %v3190, 4294901760
  %3672 = vmatmul.mubr.f32.gmra.mrb[0].mxu0 %v3671
  %v3673 = vpop.f32.mrb[0].mxu0
  %v3674 = vadd.f32 %v3599, %v3673
  %v3675 = vpop.f32.mrb[0].mxu0
  %3676 = vdwg.mxu0
  %v3677 = vadd.f32 %v3189, %v3674
  %v3678 = vxor.u32 %v3677, 2147483648
  %v3679 = vmul.f32 %v3678, 1.442695
  %v3680 = vpow.pop %v3679
  %v3681 = vadd.f32 %v3680, 1.0
  %v3682 = vrcp.pop %v3681
  %v3683 = vmul.f32 1.0, %v3682
  %v3684 = vtanh.pop %v3677
  %v3685 = vmul.f32 %v3683, %v3171
  %3687 = vrot.lane.b32.xlu0 %v3684, 64
  %v3688 = vpop.permute.xlu0 %3687
  %v3690 = vmul.f32 %v3683, %v3688
  %3692 = vrot.lane.b32.xlu0 %v3690, 32
  %v3693 = vpop.permute.xlu0 %3692
  %v3695 = vadd.f32 %v3685, %v3693
  %v3696 = vtanh.pop %v3695
  %3698 = vrot.lane.b32.xlu0 %v3696, 64
  %v3699 = vpop.permute.xlu0 %3698
  %v3701 = vmul.f32 %v3683, %v3699
  %3703 = vrot.lane.b32.xlu0 %v3701, 32
  %v3704 = vpop.permute.xlu0 %3703
  %3706 = vst.msk [vmem:[#allocation3 + $0x5] sm:$0x1] %vm1084, %v3704
  %3707 = vst.msk [vmem:[#allocation3 + $0xc] sm:$0x2] %vm1086, %v3704
  %v3708 = vld [vmem:[#allocation2 + $0x6] sm:$0x1]
  %v3709 = vld [vmem:[#allocation2 + $0xe] sm:$0x1]
  %v3711 = vrot.slane %v3709, 7
  %v3713 = vsel %vm564, %v3708, %v3711
  %v3714 = vsel %vm566, %v3704, 0
  %3716 = vmatprep.subr.mxu0 0.0
  %v3717 = vand.u32 %v555, 4294901760
  %3718 = vmatpush1.msra.mxu0 %v3717
  %3719 = vmatprep.subr.mxu0 0.0
  %v3720 = vand.u32 %v556, 4294901760
  %3721 = vmatpush1.msra.mxu0 %v3720
  %3722 = vmatprep.subr.mxu0 0.0
  %v3723 = vand.u32 %v557, 4294901760
  %3724 = vmatpush1.msra.mxu0 %v3723
  %3725 = vmatprep.subr.mxu0 0.0
  %v3726 = vand.u32 %v558, 4294901760
  %3727 = vmatpush1.msra.mxu0 %v3726
  %3728 = vmatprep.subr.mxu0 0.0
  %3729 = vmatpush1.msra.mxu0 0.0
  %3730 = vmatprep.subr.mxu0 0.0
  %3731 = vmatpush1.msra.mxu0 0.0
  %3732 = vmatprep.subr.mxu0 0.0
  %3733 = vmatpush1.msra.mxu0 0.0
  %3734 = vmatprep.subr.mxu0 0.0
  %3735 = vmatpush1.msra.mxu0 0.0
  %3736 = vmatprep.subr.mxu0 0.0
  %3737 = vmatpush1.msra.mxu0 0.0
  %3738 = vmatprep.subr.mxu0 0.0
  %3739 = vmatpush1.msra.mxu0 0.0
  %3740 = vmatprep.subr.mxu0 0.0
  %3741 = vmatpush1.msra.mxu0 0.0
  %3742 = vmatprep.subr.mxu0 0.0
  %3743 = vmatpush1.msra.mxu0 0.0
  %3744 = vmatprep.subr.mxu0 0.0
  %3745 = vmatpush1.msra.mxu0 0.0
  %3746 = vmatprep.subr.mxu0 0.0
  %3747 = vmatpush1.msra.mxu0 0.0
  %3748 = vmatprep.subr.mxu0 0.0
  %3749 = vmatpush1.msra.mxu0 0.0
  %3750 = vmatprep.subr.mxu0 0.0
  %3751 = vmatpush1.msra.mxu0 0.0
  %3752 = vmatprep.subr.mxu0 0.0
  %3753 = vmatpush1.msra.mxu0 0.0
  %3754 = vmatprep.subr.mxu0 0.0
  %3755 = vmatpush1.msra.mxu0 0.0
  %3756 = vmatprep.subr.mxu0 0.0
  %3757 = vmatpush1.msra.mxu0 0.0
  %3758 = vmatprep.subr.mxu0 0.0
  %3759 = vmatpush1.msra.mxu0 0.0
  %3760 = vmatprep.subr.mxu0 0.0
  %3761 = vmatpush1.msra.mxu0 0.0
  %3762 = vmatprep.subr.mxu0 0.0
  %3763 = vmatpush1.msra.mxu0 0.0
  %3764 = vmatprep.subr.mxu0 0.0
  %3765 = vmatpush1.msra.mxu0 0.0
  %3766 = vmatprep.subr.mxu0 0.0
  %3767 = vmatpush1.msra.mxu0 0.0
  %3768 = vmatprep.subr.mxu0 0.0
  %3769 = vmatpush1.msra.mxu0 0.0
  %3770 = vmatprep.subr.mxu0 0.0
  %3771 = vmatpush1.msra.mxu0 0.0
  %3772 = vmatprep.subr.mxu0 0.0
  %3773 = vmatpush1.msra.mxu0 0.0
  %3774 = vmatprep.subr.mxu0 0.0
  %3775 = vmatpush1.msra.mxu0 0.0
  %3776 = vmatprep.subr.mxu0 0.0
  %3777 = vmatpush1.msra.mxu0 0.0
  %3778 = vmatprep.subr.mxu0 0.0
  %3779 = vmatpush1.msra.mxu0 0.0
  %3780 = vmatprep.subr.mxu0 0.0
  %3781 = vmatpush1.msra.mxu0 0.0
  %3782 = vmatprep.subr.mxu0 0.0
  %3783 = vmatpush1.msra.mxu0 0.0
  %3784 = vmatprep.mubr.f32.mxu0 0.0
  %v3785 = vand.u32 %v3714, 4294901760
  %v3786 = vsub.f32 %v3714, %v3785
  %v3787 = vand.u32 %v3786, 4294901760
  %v3788 = vsub.f32 %v3786, %v3787
  %v3789 = vand.u32 %v3788, 4294901760
  %3790 = vmatmul.mubr.f32.gmra.mrb[0].mxu0 %v3789
  %v3791 = vpop.f32.mrb[0].mxu0
  %v3792 = vadd.f32 0.0, %v3791
  %v3793 = vpop.f32.mrb[0].mxu0
  %3794 = vdwg.mxu0
  %3795 = vmatprep.subr.mxu0 0.0
  %v3796 = vand.u32 %v555, 4294901760
  %v3797 = vsub.f32 %v555, %v3796
  %v3798 = vand.u32 %v3797, 4294901760
  %v3799 = vsub.f32 %v3797, %v3798
  %v3800 = vand.u32 %v3799, 4294901760
  %3801 = vmatpush1.msra.mxu0 %v3800
  %3802 = vmatprep.subr.mxu0 0.0
  %v3803 = vand.u32 %v556, 4294901760
  %v3804 = vsub.f32 %v556, %v3803
  %v3805 = vand.u32 %v3804, 4294901760
  %v3806 = vsub.f32 %v3804, %v3805
  %v3807 = vand.u32 %v3806, 4294901760
  %3808 = vmatpush1.msra.mxu0 %v3807
  %3809 = vmatprep.subr.mxu0 0.0
  %v3810 = vand.u32 %v557, 4294901760
  %v3811 = vsub.f32 %v557, %v3810
  %v3812 = vand.u32 %v3811, 4294901760
  %v3813 = vsub.f32 %v3811, %v3812
  %v3814 = vand.u32 %v3813, 4294901760
  %3815 = vmatpush1.msra.mxu0 %v3814
  %3816 = vmatprep.subr.mxu0 0.0
  %v3817 = vand.u32 %v558, 4294901760
  %v3818 = vsub.f32 %v558, %v3817
  %v3819 = vand.u32 %v3818, 4294901760
  %v3820 = vsub.f32 %v3818, %v3819
  %v3821 = vand.u32 %v3820, 4294901760
  %3822 = vmatpush1.msra.mxu0 %v3821
  %3823 = vmatprep.subr.mxu0 0.0
  %3824 = vmatpush1.msra.mxu0 0.0
  %3825 = vmatprep.subr.mxu0 0.0
  %3826 = vmatpush1.msra.mxu0 0.0
  %3827 = vmatprep.subr.mxu0 0.0
  %3828 = vmatpush1.msra.mxu0 0.0
  %3829 = vmatprep.subr.mxu0 0.0
  %3830 = vmatpush1.msra.mxu0 0.0
  %3831 = vmatprep.subr.mxu0 0.0
  %3832 = vmatpush1.msra.mxu0 0.0
  %3833 = vmatprep.subr.mxu0 0.0
  %3834 = vmatpush1.msra.mxu0 0.0
  %3835 = vmatprep.subr.mxu0 0.0
  %3836 = vmatpush1.msra.mxu0 0.0
  %3837 = vmatprep.subr.mxu0 0.0
  %3838 = vmatpush1.msra.mxu0 0.0
  %3839 = vmatprep.subr.mxu0 0.0
  %3840 = vmatpush1.msra.mxu0 0.0
  %3841 = vmatprep.subr.mxu0 0.0
  %3842 = vmatpush1.msra.mxu0 0.0
  %3843 = vmatprep.subr.mxu0 0.0
  %3844 = vmatpush1.msra.mxu0 0.0
  %3845 = vmatprep.subr.mxu0 0.0
  %3846 = vmatpush1.msra.mxu0 0.0
  %3847 = vmatprep.subr.mxu0 0.0
  %3848 = vmatpush1.msra.mxu0 0.0
  %3849 = vmatprep.subr.mxu0 0.0
  %3850 = vmatpush1.msra.mxu0 0.0
  %3851 = vmatprep.subr.mxu0 0.0
  %3852 = vmatpush1.msra.mxu0 0.0
  %3853 = vmatprep.subr.mxu0 0.0
  %3854 = vmatpush1.msra.mxu0 0.0
  %3855 = vmatprep.subr.mxu0 0.0
  %3856 = vmatpush1.msra.mxu0 0.0
  %3857 = vmatprep.subr.mxu0 0.0
  %3858 = vmatpush1.msra.mxu0 0.0
  %3859 = vmatprep.subr.mxu0 0.0
  %3860 = vmatpush1.msra.mxu0 0.0
  %3861 = vmatprep.subr.mxu0 0.0
  %3862 = vmatpush1.msra.mxu0 0.0
  %3863 = vmatprep.subr.mxu0 0.0
  %3864 = vmatpush1.msra.mxu0 0.0
  %3865 = vmatprep.subr.mxu0 0.0
  %3866 = vmatpush1.msra.mxu0 0.0
  %3867 = vmatprep.subr.mxu0 0.0
  %3868 = vmatpush1.msra.mxu0 0.0
  %3869 = vmatprep.subr.mxu0 0.0
  %3870 = vmatpush1.msra.mxu0 0.0
  %3871 = vmatprep.subr.mxu0 0.0
  %3872 = vmatpush1.msra.mxu0 0.0
  %3873 = vmatprep.subr.mxu0 0.0
  %3874 = vmatpush1.msra.mxu0 0.0
  %3875 = vmatprep.subr.mxu0 0.0
  %3876 = vmatpush1.msra.mxu0 0.0
  %3877 = vmatprep.subr.mxu0 0.0
  %3878 = vmatpush1.msra.mxu0 0.0
  %3879 = vmatprep.mubr.f32.mxu0 0.0
  %v3880 = vand.u32 %v3714, 4294901760
  %3881 = vmatmul.mubr.f32.gmra.mrb[0].mxu0 %v3880
  %v3882 = vpop.f32.mrb[0].mxu0
  %v3883 = vadd.f32 %v3792, %v3882
  %v3884 = vpop.f32.mrb[0].mxu0
  %3885 = vdwg.mxu0
  %3886 = vmatprep.subr.mxu0 0.0
  %v3887 = vand.u32 %v555, 4294901760
  %v3888 = vsub.f32 %v555, %v3887
  %3889 = vmatpush1.msra.mxu0 %v3888
  %3890 = vmatprep.subr.mxu0 0.0
  %v3891 = vand.u32 %v556, 4294901760
  %v3892 = vsub.f32 %v556, %v3891
  %3893 = vmatpush1.msra.mxu0 %v3892
  %3894 = vmatprep.subr.mxu0 0.0
  %v3895 = vand.u32 %v557, 4294901760
  %v3896 = vsub.f32 %v557, %v3895
  %3897 = vmatpush1.msra.mxu0 %v3896
  %3898 = vmatprep.subr.mxu0 0.0
  %v3899 = vand.u32 %v558, 4294901760
  %v3900 = vsub.f32 %v558, %v3899
  %3901 = vmatpush1.msra.mxu0 %v3900
  %3902 = vmatprep.subr.mxu0 0.0
  %3903 = vmatpush1.msra.mxu0 0.0
  %3904 = vmatprep.subr.mxu0 0.0
  %3905 = vmatpush1.msra.mxu0 0.0
  %3906 = vmatprep.subr.mxu0 0.0
  %3907 = vmatpush1.msra.mxu0 0.0
  %3908 = vmatprep.subr.mxu0 0.0
  %3909 = vmatpush1.msra.mxu0 0.0
  %3910 = vmatprep.subr.mxu0 0.0
  %3911 = vmatpush1.msra.mxu0 0.0
  %3912 = vmatprep.subr.mxu0 0.0
  %3913 = vmatpush1.msra.mxu0 0.0
  %3914 = vmatprep.subr.mxu0 0.0
  %3915 = vmatpush1.msra.mxu0 0.0
  %3916 = vmatprep.subr.mxu0 0.0
  %3917 = vmatpush1.msra.mxu0 0.0
  %3918 = vmatprep.subr.mxu0 0.0
  %3919 = vmatpush1.msra.mxu0 0.0
  %3920 = vmatprep.subr.mxu0 0.0
  %3921 = vmatpush1.msra.mxu0 0.0
  %3922 = vmatprep.subr.mxu0 0.0
  %3923 = vmatpush1.msra.mxu0 0.0
  %3924 = vmatprep.subr.mxu0 0.0
  %3925 = vmatpush1.msra.mxu0 0.0
  %3926 = vmatprep.subr.mxu0 0.0
  %3927 = vmatpush1.msra.mxu0 0.0
  %3928 = vmatprep.subr.mxu0 0.0
  %3929 = vmatpush1.msra.mxu0 0.0
  %3930 = vmatprep.subr.mxu0 0.0
  %3931 = vmatpush1.msra.mxu0 0.0
  %3932 = vmatprep.subr.mxu0 0.0
  %3933 = vmatpush1.msra.mxu0 0.0
  %3934 = vmatprep.subr.mxu0 0.0
  %3935 = vmatpush1.msra.mxu0 0.0
  %3936 = vmatprep.subr.mxu0 0.0
  %3937 = vmatpush1.msra.mxu0 0.0
  %3938 = vmatprep.subr.mxu0 0.0
  %3939 = vmatpush1.msra.mxu0 0.0
  %3940 = vmatprep.subr.mxu0 0.0
  %3941 = vmatpush1.msra.mxu0 0.0
  %3942 = vmatprep.subr.mxu0 0.0
  %3943 = vmatpush1.msra.mxu0 0.0
  %3944 = vmatprep.subr.mxu0 0.0
  %3945 = vmatpush1.msra.mxu0 0.0
  %3946 = vmatprep.subr.mxu0 0.0
  %3947 = vmatpush1.msra.mxu0 0.0
  %3948 = vmatprep.subr.mxu0 0.0
  %3949 = vmatpush1.msra.mxu0 0.0
  %3950 = vmatprep.subr.mxu0 0.0
  %3951 = vmatpush1.msra.mxu0 0.0
  %3952 = vmatprep.subr.mxu0 0.0
  %3953 = vmatpush1.msra.mxu0 0.0
  %3954 = vmatprep.subr.mxu0 0.0
  %3955 = vmatpush1.msra.mxu0 0.0
  %3956 = vmatprep.subr.mxu0 0.0
  %3957 = vmatpush1.msra.mxu0 0.0
  %3958 = vmatprep.mubr.f32.mxu0 0.0
  %v3959 = vand.u32 %v3714, 4294901760
  %v3960 = vsub.f32 %v3714, %v3959
  %3961 = vmatmul.mubr.f32.gmra.mrb[0].mxu0 %v3960
  %v3962 = vpop.f32.mrb[0].mxu0
  %v3963 = vadd.f32 %v3883, %v3962
  %v3964 = vpop.f32.mrb[0].mxu0
  %3965 = vdwg.mxu0
  %3966 = vmatprep.subr.mxu0 0.0
  %v3967 = vand.u32 %v555, 4294901760
  %3968 = vmatpush1.msra.mxu0 %v3967
  %3969 = vmatprep.subr.mxu0 0.0
  %v3970 = vand.u32 %v556, 4294901760
  %3971 = vmatpush1.msra.mxu0 %v3970
  %3972 = vmatprep.subr.mxu0 0.0
  %v3973 = vand.u32 %v557, 4294901760
  %3974 = vmatpush1.msra.mxu0 %v3973
  %3975 = vmatprep.subr.mxu0 0.0
  %v3976 = vand.u32 %v558, 4294901760
  %3977 = vmatpush1.msra.mxu0 %v3976
  %3978 = vmatprep.subr.mxu0 0.0
  %3979 = vmatpush1.msra.mxu0 0.0
  %3980 = vmatprep.subr.mxu0 0.0
  %3981 = vmatpush1.msra.mxu0 0.0
  %3982 = vmatprep.subr.mxu0 0.0
  %3983 = vmatpush1.msra.mxu0 0.0
  %3984 = vmatprep.subr.mxu0 0.0
  %3985 = vmatpush1.msra.mxu0 0.0
  %3986 = vmatprep.subr.mxu0 0.0
  %3987 = vmatpush1.msra.mxu0 0.0
  %3988 = vmatprep.subr.mxu0 0.0
  %3989 = vmatpush1.msra.mxu0 0.0
  %3990 = vmatprep.subr.mxu0 0.0
  %3991 = vmatpush1.msra.mxu0 0.0
  %3992 = vmatprep.subr.mxu0 0.0
  %3993 = vmatpush1.msra.mxu0 0.0
  %3994 = vmatprep.subr.mxu0 0.0
  %3995 = vmatpush1.msra.mxu0 0.0
  %3996 = vmatprep.subr.mxu0 0.0
  %3997 = vmatpush1.msra.mxu0 0.0
  %3998 = vmatprep.subr.mxu0 0.0
  %3999 = vmatpush1.msra.mxu0 0.0
  %4000 = vmatprep.subr.mxu0 0.0
  %4001 = vmatpush1.msra.mxu0 0.0
  %4002 = vmatprep.subr.mxu0 0.0
  %4003 = vmatpush1.msra.mxu0 0.0
  %4004 = vmatprep.subr.mxu0 0.0
  %4005 = vmatpush1.msra.mxu0 0.0
  %4006 = vmatprep.subr.mxu0 0.0
  %4007 = vmatpush1.msra.mxu0 0.0
  %4008 = vmatprep.subr.mxu0 0.0
  %4009 = vmatpush1.msra.mxu0 0.0
  %4010 = vmatprep.subr.mxu0 0.0
  %4011 = vmatpush1.msra.mxu0 0.0
  %4012 = vmatprep.subr.mxu0 0.0
  %4013 = vmatpush1.msra.mxu0 0.0
  %4014 = vmatprep.subr.mxu0 0.0
  %4015 = vmatpush1.msra.mxu0 0.0
  %4016 = vmatprep.subr.mxu0 0.0
  %4017 = vmatpush1.msra.mxu0 0.0
  %4018 = vmatprep.subr.mxu0 0.0
  %4019 = vmatpush1.msra.mxu0 0.0
  %4020 = vmatprep.subr.mxu0 0.0
  %4021 = vmatpush1.msra.mxu0 0.0
  %4022 = vmatprep.subr.mxu0 0.0
  %4023 = vmatpush1.msra.mxu0 0.0
  %4024 = vmatprep.subr.mxu0 0.0
  %4025 = vmatpush1.msra.mxu0 0.0
  %4026 = vmatprep.subr.mxu0 0.0
  %4027 = vmatpush1.msra.mxu0 0.0
  %4028 = vmatprep.subr.mxu0 0.0
  %4029 = vmatpush1.msra.mxu0 0.0
  %4030 = vmatprep.subr.mxu0 0.0
  %4031 = vmatpush1.msra.mxu0 0.0
  %4032 = vmatprep.subr.mxu0 0.0
  %4033 = vmatpush1.msra.mxu0 0.0
  %4034 = vmatprep.mubr.f32.mxu0 0.0
  %v4035 = vand.u32 %v3714, 4294901760
  %v4036 = vsub.f32 %v3714, %v4035
  %v4037 = vand.u32 %v4036, 4294901760
  %4038 = vmatmul.mubr.f32.gmra.mrb[0].mxu0 %v4037
  %v4039 = vpop.f32.mrb[0].mxu0
  %v4040 = vadd.f32 %v3963, %v4039
  %v4041 = vpop.f32.mrb[0].mxu0
  %4042 = vdwg.mxu0
  %4043 = vmatprep.subr.mxu0 0.0
  %v4044 = vand.u32 %v555, 4294901760
  %v4045 = vsub.f32 %v555, %v4044
  %v4046 = vand.u32 %v4045, 4294901760
  %4047 = vmatpush1.msra.mxu0 %v4046
  %4048 = vmatprep.subr.mxu0 0.0
  %v4049 = vand.u32 %v556, 4294901760
  %v4050 = vsub.f32 %v556, %v4049
  %v4051 = vand.u32 %v4050, 4294901760
  %4052 = vmatpush1.msra.mxu0 %v4051
  %4053 = vmatprep.subr.mxu0 0.0
  %v4054 = vand.u32 %v557, 4294901760
  %v4055 = vsub.f32 %v557, %v4054
  %v4056 = vand.u32 %v4055, 4294901760
  %4057 = vmatpush1.msra.mxu0 %v4056
  %4058 = vmatprep.subr.mxu0 0.0
  %v4059 = vand.u32 %v558, 4294901760
  %v4060 = vsub.f32 %v558, %v4059
  %v4061 = vand.u32 %v4060, 4294901760
  %4062 = vmatpush1.msra.mxu0 %v4061
  %4063 = vmatprep.subr.mxu0 0.0
  %4064 = vmatpush1.msra.mxu0 0.0
  %4065 = vmatprep.subr.mxu0 0.0
  %4066 = vmatpush1.msra.mxu0 0.0
  %4067 = vmatprep.subr.mxu0 0.0
  %4068 = vmatpush1.msra.mxu0 0.0
  %4069 = vmatprep.subr.mxu0 0.0
  %4070 = vmatpush1.msra.mxu0 0.0
  %4071 = vmatprep.subr.mxu0 0.0
  %4072 = vmatpush1.msra.mxu0 0.0
  %4073 = vmatprep.subr.mxu0 0.0
  %4074 = vmatpush1.msra.mxu0 0.0
  %4075 = vmatprep.subr.mxu0 0.0
  %4076 = vmatpush1.msra.mxu0 0.0
  %4077 = vmatprep.subr.mxu0 0.0
  %4078 = vmatpush1.msra.mxu0 0.0
  %4079 = vmatprep.subr.mxu0 0.0
  %4080 = vmatpush1.msra.mxu0 0.0
  %4081 = vmatprep.subr.mxu0 0.0
  %4082 = vmatpush1.msra.mxu0 0.0
  %4083 = vmatprep.subr.mxu0 0.0
  %4084 = vmatpush1.msra.mxu0 0.0
  %4085 = vmatprep.subr.mxu0 0.0
  %4086 = vmatpush1.msra.mxu0 0.0
  %4087 = vmatprep.subr.mxu0 0.0
  %4088 = vmatpush1.msra.mxu0 0.0
  %4089 = vmatprep.subr.mxu0 0.0
  %4090 = vmatpush1.msra.mxu0 0.0
  %4091 = vmatprep.subr.mxu0 0.0
  %4092 = vmatpush1.msra.mxu0 0.0
  %4093 = vmatprep.subr.mxu0 0.0
  %4094 = vmatpush1.msra.mxu0 0.0
  %4095 = vmatprep.subr.mxu0 0.0
  %4096 = vmatpush1.msra.mxu0 0.0
  %4097 = vmatprep.subr.mxu0 0.0
  %4098 = vmatpush1.msra.mxu0 0.0
  %4099 = vmatprep.subr.mxu0 0.0
  %4100 = vmatpush1.msra.mxu0 0.0
  %4101 = vmatprep.subr.mxu0 0.0
  %4102 = vmatpush1.msra.mxu0 0.0
  %4103 = vmatprep.subr.mxu0 0.0
  %4104 = vmatpush1.msra.mxu0 0.0
  %4105 = vmatprep.subr.mxu0 0.0
  %4106 = vmatpush1.msra.mxu0 0.0
  %4107 = vmatprep.subr.mxu0 0.0
  %4108 = vmatpush1.msra.mxu0 0.0
  %4109 = vmatprep.subr.mxu0 0.0
  %4110 = vmatpush1.msra.mxu0 0.0
  %4111 = vmatprep.subr.mxu0 0.0
  %4112 = vmatpush1.msra.mxu0 0.0
  %4113 = vmatprep.subr.mxu0 0.0
  %4114 = vmatpush1.msra.mxu0 0.0
  %4115 = vmatprep.subr.mxu0 0.0
  %4116 = vmatpush1.msra.mxu0 0.0
  %4117 = vmatprep.subr.mxu0 0.0
  %4118 = vmatpush1.msra.mxu0 0.0
  %4119 = vmatprep.mubr.f32.mxu0 0.0
  %v4120 = vand.u32 %v3714, 4294901760
  %4121 = vmatmul.mubr.f32.gmra.mrb[0].mxu0 %v4120
  %v4122 = vpop.f32.mrb[0].mxu0
  %v4123 = vadd.f32 %v4040, %v4122
  %v4124 = vpop.f32.mrb[0].mxu0
  %4125 = vdwg.mxu0
  %4126 = vmatprep.subr.mxu0 0.0
  %v4127 = vand.u32 %v555, 4294901760
  %4128 = vmatpush1.msra.mxu0 %v4127
  %4129 = vmatprep.subr.mxu0 0.0
  %v4130 = vand.u32 %v556, 4294901760
  %4131 = vmatpush1.msra.mxu0 %v4130
  %4132 = vmatprep.subr.mxu0 0.0
  %v4133 = vand.u32 %v557, 4294901760
  %4134 = vmatpush1.msra.mxu0 %v4133
  %4135 = vmatprep.subr.mxu0 0.0
  %v4136 = vand.u32 %v558, 4294901760
  %4137 = vmatpush1.msra.mxu0 %v4136
  %4138 = vmatprep.subr.mxu0 0.0
  %4139 = vmatpush1.msra.mxu0 0.0
  %4140 = vmatprep.subr.mxu0 0.0
  %4141 = vmatpush1.msra.mxu0 0.0
  %4142 = vmatprep.subr.mxu0 0.0
  %4143 = vmatpush1.msra.mxu0 0.0
  %4144 = vmatprep.subr.mxu0 0.0
  %4145 = vmatpush1.msra.mxu0 0.0
  %4146 = vmatprep.subr.mxu0 0.0
  %4147 = vmatpush1.msra.mxu0 0.0
  %4148 = vmatprep.subr.mxu0 0.0
  %4149 = vmatpush1.msra.mxu0 0.0
  %4150 = vmatprep.subr.mxu0 0.0
  %4151 = vmatpush1.msra.mxu0 0.0
  %4152 = vmatprep.subr.mxu0 0.0
  %4153 = vmatpush1.msra.mxu0 0.0
  %4154 = vmatprep.subr.mxu0 0.0
  %4155 = vmatpush1.msra.mxu0 0.0
  %4156 = vmatprep.subr.mxu0 0.0
  %4157 = vmatpush1.msra.mxu0 0.0
  %4158 = vmatprep.subr.mxu0 0.0
  %4159 = vmatpush1.msra.mxu0 0.0
  %4160 = vmatprep.subr.mxu0 0.0
  %4161 = vmatpush1.msra.mxu0 0.0
  %4162 = vmatprep.subr.mxu0 0.0
  %4163 = vmatpush1.msra.mxu0 0.0
  %4164 = vmatprep.subr.mxu0 0.0
  %4165 = vmatpush1.msra.mxu0 0.0
  %4166 = vmatprep.subr.mxu0 0.0
  %4167 = vmatpush1.msra.mxu0 0.0
  %4168 = vmatprep.subr.mxu0 0.0
  %4169 = vmatpush1.msra.mxu0 0.0
  %4170 = vmatprep.subr.mxu0 0.0
  %4171 = vmatpush1.msra.mxu0 0.0
  %4172 = vmatprep.subr.mxu0 0.0
  %4173 = vmatpush1.msra.mxu0 0.0
  %4174 = vmatprep.subr.mxu0 0.0
  %4175 = vmatpush1.msra.mxu0 0.0
  %4176 = vmatprep.subr.mxu0 0.0
  %4177 = vmatpush1.msra.mxu0 0.0
  %4178 = vmatprep.subr.mxu0 0.0
  %4179 = vmatpush1.msra.mxu0 0.0
  %4180 = vmatprep.subr.mxu0 0.0
  %4181 = vmatpush1.msra.mxu0 0.0
  %4182 = vmatprep.subr.mxu0 0.0
  %4183 = vmatpush1.msra.mxu0 0.0
  %4184 = vmatprep.subr.mxu0 0.0
  %4185 = vmatpush1.msra.mxu0 0.0
  %4186 = vmatprep.subr.mxu0 0.0
  %4187 = vmatpush1.msra.mxu0 0.0
  %4188 = vmatprep.subr.mxu0 0.0
  %4189 = vmatpush1.msra.mxu0 0.0
  %4190 = vmatprep.subr.mxu0 0.0
  %4191 = vmatpush1.msra.mxu0 0.0
  %4192 = vmatprep.subr.mxu0 0.0
  %4193 = vmatpush1.msra.mxu0 0.0
  %4194 = vmatprep.mubr.f32.mxu0 0.0
  %v4195 = vand.u32 %v3714, 4294901760
  %4196 = vmatmul.mubr.f32.gmra.mrb[0].mxu0 %v4195
  %v4197 = vpop.f32.mrb[0].mxu0
  %v4198 = vadd.f32 %v4123, %v4197
  %v4199 = vpop.f32.mrb[0].mxu0
  %4200 = vdwg.mxu0
  %v4201 = vadd.f32 %v3713, %v4198
  %v4202 = vxor.u32 %v4201, 2147483648
  %v4203 = vmul.f32 %v4202, 1.442695
  %v4204 = vpow.pop %v4203
  %v4205 = vadd.f32 %v4204, 1.0
  %v4206 = vrcp.pop %v4205
  %v4207 = vmul.f32 1.0, %v4206
  %v4208 = vtanh.pop %v4201
  %v4209 = vmul.f32 %v4207, %v3695
  %4211 = vrot.lane.b32.xlu0 %v4208, 64
  %v4212 = vpop.permute.xlu0 %4211
  %v4214 = vmul.f32 %v4207, %v4212
  %4216 = vrot.lane.b32.xlu0 %v4214, 32
  %v4217 = vpop.permute.xlu0 %4216
  %v4219 = vadd.f32 %v4209, %v4217
  %v4220 = vtanh.pop %v4219
  %4222 = vrot.lane.b32.xlu0 %v4220, 64
  %v4223 = vpop.permute.xlu0 %4222
  %v4225 = vmul.f32 %v4207, %v4223
  %4227 = vrot.lane.b32.xlu0 %v4225, 32
  %v4228 = vpop.permute.xlu0 %4227
  %4230 = vst.msk [vmem:[#allocation3 + $0x6] sm:$0x1] %vm1084, %v4228
  %4231 = vst.msk [vmem:[#allocation3 + $0xd] sm:$0x2] %vm1086, %v4228
  %v4232 = vld [vmem:[#allocation2 + $0x7] sm:$0x1]
  %v4233 = vld [vmem:[#allocation2 + $0xf] sm:$0x1]
  %v4235 = vrot.slane %v4233, 7
  %v4237 = vsel %vm564, %v4232, %v4235
  %v4238 = vsel %vm566, %v4228, 0
  %4240 = vmatprep.subr.mxu0 0.0
  %v4241 = vand.u32 %v555, 4294901760
  %4242 = vmatpush1.msra.mxu0 %v4241
  %4243 = vmatprep.subr.mxu0 0.0
  %v4244 = vand.u32 %v556, 4294901760
  %4245 = vmatpush1.msra.mxu0 %v4244
  %4246 = vmatprep.subr.mxu0 0.0
  %v4247 = vand.u32 %v557, 4294901760
  %4248 = vmatpush1.msra.mxu0 %v4247
  %4249 = vmatprep.subr.mxu0 0.0
  %v4250 = vand.u32 %v558, 4294901760
  %4251 = vmatpush1.msra.mxu0 %v4250
  %4252 = vmatprep.subr.mxu0 0.0
  %4253 = vmatpush1.msra.mxu0 0.0
  %4254 = vmatprep.subr.mxu0 0.0
  %4255 = vmatpush1.msra.mxu0 0.0
  %4256 = vmatprep.subr.mxu0 0.0
  %4257 = vmatpush1.msra.mxu0 0.0
  %4258 = vmatprep.subr.mxu0 0.0
  %4259 = vmatpush1.msra.mxu0 0.0
  %4260 = vmatprep.subr.mxu0 0.0
  %4261 = vmatpush1.msra.mxu0 0.0
  %4262 = vmatprep.subr.mxu0 0.0
  %4263 = vmatpush1.msra.mxu0 0.0
  %4264 = vmatprep.subr.mxu0 0.0
  %4265 = vmatpush1.msra.mxu0 0.0
  %4266 = vmatprep.subr.mxu0 0.0
  %4267 = vmatpush1.msra.mxu0 0.0
  %4268 = vmatprep.subr.mxu0 0.0
  %4269 = vmatpush1.msra.mxu0 0.0
  %4270 = vmatprep.subr.mxu0 0.0
  %4271 = vmatpush1.msra.mxu0 0.0
  %4272 = vmatprep.subr.mxu0 0.0
  %4273 = vmatpush1.msra.mxu0 0.0
  %4274 = vmatprep.subr.mxu0 0.0
  %4275 = vmatpush1.msra.mxu0 0.0
  %4276 = vmatprep.subr.mxu0 0.0
  %4277 = vmatpush1.msra.mxu0 0.0
  %4278 = vmatprep.subr.mxu0 0.0
  %4279 = vmatpush1.msra.mxu0 0.0
  %4280 = vmatprep.subr.mxu0 0.0
  %4281 = vmatpush1.msra.mxu0 0.0
  %4282 = vmatprep.subr.mxu0 0.0
  %4283 = vmatpush1.msra.mxu0 0.0
  %4284 = vmatprep.subr.mxu0 0.0
  %4285 = vmatpush1.msra.mxu0 0.0
  %4286 = vmatprep.subr.mxu0 0.0
  %4287 = vmatpush1.msra.mxu0 0.0
  %4288 = vmatprep.subr.mxu0 0.0
  %4289 = vmatpush1.msra.mxu0 0.0
  %4290 = vmatprep.subr.mxu0 0.0
  %4291 = vmatpush1.msra.mxu0 0.0
  %4292 = vmatprep.subr.mxu0 0.0
  %4293 = vmatpush1.msra.mxu0 0.0
  %4294 = vmatprep.subr.mxu0 0.0
  %4295 = vmatpush1.msra.mxu0 0.0
  %4296 = vmatprep.subr.mxu0 0.0
  %4297 = vmatpush1.msra.mxu0 0.0
  %4298 = vmatprep.subr.mxu0 0.0
  %4299 = vmatpush1.msra.mxu0 0.0
  %4300 = vmatprep.subr.mxu0 0.0
  %4301 = vmatpush1.msra.mxu0 0.0
  %4302 = vmatprep.subr.mxu0 0.0
  %4303 = vmatpush1.msra.mxu0 0.0
  %4304 = vmatprep.subr.mxu0 0.0
  %4305 = vmatpush1.msra.mxu0 0.0
  %4306 = vmatprep.subr.mxu0 0.0
  %4307 = vmatpush1.msra.mxu0 0.0
  %4308 = vmatprep.mubr.f32.mxu0 0.0
  %v4309 = vand.u32 %v4238, 4294901760
  %v4310 = vsub.f32 %v4238, %v4309
  %v4311 = vand.u32 %v4310, 4294901760
  %v4312 = vsub.f32 %v4310, %v4311
  %v4313 = vand.u32 %v4312, 4294901760
  %4314 = vmatmul.mubr.f32.gmra.mrb[0].mxu0 %v4313
  %v4315 = vpop.f32.mrb[0].mxu0
  %v4316 = vadd.f32 0.0, %v4315
  %v4317 = vpop.f32.mrb[0].mxu0
  %4318 = vdwg.mxu0
  %4319 = vmatprep.subr.mxu0 0.0
  %v4320 = vand.u32 %v555, 4294901760
  %v4321 = vsub.f32 %v555, %v4320
  %v4322 = vand.u32 %v4321, 4294901760
  %v4323 = vsub.f32 %v4321, %v4322
  %v4324 = vand.u32 %v4323, 4294901760
  %4325 = vmatpush1.msra.mxu0 %v4324
  %4326 = vmatprep.subr.mxu0 0.0
  %v4327 = vand.u32 %v556, 4294901760
  %v4328 = vsub.f32 %v556, %v4327
  %v4329 = vand.u32 %v4328, 4294901760
  %v4330 = vsub.f32 %v4328, %v4329
  %v4331 = vand.u32 %v4330, 4294901760
  %4332 = vmatpush1.msra.mxu0 %v4331
  %4333 = vmatprep.subr.mxu0 0.0
  %v4334 = vand.u32 %v557, 4294901760
  %v4335 = vsub.f32 %v557, %v4334
  %v4336 = vand.u32 %v4335, 4294901760
  %v4337 = vsub.f32 %v4335, %v4336
  %v4338 = vand.u32 %v4337, 4294901760
  %4339 = vmatpush1.msra.mxu0 %v4338
  %4340 = vmatprep.subr.mxu0 0.0
  %v4341 = vand.u32 %v558, 4294901760
  %v4342 = vsub.f32 %v558, %v4341
  %v4343 = vand.u32 %v4342, 4294901760
  %v4344 = vsub.f32 %v4342, %v4343
  %v4345 = vand.u32 %v4344, 4294901760
  %4346 = vmatpush1.msra.mxu0 %v4345
  %4347 = vmatprep.subr.mxu0 0.0
  %4348 = vmatpush1.msra.mxu0 0.0
  %4349 = vmatprep.subr.mxu0 0.0
  %4350 = vmatpush1.msra.mxu0 0.0
  %4351 = vmatprep.subr.mxu0 0.0
  %4352 = vmatpush1.msra.mxu0 0.0
  %4353 = vmatprep.subr.mxu0 0.0
  %4354 = vmatpush1.msra.mxu0 0.0
  %4355 = vmatprep.subr.mxu0 0.0
  %4356 = vmatpush1.msra.mxu0 0.0
  %4357 = vmatprep.subr.mxu0 0.0
  %4358 = vmatpush1.msra.mxu0 0.0
  %4359 = vmatprep.subr.mxu0 0.0
  %4360 = vmatpush1.msra.mxu0 0.0
  %4361 = vmatprep.subr.mxu0 0.0
  %4362 = vmatpush1.msra.mxu0 0.0
  %4363 = vmatprep.subr.mxu0 0.0
  %4364 = vmatpush1.msra.mxu0 0.0
  %4365 = vmatprep.subr.mxu0 0.0
  %4366 = vmatpush1.msra.mxu0 0.0
  %4367 = vmatprep.subr.mxu0 0.0
  %4368 = vmatpush1.msra.mxu0 0.0
  %4369 = vmatprep.subr.mxu0 0.0
  %4370 = vmatpush1.msra.mxu0 0.0
  %4371 = vmatprep.subr.mxu0 0.0
  %4372 = vmatpush1.msra.mxu0 0.0
  %4373 = vmatprep.subr.mxu0 0.0
  %4374 = vmatpush1.msra.mxu0 0.0
  %4375 = vmatprep.subr.mxu0 0.0
  %4376 = vmatpush1.msra.mxu0 0.0
  %4377 = vmatprep.subr.mxu0 0.0
  %4378 = vmatpush1.msra.mxu0 0.0
  %4379 = vmatprep.subr.mxu0 0.0
  %4380 = vmatpush1.msra.mxu0 0.0
  %4381 = vmatprep.subr.mxu0 0.0
  %4382 = vmatpush1.msra.mxu0 0.0
  %4383 = vmatprep.subr.mxu0 0.0
  %4384 = vmatpush1.msra.mxu0 0.0
  %4385 = vmatprep.subr.mxu0 0.0
  %4386 = vmatpush1.msra.mxu0 0.0
  %4387 = vmatprep.subr.mxu0 0.0
  %4388 = vmatpush1.msra.mxu0 0.0
  %4389 = vmatprep.subr.mxu0 0.0
  %4390 = vmatpush1.msra.mxu0 0.0
  %4391 = vmatprep.subr.mxu0 0.0
  %4392 = vmatpush1.msra.mxu0 0.0
  %4393 = vmatprep.subr.mxu0 0.0
  %4394 = vmatpush1.msra.mxu0 0.0
  %4395 = vmatprep.subr.mxu0 0.0
  %4396 = vmatpush1.msra.mxu0 0.0
  %4397 = vmatprep.subr.mxu0 0.0
  %4398 = vmatpush1.msra.mxu0 0.0
  %4399 = vmatprep.subr.mxu0 0.0
  %4400 = vmatpush1.msra.mxu0 0.0
  %4401 = vmatprep.subr.mxu0 0.0
  %4402 = vmatpush1.msra.mxu0 0.0
  %4403 = vmatprep.mubr.f32.mxu0 0.0
  %v4404 = vand.u32 %v4238, 4294901760
  %4405 = vmatmul.mubr.f32.gmra.mrb[0].mxu0 %v4404
  %v4406 = vpop.f32.mrb[0].mxu0
  %v4407 = vadd.f32 %v4316, %v4406
  %v4408 = vpop.f32.mrb[0].mxu0
  %4409 = vdwg.mxu0
  %4410 = vmatprep.subr.mxu0 0.0
  %v4411 = vand.u32 %v555, 4294901760
  %v4412 = vsub.f32 %v555, %v4411
  %4413 = vmatpush1.msra.mxu0 %v4412
  %4414 = vmatprep.subr.mxu0 0.0
  %v4415 = vand.u32 %v556, 4294901760
  %v4416 = vsub.f32 %v556, %v4415
  %4417 = vmatpush1.msra.mxu0 %v4416
  %4418 = vmatprep.subr.mxu0 0.0
  %v4419 = vand.u32 %v557, 4294901760
  %v4420 = vsub.f32 %v557, %v4419
  %4421 = vmatpush1.msra.mxu0 %v4420
  %4422 = vmatprep.subr.mxu0 0.0
  %v4423 = vand.u32 %v558, 4294901760
  %v4424 = vsub.f32 %v558, %v4423
  %4425 = vmatpush1.msra.mxu0 %v4424
  %4426 = vmatprep.subr.mxu0 0.0
  %4427 = vmatpush1.msra.mxu0 0.0
  %4428 = vmatprep.subr.mxu0 0.0
  %4429 = vmatpush1.msra.mxu0 0.0
  %4430 = vmatprep.subr.mxu0 0.0
  %4431 = vmatpush1.msra.mxu0 0.0
  %4432 = vmatprep.subr.mxu0 0.0
  %4433 = vmatpush1.msra.mxu0 0.0
  %4434 = vmatprep.subr.mxu0 0.0
  %4435 = vmatpush1.msra.mxu0 0.0
  %4436 = vmatprep.subr.mxu0 0.0
  %4437 = vmatpush1.msra.mxu0 0.0
  %4438 = vmatprep.subr.mxu0 0.0
  %4439 = vmatpush1.msra.mxu0 0.0
  %4440 = vmatprep.subr.mxu0 0.0
  %4441 = vmatpush1.msra.mxu0 0.0
  %4442 = vmatprep.subr.mxu0 0.0
  %4443 = vmatpush1.msra.mxu0 0.0
  %4444 = vmatprep.subr.mxu0 0.0
  %4445 = vmatpush1.msra.mxu0 0.0
  %4446 = vmatprep.subr.mxu0 0.0
  %4447 = vmatpush1.msra.mxu0 0.0
  %4448 = vmatprep.subr.mxu0 0.0
  %4449 = vmatpush1.msra.mxu0 0.0
  %4450 = vmatprep.subr.mxu0 0.0
  %4451 = vmatpush1.msra.mxu0 0.0
  %4452 = vmatprep.subr.mxu0 0.0
  %4453 = vmatpush1.msra.mxu0 0.0
  %4454 = vmatprep.subr.mxu0 0.0
  %4455 = vmatpush1.msra.mxu0 0.0
  %4456 = vmatprep.subr.mxu0 0.0
  %4457 = vmatpush1.msra.mxu0 0.0
  %4458 = vmatprep.subr.mxu0 0.0
  %4459 = vmatpush1.msra.mxu0 0.0
  %4460 = vmatprep.subr.mxu0 0.0
  %4461 = vmatpush1.msra.mxu0 0.0
  %4462 = vmatprep.subr.mxu0 0.0
  %4463 = vmatpush1.msra.mxu0 0.0
  %4464 = vmatprep.subr.mxu0 0.0
  %4465 = vmatpush1.msra.mxu0 0.0
  %4466 = vmatprep.subr.mxu0 0.0
  %4467 = vmatpush1.msra.mxu0 0.0
  %4468 = vmatprep.subr.mxu0 0.0
  %4469 = vmatpush1.msra.mxu0 0.0
  %4470 = vmatprep.subr.mxu0 0.0
  %4471 = vmatpush1.msra.mxu0 0.0
  %4472 = vmatprep.subr.mxu0 0.0
  %4473 = vmatpush1.msra.mxu0 0.0
  %4474 = vmatprep.subr.mxu0 0.0
  %4475 = vmatpush1.msra.mxu0 0.0
  %4476 = vmatprep.subr.mxu0 0.0
  %4477 = vmatpush1.msra.mxu0 0.0
  %4478 = vmatprep.subr.mxu0 0.0
  %4479 = vmatpush1.msra.mxu0 0.0
  %4480 = vmatprep.subr.mxu0 0.0
  %4481 = vmatpush1.msra.mxu0 0.0
  %4482 = vmatprep.mubr.f32.mxu0 0.0
  %v4483 = vand.u32 %v4238, 4294901760
  %v4484 = vsub.f32 %v4238, %v4483
  %4485 = vmatmul.mubr.f32.gmra.mrb[0].mxu0 %v4484
  %v4486 = vpop.f32.mrb[0].mxu0
  %v4487 = vadd.f32 %v4407, %v4486
  %v4488 = vpop.f32.mrb[0].mxu0
  %4489 = vdwg.mxu0
  %4490 = vmatprep.subr.mxu0 0.0
  %v4491 = vand.u32 %v555, 4294901760
  %4492 = vmatpush1.msra.mxu0 %v4491
  %4493 = vmatprep.subr.mxu0 0.0
  %v4494 = vand.u32 %v556, 4294901760
  %4495 = vmatpush1.msra.mxu0 %v4494
  %4496 = vmatprep.subr.mxu0 0.0
  %v4497 = vand.u32 %v557, 4294901760
  %4498 = vmatpush1.msra.mxu0 %v4497
  %4499 = vmatprep.subr.mxu0 0.0
  %v4500 = vand.u32 %v558, 4294901760
  %4501 = vmatpush1.msra.mxu0 %v4500
  %4502 = vmatprep.subr.mxu0 0.0
  %4503 = vmatpush1.msra.mxu0 0.0
  %4504 = vmatprep.subr.mxu0 0.0
  %4505 = vmatpush1.msra.mxu0 0.0
  %4506 = vmatprep.subr.mxu0 0.0
  %4507 = vmatpush1.msra.mxu0 0.0
  %4508 = vmatprep.subr.mxu0 0.0
  %4509 = vmatpush1.msra.mxu0 0.0
  %4510 = vmatprep.subr.mxu0 0.0
  %4511 = vmatpush1.msra.mxu0 0.0
  %4512 = vmatprep.subr.mxu0 0.0
  %4513 = vmatpush1.msra.mxu0 0.0
  %4514 = vmatprep.subr.mxu0 0.0
  %4515 = vmatpush1.msra.mxu0 0.0
  %4516 = vmatprep.subr.mxu0 0.0
  %4517 = vmatpush1.msra.mxu0 0.0
  %4518 = vmatprep.subr.mxu0 0.0
  %4519 = vmatpush1.msra.mxu0 0.0
  %4520 = vmatprep.subr.mxu0 0.0
  %4521 = vmatpush1.msra.mxu0 0.0
  %4522 = vmatprep.subr.mxu0 0.0
  %4523 = vmatpush1.msra.mxu0 0.0
  %4524 = vmatprep.subr.mxu0 0.0
  %4525 = vmatpush1.msra.mxu0 0.0
  %4526 = vmatprep.subr.mxu0 0.0
  %4527 = vmatpush1.msra.mxu0 0.0
  %4528 = vmatprep.subr.mxu0 0.0
  %4529 = vmatpush1.msra.mxu0 0.0
  %4530 = vmatprep.subr.mxu0 0.0
  %4531 = vmatpush1.msra.mxu0 0.0
  %4532 = vmatprep.subr.mxu0 0.0
  %4533 = vmatpush1.msra.mxu0 0.0
  %4534 = vmatprep.subr.mxu0 0.0
  %4535 = vmatpush1.msra.mxu0 0.0
  %4536 = vmatprep.subr.mxu0 0.0
  %4537 = vmatpush1.msra.mxu0 0.0
  %4538 = vmatprep.subr.mxu0 0.0
  %4539 = vmatpush1.msra.mxu0 0.0
  %4540 = vmatprep.subr.mxu0 0.0
  %4541 = vmatpush1.msra.mxu0 0.0
  %4542 = vmatprep.subr.mxu0 0.0
  %4543 = vmatpush1.msra.mxu0 0.0
  %4544 = vmatprep.subr.mxu0 0.0
  %4545 = vmatpush1.msra.mxu0 0.0
  %4546 = vmatprep.subr.mxu0 0.0
  %4547 = vmatpush1.msra.mxu0 0.0
  %4548 = vmatprep.subr.mxu0 0.0
  %4549 = vmatpush1.msra.mxu0 0.0
  %4550 = vmatprep.subr.mxu0 0.0
  %4551 = vmatpush1.msra.mxu0 0.0
  %4552 = vmatprep.subr.mxu0 0.0
  %4553 = vmatpush1.msra.mxu0 0.0
  %4554 = vmatprep.subr.mxu0 0.0
  %4555 = vmatpush1.msra.mxu0 0.0
  %4556 = vmatprep.subr.mxu0 0.0
  %4557 = vmatpush1.msra.mxu0 0.0
  %4558 = vmatprep.mubr.f32.mxu0 0.0
  %v4559 = vand.u32 %v4238, 4294901760
  %v4560 = vsub.f32 %v4238, %v4559
  %v4561 = vand.u32 %v4560, 4294901760
  %4562 = vmatmul.mubr.f32.gmra.mrb[0].mxu0 %v4561
  %v4563 = vpop.f32.mrb[0].mxu0
  %v4564 = vadd.f32 %v4487, %v4563
  %v4565 = vpop.f32.mrb[0].mxu0
  %4566 = vdwg.mxu0
  %4567 = vmatprep.subr.mxu0 0.0
  %v4568 = vand.u32 %v555, 4294901760
  %v4569 = vsub.f32 %v555, %v4568
  %v4570 = vand.u32 %v4569, 4294901760
  %4571 = vmatpush1.msra.mxu0 %v4570
  %4572 = vmatprep.subr.mxu0 0.0
  %v4573 = vand.u32 %v556, 4294901760
  %v4574 = vsub.f32 %v556, %v4573
  %v4575 = vand.u32 %v4574, 4294901760
  %4576 = vmatpush1.msra.mxu0 %v4575
  %4577 = vmatprep.subr.mxu0 0.0
  %v4578 = vand.u32 %v557, 4294901760
  %v4579 = vsub.f32 %v557, %v4578
  %v4580 = vand.u32 %v4579, 4294901760
  %4581 = vmatpush1.msra.mxu0 %v4580
  %4582 = vmatprep.subr.mxu0 0.0
  %v4583 = vand.u32 %v558, 4294901760
  %v4584 = vsub.f32 %v558, %v4583
  %v4585 = vand.u32 %v4584, 4294901760
  %4586 = vmatpush1.msra.mxu0 %v4585
  %4587 = vmatprep.subr.mxu0 0.0
  %4588 = vmatpush1.msra.mxu0 0.0
  %4589 = vmatprep.subr.mxu0 0.0
  %4590 = vmatpush1.msra.mxu0 0.0
  %4591 = vmatprep.subr.mxu0 0.0
  %4592 = vmatpush1.msra.mxu0 0.0
  %4593 = vmatprep.subr.mxu0 0.0
  %4594 = vmatpush1.msra.mxu0 0.0
  %4595 = vmatprep.subr.mxu0 0.0
  %4596 = vmatpush1.msra.mxu0 0.0
  %4597 = vmatprep.subr.mxu0 0.0
  %4598 = vmatpush1.msra.mxu0 0.0
  %4599 = vmatprep.subr.mxu0 0.0
  %4600 = vmatpush1.msra.mxu0 0.0
  %4601 = vmatprep.subr.mxu0 0.0
  %4602 = vmatpush1.msra.mxu0 0.0
  %4603 = vmatprep.subr.mxu0 0.0
  %4604 = vmatpush1.msra.mxu0 0.0
  %4605 = vmatprep.subr.mxu0 0.0
  %4606 = vmatpush1.msra.mxu0 0.0
  %4607 = vmatprep.subr.mxu0 0.0
  %4608 = vmatpush1.msra.mxu0 0.0
  %4609 = vmatprep.subr.mxu0 0.0
  %4610 = vmatpush1.msra.mxu0 0.0
  %4611 = vmatprep.subr.mxu0 0.0
  %4612 = vmatpush1.msra.mxu0 0.0
  %4613 = vmatprep.subr.mxu0 0.0
  %4614 = vmatpush1.msra.mxu0 0.0
  %4615 = vmatprep.subr.mxu0 0.0
  %4616 = vmatpush1.msra.mxu0 0.0
  %4617 = vmatprep.subr.mxu0 0.0
  %4618 = vmatpush1.msra.mxu0 0.0
  %4619 = vmatprep.subr.mxu0 0.0
  %4620 = vmatpush1.msra.mxu0 0.0
  %4621 = vmatprep.subr.mxu0 0.0
  %4622 = vmatpush1.msra.mxu0 0.0
  %4623 = vmatprep.subr.mxu0 0.0
  %4624 = vmatpush1.msra.mxu0 0.0
  %4625 = vmatprep.subr.mxu0 0.0
  %4626 = vmatpush1.msra.mxu0 0.0
  %4627 = vmatprep.subr.mxu0 0.0
  %4628 = vmatpush1.msra.mxu0 0.0
  %4629 = vmatprep.subr.mxu0 0.0
  %4630 = vmatpush1.msra.mxu0 0.0
  %4631 = vmatprep.subr.mxu0 0.0
  %4632 = vmatpush1.msra.mxu0 0.0
  %4633 = vmatprep.subr.mxu0 0.0
  %4634 = vmatpush1.msra.mxu0 0.0
  %4635 = vmatprep.subr.mxu0 0.0
  %4636 = vmatpush1.msra.mxu0 0.0
  %4637 = vmatprep.subr.mxu0 0.0
  %4638 = vmatpush1.msra.mxu0 0.0
  %4639 = vmatprep.subr.mxu0 0.0
  %4640 = vmatpush1.msra.mxu0 0.0
  %4641 = vmatprep.subr.mxu0 0.0
  %4642 = vmatpush1.msra.mxu0 0.0
  %4643 = vmatprep.mubr.f32.mxu0 0.0
  %v4644 = vand.u32 %v4238, 4294901760
  %4645 = vmatmul.mubr.f32.gmra.mrb[0].mxu0 %v4644
  %v4646 = vpop.f32.mrb[0].mxu0
  %v4647 = vadd.f32 %v4564, %v4646
  %v4648 = vpop.f32.mrb[0].mxu0
  %4649 = vdwg.mxu0
  %4650 = vmatprep.subr.mxu0 0.0
  %v4651 = vand.u32 %v555, 4294901760
  %4652 = vmatpush1.msra.mxu0 %v4651
  %4653 = vmatprep.subr.mxu0 0.0
  %v4654 = vand.u32 %v556, 4294901760
  %4655 = vmatpush1.msra.mxu0 %v4654
  %4656 = vmatprep.subr.mxu0 0.0
  %v4657 = vand.u32 %v557, 4294901760
  %4658 = vmatpush1.msra.mxu0 %v4657
  %4659 = vmatprep.subr.mxu0 0.0
  %v4660 = vand.u32 %v558, 4294901760
  %4661 = vmatpush1.msra.mxu0 %v4660
  %4662 = vmatprep.subr.mxu0 0.0
  %4663 = vmatpush1.msra.mxu0 0.0
  %4664 = vmatprep.subr.mxu0 0.0
  %4665 = vmatpush1.msra.mxu0 0.0
  %4666 = vmatprep.subr.mxu0 0.0
  %4667 = vmatpush1.msra.mxu0 0.0
  %4668 = vmatprep.subr.mxu0 0.0
  %4669 = vmatpush1.msra.mxu0 0.0
  %4670 = vmatprep.subr.mxu0 0.0
  %4671 = vmatpush1.msra.mxu0 0.0
  %4672 = vmatprep.subr.mxu0 0.0
  %4673 = vmatpush1.msra.mxu0 0.0
  %4674 = vmatprep.subr.mxu0 0.0
  %4675 = vmatpush1.msra.mxu0 0.0
  %4676 = vmatprep.subr.mxu0 0.0
  %4677 = vmatpush1.msra.mxu0 0.0
  %4678 = vmatprep.subr.mxu0 0.0
  %4679 = vmatpush1.msra.mxu0 0.0
  %4680 = vmatprep.subr.mxu0 0.0
  %4681 = vmatpush1.msra.mxu0 0.0
  %4682 = vmatprep.subr.mxu0 0.0
  %4683 = vmatpush1.msra.mxu0 0.0
  %4684 = vmatprep.subr.mxu0 0.0
  %4685 = vmatpush1.msra.mxu0 0.0
  %4686 = vmatprep.subr.mxu0 0.0
  %4687 = vmatpush1.msra.mxu0 0.0
  %4688 = vmatprep.subr.mxu0 0.0
  %4689 = vmatpush1.msra.mxu0 0.0
  %4690 = vmatprep.subr.mxu0 0.0
  %4691 = vmatpush1.msra.mxu0 0.0
  %4692 = vmatprep.subr.mxu0 0.0
  %4693 = vmatpush1.msra.mxu0 0.0
  %4694 = vmatprep.subr.mxu0 0.0
  %4695 = vmatpush1.msra.mxu0 0.0
  %4696 = vmatprep.subr.mxu0 0.0
  %4697 = vmatpush1.msra.mxu0 0.0
  %4698 = vmatprep.subr.mxu0 0.0
  %4699 = vmatpush1.msra.mxu0 0.0
  %4700 = vmatprep.subr.mxu0 0.0
  %4701 = vmatpush1.msra.mxu0 0.0
  %4702 = vmatprep.subr.mxu0 0.0
  %4703 = vmatpush1.msra.mxu0 0.0
  %4704 = vmatprep.subr.mxu0 0.0
  %4705 = vmatpush1.msra.mxu0 0.0
  %4706 = vmatprep.subr.mxu0 0.0
  %4707 = vmatpush1.msra.mxu0 0.0
  %4708 = vmatprep.subr.mxu0 0.0
  %4709 = vmatpush1.msra.mxu0 0.0
  %4710 = vmatprep.subr.mxu0 0.0
  %4711 = vmatpush1.msra.mxu0 0.0
  %4712 = vmatprep.subr.mxu0 0.0
  %4713 = vmatpush1.msra.mxu0 0.0
  %4714 = vmatprep.subr.mxu0 0.0
  %4715 = vmatpush1.msra.mxu0 0.0
  %4716 = vmatprep.subr.mxu0 0.0
  %4717 = vmatpush1.msra.mxu0 0.0
  %4718 = vmatprep.mubr.f32.mxu0 0.0
  %v4719 = vand.u32 %v4238, 4294901760
  %4720 = vmatmul.mubr.f32.gmra.mrb[0].mxu0 %v4719
  %v4721 = vpop.f32.mrb[0].mxu0
  %v4722 = vadd.f32 %v4647, %v4721
  %v4723 = vpop.f32.mrb[0].mxu0
  %4724 = vdwg.mxu0
  %v4725 = vadd.f32 %v4237, %v4722
  %v4726 = vxor.u32 %v4725, 2147483648
  %v4727 = vmul.f32 %v4726, 1.442695
  %v4728 = vpow.pop %v4727
  %v4729 = vadd.f32 %v4728, 1.0
  %v4730 = vrcp.pop %v4729
  %v4731 = vmul.f32 1.0, %v4730
  %v4732 = vtanh.pop %v4725
  %v4733 = vmul.f32 %v4731, %v4219
  %4735 = vrot.lane.b32.xlu0 %v4732, 64
  %v4736 = vpop.permute.xlu0 %4735
  %v4738 = vmul.f32 %v4731, %v4736
  %4740 = vrot.lane.b32.xlu0 %v4738, 32
  %v4741 = vpop.permute.xlu0 %4740
  %v4743 = vadd.f32 %v4733, %v4741
  %v4744 = vtanh.pop %v4743
  %4746 = vrot.lane.b32.xlu0 %v4744, 64
  %v4747 = vpop.permute.xlu0 %4746
  %v4749 = vmul.f32 %v4731, %v4747
  %4751 = vrot.lane.b32.xlu0 %v4749, 32
  %v4752 = vpop.permute.xlu0 %4751
  %4754 = vst.msk [vmem:[#allocation3 + $0x7] sm:$0x1] %vm1084, %v4752
  %4755 = vst.msk [vmem:[#allocation3 + $0xe] sm:$0x2] %vm1086, %v4752
  %v4756 = vld [vmem:[#allocation3] sm:$0xff]
  %v4757 = vld [vmem:[#allocation3 + $0x8] sm:$0xff]
  %v4758 = vld [vmem:[%s5] sm:$0xff]
  %v4759 = vld [vmem:[%s5 + $0x8] sm:$0xff]
  %v4760 = vld [vmem:[%s5 + $0x10] sm:$0xff]
  %v4761 = vld [vmem:[%s5 + $0x18] sm:$0xff]
  %v4762 = vld [vmem:[#allocation6] sm:$0x1]
  %v4764 = vlaneseq
  %v4765 = vshrl.u32 %v4764, 7
  %v4766 = vsub.s32 0, %v4765
  %v4767 = vrot.slane %v4762, %v4766
  %v4770 = vsel %vm566, %v4756, 0
  %v4773 = vsel %vm566, %v4757, 0
  %4775 = vmatprep.subr.mxu0 0.0
  %v4776 = vand.u32 %v4758, 4294901760
  %4777 = vmatpush1.msra.mxu0 %v4776
  %4778 = vmatprep.subr.mxu0 0.0
  %v4779 = vand.u32 %v4759, 4294901760
  %4780 = vmatpush1.msra.mxu0 %v4779
  %4781 = vmatprep.subr.mxu0 0.0
  %v4782 = vand.u32 %v4760, 4294901760
  %4783 = vmatpush1.msra.mxu0 %v4782
  %4784 = vmatprep.subr.mxu0 0.0
  %v4785 = vand.u32 %v4761, 4294901760
  %4786 = vmatpush1.msra.mxu0 %v4785
  %4787 = vmatprep.subr.mxu0 0.0
  %4788 = vmatpush1.msra.mxu0 0.0
  %4789 = vmatprep.subr.mxu0 0.0
  %4790 = vmatpush1.msra.mxu0 0.0
  %4791 = vmatprep.subr.mxu0 0.0
  %4792 = vmatpush1.msra.mxu0 0.0
  %4793 = vmatprep.subr.mxu0 0.0
  %4794 = vmatpush1.msra.mxu0 0.0
  %4795 = vmatprep.subr.mxu0 0.0
  %4796 = vmatpush1.msra.mxu0 0.0
  %4797 = vmatprep.subr.mxu0 0.0
  %4798 = vmatpush1.msra.mxu0 0.0
  %4799 = vmatprep.subr.mxu0 0.0
  %4800 = vmatpush1.msra.mxu0 0.0
  %4801 = vmatprep.subr.mxu0 0.0
  %4802 = vmatpush1.msra.mxu0 0.0
  %4803 = vmatprep.subr.mxu0 0.0
  %4804 = vmatpush1.msra.mxu0 0.0
  %4805 = vmatprep.subr.mxu0 0.0
  %4806 = vmatpush1.msra.mxu0 0.0
  %4807 = vmatprep.subr.mxu0 0.0
  %4808 = vmatpush1.msra.mxu0 0.0
  %4809 = vmatprep.subr.mxu0 0.0
  %4810 = vmatpush1.msra.mxu0 0.0
  %4811 = vmatprep.subr.mxu0 0.0
  %4812 = vmatpush1.msra.mxu0 0.0
  %4813 = vmatprep.subr.mxu0 0.0
  %4814 = vmatpush1.msra.mxu0 0.0
  %4815 = vmatprep.subr.mxu0 0.0
  %4816 = vmatpush1.msra.mxu0 0.0
  %4817 = vmatprep.subr.mxu0 0.0
  %4818 = vmatpush1.msra.mxu0 0.0
  %4819 = vmatprep.subr.mxu0 0.0
  %4820 = vmatpush1.msra.mxu0 0.0
  %4821 = vmatprep.subr.mxu0 0.0
  %4822 = vmatpush1.msra.mxu0 0.0
  %4823 = vmatprep.subr.mxu0 0.0
  %4824 = vmatpush1.msra.mxu0 0.0
  %4825 = vmatprep.subr.mxu0 0.0
  %4826 = vmatpush1.msra.mxu0 0.0
  %4827 = vmatprep.subr.mxu0 0.0
  %4828 = vmatpush1.msra.mxu0 0.0
  %4829 = vmatprep.subr.mxu0 0.0
  %4830 = vmatpush1.msra.mxu0 0.0
  %4831 = vmatprep.subr.mxu0 0.0
  %4832 = vmatpush1.msra.mxu0 0.0
  %4833 = vmatprep.subr.mxu0 0.0
  %4834 = vmatpush1.msra.mxu0 0.0
  %4835 = vmatprep.subr.mxu0 0.0
  %4836 = vmatpush1.msra.mxu0 0.0
  %4837 = vmatprep.subr.mxu0 0.0
  %4838 = vmatpush1.msra.mxu0 0.0
  %4839 = vmatprep.subr.mxu0 0.0
  %4840 = vmatpush1.msra.mxu0 0.0
  %4841 = vmatprep.subr.mxu0 0.0
  %4842 = vmatpush1.msra.mxu0 0.0
  %4843 = vmatprep.mubr.f32.mxu0 0.0
  %v4844 = vand.u32 %v4770, 4294901760
  %v4845 = vsub.f32 %v4770, %v4844
  %v4846 = vand.u32 %v4845, 4294901760
  %v4847 = vsub.f32 %v4845, %v4846
  %v4848 = vand.u32 %v4847, 4294901760
  %4849 = vmatmul.mubr.f32.gmra.mrb[0].mxu0 %v4848
  %v4850 = vpop.f32.mrb[0].mxu0
  %v4851 = vadd.f32 %v4767, %v4850
  %v4852 = vpop.f32.mrb[0].mxu0
  %4853 = vmatprep.mubr.f32.mxu0 0.0
  %v4854 = vand.u32 %v4773, 4294901760
  %v4855 = vsub.f32 %v4773, %v4854
  %v4856 = vand.u32 %v4855, 4294901760
  %v4857 = vsub.f32 %v4855, %v4856
  %v4858 = vand.u32 %v4857, 4294901760
  %4859 = vmatmul.mubr.f32.gmra.mrb[0].mxu0 %v4858
  %v4860 = vpop.f32.mrb[0].mxu0
  %v4861 = vadd.f32 %v4767, %v4860
  %v4862 = vpop.f32.mrb[0].mxu0
  %4863 = vdwg.mxu0
  %4864 = vmatprep.subr.mxu0 0.0
  %v4865 = vand.u32 %v4758, 4294901760
  %v4866 = vsub.f32 %v4758, %v4865
  %v4867 = vand.u32 %v4866, 4294901760
  %v4868 = vsub.f32 %v4866, %v4867
  %v4869 = vand.u32 %v4868, 4294901760
  %4870 = vmatpush1.msra.mxu0 %v4869
  %4871 = vmatprep.subr.mxu0 0.0
  %v4872 = vand.u32 %v4759, 4294901760
  %v4873 = vsub.f32 %v4759, %v4872
  %v4874 = vand.u32 %v4873, 4294901760
  %v4875 = vsub.f32 %v4873, %v4874
  %v4876 = vand.u32 %v4875, 4294901760
  %4877 = vmatpush1.msra.mxu0 %v4876
  %4878 = vmatprep.subr.mxu0 0.0
  %v4879 = vand.u32 %v4760, 4294901760
  %v4880 = vsub.f32 %v4760, %v4879
  %v4881 = vand.u32 %v4880, 4294901760
  %v4882 = vsub.f32 %v4880, %v4881
  %v4883 = vand.u32 %v4882, 4294901760
  %4884 = vmatpush1.msra.mxu0 %v4883
  %4885 = vmatprep.subr.mxu0 0.0
  %v4886 = vand.u32 %v4761, 4294901760
  %v4887 = vsub.f32 %v4761, %v4886
  %v4888 = vand.u32 %v4887, 4294901760
  %v4889 = vsub.f32 %v4887, %v4888
  %v4890 = vand.u32 %v4889, 4294901760
  %4891 = vmatpush1.msra.mxu0 %v4890
  %4892 = vmatprep.subr.mxu0 0.0
  %4893 = vmatpush1.msra.mxu0 0.0
  %4894 = vmatprep.subr.mxu0 0.0
  %4895 = vmatpush1.msra.mxu0 0.0
  %4896 = vmatprep.subr.mxu0 0.0
  %4897 = vmatpush1.msra.mxu0 0.0
  %4898 = vmatprep.subr.mxu0 0.0
  %4899 = vmatpush1.msra.mxu0 0.0
  %4900 = vmatprep.subr.mxu0 0.0
  %4901 = vmatpush1.msra.mxu0 0.0
  %4902 = vmatprep.subr.mxu0 0.0
  %4903 = vmatpush1.msra.mxu0 0.0
  %4904 = vmatprep.subr.mxu0 0.0
  %4905 = vmatpush1.msra.mxu0 0.0
  %4906 = vmatprep.subr.mxu0 0.0
  %4907 = vmatpush1.msra.mxu0 0.0
  %4908 = vmatprep.subr.mxu0 0.0
  %4909 = vmatpush1.msra.mxu0 0.0
  %4910 = vmatprep.subr.mxu0 0.0
  %4911 = vmatpush1.msra.mxu0 0.0
  %4912 = vmatprep.subr.mxu0 0.0
  %4913 = vmatpush1.msra.mxu0 0.0
  %4914 = vmatprep.subr.mxu0 0.0
  %4915 = vmatpush1.msra.mxu0 0.0
  %4916 = vmatprep.subr.mxu0 0.0
  %4917 = vmatpush1.msra.mxu0 0.0
  %4918 = vmatprep.subr.mxu0 0.0
  %4919 = vmatpush1.msra.mxu0 0.0
  %4920 = vmatprep.subr.mxu0 0.0
  %4921 = vmatpush1.msra.mxu0 0.0
  %4922 = vmatprep.subr.mxu0 0.0
  %4923 = vmatpush1.msra.mxu0 0.0
  %4924 = vmatprep.subr.mxu0 0.0
  %4925 = vmatpush1.msra.mxu0 0.0
  %4926 = vmatprep.subr.mxu0 0.0
  %4927 = vmatpush1.msra.mxu0 0.0
  %4928 = vmatprep.subr.mxu0 0.0
  %4929 = vmatpush1.msra.mxu0 0.0
  %4930 = vmatprep.subr.mxu0 0.0
  %4931 = vmatpush1.msra.mxu0 0.0
  %4932 = vmatprep.subr.mxu0 0.0
  %4933 = vmatpush1.msra.mxu0 0.0
  %4934 = vmatprep.subr.mxu0 0.0
  %4935 = vmatpush1.msra.mxu0 0.0
  %4936 = vmatprep.subr.mxu0 0.0
  %4937 = vmatpush1.msra.mxu0 0.0
  %4938 = vmatprep.subr.mxu0 0.0
  %4939 = vmatpush1.msra.mxu0 0.0
  %4940 = vmatprep.subr.mxu0 0.0
  %4941 = vmatpush1.msra.mxu0 0.0
  %4942 = vmatprep.subr.mxu0 0.0
  %4943 = vmatpush1.msra.mxu0 0.0
  %4944 = vmatprep.subr.mxu0 0.0
  %4945 = vmatpush1.msra.mxu0 0.0
  %4946 = vmatprep.subr.mxu0 0.0
  %4947 = vmatpush1.msra.mxu0 0.0
  %4948 = vmatprep.mubr.f32.mxu0 0.0
  %v4949 = vand.u32 %v4770, 4294901760
  %4950 = vmatmul.mubr.f32.gmra.mrb[0].mxu0 %v4949
  %v4951 = vpop.f32.mrb[0].mxu0
  %v4952 = vadd.f32 %v4851, %v4951
  %v4953 = vpop.f32.mrb[0].mxu0
  %4954 = vmatprep.mubr.f32.mxu0 0.0
  %v4955 = vand.u32 %v4773, 4294901760
  %4956 = vmatmul.mubr.f32.gmra.mrb[0].mxu0 %v4955
  %v4957 = vpop.f32.mrb[0].mxu0
  %v4958 = vadd.f32 %v4861, %v4957
  %v4959 = vpop.f32.mrb[0].mxu0
  %4960 = vdwg.mxu0
  %4961 = vmatprep.subr.mxu0 0.0
  %v4962 = vand.u32 %v4758, 4294901760
  %v4963 = vsub.f32 %v4758, %v4962
  %4964 = vmatpush1.msra.mxu0 %v4963
  %4965 = vmatprep.subr.mxu0 0.0
  %v4966 = vand.u32 %v4759, 4294901760
  %v4967 = vsub.f32 %v4759, %v4966
  %4968 = vmatpush1.msra.mxu0 %v4967
  %4969 = vmatprep.subr.mxu0 0.0
  %v4970 = vand.u32 %v4760, 4294901760
  %v4971 = vsub.f32 %v4760, %v4970
  %4972 = vmatpush1.msra.mxu0 %v4971
  %4973 = vmatprep.subr.mxu0 0.0
  %v4974 = vand.u32 %v4761, 4294901760
  %v4975 = vsub.f32 %v4761, %v4974
  %4976 = vmatpush1.msra.mxu0 %v4975
  %4977 = vmatprep.subr.mxu0 0.0
  %4978 = vmatpush1.msra.mxu0 0.0
  %4979 = vmatprep.subr.mxu0 0.0
  %4980 = vmatpush1.msra.mxu0 0.0
  %4981 = vmatprep.subr.mxu0 0.0
  %4982 = vmatpush1.msra.mxu0 0.0
  %4983 = vmatprep.subr.mxu0 0.0
  %4984 = vmatpush1.msra.mxu0 0.0
  %4985 = vmatprep.subr.mxu0 0.0
  %4986 = vmatpush1.msra.mxu0 0.0
  %4987 = vmatprep.subr.mxu0 0.0
  %4988 = vmatpush1.msra.mxu0 0.0
  %4989 = vmatprep.subr.mxu0 0.0
  %4990 = vmatpush1.msra.mxu0 0.0
  %4991 = vmatprep.subr.mxu0 0.0
  %4992 = vmatpush1.msra.mxu0 0.0
  %4993 = vmatprep.subr.mxu0 0.0
  %4994 = vmatpush1.msra.mxu0 0.0
  %4995 = vmatprep.subr.mxu0 0.0
  %4996 = vmatpush1.msra.mxu0 0.0
  %4997 = vmatprep.subr.mxu0 0.0
  %4998 = vmatpush1.msra.mxu0 0.0
  %4999 = vmatprep.subr.mxu0 0.0
  %5000 = vmatpush1.msra.mxu0 0.0
  %5001 = vmatprep.subr.mxu0 0.0
  %5002 = vmatpush1.msra.mxu0 0.0
  %5003 = vmatprep.subr.mxu0 0.0
  %5004 = vmatpush1.msra.mxu0 0.0
  %5005 = vmatprep.subr.mxu0 0.0
  %5006 = vmatpush1.msra.mxu0 0.0
  %5007 = vmatprep.subr.mxu0 0.0
  %5008 = vmatpush1.msra.mxu0 0.0
  %5009 = vmatprep.subr.mxu0 0.0
  %5010 = vmatpush1.msra.mxu0 0.0
  %5011 = vmatprep.subr.mxu0 0.0
  %5012 = vmatpush1.msra.mxu0 0.0
  %5013 = vmatprep.subr.mxu0 0.0
  %5014 = vmatpush1.msra.mxu0 0.0
  %5015 = vmatprep.subr.mxu0 0.0
  %5016 = vmatpush1.msra.mxu0 0.0
  %5017 = vmatprep.subr.mxu0 0.0
  %5018 = vmatpush1.msra.mxu0 0.0
  %5019 = vmatprep.subr.mxu0 0.0
  %5020 = vmatpush1.msra.mxu0 0.0
  %5021 = vmatprep.subr.mxu0 0.0
  %5022 = vmatpush1.msra.mxu0 0.0
  %5023 = vmatprep.subr.mxu0 0.0
  %5024 = vmatpush1.msra.mxu0 0.0
  %5025 = vmatprep.subr.mxu0 0.0
  %5026 = vmatpush1.msra.mxu0 0.0
  %5027 = vmatprep.subr.mxu0 0.0
  %5028 = vmatpush1.msra.mxu0 0.0
  %5029 = vmatprep.subr.mxu0 0.0
  %5030 = vmatpush1.msra.mxu0 0.0
  %5031 = vmatprep.subr.mxu0 0.0
  %5032 = vmatpush1.msra.mxu0 0.0
  %5033 = vmatprep.mubr.f32.mxu0 0.0
  %v5034 = vand.u32 %v4770, 4294901760
  %v5035 = vsub.f32 %v4770, %v5034
  %5036 = vmatmul.mubr.f32.gmra.mrb[0].mxu0 %v5035
  %v5037 = vpop.f32.mrb[0].mxu0
  %v5038 = vadd.f32 %v4952, %v5037
  %v5039 = vpop.f32.mrb[0].mxu0
  %5040 = vmatprep.mubr.f32.mxu0 0.0
  %v5041 = vand.u32 %v4773, 4294901760
  %v5042 = vsub.f32 %v4773, %v5041
  %5043 = vmatmul.mubr.f32.gmra.mrb[0].mxu0 %v5042
  %v5044 = vpop.f32.mrb[0].mxu0
  %v5045 = vadd.f32 %v4958, %v5044
  %v5046 = vpop.f32.mrb[0].mxu0
  %5047 = vdwg.mxu0
  %5048 = vmatprep.subr.mxu0 0.0
  %v5049 = vand.u32 %v4758, 4294901760
  %5050 = vmatpush1.msra.mxu0 %v5049
  %5051 = vmatprep.subr.mxu0 0.0
  %v5052 = vand.u32 %v4759, 4294901760
  %5053 = vmatpush1.msra.mxu0 %v5052
  %5054 = vmatprep.subr.mxu0 0.0
  %v5055 = vand.u32 %v4760, 4294901760
  %5056 = vmatpush1.msra.mxu0 %v5055
  %5057 = vmatprep.subr.mxu0 0.0
  %v5058 = vand.u32 %v4761, 4294901760
  %5059 = vmatpush1.msra.mxu0 %v5058
  %5060 = vmatprep.subr.mxu0 0.0
  %5061 = vmatpush1.msra.mxu0 0.0
  %5062 = vmatprep.subr.mxu0 0.0
  %5063 = vmatpush1.msra.mxu0 0.0
  %5064 = vmatprep.subr.mxu0 0.0
  %5065 = vmatpush1.msra.mxu0 0.0
  %5066 = vmatprep.subr.mxu0 0.0
  %5067 = vmatpush1.msra.mxu0 0.0
  %5068 = vmatprep.subr.mxu0 0.0
  %5069 = vmatpush1.msra.mxu0 0.0
  %5070 = vmatprep.subr.mxu0 0.0
  %5071 = vmatpush1.msra.mxu0 0.0
  %5072 = vmatprep.subr.mxu0 0.0
  %5073 = vmatpush1.msra.mxu0 0.0
  %5074 = vmatprep.subr.mxu0 0.0
  %5075 = vmatpush1.msra.mxu0 0.0
  %5076 = vmatprep.subr.mxu0 0.0
  %5077 = vmatpush1.msra.mxu0 0.0
  %5078 = vmatprep.subr.mxu0 0.0
  %5079 = vmatpush1.msra.mxu0 0.0
  %5080 = vmatprep.subr.mxu0 0.0
  %5081 = vmatpush1.msra.mxu0 0.0
  %5082 = vmatprep.subr.mxu0 0.0
  %5083 = vmatpush1.msra.mxu0 0.0
  %5084 = vmatprep.subr.mxu0 0.0
  %5085 = vmatpush1.msra.mxu0 0.0
  %5086 = vmatprep.subr.mxu0 0.0
  %5087 = vmatpush1.msra.mxu0 0.0
  %5088 = vmatprep.subr.mxu0 0.0
  %5089 = vmatpush1.msra.mxu0 0.0
  %5090 = vmatprep.subr.mxu0 0.0
  %5091 = vmatpush1.msra.mxu0 0.0
  %5092 = vmatprep.subr.mxu0 0.0
  %5093 = vmatpush1.msra.mxu0 0.0
  %5094 = vmatprep.subr.mxu0 0.0
  %5095 = vmatpush1.msra.mxu0 0.0
  %5096 = vmatprep.subr.mxu0 0.0
  %5097 = vmatpush1.msra.mxu0 0.0
  %5098 = vmatprep.subr.mxu0 0.0
  %5099 = vmatpush1.msra.mxu0 0.0
  %5100 = vmatprep.subr.mxu0 0.0
  %5101 = vmatpush1.msra.mxu0 0.0
  %5102 = vmatprep.subr.mxu0 0.0
  %5103 = vmatpush1.msra.mxu0 0.0
  %5104 = vmatprep.subr.mxu0 0.0
  %5105 = vmatpush1.msra.mxu0 0.0
  %5106 = vmatprep.subr.mxu0 0.0
  %5107 = vmatpush1.msra.mxu0 0.0
  %5108 = vmatprep.subr.mxu0 0.0
  %5109 = vmatpush1.msra.mxu0 0.0
  %5110 = vmatprep.subr.mxu0 0.0
  %5111 = vmatpush1.msra.mxu0 0.0
  %5112 = vmatprep.subr.mxu0 0.0
  %5113 = vmatpush1.msra.mxu0 0.0
  %5114 = vmatprep.subr.mxu0 0.0
  %5115 = vmatpush1.msra.mxu0 0.0
  %5116 = vmatprep.mubr.f32.mxu0 0.0
  %v5117 = vand.u32 %v4770, 4294901760
  %v5118 = vsub.f32 %v4770, %v5117
  %v5119 = vand.u32 %v5118, 4294901760
  %5120 = vmatmul.mubr.f32.gmra.mrb[0].mxu0 %v5119
  %v5121 = vpop.f32.mrb[0].mxu0
  %v5122 = vadd.f32 %v5038, %v5121
  %v5123 = vpop.f32.mrb[0].mxu0
  %5124 = vmatprep.mubr.f32.mxu0 0.0
  %v5125 = vand.u32 %v4773, 4294901760
  %v5126 = vsub.f32 %v4773, %v5125
  %v5127 = vand.u32 %v5126, 4294901760
  %5128 = vmatmul.mubr.f32.gmra.mrb[0].mxu0 %v5127
  %v5129 = vpop.f32.mrb[0].mxu0
  %v5130 = vadd.f32 %v5045, %v5129
  %v5131 = vpop.f32.mrb[0].mxu0
  %5132 = vdwg.mxu0
  %5133 = vmatprep.subr.mxu0 0.0
  %v5134 = vand.u32 %v4758, 4294901760
  %v5135 = vsub.f32 %v4758, %v5134
  %v5136 = vand.u32 %v5135, 4294901760
  %5137 = vmatpush1.msra.mxu0 %v5136
  %5138 = vmatprep.subr.mxu0 0.0
  %v5139 = vand.u32 %v4759, 4294901760
  %v5140 = vsub.f32 %v4759, %v5139
  %v5141 = vand.u32 %v5140, 4294901760
  %5142 = vmatpush1.msra.mxu0 %v5141
  %5143 = vmatprep.subr.mxu0 0.0
  %v5144 = vand.u32 %v4760, 4294901760
  %v5145 = vsub.f32 %v4760, %v5144
  %v5146 = vand.u32 %v5145, 4294901760
  %5147 = vmatpush1.msra.mxu0 %v5146
  %5148 = vmatprep.subr.mxu0 0.0
  %v5149 = vand.u32 %v4761, 4294901760
  %v5150 = vsub.f32 %v4761, %v5149
  %v5151 = vand.u32 %v5150, 4294901760
  %5152 = vmatpush1.msra.mxu0 %v5151
  %5153 = vmatprep.subr.mxu0 0.0
  %5154 = vmatpush1.msra.mxu0 0.0
  %5155 = vmatprep.subr.mxu0 0.0
  %5156 = vmatpush1.msra.mxu0 0.0
  %5157 = vmatprep.subr.mxu0 0.0
  %5158 = vmatpush1.msra.mxu0 0.0
  %5159 = vmatprep.subr.mxu0 0.0
  %5160 = vmatpush1.msra.mxu0 0.0
  %5161 = vmatprep.subr.mxu0 0.0
  %5162 = vmatpush1.msra.mxu0 0.0
  %5163 = vmatprep.subr.mxu0 0.0
  %5164 = vmatpush1.msra.mxu0 0.0
  %5165 = vmatprep.subr.mxu0 0.0
  %5166 = vmatpush1.msra.mxu0 0.0
  %5167 = vmatprep.subr.mxu0 0.0
  %5168 = vmatpush1.msra.mxu0 0.0
  %5169 = vmatprep.subr.mxu0 0.0
  %5170 = vmatpush1.msra.mxu0 0.0
  %5171 = vmatprep.subr.mxu0 0.0
  %5172 = vmatpush1.msra.mxu0 0.0
  %5173 = vmatprep.subr.mxu0 0.0
  %5174 = vmatpush1.msra.mxu0 0.0
  %5175 = vmatprep.subr.mxu0 0.0
  %5176 = vmatpush1.msra.mxu0 0.0
  %5177 = vmatprep.subr.mxu0 0.0
  %5178 = vmatpush1.msra.mxu0 0.0
  %5179 = vmatprep.subr.mxu0 0.0
  %5180 = vmatpush1.msra.mxu0 0.0
  %5181 = vmatprep.subr.mxu0 0.0
  %5182 = vmatpush1.msra.mxu0 0.0
  %5183 = vmatprep.subr.mxu0 0.0
  %5184 = vmatpush1.msra.mxu0 0.0
  %5185 = vmatprep.subr.mxu0 0.0
  %5186 = vmatpush1.msra.mxu0 0.0
  %5187 = vmatprep.subr.mxu0 0.0
  %5188 = vmatpush1.msra.mxu0 0.0
  %5189 = vmatprep.subr.mxu0 0.0
  %5190 = vmatpush1.msra.mxu0 0.0
  %5191 = vmatprep.subr.mxu0 0.0
  %5192 = vmatpush1.msra.mxu0 0.0
  %5193 = vmatprep.subr.mxu0 0.0
  %5194 = vmatpush1.msra.mxu0 0.0
  %5195 = vmatprep.subr.mxu0 0.0
  %5196 = vmatpush1.msra.mxu0 0.0
  %5197 = vmatprep.subr.mxu0 0.0
  %5198 = vmatpush1.msra.mxu0 0.0
  %5199 = vmatprep.subr.mxu0 0.0
  %5200 = vmatpush1.msra.mxu0 0.0
  %5201 = vmatprep.subr.mxu0 0.0
  %5202 = vmatpush1.msra.mxu0 0.0
  %5203 = vmatprep.subr.mxu0 0.0
  %5204 = vmatpush1.msra.mxu0 0.0
  %5205 = vmatprep.subr.mxu0 0.0
  %5206 = vmatpush1.msra.mxu0 0.0
  %5207 = vmatprep.subr.mxu0 0.0
  %5208 = vmatpush1.msra.mxu0 0.0
  %5209 = vmatprep.mubr.f32.mxu0 0.0
  %v5210 = vand.u32 %v4770, 4294901760
  %5211 = vmatmul.mubr.f32.gmra.mrb[0].mxu0 %v5210
  %v5212 = vpop.f32.mrb[0].mxu0
  %v5213 = vadd.f32 %v5122, %v5212
  %v5214 = vpop.f32.mrb[0].mxu0
  %5215 = vmatprep.mubr.f32.mxu0 0.0
  %v5216 = vand.u32 %v4773, 4294901760
  %5217 = vmatmul.mubr.f32.gmra.mrb[0].mxu0 %v5216
  %v5218 = vpop.f32.mrb[0].mxu0
  %v5219 = vadd.f32 %v5130, %v5218
  %v5220 = vpop.f32.mrb[0].mxu0
  %5221 = vdwg.mxu0
  %5222 = vmatprep.subr.mxu0 0.0
  %v5223 = vand.u32 %v4758, 4294901760
  %5224 = vmatpush1.msra.mxu0 %v5223
  %5225 = vmatprep.subr.mxu0 0.0
  %v5226 = vand.u32 %v4759, 4294901760
  %5227 = vmatpush1.msra.mxu0 %v5226
  %5228 = vmatprep.subr.mxu0 0.0
  %v5229 = vand.u32 %v4760, 4294901760
  %5230 = vmatpush1.msra.mxu0 %v5229
  %5231 = vmatprep.subr.mxu0 0.0
  %v5232 = vand.u32 %v4761, 4294901760
  %5233 = vmatpush1.msra.mxu0 %v5232
  %5234 = vmatprep.subr.mxu0 0.0
  %5235 = vmatpush1.msra.mxu0 0.0
  %5236 = vmatprep.subr.mxu0 0.0
  %5237 = vmatpush1.msra.mxu0 0.0
  %5238 = vmatprep.subr.mxu0 0.0
  %5239 = vmatpush1.msra.mxu0 0.0
  %5240 = vmatprep.subr.mxu0 0.0
  %5241 = vmatpush1.msra.mxu0 0.0
  %5242 = vmatprep.subr.mxu0 0.0
  %5243 = vmatpush1.msra.mxu0 0.0
  %5244 = vmatprep.subr.mxu0 0.0
  %5245 = vmatpush1.msra.mxu0 0.0
  %5246 = vmatprep.subr.mxu0 0.0
  %5247 = vmatpush1.msra.mxu0 0.0
  %5248 = vmatprep.subr.mxu0 0.0
  %5249 = vmatpush1.msra.mxu0 0.0
  %5250 = vmatprep.subr.mxu0 0.0
  %5251 = vmatpush1.msra.mxu0 0.0
  %5252 = vmatprep.subr.mxu0 0.0
  %5253 = vmatpush1.msra.mxu0 0.0
  %5254 = vmatprep.subr.mxu0 0.0
  %5255 = vmatpush1.msra.mxu0 0.0
  %5256 = vmatprep.subr.mxu0 0.0
  %5257 = vmatpush1.msra.mxu0 0.0
  %5258 = vmatprep.subr.mxu0 0.0
  %5259 = vmatpush1.msra.mxu0 0.0
  %5260 = vmatprep.subr.mxu0 0.0
  %5261 = vmatpush1.msra.mxu0 0.0
  %5262 = vmatprep.subr.mxu0 0.0
  %5263 = vmatpush1.msra.mxu0 0.0
  %5264 = vmatprep.subr.mxu0 0.0
  %5265 = vmatpush1.msra.mxu0 0.0
  %5266 = vmatprep.subr.mxu0 0.0
  %5267 = vmatpush1.msra.mxu0 0.0
  %5268 = vmatprep.subr.mxu0 0.0
  %5269 = vmatpush1.msra.mxu0 0.0
  %5270 = vmatprep.subr.mxu0 0.0
  %5271 = vmatpush1.msra.mxu0 0.0
  %5272 = vmatprep.subr.mxu0 0.0
  %5273 = vmatpush1.msra.mxu0 0.0
  %5274 = vmatprep.subr.mxu0 0.0
  %5275 = vmatpush1.msra.mxu0 0.0
  %5276 = vmatprep.subr.mxu0 0.0
  %5277 = vmatpush1.msra.mxu0 0.0
  %5278 = vmatprep.subr.mxu0 0.0
  %5279 = vmatpush1.msra.mxu0 0.0
  %5280 = vmatprep.subr.mxu0 0.0
  %5281 = vmatpush1.msra.mxu0 0.0
  %5282 = vmatprep.subr.mxu0 0.0
  %5283 = vmatpush1.msra.mxu0 0.0
  %5284 = vmatprep.subr.mxu0 0.0
  %5285 = vmatpush1.msra.mxu0 0.0
  %5286 = vmatprep.subr.mxu0 0.0
  %5287 = vmatpush1.msra.mxu0 0.0
  %5288 = vmatprep.subr.mxu0 0.0
  %5289 = vmatpush1.msra.mxu0 0.0
  %5290 = vmatprep.mubr.f32.mxu0 0.0
  %v5291 = vand.u32 %v4770, 4294901760
  %5292 = vmatmul.mubr.f32.gmra.mrb[0].mxu0 %v5291
  %v5293 = vpop.f32.mrb[0].mxu0
  %v5294 = vadd.f32 %v5213, %v5293
  %v5295 = vpop.f32.mrb[0].mxu0
  %5296 = vmatprep.mubr.f32.mxu0 0.0
  %v5297 = vand.u32 %v4773, 4294901760
  %5298 = vmatmul.mubr.f32.gmra.mrb[0].mxu0 %v5297
  %v5299 = vpop.f32.mrb[0].mxu0
  %v5300 = vadd.f32 %v5219, %v5299
  %v5301 = vpop.f32.mrb[0].mxu0
  %5302 = vdwg.mxu0
  %vm5303 = vcmask 7168
  %5304 = vst.msk [vmem:[%s13] sm:$0xff] %vm5303, %v5294
  %5305 = vst.msk [vmem:[%s13 + $0x8] sm:$0xff] %vm5303, %v5300
  %v5306 = vld [vmem:[%s1] sm:$0xff]
  %v5307 = vld [vmem:[%s1 + $0x8] sm:$0xff]
  %v5308 = vld [vmem:[%s7] sm:$0xf]
  %v5309 = vld [vmem:[%s9] sm:$0x1]
  %v5311 = vlaneseq
  %v5312 = vshrl.u32 %v5311, 7
  %v5313 = vsub.s32 0, %v5312
  %v5314 = vrot.slane %v5309, %v5313
  %vm5316 = vcmask 31744
  %v5318 = vsel %vm5316, %v5306, 0
  %v5321 = vsel %vm5316, %v5307, 0
  %vm5323 = vcmask 1043456
  %v5325 = vsel %vm5323, %v5308, 0
  %5327 = vmatprep.subr.mxu0 0.0
  %v5328 = vand.u32 %v5325, 4294901760
  %5329 = vmatpush1.msra.mxu0 %v5328
  %5330 = vmatprep.subr.mxu0 0.0
  %5331 = vmatpush1.msra.mxu0 0.0
  %5332 = vmatprep.subr.mxu0 0.0
  %5333 = vmatpush1.msra.mxu0 0.0
  %5334 = vmatprep.subr.mxu0 0.0
  %5335 = vmatpush1.msra.mxu0 0.0
  %5336 = vmatprep.subr.mxu0 0.0
  %5337 = vmatpush1.msra.mxu0 0.0
  %5338 = vmatprep.subr.mxu0 0.0
  %5339 = vmatpush1.msra.mxu0 0.0
  %5340 = vmatprep.subr.mxu0 0.0
  %5341 = vmatpush1.msra.mxu0 0.0
  %5342 = vmatprep.subr.mxu0 0.0
  %5343 = vmatpush1.msra.mxu0 0.0
  %5344 = vmatprep.subr.mxu0 0.0
  %5345 = vmatpush1.msra.mxu0 0.0
  %5346 = vmatprep.subr.mxu0 0.0
  %5347 = vmatpush1.msra.mxu0 0.0
  %5348 = vmatprep.subr.mxu0 0.0
  %5349 = vmatpush1.msra.mxu0 0.0
  %5350 = vmatprep.subr.mxu0 0.0
  %5351 = vmatpush1.msra.mxu0 0.0
  %5352 = vmatprep.subr.mxu0 0.0
  %5353 = vmatpush1.msra.mxu0 0.0
  %5354 = vmatprep.subr.mxu0 0.0
  %5355 = vmatpush1.msra.mxu0 0.0
  %5356 = vmatprep.subr.mxu0 0.0
  %5357 = vmatpush1.msra.mxu0 0.0
  %5358 = vmatprep.subr.mxu0 0.0
  %5359 = vmatpush1.msra.mxu0 0.0
  %5360 = vmatprep.subr.mxu0 0.0
  %5361 = vmatpush1.msra.mxu0 0.0
  %5362 = vmatprep.subr.mxu0 0.0
  %5363 = vmatpush1.msra.mxu0 0.0
  %5364 = vmatprep.subr.mxu0 0.0
  %5365 = vmatpush1.msra.mxu0 0.0
  %5366 = vmatprep.subr.mxu0 0.0
  %5367 = vmatpush1.msra.mxu0 0.0
  %5368 = vmatprep.subr.mxu0 0.0
  %5369 = vmatpush1.msra.mxu0 0.0
  %5370 = vmatprep.subr.mxu0 0.0
  %5371 = vmatpush1.msra.mxu0 0.0
  %5372 = vmatprep.subr.mxu0 0.0
  %5373 = vmatpush1.msra.mxu0 0.0
  %5374 = vmatprep.subr.mxu0 0.0
  %5375 = vmatpush1.msra.mxu0 0.0
  %5376 = vmatprep.subr.mxu0 0.0
  %5377 = vmatpush1.msra.mxu0 0.0
  %5378 = vmatprep.subr.mxu0 0.0
  %5379 = vmatpush1.msra.mxu0 0.0
  %5380 = vmatprep.subr.mxu0 0.0
  %5381 = vmatpush1.msra.mxu0 0.0
  %5382 = vmatprep.subr.mxu0 0.0
  %5383 = vmatpush1.msra.mxu0 0.0
  %5384 = vmatprep.subr.mxu0 0.0
  %5385 = vmatpush1.msra.mxu0 0.0
  %5386 = vmatprep.subr.mxu0 0.0
  %5387 = vmatpush1.msra.mxu0 0.0
  %5388 = vmatprep.subr.mxu0 0.0
  %5389 = vmatpush1.msra.mxu0 0.0
  %5390 = vmatprep.subr.mxu0 0.0
  %5391 = vmatpush1.msra.mxu0 0.0
  %5392 = vmatprep.mubr.f32.mxu0 0.0
  %v5393 = vand.u32 %v5318, 4294901760
  %v5394 = vsub.f32 %v5318, %v5393
  %v5395 = vand.u32 %v5394, 4294901760
  %v5396 = vsub.f32 %v5394, %v5395
  %v5397 = vand.u32 %v5396, 4294901760
  %5398 = vmatmul.mubr.f32.gmra.mrb[0].mxu0 %v5397
  %v5399 = vpop.f32.mrb[0].mxu0
  %v5400 = vadd.f32 %v5314, %v5399
  %v5401 = vpop.f32.mrb[0].mxu0
  %5402 = vmatprep.mubr.f32.mxu0 0.0
  %v5403 = vand.u32 %v5321, 4294901760
  %v5404 = vsub.f32 %v5321, %v5403
  %v5405 = vand.u32 %v5404, 4294901760
  %v5406 = vsub.f32 %v5404, %v5405
  %v5407 = vand.u32 %v5406, 4294901760
  %5408 = vmatmul.mubr.f32.gmra.mrb[0].mxu0 %v5407
  %v5409 = vpop.f32.mrb[0].mxu0
  %v5410 = vadd.f32 %v5314, %v5409
  %v5411 = vpop.f32.mrb[0].mxu0
  %5412 = vdwg.mxu0
  %5413 = vmatprep.subr.mxu0 0.0
  %v5414 = vand.u32 %v5325, 4294901760
  %v5415 = vsub.f32 %v5325, %v5414
  %v5416 = vand.u32 %v5415, 4294901760
  %v5417 = vsub.f32 %v5415, %v5416
  %v5418 = vand.u32 %v5417, 4294901760
  %5419 = vmatpush1.msra.mxu0 %v5418
  %5420 = vmatprep.subr.mxu0 0.0
  %5421 = vmatpush1.msra.mxu0 0.0
  %5422 = vmatprep.subr.mxu0 0.0
  %5423 = vmatpush1.msra.mxu0 0.0
  %5424 = vmatprep.subr.mxu0 0.0
  %5425 = vmatpush1.msra.mxu0 0.0
  %5426 = vmatprep.subr.mxu0 0.0
  %5427 = vmatpush1.msra.mxu0 0.0
  %5428 = vmatprep.subr.mxu0 0.0
  %5429 = vmatpush1.msra.mxu0 0.0
  %5430 = vmatprep.subr.mxu0 0.0
  %5431 = vmatpush1.msra.mxu0 0.0
  %5432 = vmatprep.subr.mxu0 0.0
  %5433 = vmatpush1.msra.mxu0 0.0
  %5434 = vmatprep.subr.mxu0 0.0
  %5435 = vmatpush1.msra.mxu0 0.0
  %5436 = vmatprep.subr.mxu0 0.0
  %5437 = vmatpush1.msra.mxu0 0.0
  %5438 = vmatprep.subr.mxu0 0.0
  %5439 = vmatpush1.msra.mxu0 0.0
  %5440 = vmatprep.subr.mxu0 0.0
  %5441 = vmatpush1.msra.mxu0 0.0
  %5442 = vmatprep.subr.mxu0 0.0
  %5443 = vmatpush1.msra.mxu0 0.0
  %5444 = vmatprep.subr.mxu0 0.0
  %5445 = vmatpush1.msra.mxu0 0.0
  %5446 = vmatprep.subr.mxu0 0.0
  %5447 = vmatpush1.msra.mxu0 0.0
  %5448 = vmatprep.subr.mxu0 0.0
  %5449 = vmatpush1.msra.mxu0 0.0
  %5450 = vmatprep.subr.mxu0 0.0
  %5451 = vmatpush1.msra.mxu0 0.0
  %5452 = vmatprep.subr.mxu0 0.0
  %5453 = vmatpush1.msra.mxu0 0.0
  %5454 = vmatprep.subr.mxu0 0.0
  %5455 = vmatpush1.msra.mxu0 0.0
  %5456 = vmatprep.subr.mxu0 0.0
  %5457 = vmatpush1.msra.mxu0 0.0
  %5458 = vmatprep.subr.mxu0 0.0
  %5459 = vmatpush1.msra.mxu0 0.0
  %5460 = vmatprep.subr.mxu0 0.0
  %5461 = vmatpush1.msra.mxu0 0.0
  %5462 = vmatprep.subr.mxu0 0.0
  %5463 = vmatpush1.msra.mxu0 0.0
  %5464 = vmatprep.subr.mxu0 0.0
  %5465 = vmatpush1.msra.mxu0 0.0
  %5466 = vmatprep.subr.mxu0 0.0
  %5467 = vmatpush1.msra.mxu0 0.0
  %5468 = vmatprep.subr.mxu0 0.0
  %5469 = vmatpush1.msra.mxu0 0.0
  %5470 = vmatprep.subr.mxu0 0.0
  %5471 = vmatpush1.msra.mxu0 0.0
  %5472 = vmatprep.subr.mxu0 0.0
  %5473 = vmatpush1.msra.mxu0 0.0
  %5474 = vmatprep.subr.mxu0 0.0
  %5475 = vmatpush1.msra.mxu0 0.0
  %5476 = vmatprep.subr.mxu0 0.0
  %5477 = vmatpush1.msra.mxu0 0.0
  %5478 = vmatprep.subr.mxu0 0.0
  %5479 = vmatpush1.msra.mxu0 0.0
  %5480 = vmatprep.subr.mxu0 0.0
  %5481 = vmatpush1.msra.mxu0 0.0
  %5482 = vmatprep.mubr.f32.mxu0 0.0
  %v5483 = vand.u32 %v5318, 4294901760
  %5484 = vmatmul.mubr.f32.gmra.mrb[0].mxu0 %v5483
  %v5485 = vpop.f32.mrb[0].mxu0
  %v5486 = vadd.f32 %v5400, %v5485
  %v5487 = vpop.f32.mrb[0].mxu0
  %5488 = vmatprep.mubr.f32.mxu0 0.0
  %v5489 = vand.u32 %v5321, 4294901760
  %5490 = vmatmul.mubr.f32.gmra.mrb[0].mxu0 %v5489
  %v5491 = vpop.f32.mrb[0].mxu0
  %v5492 = vadd.f32 %v5410, %v5491
  %v5493 = vpop.f32.mrb[0].mxu0
  %5494 = vdwg.mxu0
  %5495 = vmatprep.subr.mxu0 0.0
  %v5496 = vand.u32 %v5325, 4294901760
  %v5497 = vsub.f32 %v5325, %v5496
  %5498 = vmatpush1.msra.mxu0 %v5497
  %5499 = vmatprep.subr.mxu0 0.0
  %5500 = vmatpush1.msra.mxu0 0.0
  %5501 = vmatprep.subr.mxu0 0.0
  %5502 = vmatpush1.msra.mxu0 0.0
  %5503 = vmatprep.subr.mxu0 0.0
  %5504 = vmatpush1.msra.mxu0 0.0
  %5505 = vmatprep.subr.mxu0 0.0
  %5506 = vmatpush1.msra.mxu0 0.0
  %5507 = vmatprep.subr.mxu0 0.0
  %5508 = vmatpush1.msra.mxu0 0.0
  %5509 = vmatprep.subr.mxu0 0.0
  %5510 = vmatpush1.msra.mxu0 0.0
  %5511 = vmatprep.subr.mxu0 0.0
  %5512 = vmatpush1.msra.mxu0 0.0
  %5513 = vmatprep.subr.mxu0 0.0
  %5514 = vmatpush1.msra.mxu0 0.0
  %5515 = vmatprep.subr.mxu0 0.0
  %5516 = vmatpush1.msra.mxu0 0.0
  %5517 = vmatprep.subr.mxu0 0.0
  %5518 = vmatpush1.msra.mxu0 0.0
  %5519 = vmatprep.subr.mxu0 0.0
  %5520 = vmatpush1.msra.mxu0 0.0
  %5521 = vmatprep.subr.mxu0 0.0
  %5522 = vmatpush1.msra.mxu0 0.0
  %5523 = vmatprep.subr.mxu0 0.0
  %5524 = vmatpush1.msra.mxu0 0.0
  %5525 = vmatprep.subr.mxu0 0.0
  %5526 = vmatpush1.msra.mxu0 0.0
  %5527 = vmatprep.subr.mxu0 0.0
  %5528 = vmatpush1.msra.mxu0 0.0
  %5529 = vmatprep.subr.mxu0 0.0
  %5530 = vmatpush1.msra.mxu0 0.0
  %5531 = vmatprep.subr.mxu0 0.0
  %5532 = vmatpush1.msra.mxu0 0.0
  %5533 = vmatprep.subr.mxu0 0.0
  %5534 = vmatpush1.msra.mxu0 0.0
  %5535 = vmatprep.subr.mxu0 0.0
  %5536 = vmatpush1.msra.mxu0 0.0
  %5537 = vmatprep.subr.mxu0 0.0
  %5538 = vmatpush1.msra.mxu0 0.0
  %5539 = vmatprep.subr.mxu0 0.0
  %5540 = vmatpush1.msra.mxu0 0.0
  %5541 = vmatprep.subr.mxu0 0.0
  %5542 = vmatpush1.msra.mxu0 0.0
  %5543 = vmatprep.subr.mxu0 0.0
  %5544 = vmatpush1.msra.mxu0 0.0
  %5545 = vmatprep.subr.mxu0 0.0
  %5546 = vmatpush1.msra.mxu0 0.0
  %5547 = vmatprep.subr.mxu0 0.0
  %5548 = vmatpush1.msra.mxu0 0.0
  %5549 = vmatprep.subr.mxu0 0.0
  %5550 = vmatpush1.msra.mxu0 0.0
  %5551 = vmatprep.subr.mxu0 0.0
  %5552 = vmatpush1.msra.mxu0 0.0
  %5553 = vmatprep.subr.mxu0 0.0
  %5554 = vmatpush1.msra.mxu0 0.0
  %5555 = vmatprep.subr.mxu0 0.0
  %5556 = vmatpush1.msra.mxu0 0.0
  %5557 = vmatprep.subr.mxu0 0.0
  %5558 = vmatpush1.msra.mxu0 0.0
  %5559 = vmatprep.subr.mxu0 0.0
  %5560 = vmatpush1.msra.mxu0 0.0
  %5561 = vmatprep.mubr.f32.mxu0 0.0
  %v5562 = vand.u32 %v5318, 4294901760
  %v5563 = vsub.f32 %v5318, %v5562
  %5564 = vmatmul.mubr.f32.gmra.mrb[0].mxu0 %v5563
  %v5565 = vpop.f32.mrb[0].mxu0
  %v5566 = vadd.f32 %v5486, %v5565
  %v5567 = vpop.f32.mrb[0].mxu0
  %5568 = vmatprep.mubr.f32.mxu0 0.0
  %v5569 = vand.u32 %v5321, 4294901760
  %v5570 = vsub.f32 %v5321, %v5569
  %5571 = vmatmul.mubr.f32.gmra.mrb[0].mxu0 %v5570
  %v5572 = vpop.f32.mrb[0].mxu0
  %v5573 = vadd.f32 %v5492, %v5572
  %v5574 = vpop.f32.mrb[0].mxu0
  %5575 = vdwg.mxu0
  %5576 = vmatprep.subr.mxu0 0.0
  %v5577 = vand.u32 %v5325, 4294901760
  %5578 = vmatpush1.msra.mxu0 %v5577
  %5579 = vmatprep.subr.mxu0 0.0
  %5580 = vmatpush1.msra.mxu0 0.0
  %5581 = vmatprep.subr.mxu0 0.0
  %5582 = vmatpush1.msra.mxu0 0.0
  %5583 = vmatprep.subr.mxu0 0.0
  %5584 = vmatpush1.msra.mxu0 0.0
  %5585 = vmatprep.subr.mxu0 0.0
  %5586 = vmatpush1.msra.mxu0 0.0
  %5587 = vmatprep.subr.mxu0 0.0
  %5588 = vmatpush1.msra.mxu0 0.0
  %5589 = vmatprep.subr.mxu0 0.0
  %5590 = vmatpush1.msra.mxu0 0.0
  %5591 = vmatprep.subr.mxu0 0.0
  %5592 = vmatpush1.msra.mxu0 0.0
  %5593 = vmatprep.subr.mxu0 0.0
  %5594 = vmatpush1.msra.mxu0 0.0
  %5595 = vmatprep.subr.mxu0 0.0
  %5596 = vmatpush1.msra.mxu0 0.0
  %5597 = vmatprep.subr.mxu0 0.0
  %5598 = vmatpush1.msra.mxu0 0.0
  %5599 = vmatprep.subr.mxu0 0.0
  %5600 = vmatpush1.msra.mxu0 0.0
  %5601 = vmatprep.subr.mxu0 0.0
  %5602 = vmatpush1.msra.mxu0 0.0
  %5603 = vmatprep.subr.mxu0 0.0
  %5604 = vmatpush1.msra.mxu0 0.0
  %5605 = vmatprep.subr.mxu0 0.0
  %5606 = vmatpush1.msra.mxu0 0.0
  %5607 = vmatprep.subr.mxu0 0.0
  %5608 = vmatpush1.msra.mxu0 0.0
  %5609 = vmatprep.subr.mxu0 0.0
  %5610 = vmatpush1.msra.mxu0 0.0
  %5611 = vmatprep.subr.mxu0 0.0
  %5612 = vmatpush1.msra.mxu0 0.0
  %5613 = vmatprep.subr.mxu0 0.0
  %5614 = vmatpush1.msra.mxu0 0.0
  %5615 = vmatprep.subr.mxu0 0.0
  %5616 = vmatpush1.msra.mxu0 0.0
  %5617 = vmatprep.subr.mxu0 0.0
  %5618 = vmatpush1.msra.mxu0 0.0
  %5619 = vmatprep.subr.mxu0 0.0
  %5620 = vmatpush1.msra.mxu0 0.0
  %5621 = vmatprep.subr.mxu0 0.0
  %5622 = vmatpush1.msra.mxu0 0.0
  %5623 = vmatprep.subr.mxu0 0.0
  %5624 = vmatpush1.msra.mxu0 0.0
  %5625 = vmatprep.subr.mxu0 0.0
  %5626 = vmatpush1.msra.mxu0 0.0
  %5627 = vmatprep.subr.mxu0 0.0
  %5628 = vmatpush1.msra.mxu0 0.0
  %5629 = vmatprep.subr.mxu0 0.0
  %5630 = vmatpush1.msra.mxu0 0.0
  %5631 = vmatprep.subr.mxu0 0.0
  %5632 = vmatpush1.msra.mxu0 0.0
  %5633 = vmatprep.subr.mxu0 0.0
  %5634 = vmatpush1.msra.mxu0 0.0
  %5635 = vmatprep.subr.mxu0 0.0
  %5636 = vmatpush1.msra.mxu0 0.0
  %5637 = vmatprep.subr.mxu0 0.0
  %5638 = vmatpush1.msra.mxu0 0.0
  %5639 = vmatprep.subr.mxu0 0.0
  %5640 = vmatpush1.msra.mxu0 0.0
  %5641 = vmatprep.mubr.f32.mxu0 0.0
  %v5642 = vand.u32 %v5318, 4294901760
  %v5643 = vsub.f32 %v5318, %v5642
  %v5644 = vand.u32 %v5643, 4294901760
  %5645 = vmatmul.mubr.f32.gmra.mrb[0].mxu0 %v5644
  %v5646 = vpop.f32.mrb[0].mxu0
  %v5647 = vadd.f32 %v5566, %v5646
  %v5648 = vpop.f32.mrb[0].mxu0
  %5649 = vmatprep.mubr.f32.mxu0 0.0
  %v5650 = vand.u32 %v5321, 4294901760
  %v5651 = vsub.f32 %v5321, %v5650
  %v5652 = vand.u32 %v5651, 4294901760
  %5653 = vmatmul.mubr.f32.gmra.mrb[0].mxu0 %v5652
  %v5654 = vpop.f32.mrb[0].mxu0
  %v5655 = vadd.f32 %v5573, %v5654
  %v5656 = vpop.f32.mrb[0].mxu0
  %5657 = vdwg.mxu0
  %5658 = vmatprep.subr.mxu0 0.0
  %v5659 = vand.u32 %v5325, 4294901760
  %v5660 = vsub.f32 %v5325, %v5659
  %v5661 = vand.u32 %v5660, 4294901760
  %5662 = vmatpush1.msra.mxu0 %v5661
  %5663 = vmatprep.subr.mxu0 0.0
  %5664 = vmatpush1.msra.mxu0 0.0
  %5665 = vmatprep.subr.mxu0 0.0
  %5666 = vmatpush1.msra.mxu0 0.0
  %5667 = vmatprep.subr.mxu0 0.0
  %5668 = vmatpush1.msra.mxu0 0.0
  %5669 = vmatprep.subr.mxu0 0.0
  %5670 = vmatpush1.msra.mxu0 0.0
  %5671 = vmatprep.subr.mxu0 0.0
  %5672 = vmatpush1.msra.mxu0 0.0
  %5673 = vmatprep.subr.mxu0 0.0
  %5674 = vmatpush1.msra.mxu0 0.0
  %5675 = vmatprep.subr.mxu0 0.0
  %5676 = vmatpush1.msra.mxu0 0.0
  %5677 = vmatprep.subr.mxu0 0.0
  %5678 = vmatpush1.msra.mxu0 0.0
  %5679 = vmatprep.subr.mxu0 0.0
  %5680 = vmatpush1.msra.mxu0 0.0
  %5681 = vmatprep.subr.mxu0 0.0
  %5682 = vmatpush1.msra.mxu0 0.0
  %5683 = vmatprep.subr.mxu0 0.0
  %5684 = vmatpush1.msra.mxu0 0.0
  %5685 = vmatprep.subr.mxu0 0.0
  %5686 = vmatpush1.msra.mxu0 0.0
  %5687 = vmatprep.subr.mxu0 0.0
  %5688 = vmatpush1.msra.mxu0 0.0
  %5689 = vmatprep.subr.mxu0 0.0
  %5690 = vmatpush1.msra.mxu0 0.0
  %5691 = vmatprep.subr.mxu0 0.0
  %5692 = vmatpush1.msra.mxu0 0.0
  %5693 = vmatprep.subr.mxu0 0.0
  %5694 = vmatpush1.msra.mxu0 0.0
  %5695 = vmatprep.subr.mxu0 0.0
  %5696 = vmatpush1.msra.mxu0 0.0
  %5697 = vmatprep.subr.mxu0 0.0
  %5698 = vmatpush1.msra.mxu0 0.0
  %5699 = vmatprep.subr.mxu0 0.0
  %5700 = vmatpush1.msra.mxu0 0.0
  %5701 = vmatprep.subr.mxu0 0.0
  %5702 = vmatpush1.msra.mxu0 0.0
  %5703 = vmatprep.subr.mxu0 0.0
  %5704 = vmatpush1.msra.mxu0 0.0
  %5705 = vmatprep.subr.mxu0 0.0
  %5706 = vmatpush1.msra.mxu0 0.0
  %5707 = vmatprep.subr.mxu0 0.0
  %5708 = vmatpush1.msra.mxu0 0.0
  %5709 = vmatprep.subr.mxu0 0.0
  %5710 = vmatpush1.msra.mxu0 0.0
  %5711 = vmatprep.subr.mxu0 0.0
  %5712 = vmatpush1.msra.mxu0 0.0
  %5713 = vmatprep.subr.mxu0 0.0
  %5714 = vmatpush1.msra.mxu0 0.0
  %5715 = vmatprep.subr.mxu0 0.0
  %5716 = vmatpush1.msra.mxu0 0.0
  %5717 = vmatprep.subr.mxu0 0.0
  %5718 = vmatpush1.msra.mxu0 0.0
  %5719 = vmatprep.subr.mxu0 0.0
  %5720 = vmatpush1.msra.mxu0 0.0
  %5721 = vmatprep.subr.mxu0 0.0
  %5722 = vmatpush1.msra.mxu0 0.0
  %5723 = vmatprep.subr.mxu0 0.0
  %5724 = vmatpush1.msra.mxu0 0.0
  %5725 = vmatprep.mubr.f32.mxu0 0.0
  %v5726 = vand.u32 %v5318, 4294901760
  %5727 = vmatmul.mubr.f32.gmra.mrb[0].mxu0 %v5726
  %v5728 = vpop.f32.mrb[0].mxu0
  %v5729 = vadd.f32 %v5647, %v5728
  %v5730 = vpop.f32.mrb[0].mxu0
  %5731 = vmatprep.mubr.f32.mxu0 0.0
  %v5732 = vand.u32 %v5321, 4294901760
  %5733 = vmatmul.mubr.f32.gmra.mrb[0].mxu0 %v5732
  %v5734 = vpop.f32.mrb[0].mxu0
  %v5735 = vadd.f32 %v5655, %v5734
  %v5736 = vpop.f32.mrb[0].mxu0
  %5737 = vdwg.mxu0
  %5738 = vmatprep.subr.mxu0 0.0
  %v5739 = vand.u32 %v5325, 4294901760
  %5740 = vmatpush1.msra.mxu0 %v5739
  %5741 = vmatprep.subr.mxu0 0.0
  %5742 = vmatpush1.msra.mxu0 0.0
  %5743 = vmatprep.subr.mxu0 0.0
  %5744 = vmatpush1.msra.mxu0 0.0
  %5745 = vmatprep.subr.mxu0 0.0
  %5746 = vmatpush1.msra.mxu0 0.0
  %5747 = vmatprep.subr.mxu0 0.0
  %5748 = vmatpush1.msra.mxu0 0.0
  %5749 = vmatprep.subr.mxu0 0.0
  %5750 = vmatpush1.msra.mxu0 0.0
  %5751 = vmatprep.subr.mxu0 0.0
  %5752 = vmatpush1.msra.mxu0 0.0
  %5753 = vmatprep.subr.mxu0 0.0
  %5754 = vmatpush1.msra.mxu0 0.0
  %5755 = vmatprep.subr.mxu0 0.0
  %5756 = vmatpush1.msra.mxu0 0.0
  %5757 = vmatprep.subr.mxu0 0.0
  %5758 = vmatpush1.msra.mxu0 0.0
  %5759 = vmatprep.subr.mxu0 0.0
  %5760 = vmatpush1.msra.mxu0 0.0
  %5761 = vmatprep.subr.mxu0 0.0
  %5762 = vmatpush1.msra.mxu0 0.0
  %5763 = vmatprep.subr.mxu0 0.0
  %5764 = vmatpush1.msra.mxu0 0.0
  %5765 = vmatprep.subr.mxu0 0.0
  %5766 = vmatpush1.msra.mxu0 0.0
  %5767 = vmatprep.subr.mxu0 0.0
  %5768 = vmatpush1.msra.mxu0 0.0
  %5769 = vmatprep.subr.mxu0 0.0
  %5770 = vmatpush1.msra.mxu0 0.0
  %5771 = vmatprep.subr.mxu0 0.0
  %5772 = vmatpush1.msra.mxu0 0.0
  %5773 = vmatprep.subr.mxu0 0.0
  %5774 = vmatpush1.msra.mxu0 0.0
  %5775 = vmatprep.subr.mxu0 0.0
  %5776 = vmatpush1.msra.mxu0 0.0
  %5777 = vmatprep.subr.mxu0 0.0
  %5778 = vmatpush1.msra.mxu0 0.0
  %5779 = vmatprep.subr.mxu0 0.0
  %5780 = vmatpush1.msra.mxu0 0.0
  %5781 = vmatprep.subr.mxu0 0.0
  %5782 = vmatpush1.msra.mxu0 0.0
  %5783 = vmatprep.subr.mxu0 0.0
  %5784 = vmatpush1.msra.mxu0 0.0
  %5785 = vmatprep.subr.mxu0 0.0
  %5786 = vmatpush1.msra.mxu0 0.0
  %5787 = vmatprep.subr.mxu0 0.0
  %5788 = vmatpush1.msra.mxu0 0.0
  %5789 = vmatprep.subr.mxu0 0.0
  %5790 = vmatpush1.msra.mxu0 0.0
  %5791 = vmatprep.subr.mxu0 0.0
  %5792 = vmatpush1.msra.mxu0 0.0
  %5793 = vmatprep.subr.mxu0 0.0
  %5794 = vmatpush1.msra.mxu0 0.0
  %5795 = vmatprep.subr.mxu0 0.0
  %5796 = vmatpush1.msra.mxu0 0.0
  %5797 = vmatprep.subr.mxu0 0.0
  %5798 = vmatpush1.msra.mxu0 0.0
  %5799 = vmatprep.subr.mxu0 0.0
  %5800 = vmatpush1.msra.mxu0 0.0
  %5801 = vmatprep.subr.mxu0 0.0
  %5802 = vmatpush1.msra.mxu0 0.0
  %5803 = vmatprep.mubr.f32.mxu0 0.0
  %v5804 = vand.u32 %v5318, 4294901760
  %5805 = vmatmul.mubr.f32.gmra.mrb[0].mxu0 %v5804
  %v5806 = vpop.f32.mrb[0].mxu0
  %v5807 = vadd.f32 %v5729, %v5806
  %v5808 = vpop.f32.mrb[0].mxu0
  %5809 = vmatprep.mubr.f32.mxu0 0.0
  %v5810 = vand.u32 %v5321, 4294901760
  %5811 = vmatmul.mubr.f32.gmra.mrb[0].mxu0 %v5810
  %v5812 = vpop.f32.mrb[0].mxu0
  %v5813 = vadd.f32 %v5735, %v5812
  %v5814 = vpop.f32.mrb[0].mxu0
  %5815 = vdwg.mxu0
  %5816 = vst [vmem:[#allocation4] sm:$0xff] %v5807
  %5817 = vst [vmem:[#allocation4 + $0x8] sm:$0xff] %v5813
  %v5818 = vld [vmem:[%s8] sm:$0xff]
  %v5819 = vld [vmem:[%s8 + $0x8] sm:$0xff]
  %v5820 = vld [vmem:[%s8 + $0x10] sm:$0xff]
  %v5821 = vld [vmem:[%s8 + $0x18] sm:$0xff]
  %v5822 = vld [vmem:[#allocation4] sm:$0x1]
  %v5823 = vld [vmem:[#allocation4 + $0x8] sm:$0x1]
  %v5825 = vrot.slane %v5823, 7
  %v5827 = vsel %vm564, %v5822, %v5825
  %v5828 = vsel %vm566, %v4752, 0
  %5830 = vmatprep.subr.mxu0 0.0
  %v5831 = vand.u32 %v5818, 4294901760
  %5832 = vmatpush1.msra.mxu0 %v5831
  %5833 = vmatprep.subr.mxu0 0.0
  %v5834 = vand.u32 %v5819, 4294901760
  %5835 = vmatpush1.msra.mxu0 %v5834
  %5836 = vmatprep.subr.mxu0 0.0
  %v5837 = vand.u32 %v5820, 4294901760
  %5838 = vmatpush1.msra.mxu0 %v5837
  %5839 = vmatprep.subr.mxu0 0.0
  %v5840 = vand.u32 %v5821, 4294901760
  %5841 = vmatpush1.msra.mxu0 %v5840
  %5842 = vmatprep.subr.mxu0 0.0
  %5843 = vmatpush1.msra.mxu0 0.0
  %5844 = vmatprep.subr.mxu0 0.0
  %5845 = vmatpush1.msra.mxu0 0.0
  %5846 = vmatprep.subr.mxu0 0.0
  %5847 = vmatpush1.msra.mxu0 0.0
  %5848 = vmatprep.subr.mxu0 0.0
  %5849 = vmatpush1.msra.mxu0 0.0
  %5850 = vmatprep.subr.mxu0 0.0
  %5851 = vmatpush1.msra.mxu0 0.0
  %5852 = vmatprep.subr.mxu0 0.0
  %5853 = vmatpush1.msra.mxu0 0.0
  %5854 = vmatprep.subr.mxu0 0.0
  %5855 = vmatpush1.msra.mxu0 0.0
  %5856 = vmatprep.subr.mxu0 0.0
  %5857 = vmatpush1.msra.mxu0 0.0
  %5858 = vmatprep.subr.mxu0 0.0
  %5859 = vmatpush1.msra.mxu0 0.0
  %5860 = vmatprep.subr.mxu0 0.0
  %5861 = vmatpush1.msra.mxu0 0.0
  %5862 = vmatprep.subr.mxu0 0.0
  %5863 = vmatpush1.msra.mxu0 0.0
  %5864 = vmatprep.subr.mxu0 0.0
  %5865 = vmatpush1.msra.mxu0 0.0
  %5866 = vmatprep.subr.mxu0 0.0
  %5867 = vmatpush1.msra.mxu0 0.0
  %5868 = vmatprep.subr.mxu0 0.0
  %5869 = vmatpush1.msra.mxu0 0.0
  %5870 = vmatprep.subr.mxu0 0.0
  %5871 = vmatpush1.msra.mxu0 0.0
  %5872 = vmatprep.subr.mxu0 0.0
  %5873 = vmatpush1.msra.mxu0 0.0
  %5874 = vmatprep.subr.mxu0 0.0
  %5875 = vmatpush1.msra.mxu0 0.0
  %5876 = vmatprep.subr.mxu0 0.0
  %5877 = vmatpush1.msra.mxu0 0.0
  %5878 = vmatprep.subr.mxu0 0.0
  %5879 = vmatpush1.msra.mxu0 0.0
  %5880 = vmatprep.subr.mxu0 0.0
  %5881 = vmatpush1.msra.mxu0 0.0
  %5882 = vmatprep.subr.mxu0 0.0
  %5883 = vmatpush1.msra.mxu0 0.0
  %5884 = vmatprep.subr.mxu0 0.0
  %5885 = vmatpush1.msra.mxu0 0.0
  %5886 = vmatprep.subr.mxu0 0.0
  %5887 = vmatpush1.msra.mxu0 0.0
  %5888 = vmatprep.subr.mxu0 0.0
  %5889 = vmatpush1.msra.mxu0 0.0
  %5890 = vmatprep.subr.mxu0 0.0
  %5891 = vmatpush1.msra.mxu0 0.0
  %5892 = vmatprep.subr.mxu0 0.0
  %5893 = vmatpush1.msra.mxu0 0.0
  %5894 = vmatprep.subr.mxu0 0.0
  %5895 = vmatpush1.msra.mxu0 0.0
  %5896 = vmatprep.subr.mxu0 0.0
  %5897 = vmatpush1.msra.mxu0 0.0
  %5898 = vmatprep.mubr.f32.mxu0 0.0
  %v5899 = vand.u32 %v5828, 4294901760
  %v5900 = vsub.f32 %v5828, %v5899
  %v5901 = vand.u32 %v5900, 4294901760
  %v5902 = vsub.f32 %v5900, %v5901
  %v5903 = vand.u32 %v5902, 4294901760
  %5904 = vmatmul.mubr.f32.gmra.mrb[0].mxu0 %v5903
  %v5905 = vpop.f32.mrb[0].mxu0
  %v5906 = vadd.f32 0.0, %v5905
  %v5907 = vpop.f32.mrb[0].mxu0
  %5908 = vdwg.mxu0
  %5909 = vmatprep.subr.mxu0 0.0
  %v5910 = vand.u32 %v5818, 4294901760
  %v5911 = vsub.f32 %v5818, %v5910
  %v5912 = vand.u32 %v5911, 4294901760
  %v5913 = vsub.f32 %v5911, %v5912
  %v5914 = vand.u32 %v5913, 4294901760
  %5915 = vmatpush1.msra.mxu0 %v5914
  %5916 = vmatprep.subr.mxu0 0.0
  %v5917 = vand.u32 %v5819, 4294901760
  %v5918 = vsub.f32 %v5819, %v5917
  %v5919 = vand.u32 %v5918, 4294901760
  %v5920 = vsub.f32 %v5918, %v5919
  %v5921 = vand.u32 %v5920, 4294901760
  %5922 = vmatpush1.msra.mxu0 %v5921
  %5923 = vmatprep.subr.mxu0 0.0
  %v5924 = vand.u32 %v5820, 4294901760
  %v5925 = vsub.f32 %v5820, %v5924
  %v5926 = vand.u32 %v5925, 4294901760
  %v5927 = vsub.f32 %v5925, %v5926
  %v5928 = vand.u32 %v5927, 4294901760
  %5929 = vmatpush1.msra.mxu0 %v5928
  %5930 = vmatprep.subr.mxu0 0.0
  %v5931 = vand.u32 %v5821, 4294901760
  %v5932 = vsub.f32 %v5821, %v5931
  %v5933 = vand.u32 %v5932, 4294901760
  %v5934 = vsub.f32 %v5932, %v5933
  %v5935 = vand.u32 %v5934, 4294901760
  %5936 = vmatpush1.msra.mxu0 %v5935
  %5937 = vmatprep.subr.mxu0 0.0
  %5938 = vmatpush1.msra.mxu0 0.0
  %5939 = vmatprep.subr.mxu0 0.0
  %5940 = vmatpush1.msra.mxu0 0.0
  %5941 = vmatprep.subr.mxu0 0.0
  %5942 = vmatpush1.msra.mxu0 0.0
  %5943 = vmatprep.subr.mxu0 0.0
  %5944 = vmatpush1.msra.mxu0 0.0
  %5945 = vmatprep.subr.mxu0 0.0
  %5946 = vmatpush1.msra.mxu0 0.0
  %5947 = vmatprep.subr.mxu0 0.0
  %5948 = vmatpush1.msra.mxu0 0.0
  %5949 = vmatprep.subr.mxu0 0.0
  %5950 = vmatpush1.msra.mxu0 0.0
  %5951 = vmatprep.subr.mxu0 0.0
  %5952 = vmatpush1.msra.mxu0 0.0
  %5953 = vmatprep.subr.mxu0 0.0
  %5954 = vmatpush1.msra.mxu0 0.0
  %5955 = vmatprep.subr.mxu0 0.0
  %5956 = vmatpush1.msra.mxu0 0.0
  %5957 = vmatprep.subr.mxu0 0.0
  %5958 = vmatpush1.msra.mxu0 0.0
  %5959 = vmatprep.subr.mxu0 0.0
  %5960 = vmatpush1.msra.mxu0 0.0
  %5961 = vmatprep.subr.mxu0 0.0
  %5962 = vmatpush1.msra.mxu0 0.0
  %5963 = vmatprep.subr.mxu0 0.0
  %5964 = vmatpush1.msra.mxu0 0.0
  %5965 = vmatprep.subr.mxu0 0.0
  %5966 = vmatpush1.msra.mxu0 0.0
  %5967 = vmatprep.subr.mxu0 0.0
  %5968 = vmatpush1.msra.mxu0 0.0
  %5969 = vmatprep.subr.mxu0 0.0
  %5970 = vmatpush1.msra.mxu0 0.0
  %5971 = vmatprep.subr.mxu0 0.0
  %5972 = vmatpush1.msra.mxu0 0.0
  %5973 = vmatprep.subr.mxu0 0.0
  %5974 = vmatpush1.msra.mxu0 0.0
  %5975 = vmatprep.subr.mxu0 0.0
  %5976 = vmatpush1.msra.mxu0 0.0
  %5977 = vmatprep.subr.mxu0 0.0
  %5978 = vmatpush1.msra.mxu0 0.0
  %5979 = vmatprep.subr.mxu0 0.0
  %5980 = vmatpush1.msra.mxu0 0.0
  %5981 = vmatprep.subr.mxu0 0.0
  %5982 = vmatpush1.msra.mxu0 0.0
  %5983 = vmatprep.subr.mxu0 0.0
  %5984 = vmatpush1.msra.mxu0 0.0
  %5985 = vmatprep.subr.mxu0 0.0
  %5986 = vmatpush1.msra.mxu0 0.0
  %5987 = vmatprep.subr.mxu0 0.0
  %5988 = vmatpush1.msra.mxu0 0.0
  %5989 = vmatprep.subr.mxu0 0.0
  %5990 = vmatpush1.msra.mxu0 0.0
  %5991 = vmatprep.subr.mxu0 0.0
  %5992 = vmatpush1.msra.mxu0 0.0
  %5993 = vmatprep.mubr.f32.mxu0 0.0
  %v5994 = vand.u32 %v5828, 4294901760
  %5995 = vmatmul.mubr.f32.gmra.mrb[0].mxu0 %v5994
  %v5996 = vpop.f32.mrb[0].mxu0
  %v5997 = vadd.f32 %v5906, %v5996
  %v5998 = vpop.f32.mrb[0].mxu0
  %5999 = vdwg.mxu0
  %6000 = vmatprep.subr.mxu0 0.0
  %v6001 = vand.u32 %v5818, 4294901760
  %v6002 = vsub.f32 %v5818, %v6001
  %6003 = vmatpush1.msra.mxu0 %v6002
  %6004 = vmatprep.subr.mxu0 0.0
  %v6005 = vand.u32 %v5819, 4294901760
  %v6006 = vsub.f32 %v5819, %v6005
  %6007 = vmatpush1.msra.mxu0 %v6006
  %6008 = vmatprep.subr.mxu0 0.0
  %v6009 = vand.u32 %v5820, 4294901760
  %v6010 = vsub.f32 %v5820, %v6009
  %6011 = vmatpush1.msra.mxu0 %v6010
  %6012 = vmatprep.subr.mxu0 0.0
  %v6013 = vand.u32 %v5821, 4294901760
  %v6014 = vsub.f32 %v5821, %v6013
  %6015 = vmatpush1.msra.mxu0 %v6014
  %6016 = vmatprep.subr.mxu0 0.0
  %6017 = vmatpush1.msra.mxu0 0.0
  %6018 = vmatprep.subr.mxu0 0.0
  %6019 = vmatpush1.msra.mxu0 0.0
  %6020 = vmatprep.subr.mxu0 0.0
  %6021 = vmatpush1.msra.mxu0 0.0
  %6022 = vmatprep.subr.mxu0 0.0
  %6023 = vmatpush1.msra.mxu0 0.0
  %6024 = vmatprep.subr.mxu0 0.0
  %6025 = vmatpush1.msra.mxu0 0.0
  %6026 = vmatprep.subr.mxu0 0.0
  %6027 = vmatpush1.msra.mxu0 0.0
  %6028 = vmatprep.subr.mxu0 0.0
  %6029 = vmatpush1.msra.mxu0 0.0
  %6030 = vmatprep.subr.mxu0 0.0
  %6031 = vmatpush1.msra.mxu0 0.0
  %6032 = vmatprep.subr.mxu0 0.0
  %6033 = vmatpush1.msra.mxu0 0.0
  %6034 = vmatprep.subr.mxu0 0.0
  %6035 = vmatpush1.msra.mxu0 0.0
  %6036 = vmatprep.subr.mxu0 0.0
  %6037 = vmatpush1.msra.mxu0 0.0
  %6038 = vmatprep.subr.mxu0 0.0
  %6039 = vmatpush1.msra.mxu0 0.0
  %6040 = vmatprep.subr.mxu0 0.0
  %6041 = vmatpush1.msra.mxu0 0.0
  %6042 = vmatprep.subr.mxu0 0.0
  %6043 = vmatpush1.msra.mxu0 0.0
  %6044 = vmatprep.subr.mxu0 0.0
  %6045 = vmatpush1.msra.mxu0 0.0
  %6046 = vmatprep.subr.mxu0 0.0
  %6047 = vmatpush1.msra.mxu0 0.0
  %6048 = vmatprep.subr.mxu0 0.0
  %6049 = vmatpush1.msra.mxu0 0.0
  %6050 = vmatprep.subr.mxu0 0.0
  %6051 = vmatpush1.msra.mxu0 0.0
  %6052 = vmatprep.subr.mxu0 0.0
  %6053 = vmatpush1.msra.mxu0 0.0
  %6054 = vmatprep.subr.mxu0 0.0
  %6055 = vmatpush1.msra.mxu0 0.0
  %6056 = vmatprep.subr.mxu0 0.0
  %6057 = vmatpush1.msra.mxu0 0.0
  %6058 = vmatprep.subr.mxu0 0.0
  %6059 = vmatpush1.msra.mxu0 0.0
  %6060 = vmatprep.subr.mxu0 0.0
  %6061 = vmatpush1.msra.mxu0 0.0
  %6062 = vmatprep.subr.mxu0 0.0
  %6063 = vmatpush1.msra.mxu0 0.0
  %6064 = vmatprep.subr.mxu0 0.0
  %6065 = vmatpush1.msra.mxu0 0.0
  %6066 = vmatprep.subr.mxu0 0.0
  %6067 = vmatpush1.msra.mxu0 0.0
  %6068 = vmatprep.subr.mxu0 0.0
  %6069 = vmatpush1.msra.mxu0 0.0
  %6070 = vmatprep.subr.mxu0 0.0
  %6071 = vmatpush1.msra.mxu0 0.0
  %6072 = vmatprep.mubr.f32.mxu0 0.0
  %v6073 = vand.u32 %v5828, 4294901760
  %v6074 = vsub.f32 %v5828, %v6073
  %6075 = vmatmul.mubr.f32.gmra.mrb[0].mxu0 %v6074
  %v6076 = vpop.f32.mrb[0].mxu0
  %v6077 = vadd.f32 %v5997, %v6076
  %v6078 = vpop.f32.mrb[0].mxu0
  %6079 = vdwg.mxu0
  %6080 = vmatprep.subr.mxu0 0.0
  %v6081 = vand.u32 %v5818, 4294901760
  %6082 = vmatpush1.msra.mxu0 %v6081
  %6083 = vmatprep.subr.mxu0 0.0
  %v6084 = vand.u32 %v5819, 4294901760
  %6085 = vmatpush1.msra.mxu0 %v6084
  %6086 = vmatprep.subr.mxu0 0.0
  %v6087 = vand.u32 %v5820, 4294901760
  %6088 = vmatpush1.msra.mxu0 %v6087
  %6089 = vmatprep.subr.mxu0 0.0
  %v6090 = vand.u32 %v5821, 4294901760
  %6091 = vmatpush1.msra.mxu0 %v6090
  %6092 = vmatprep.subr.mxu0 0.0
  %6093 = vmatpush1.msra.mxu0 0.0
  %6094 = vmatprep.subr.mxu0 0.0
  %6095 = vmatpush1.msra.mxu0 0.0
  %6096 = vmatprep.subr.mxu0 0.0
  %6097 = vmatpush1.msra.mxu0 0.0
  %6098 = vmatprep.subr.mxu0 0.0
  %6099 = vmatpush1.msra.mxu0 0.0
  %6100 = vmatprep.subr.mxu0 0.0
  %6101 = vmatpush1.msra.mxu0 0.0
  %6102 = vmatprep.subr.mxu0 0.0
  %6103 = vmatpush1.msra.mxu0 0.0
  %6104 = vmatprep.subr.mxu0 0.0
  %6105 = vmatpush1.msra.mxu0 0.0
  %6106 = vmatprep.subr.mxu0 0.0
  %6107 = vmatpush1.msra.mxu0 0.0
  %6108 = vmatprep.subr.mxu0 0.0
  %6109 = vmatpush1.msra.mxu0 0.0
  %6110 = vmatprep.subr.mxu0 0.0
  %6111 = vmatpush1.msra.mxu0 0.0
  %6112 = vmatprep.subr.mxu0 0.0
  %6113 = vmatpush1.msra.mxu0 0.0
  %6114 = vmatprep.subr.mxu0 0.0
  %6115 = vmatpush1.msra.mxu0 0.0
  %6116 = vmatprep.subr.mxu0 0.0
  %6117 = vmatpush1.msra.mxu0 0.0
  %6118 = vmatprep.subr.mxu0 0.0
  %6119 = vmatpush1.msra.mxu0 0.0
  %6120 = vmatprep.subr.mxu0 0.0
  %6121 = vmatpush1.msra.mxu0 0.0
  %6122 = vmatprep.subr.mxu0 0.0
  %6123 = vmatpush1.msra.mxu0 0.0
  %6124 = vmatprep.subr.mxu0 0.0
  %6125 = vmatpush1.msra.mxu0 0.0
  %6126 = vmatprep.subr.mxu0 0.0
  %6127 = vmatpush1.msra.mxu0 0.0
  %6128 = vmatprep.subr.mxu0 0.0
  %6129 = vmatpush1.msra.mxu0 0.0
  %6130 = vmatprep.subr.mxu0 0.0
  %6131 = vmatpush1.msra.mxu0 0.0
  %6132 = vmatprep.subr.mxu0 0.0
  %6133 = vmatpush1.msra.mxu0 0.0
  %6134 = vmatprep.subr.mxu0 0.0
  %6135 = vmatpush1.msra.mxu0 0.0
  %6136 = vmatprep.subr.mxu0 0.0
  %6137 = vmatpush1.msra.mxu0 0.0
  %6138 = vmatprep.subr.mxu0 0.0
  %6139 = vmatpush1.msra.mxu0 0.0
  %6140 = vmatprep.subr.mxu0 0.0
  %6141 = vmatpush1.msra.mxu0 0.0
  %6142 = vmatprep.subr.mxu0 0.0
  %6143 = vmatpush1.msra.mxu0 0.0
  %6144 = vmatprep.subr.mxu0 0.0
  %6145 = vmatpush1.msra.mxu0 0.0
  %6146 = vmatprep.subr.mxu0 0.0
  %6147 = vmatpush1.msra.mxu0 0.0
  %6148 = vmatprep.mubr.f32.mxu0 0.0
  %v6149 = vand.u32 %v5828, 4294901760
  %v6150 = vsub.f32 %v5828, %v6149
  %v6151 = vand.u32 %v6150, 4294901760
  %6152 = vmatmul.mubr.f32.gmra.mrb[0].mxu0 %v6151
  %v6153 = vpop.f32.mrb[0].mxu0
  %v6154 = vadd.f32 %v6077, %v6153
  %v6155 = vpop.f32.mrb[0].mxu0
  %6156 = vdwg.mxu0
  %6157 = vmatprep.subr.mxu0 0.0
  %v6158 = vand.u32 %v5818, 4294901760
  %v6159 = vsub.f32 %v5818, %v6158
  %v6160 = vand.u32 %v6159, 4294901760
  %6161 = vmatpush1.msra.mxu0 %v6160
  %6162 = vmatprep.subr.mxu0 0.0
  %v6163 = vand.u32 %v5819, 4294901760
  %v6164 = vsub.f32 %v5819, %v6163
  %v6165 = vand.u32 %v6164, 4294901760
  %6166 = vmatpush1.msra.mxu0 %v6165
  %6167 = vmatprep.subr.mxu0 0.0
  %v6168 = vand.u32 %v5820, 4294901760
  %v6169 = vsub.f32 %v5820, %v6168
  %v6170 = vand.u32 %v6169, 4294901760
  %6171 = vmatpush1.msra.mxu0 %v6170
  %6172 = vmatprep.subr.mxu0 0.0
  %v6173 = vand.u32 %v5821, 4294901760
  %v6174 = vsub.f32 %v5821, %v6173
  %v6175 = vand.u32 %v6174, 4294901760
  %6176 = vmatpush1.msra.mxu0 %v6175
  %6177 = vmatprep.subr.mxu0 0.0
  %6178 = vmatpush1.msra.mxu0 0.0
  %6179 = vmatprep.subr.mxu0 0.0
  %6180 = vmatpush1.msra.mxu0 0.0
  %6181 = vmatprep.subr.mxu0 0.0
  %6182 = vmatpush1.msra.mxu0 0.0
  %6183 = vmatprep.subr.mxu0 0.0
  %6184 = vmatpush1.msra.mxu0 0.0
  %6185 = vmatprep.subr.mxu0 0.0
  %6186 = vmatpush1.msra.mxu0 0.0
  %6187 = vmatprep.subr.mxu0 0.0
  %6188 = vmatpush1.msra.mxu0 0.0
  %6189 = vmatprep.subr.mxu0 0.0
  %6190 = vmatpush1.msra.mxu0 0.0
  %6191 = vmatprep.subr.mxu0 0.0
  %6192 = vmatpush1.msra.mxu0 0.0
  %6193 = vmatprep.subr.mxu0 0.0
  %6194 = vmatpush1.msra.mxu0 0.0
  %6195 = vmatprep.subr.mxu0 0.0
  %6196 = vmatpush1.msra.mxu0 0.0
  %6197 = vmatprep.subr.mxu0 0.0
  %6198 = vmatpush1.msra.mxu0 0.0
  %6199 = vmatprep.subr.mxu0 0.0
  %6200 = vmatpush1.msra.mxu0 0.0
  %6201 = vmatprep.subr.mxu0 0.0
  %6202 = vmatpush1.msra.mxu0 0.0
  %6203 = vmatprep.subr.mxu0 0.0
  %6204 = vmatpush1.msra.mxu0 0.0
  %6205 = vmatprep.subr.mxu0 0.0
  %6206 = vmatpush1.msra.mxu0 0.0
  %6207 = vmatprep.subr.mxu0 0.0
  %6208 = vmatpush1.msra.mxu0 0.0
  %6209 = vmatprep.subr.mxu0 0.0
  %6210 = vmatpush1.msra.mxu0 0.0
  %6211 = vmatprep.subr.mxu0 0.0
  %6212 = vmatpush1.msra.mxu0 0.0
  %6213 = vmatprep.subr.mxu0 0.0
  %6214 = vmatpush1.msra.mxu0 0.0
  %6215 = vmatprep.subr.mxu0 0.0
  %6216 = vmatpush1.msra.mxu0 0.0
  %6217 = vmatprep.subr.mxu0 0.0
  %6218 = vmatpush1.msra.mxu0 0.0
  %6219 = vmatprep.subr.mxu0 0.0
  %6220 = vmatpush1.msra.mxu0 0.0
  %6221 = vmatprep.subr.mxu0 0.0
  %6222 = vmatpush1.msra.mxu0 0.0
  %6223 = vmatprep.subr.mxu0 0.0
  %6224 = vmatpush1.msra.mxu0 0.0
  %6225 = vmatprep.subr.mxu0 0.0
  %6226 = vmatpush1.msra.mxu0 0.0
  %6227 = vmatprep.subr.mxu0 0.0
  %6228 = vmatpush1.msra.mxu0 0.0
  %6229 = vmatprep.subr.mxu0 0.0
  %6230 = vmatpush1.msra.mxu0 0.0
  %6231 = vmatprep.subr.mxu0 0.0
  %6232 = vmatpush1.msra.mxu0 0.0
  %6233 = vmatprep.mubr.f32.mxu0 0.0
  %v6234 = vand.u32 %v5828, 4294901760
  %6235 = vmatmul.mubr.f32.gmra.mrb[0].mxu0 %v6234
  %v6236 = vpop.f32.mrb[0].mxu0
  %v6237 = vadd.f32 %v6154, %v6236
  %v6238 = vpop.f32.mrb[0].mxu0
  %6239 = vdwg.mxu0
  %6240 = vmatprep.subr.mxu0 0.0
  %v6241 = vand.u32 %v5818, 4294901760
  %6242 = vmatpush1.msra.mxu0 %v6241
  %6243 = vmatprep.subr.mxu0 0.0
  %v6244 = vand.u32 %v5819, 4294901760
  %6245 = vmatpush1.msra.mxu0 %v6244
  %6246 = vmatprep.subr.mxu0 0.0
  %v6247 = vand.u32 %v5820, 4294901760
  %6248 = vmatpush1.msra.mxu0 %v6247
  %6249 = vmatprep.subr.mxu0 0.0
  %v6250 = vand.u32 %v5821, 4294901760
  %6251 = vmatpush1.msra.mxu0 %v6250
  %6252 = vmatprep.subr.mxu0 0.0
  %6253 = vmatpush1.msra.mxu0 0.0
  %6254 = vmatprep.subr.mxu0 0.0
  %6255 = vmatpush1.msra.mxu0 0.0
  %6256 = vmatprep.subr.mxu0 0.0
  %6257 = vmatpush1.msra.mxu0 0.0
  %6258 = vmatprep.subr.mxu0 0.0
  %6259 = vmatpush1.msra.mxu0 0.0
  %6260 = vmatprep.subr.mxu0 0.0
  %6261 = vmatpush1.msra.mxu0 0.0
  %6262 = vmatprep.subr.mxu0 0.0
  %6263 = vmatpush1.msra.mxu0 0.0
  %6264 = vmatprep.subr.mxu0 0.0
  %6265 = vmatpush1.msra.mxu0 0.0
  %6266 = vmatprep.subr.mxu0 0.0
  %6267 = vmatpush1.msra.mxu0 0.0
  %6268 = vmatprep.subr.mxu0 0.0
  %6269 = vmatpush1.msra.mxu0 0.0
  %6270 = vmatprep.subr.mxu0 0.0
  %6271 = vmatpush1.msra.mxu0 0.0
  %6272 = vmatprep.subr.mxu0 0.0
  %6273 = vmatpush1.msra.mxu0 0.0
  %6274 = vmatprep.subr.mxu0 0.0
  %6275 = vmatpush1.msra.mxu0 0.0
  %6276 = vmatprep.subr.mxu0 0.0
  %6277 = vmatpush1.msra.mxu0 0.0
  %6278 = vmatprep.subr.mxu0 0.0
  %6279 = vmatpush1.msra.mxu0 0.0
  %6280 = vmatprep.subr.mxu0 0.0
  %6281 = vmatpush1.msra.mxu0 0.0
  %6282 = vmatprep.subr.mxu0 0.0
  %6283 = vmatpush1.msra.mxu0 0.0
  %6284 = vmatprep.subr.mxu0 0.0
  %6285 = vmatpush1.msra.mxu0 0.0
  %6286 = vmatprep.subr.mxu0 0.0
  %6287 = vmatpush1.msra.mxu0 0.0
  %6288 = vmatprep.subr.mxu0 0.0
  %6289 = vmatpush1.msra.mxu0 0.0
  %6290 = vmatprep.subr.mxu0 0.0
  %6291 = vmatpush1.msra.mxu0 0.0
  %6292 = vmatprep.subr.mxu0 0.0
  %6293 = vmatpush1.msra.mxu0 0.0
  %6294 = vmatprep.subr.mxu0 0.0
  %6295 = vmatpush1.msra.mxu0 0.0
  %6296 = vmatprep.subr.mxu0 0.0
  %6297 = vmatpush1.msra.mxu0 0.0
  %6298 = vmatprep.subr.mxu0 0.0
  %6299 = vmatpush1.msra.mxu0 0.0
  %6300 = vmatprep.subr.mxu0 0.0
  %6301 = vmatpush1.msra.mxu0 0.0
  %6302 = vmatprep.subr.mxu0 0.0
  %6303 = vmatpush1.msra.mxu0 0.0
  %6304 = vmatprep.subr.mxu0 0.0
  %6305 = vmatpush1.msra.mxu0 0.0
  %6306 = vmatprep.subr.mxu0 0.0
  %6307 = vmatpush1.msra.mxu0 0.0
  %6308 = vmatprep.mubr.f32.mxu0 0.0
  %v6309 = vand.u32 %v5828, 4294901760
  %6310 = vmatmul.mubr.f32.gmra.mrb[0].mxu0 %v6309
  %v6311 = vpop.f32.mrb[0].mxu0
  %v6312 = vadd.f32 %v6237, %v6311
  %v6313 = vpop.f32.mrb[0].mxu0
  %6314 = vdwg.mxu0
  %v6315 = vadd.f32 %v5827, %v6312
  %v6316 = vxor.u32 %v6315, 2147483648
  %v6317 = vmul.f32 %v6316, 1.442695
  %v6318 = vpow.pop %v6317
  %v6319 = vadd.f32 %v6318, 1.0
  %v6320 = vrcp.pop %v6319
  %v6321 = vmul.f32 1.0, %v6320
  %v6322 = vtanh.pop %v6315
  %v6323 = vmul.f32 %v6321, %v4743
  %6325 = vrot.lane.b32.xlu0 %v6322, 64
  %v6326 = vpop.permute.xlu0 %6325
  %v6328 = vmul.f32 %v6321, %v6326
  %6330 = vrot.lane.b32.xlu0 %v6328, 32
  %v6331 = vpop.permute.xlu0 %6330
  %v6333 = vadd.f32 %v6323, %v6331
  %v6334 = vtanh.pop %v6333
  %6336 = vrot.lane.b32.xlu0 %v6334, 64
  %v6337 = vpop.permute.xlu0 %6336
  %v6339 = vmul.f32 %v6321, %v6337
  %6341 = vrot.lane.b32.xlu0 %v6339, 32
  %v6342 = vpop.permute.xlu0 %6341
  %6344 = vst.msk [vmem:[#allocation5] sm:$0x1] %vm1084, %v6342
  %6345 = vst.msk [vmem:[#allocation5 + $0x7] sm:$0x2] %vm1086, %v6342
  %v6346 = vld [vmem:[#allocation4 + $0x1] sm:$0x1]
  %v6347 = vld [vmem:[#allocation4 + $0x9] sm:$0x1]
  %v6349 = vrot.slane %v6347, 7
  %v6351 = vsel %vm564, %v6346, %v6349
  %v6352 = vsel %vm566, %v6342, 0
  %6354 = vmatprep.subr.mxu0 0.0
  %v6355 = vand.u32 %v5818, 4294901760
  %6356 = vmatpush1.msra.mxu0 %v6355
  %6357 = vmatprep.subr.mxu0 0.0
  %v6358 = vand.u32 %v5819, 4294901760
  %6359 = vmatpush1.msra.mxu0 %v6358
  %6360 = vmatprep.subr.mxu0 0.0
  %v6361 = vand.u32 %v5820, 4294901760
  %6362 = vmatpush1.msra.mxu0 %v6361
  %6363 = vmatprep.subr.mxu0 0.0
  %v6364 = vand.u32 %v5821, 4294901760
  %6365 = vmatpush1.msra.mxu0 %v6364
  %6366 = vmatprep.subr.mxu0 0.0
  %6367 = vmatpush1.msra.mxu0 0.0
  %6368 = vmatprep.subr.mxu0 0.0
  %6369 = vmatpush1.msra.mxu0 0.0
  %6370 = vmatprep.subr.mxu0 0.0
  %6371 = vmatpush1.msra.mxu0 0.0
  %6372 = vmatprep.subr.mxu0 0.0
  %6373 = vmatpush1.msra.mxu0 0.0
  %6374 = vmatprep.subr.mxu0 0.0
  %6375 = vmatpush1.msra.mxu0 0.0
  %6376 = vmatprep.subr.mxu0 0.0
  %6377 = vmatpush1.msra.mxu0 0.0
  %6378 = vmatprep.subr.mxu0 0.0
  %6379 = vmatpush1.msra.mxu0 0.0
  %6380 = vmatprep.subr.mxu0 0.0
  %6381 = vmatpush1.msra.mxu0 0.0
  %6382 = vmatprep.subr.mxu0 0.0
  %6383 = vmatpush1.msra.mxu0 0.0
  %6384 = vmatprep.subr.mxu0 0.0
  %6385 = vmatpush1.msra.mxu0 0.0
  %6386 = vmatprep.subr.mxu0 0.0
  %6387 = vmatpush1.msra.mxu0 0.0
  %6388 = vmatprep.subr.mxu0 0.0
  %6389 = vmatpush1.msra.mxu0 0.0
  %6390 = vmatprep.subr.mxu0 0.0
  %6391 = vmatpush1.msra.mxu0 0.0
  %6392 = vmatprep.subr.mxu0 0.0
  %6393 = vmatpush1.msra.mxu0 0.0
  %6394 = vmatprep.subr.mxu0 0.0
  %6395 = vmatpush1.msra.mxu0 0.0
  %6396 = vmatprep.subr.mxu0 0.0
  %6397 = vmatpush1.msra.mxu0 0.0
  %6398 = vmatprep.subr.mxu0 0.0
  %6399 = vmatpush1.msra.mxu0 0.0
  %6400 = vmatprep.subr.mxu0 0.0
  %6401 = vmatpush1.msra.mxu0 0.0
  %6402 = vmatprep.subr.mxu0 0.0
  %6403 = vmatpush1.msra.mxu0 0.0
  %6404 = vmatprep.subr.mxu0 0.0
  %6405 = vmatpush1.msra.mxu0 0.0
  %6406 = vmatprep.subr.mxu0 0.0
  %6407 = vmatpush1.msra.mxu0 0.0
  %6408 = vmatprep.subr.mxu0 0.0
  %6409 = vmatpush1.msra.mxu0 0.0
  %6410 = vmatprep.subr.mxu0 0.0
  %6411 = vmatpush1.msra.mxu0 0.0
  %6412 = vmatprep.subr.mxu0 0.0
  %6413 = vmatpush1.msra.mxu0 0.0
  %6414 = vmatprep.subr.mxu0 0.0
  %6415 = vmatpush1.msra.mxu0 0.0
  %6416 = vmatprep.subr.mxu0 0.0
  %6417 = vmatpush1.msra.mxu0 0.0
  %6418 = vmatprep.subr.mxu0 0.0
  %6419 = vmatpush1.msra.mxu0 0.0
  %6420 = vmatprep.subr.mxu0 0.0
  %6421 = vmatpush1.msra.mxu0 0.0
  %6422 = vmatprep.mubr.f32.mxu0 0.0
  %v6423 = vand.u32 %v6352, 4294901760
  %v6424 = vsub.f32 %v6352, %v6423
  %v6425 = vand.u32 %v6424, 4294901760
  %v6426 = vsub.f32 %v6424, %v6425
  %v6427 = vand.u32 %v6426, 4294901760
  %6428 = vmatmul.mubr.f32.gmra.mrb[0].mxu0 %v6427
  %v6429 = vpop.f32.mrb[0].mxu0
  %v6430 = vadd.f32 0.0, %v6429
  %v6431 = vpop.f32.mrb[0].mxu0
  %6432 = vdwg.mxu0
  %6433 = vmatprep.subr.mxu0 0.0
  %v6434 = vand.u32 %v5818, 4294901760
  %v6435 = vsub.f32 %v5818, %v6434
  %v6436 = vand.u32 %v6435, 4294901760
  %v6437 = vsub.f32 %v6435, %v6436
  %v6438 = vand.u32 %v6437, 4294901760
  %6439 = vmatpush1.msra.mxu0 %v6438
  %6440 = vmatprep.subr.mxu0 0.0
  %v6441 = vand.u32 %v5819, 4294901760
  %v6442 = vsub.f32 %v5819, %v6441
  %v6443 = vand.u32 %v6442, 4294901760
  %v6444 = vsub.f32 %v6442, %v6443
  %v6445 = vand.u32 %v6444, 4294901760
  %6446 = vmatpush1.msra.mxu0 %v6445
  %6447 = vmatprep.subr.mxu0 0.0
  %v6448 = vand.u32 %v5820, 4294901760
  %v6449 = vsub.f32 %v5820, %v6448
  %v6450 = vand.u32 %v6449, 4294901760
  %v6451 = vsub.f32 %v6449, %v6450
  %v6452 = vand.u32 %v6451, 4294901760
  %6453 = vmatpush1.msra.mxu0 %v6452
  %6454 = vmatprep.subr.mxu0 0.0
  %v6455 = vand.u32 %v5821, 4294901760
  %v6456 = vsub.f32 %v5821, %v6455
  %v6457 = vand.u32 %v6456, 4294901760
  %v6458 = vsub.f32 %v6456, %v6457
  %v6459 = vand.u32 %v6458, 4294901760
  %6460 = vmatpush1.msra.mxu0 %v6459
  %6461 = vmatprep.subr.mxu0 0.0
  %6462 = vmatpush1.msra.mxu0 0.0
  %6463 = vmatprep.subr.mxu0 0.0
  %6464 = vmatpush1.msra.mxu0 0.0
  %6465 = vmatprep.subr.mxu0 0.0
  %6466 = vmatpush1.msra.mxu0 0.0
  %6467 = vmatprep.subr.mxu0 0.0
  %6468 = vmatpush1.msra.mxu0 0.0
  %6469 = vmatprep.subr.mxu0 0.0
  %6470 = vmatpush1.msra.mxu0 0.0
  %6471 = vmatprep.subr.mxu0 0.0
  %6472 = vmatpush1.msra.mxu0 0.0
  %6473 = vmatprep.subr.mxu0 0.0
  %6474 = vmatpush1.msra.mxu0 0.0
  %6475 = vmatprep.subr.mxu0 0.0
  %6476 = vmatpush1.msra.mxu0 0.0
  %6477 = vmatprep.subr.mxu0 0.0
  %6478 = vmatpush1.msra.mxu0 0.0
  %6479 = vmatprep.subr.mxu0 0.0
  %6480 = vmatpush1.msra.mxu0 0.0
  %6481 = vmatprep.subr.mxu0 0.0
  %6482 = vmatpush1.msra.mxu0 0.0
  %6483 = vmatprep.subr.mxu0 0.0
  %6484 = vmatpush1.msra.mxu0 0.0
  %6485 = vmatprep.subr.mxu0 0.0
  %6486 = vmatpush1.msra.mxu0 0.0
  %6487 = vmatprep.subr.mxu0 0.0
  %6488 = vmatpush1.msra.mxu0 0.0
  %6489 = vmatprep.subr.mxu0 0.0
  %6490 = vmatpush1.msra.mxu0 0.0
  %6491 = vmatprep.subr.mxu0 0.0
  %6492 = vmatpush1.msra.mxu0 0.0
  %6493 = vmatprep.subr.mxu0 0.0
  %6494 = vmatpush1.msra.mxu0 0.0
  %6495 = vmatprep.subr.mxu0 0.0
  %6496 = vmatpush1.msra.mxu0 0.0
  %6497 = vmatprep.subr.mxu0 0.0
  %6498 = vmatpush1.msra.mxu0 0.0
  %6499 = vmatprep.subr.mxu0 0.0
  %6500 = vmatpush1.msra.mxu0 0.0
  %6501 = vmatprep.subr.mxu0 0.0
  %6502 = vmatpush1.msra.mxu0 0.0
  %6503 = vmatprep.subr.mxu0 0.0
  %6504 = vmatpush1.msra.mxu0 0.0
  %6505 = vmatprep.subr.mxu0 0.0
  %6506 = vmatpush1.msra.mxu0 0.0
  %6507 = vmatprep.subr.mxu0 0.0
  %6508 = vmatpush1.msra.mxu0 0.0
  %6509 = vmatprep.subr.mxu0 0.0
  %6510 = vmatpush1.msra.mxu0 0.0
  %6511 = vmatprep.subr.mxu0 0.0
  %6512 = vmatpush1.msra.mxu0 0.0
  %6513 = vmatprep.subr.mxu0 0.0
  %6514 = vmatpush1.msra.mxu0 0.0
  %6515 = vmatprep.subr.mxu0 0.0
  %6516 = vmatpush1.msra.mxu0 0.0
  %6517 = vmatprep.mubr.f32.mxu0 0.0
  %v6518 = vand.u32 %v6352, 4294901760
  %6519 = vmatmul.mubr.f32.gmra.mrb[0].mxu0 %v6518
  %v6520 = vpop.f32.mrb[0].mxu0
  %v6521 = vadd.f32 %v6430, %v6520
  %v6522 = vpop.f32.mrb[0].mxu0
  %6523 = vdwg.mxu0
  %6524 = vmatprep.subr.mxu0 0.0
  %v6525 = vand.u32 %v5818, 4294901760
  %v6526 = vsub.f32 %v5818, %v6525
  %6527 = vmatpush1.msra.mxu0 %v6526
  %6528 = vmatprep.subr.mxu0 0.0
  %v6529 = vand.u32 %v5819, 4294901760
  %v6530 = vsub.f32 %v5819, %v6529
  %6531 = vmatpush1.msra.mxu0 %v6530
  %6532 = vmatprep.subr.mxu0 0.0
  %v6533 = vand.u32 %v5820, 4294901760
  %v6534 = vsub.f32 %v5820, %v6533
  %6535 = vmatpush1.msra.mxu0 %v6534
  %6536 = vmatprep.subr.mxu0 0.0
  %v6537 = vand.u32 %v5821, 4294901760
  %v6538 = vsub.f32 %v5821, %v6537
  %6539 = vmatpush1.msra.mxu0 %v6538
  %6540 = vmatprep.subr.mxu0 0.0
  %6541 = vmatpush1.msra.mxu0 0.0
  %6542 = vmatprep.subr.mxu0 0.0
  %6543 = vmatpush1.msra.mxu0 0.0
  %6544 = vmatprep.subr.mxu0 0.0
  %6545 = vmatpush1.msra.mxu0 0.0
  %6546 = vmatprep.subr.mxu0 0.0
  %6547 = vmatpush1.msra.mxu0 0.0
  %6548 = vmatprep.subr.mxu0 0.0
  %6549 = vmatpush1.msra.mxu0 0.0
  %6550 = vmatprep.subr.mxu0 0.0
  %6551 = vmatpush1.msra.mxu0 0.0
  %6552 = vmatprep.subr.mxu0 0.0
  %6553 = vmatpush1.msra.mxu0 0.0
  %6554 = vmatprep.subr.mxu0 0.0
  %6555 = vmatpush1.msra.mxu0 0.0
  %6556 = vmatprep.subr.mxu0 0.0
  %6557 = vmatpush1.msra.mxu0 0.0
  %6558 = vmatprep.subr.mxu0 0.0
  %6559 = vmatpush1.msra.mxu0 0.0
  %6560 = vmatprep.subr.mxu0 0.0
  %6561 = vmatpush1.msra.mxu0 0.0
  %6562 = vmatprep.subr.mxu0 0.0
  %6563 = vmatpush1.msra.mxu0 0.0
  %6564 = vmatprep.subr.mxu0 0.0
  %6565 = vmatpush1.msra.mxu0 0.0
  %6566 = vmatprep.subr.mxu0 0.0
  %6567 = vmatpush1.msra.mxu0 0.0
  %6568 = vmatprep.subr.mxu0 0.0
  %6569 = vmatpush1.msra.mxu0 0.0
  %6570 = vmatprep.subr.mxu0 0.0
  %6571 = vmatpush1.msra.mxu0 0.0
  %6572 = vmatprep.subr.mxu0 0.0
  %6573 = vmatpush1.msra.mxu0 0.0
  %6574 = vmatprep.subr.mxu0 0.0
  %6575 = vmatpush1.msra.mxu0 0.0
  %6576 = vmatprep.subr.mxu0 0.0
  %6577 = vmatpush1.msra.mxu0 0.0
  %6578 = vmatprep.subr.mxu0 0.0
  %6579 = vmatpush1.msra.mxu0 0.0
  %6580 = vmatprep.subr.mxu0 0.0
  %6581 = vmatpush1.msra.mxu0 0.0
  %6582 = vmatprep.subr.mxu0 0.0
  %6583 = vmatpush1.msra.mxu0 0.0
  %6584 = vmatprep.subr.mxu0 0.0
  %6585 = vmatpush1.msra.mxu0 0.0
  %6586 = vmatprep.subr.mxu0 0.0
  %6587 = vmatpush1.msra.mxu0 0.0
  %6588 = vmatprep.subr.mxu0 0.0
  %6589 = vmatpush1.msra.mxu0 0.0
  %6590 = vmatprep.subr.mxu0 0.0
  %6591 = vmatpush1.msra.mxu0 0.0
  %6592 = vmatprep.subr.mxu0 0.0
  %6593 = vmatpush1.msra.mxu0 0.0
  %6594 = vmatprep.subr.mxu0 0.0
  %6595 = vmatpush1.msra.mxu0 0.0
  %6596 = vmatprep.mubr.f32.mxu0 0.0
  %v6597 = vand.u32 %v6352, 4294901760
  %v6598 = vsub.f32 %v6352, %v6597
  %6599 = vmatmul.mubr.f32.gmra.mrb[0].mxu0 %v6598
  %v6600 = vpop.f32.mrb[0].mxu0
  %v6601 = vadd.f32 %v6521, %v6600
  %v6602 = vpop.f32.mrb[0].mxu0
  %6603 = vdwg.mxu0
  %6604 = vmatprep.subr.mxu0 0.0
  %v6605 = vand.u32 %v5818, 4294901760
  %6606 = vmatpush1.msra.mxu0 %v6605
  %6607 = vmatprep.subr.mxu0 0.0
  %v6608 = vand.u32 %v5819, 4294901760
  %6609 = vmatpush1.msra.mxu0 %v6608
  %6610 = vmatprep.subr.mxu0 0.0
  %v6611 = vand.u32 %v5820, 4294901760
  %6612 = vmatpush1.msra.mxu0 %v6611
  %6613 = vmatprep.subr.mxu0 0.0
  %v6614 = vand.u32 %v5821, 4294901760
  %6615 = vmatpush1.msra.mxu0 %v6614
  %6616 = vmatprep.subr.mxu0 0.0
  %6617 = vmatpush1.msra.mxu0 0.0
  %6618 = vmatprep.subr.mxu0 0.0
  %6619 = vmatpush1.msra.mxu0 0.0
  %6620 = vmatprep.subr.mxu0 0.0
  %6621 = vmatpush1.msra.mxu0 0.0
  %6622 = vmatprep.subr.mxu0 0.0
  %6623 = vmatpush1.msra.mxu0 0.0
  %6624 = vmatprep.subr.mxu0 0.0
  %6625 = vmatpush1.msra.mxu0 0.0
  %6626 = vmatprep.subr.mxu0 0.0
  %6627 = vmatpush1.msra.mxu0 0.0
  %6628 = vmatprep.subr.mxu0 0.0
  %6629 = vmatpush1.msra.mxu0 0.0
  %6630 = vmatprep.subr.mxu0 0.0
  %6631 = vmatpush1.msra.mxu0 0.0
  %6632 = vmatprep.subr.mxu0 0.0
  %6633 = vmatpush1.msra.mxu0 0.0
  %6634 = vmatprep.subr.mxu0 0.0
  %6635 = vmatpush1.msra.mxu0 0.0
  %6636 = vmatprep.subr.mxu0 0.0
  %6637 = vmatpush1.msra.mxu0 0.0
  %6638 = vmatprep.subr.mxu0 0.0
  %6639 = vmatpush1.msra.mxu0 0.0
  %6640 = vmatprep.subr.mxu0 0.0
  %6641 = vmatpush1.msra.mxu0 0.0
  %6642 = vmatprep.subr.mxu0 0.0
  %6643 = vmatpush1.msra.mxu0 0.0
  %6644 = vmatprep.subr.mxu0 0.0
  %6645 = vmatpush1.msra.mxu0 0.0
  %6646 = vmatprep.subr.mxu0 0.0
  %6647 = vmatpush1.msra.mxu0 0.0
  %6648 = vmatprep.subr.mxu0 0.0
  %6649 = vmatpush1.msra.mxu0 0.0
  %6650 = vmatprep.subr.mxu0 0.0
  %6651 = vmatpush1.msra.mxu0 0.0
  %6652 = vmatprep.subr.mxu0 0.0
  %6653 = vmatpush1.msra.mxu0 0.0
  %6654 = vmatprep.subr.mxu0 0.0
  %6655 = vmatpush1.msra.mxu0 0.0
  %6656 = vmatprep.subr.mxu0 0.0
  %6657 = vmatpush1.msra.mxu0 0.0
  %6658 = vmatprep.subr.mxu0 0.0
  %6659 = vmatpush1.msra.mxu0 0.0
  %6660 = vmatprep.subr.mxu0 0.0
  %6661 = vmatpush1.msra.mxu0 0.0
  %6662 = vmatprep.subr.mxu0 0.0
  %6663 = vmatpush1.msra.mxu0 0.0
  %6664 = vmatprep.subr.mxu0 0.0
  %6665 = vmatpush1.msra.mxu0 0.0
  %6666 = vmatprep.subr.mxu0 0.0
  %6667 = vmatpush1.msra.mxu0 0.0
  %6668 = vmatprep.subr.mxu0 0.0
  %6669 = vmatpush1.msra.mxu0 0.0
  %6670 = vmatprep.subr.mxu0 0.0
  %6671 = vmatpush1.msra.mxu0 0.0
  %6672 = vmatprep.mubr.f32.mxu0 0.0
  %v6673 = vand.u32 %v6352, 4294901760
  %v6674 = vsub.f32 %v6352, %v6673
  %v6675 = vand.u32 %v6674, 4294901760
  %6676 = vmatmul.mubr.f32.gmra.mrb[0].mxu0 %v6675
  %v6677 = vpop.f32.mrb[0].mxu0
  %v6678 = vadd.f32 %v6601, %v6677
  %v6679 = vpop.f32.mrb[0].mxu0
  %6680 = vdwg.mxu0
  %6681 = vmatprep.subr.mxu0 0.0
  %v6682 = vand.u32 %v5818, 4294901760
  %v6683 = vsub.f32 %v5818, %v6682
  %v6684 = vand.u32 %v6683, 4294901760
  %6685 = vmatpush1.msra.mxu0 %v6684
  %6686 = vmatprep.subr.mxu0 0.0
  %v6687 = vand.u32 %v5819, 4294901760
  %v6688 = vsub.f32 %v5819, %v6687
  %v6689 = vand.u32 %v6688, 4294901760
  %6690 = vmatpush1.msra.mxu0 %v6689
  %6691 = vmatprep.subr.mxu0 0.0
  %v6692 = vand.u32 %v5820, 4294901760
  %v6693 = vsub.f32 %v5820, %v6692
  %v6694 = vand.u32 %v6693, 4294901760
  %6695 = vmatpush1.msra.mxu0 %v6694
  %6696 = vmatprep.subr.mxu0 0.0
  %v6697 = vand.u32 %v5821, 4294901760
  %v6698 = vsub.f32 %v5821, %v6697
  %v6699 = vand.u32 %v6698, 4294901760
  %6700 = vmatpush1.msra.mxu0 %v6699
  %6701 = vmatprep.subr.mxu0 0.0
  %6702 = vmatpush1.msra.mxu0 0.0
  %6703 = vmatprep.subr.mxu0 0.0
  %6704 = vmatpush1.msra.mxu0 0.0
  %6705 = vmatprep.subr.mxu0 0.0
  %6706 = vmatpush1.msra.mxu0 0.0
  %6707 = vmatprep.subr.mxu0 0.0
  %6708 = vmatpush1.msra.mxu0 0.0
  %6709 = vmatprep.subr.mxu0 0.0
  %6710 = vmatpush1.msra.mxu0 0.0
  %6711 = vmatprep.subr.mxu0 0.0
  %6712 = vmatpush1.msra.mxu0 0.0
  %6713 = vmatprep.subr.mxu0 0.0
  %6714 = vmatpush1.msra.mxu0 0.0
  %6715 = vmatprep.subr.mxu0 0.0
  %6716 = vmatpush1.msra.mxu0 0.0
  %6717 = vmatprep.subr.mxu0 0.0
  %6718 = vmatpush1.msra.mxu0 0.0
  %6719 = vmatprep.subr.mxu0 0.0
  %6720 = vmatpush1.msra.mxu0 0.0
  %6721 = vmatprep.subr.mxu0 0.0
  %6722 = vmatpush1.msra.mxu0 0.0
  %6723 = vmatprep.subr.mxu0 0.0
  %6724 = vmatpush1.msra.mxu0 0.0
  %6725 = vmatprep.subr.mxu0 0.0
  %6726 = vmatpush1.msra.mxu0 0.0
  %6727 = vmatprep.subr.mxu0 0.0
  %6728 = vmatpush1.msra.mxu0 0.0
  %6729 = vmatprep.subr.mxu0 0.0
  %6730 = vmatpush1.msra.mxu0 0.0
  %6731 = vmatprep.subr.mxu0 0.0
  %6732 = vmatpush1.msra.mxu0 0.0
  %6733 = vmatprep.subr.mxu0 0.0
  %6734 = vmatpush1.msra.mxu0 0.0
  %6735 = vmatprep.subr.mxu0 0.0
  %6736 = vmatpush1.msra.mxu0 0.0
  %6737 = vmatprep.subr.mxu0 0.0
  %6738 = vmatpush1.msra.mxu0 0.0
  %6739 = vmatprep.subr.mxu0 0.0
  %6740 = vmatpush1.msra.mxu0 0.0
  %6741 = vmatprep.subr.mxu0 0.0
  %6742 = vmatpush1.msra.mxu0 0.0
  %6743 = vmatprep.subr.mxu0 0.0
  %6744 = vmatpush1.msra.mxu0 0.0
  %6745 = vmatprep.subr.mxu0 0.0
  %6746 = vmatpush1.msra.mxu0 0.0
  %6747 = vmatprep.subr.mxu0 0.0
  %6748 = vmatpush1.msra.mxu0 0.0
  %6749 = vmatprep.subr.mxu0 0.0
  %6750 = vmatpush1.msra.mxu0 0.0
  %6751 = vmatprep.subr.mxu0 0.0
  %6752 = vmatpush1.msra.mxu0 0.0
  %6753 = vmatprep.subr.mxu0 0.0
  %6754 = vmatpush1.msra.mxu0 0.0
  %6755 = vmatprep.subr.mxu0 0.0
  %6756 = vmatpush1.msra.mxu0 0.0
  %6757 = vmatprep.mubr.f32.mxu0 0.0
  %v6758 = vand.u32 %v6352, 4294901760
  %6759 = vmatmul.mubr.f32.gmra.mrb[0].mxu0 %v6758
  %v6760 = vpop.f32.mrb[0].mxu0
  %v6761 = vadd.f32 %v6678, %v6760
  %v6762 = vpop.f32.mrb[0].mxu0
  %6763 = vdwg.mxu0
  %6764 = vmatprep.subr.mxu0 0.0
  %v6765 = vand.u32 %v5818, 4294901760
  %6766 = vmatpush1.msra.mxu0 %v6765
  %6767 = vmatprep.subr.mxu0 0.0
  %v6768 = vand.u32 %v5819, 4294901760
  %6769 = vmatpush1.msra.mxu0 %v6768
  %6770 = vmatprep.subr.mxu0 0.0
  %v6771 = vand.u32 %v5820, 4294901760
  %6772 = vmatpush1.msra.mxu0 %v6771
  %6773 = vmatprep.subr.mxu0 0.0
  %v6774 = vand.u32 %v5821, 4294901760
  %6775 = vmatpush1.msra.mxu0 %v6774
  %6776 = vmatprep.subr.mxu0 0.0
  %6777 = vmatpush1.msra.mxu0 0.0
  %6778 = vmatprep.subr.mxu0 0.0
  %6779 = vmatpush1.msra.mxu0 0.0
  %6780 = vmatprep.subr.mxu0 0.0
  %6781 = vmatpush1.msra.mxu0 0.0
  %6782 = vmatprep.subr.mxu0 0.0
  %6783 = vmatpush1.msra.mxu0 0.0
  %6784 = vmatprep.subr.mxu0 0.0
  %6785 = vmatpush1.msra.mxu0 0.0
  %6786 = vmatprep.subr.mxu0 0.0
  %6787 = vmatpush1.msra.mxu0 0.0
  %6788 = vmatprep.subr.mxu0 0.0
  %6789 = vmatpush1.msra.mxu0 0.0
  %6790 = vmatprep.subr.mxu0 0.0
  %6791 = vmatpush1.msra.mxu0 0.0
  %6792 = vmatprep.subr.mxu0 0.0
  %6793 = vmatpush1.msra.mxu0 0.0
  %6794 = vmatprep.subr.mxu0 0.0
  %6795 = vmatpush1.msra.mxu0 0.0
  %6796 = vmatprep.subr.mxu0 0.0
  %6797 = vmatpush1.msra.mxu0 0.0
  %6798 = vmatprep.subr.mxu0 0.0
  %6799 = vmatpush1.msra.mxu0 0.0
  %6800 = vmatprep.subr.mxu0 0.0
  %6801 = vmatpush1.msra.mxu0 0.0
  %6802 = vmatprep.subr.mxu0 0.0
  %6803 = vmatpush1.msra.mxu0 0.0
  %6804 = vmatprep.subr.mxu0 0.0
  %6805 = vmatpush1.msra.mxu0 0.0
  %6806 = vmatprep.subr.mxu0 0.0
  %6807 = vmatpush1.msra.mxu0 0.0
  %6808 = vmatprep.subr.mxu0 0.0
  %6809 = vmatpush1.msra.mxu0 0.0
  %6810 = vmatprep.subr.mxu0 0.0
  %6811 = vmatpush1.msra.mxu0 0.0
  %6812 = vmatprep.subr.mxu0 0.0
  %6813 = vmatpush1.msra.mxu0 0.0
  %6814 = vmatprep.subr.mxu0 0.0
  %6815 = vmatpush1.msra.mxu0 0.0
  %6816 = vmatprep.subr.mxu0 0.0
  %6817 = vmatpush1.msra.mxu0 0.0
  %6818 = vmatprep.subr.mxu0 0.0
  %6819 = vmatpush1.msra.mxu0 0.0
  %6820 = vmatprep.subr.mxu0 0.0
  %6821 = vmatpush1.msra.mxu0 0.0
  %6822 = vmatprep.subr.mxu0 0.0
  %6823 = vmatpush1.msra.mxu0 0.0
  %6824 = vmatprep.subr.mxu0 0.0
  %6825 = vmatpush1.msra.mxu0 0.0
  %6826 = vmatprep.subr.mxu0 0.0
  %6827 = vmatpush1.msra.mxu0 0.0
  %6828 = vmatprep.subr.mxu0 0.0
  %6829 = vmatpush1.msra.mxu0 0.0
  %6830 = vmatprep.subr.mxu0 0.0
  %6831 = vmatpush1.msra.mxu0 0.0
  %6832 = vmatprep.mubr.f32.mxu0 0.0
  %v6833 = vand.u32 %v6352, 4294901760
  %6834 = vmatmul.mubr.f32.gmra.mrb[0].mxu0 %v6833
  %v6835 = vpop.f32.mrb[0].mxu0
  %v6836 = vadd.f32 %v6761, %v6835
  %v6837 = vpop.f32.mrb[0].mxu0
  %6838 = vdwg.mxu0
  %v6839 = vadd.f32 %v6351, %v6836
  %v6840 = vxor.u32 %v6839, 2147483648
  %v6841 = vmul.f32 %v6840, 1.442695
  %v6842 = vpow.pop %v6841
  %v6843 = vadd.f32 %v6842, 1.0
  %v6844 = vrcp.pop %v6843
  %v6845 = vmul.f32 1.0, %v6844
  %v6846 = vtanh.pop %v6839
  %v6847 = vmul.f32 %v6845, %v6333
  %6849 = vrot.lane.b32.xlu0 %v6846, 64
  %v6850 = vpop.permute.xlu0 %6849
  %v6852 = vmul.f32 %v6845, %v6850
  %6854 = vrot.lane.b32.xlu0 %v6852, 32
  %v6855 = vpop.permute.xlu0 %6854
  %v6857 = vadd.f32 %v6847, %v6855
  %v6858 = vtanh.pop %v6857
  %6860 = vrot.lane.b32.xlu0 %v6858, 64
  %v6861 = vpop.permute.xlu0 %6860
  %v6863 = vmul.f32 %v6845, %v6861
  %6865 = vrot.lane.b32.xlu0 %v6863, 32
  %v6866 = vpop.permute.xlu0 %6865
  %6868 = vst.msk [vmem:[#allocation5 + $0x1] sm:$0x1] %vm1084, %v6866
  %6869 = vst.msk [vmem:[#allocation5 + $0x8] sm:$0x2] %vm1086, %v6866
  %v6870 = vld [vmem:[#allocation4 + $0x2] sm:$0x1]
  %v6871 = vld [vmem:[#allocation4 + $0xa] sm:$0x1]
  %v6873 = vrot.slane %v6871, 7
  %v6875 = vsel %vm564, %v6870, %v6873
  %v6876 = vsel %vm566, %v6866, 0
  %6878 = vmatprep.subr.mxu0 0.0
  %v6879 = vand.u32 %v5818, 4294901760
  %6880 = vmatpush1.msra.mxu0 %v6879
  %6881 = vmatprep.subr.mxu0 0.0
  %v6882 = vand.u32 %v5819, 4294901760
  %6883 = vmatpush1.msra.mxu0 %v6882
  %6884 = vmatprep.subr.mxu0 0.0
  %v6885 = vand.u32 %v5820, 4294901760
  %6886 = vmatpush1.msra.mxu0 %v6885
  %6887 = vmatprep.subr.mxu0 0.0
  %v6888 = vand.u32 %v5821, 4294901760
  %6889 = vmatpush1.msra.mxu0 %v6888
  %6890 = vmatprep.subr.mxu0 0.0
  %6891 = vmatpush1.msra.mxu0 0.0
  %6892 = vmatprep.subr.mxu0 0.0
  %6893 = vmatpush1.msra.mxu0 0.0
  %6894 = vmatprep.subr.mxu0 0.0
  %6895 = vmatpush1.msra.mxu0 0.0
  %6896 = vmatprep.subr.mxu0 0.0
  %6897 = vmatpush1.msra.mxu0 0.0
  %6898 = vmatprep.subr.mxu0 0.0
  %6899 = vmatpush1.msra.mxu0 0.0
  %6900 = vmatprep.subr.mxu0 0.0
  %6901 = vmatpush1.msra.mxu0 0.0
  %6902 = vmatprep.subr.mxu0 0.0
  %6903 = vmatpush1.msra.mxu0 0.0
  %6904 = vmatprep.subr.mxu0 0.0
  %6905 = vmatpush1.msra.mxu0 0.0
  %6906 = vmatprep.subr.mxu0 0.0
  %6907 = vmatpush1.msra.mxu0 0.0
  %6908 = vmatprep.subr.mxu0 0.0
  %6909 = vmatpush1.msra.mxu0 0.0
  %6910 = vmatprep.subr.mxu0 0.0
  %6911 = vmatpush1.msra.mxu0 0.0
  %6912 = vmatprep.subr.mxu0 0.0
  %6913 = vmatpush1.msra.mxu0 0.0
  %6914 = vmatprep.subr.mxu0 0.0
  %6915 = vmatpush1.msra.mxu0 0.0
  %6916 = vmatprep.subr.mxu0 0.0
  %6917 = vmatpush1.msra.mxu0 0.0
  %6918 = vmatprep.subr.mxu0 0.0
  %6919 = vmatpush1.msra.mxu0 0.0
  %6920 = vmatprep.subr.mxu0 0.0
  %6921 = vmatpush1.msra.mxu0 0.0
  %6922 = vmatprep.subr.mxu0 0.0
  %6923 = vmatpush1.msra.mxu0 0.0
  %6924 = vmatprep.subr.mxu0 0.0
  %6925 = vmatpush1.msra.mxu0 0.0
  %6926 = vmatprep.subr.mxu0 0.0
  %6927 = vmatpush1.msra.mxu0 0.0
  %6928 = vmatprep.subr.mxu0 0.0
  %6929 = vmatpush1.msra.mxu0 0.0
  %6930 = vmatprep.subr.mxu0 0.0
  %6931 = vmatpush1.msra.mxu0 0.0
  %6932 = vmatprep.subr.mxu0 0.0
  %6933 = vmatpush1.msra.mxu0 0.0
  %6934 = vmatprep.subr.mxu0 0.0
  %6935 = vmatpush1.msra.mxu0 0.0
  %6936 = vmatprep.subr.mxu0 0.0
  %6937 = vmatpush1.msra.mxu0 0.0
  %6938 = vmatprep.subr.mxu0 0.0
  %6939 = vmatpush1.msra.mxu0 0.0
  %6940 = vmatprep.subr.mxu0 0.0
  %6941 = vmatpush1.msra.mxu0 0.0
  %6942 = vmatprep.subr.mxu0 0.0
  %6943 = vmatpush1.msra.mxu0 0.0
  %6944 = vmatprep.subr.mxu0 0.0
  %6945 = vmatpush1.msra.mxu0 0.0
  %6946 = vmatprep.mubr.f32.mxu0 0.0
  %v6947 = vand.u32 %v6876, 4294901760
  %v6948 = vsub.f32 %v6876, %v6947
  %v6949 = vand.u32 %v6948, 4294901760
  %v6950 = vsub.f32 %v6948, %v6949
  %v6951 = vand.u32 %v6950, 4294901760
  %6952 = vmatmul.mubr.f32.gmra.mrb[0].mxu0 %v6951
  %v6953 = vpop.f32.mrb[0].mxu0
  %v6954 = vadd.f32 0.0, %v6953
  %v6955 = vpop.f32.mrb[0].mxu0
  %6956 = vdwg.mxu0
  %6957 = vmatprep.subr.mxu0 0.0
  %v6958 = vand.u32 %v5818, 4294901760
  %v6959 = vsub.f32 %v5818, %v6958
  %v6960 = vand.u32 %v6959, 4294901760
  %v6961 = vsub.f32 %v6959, %v6960
  %v6962 = vand.u32 %v6961, 4294901760
  %6963 = vmatpush1.msra.mxu0 %v6962
  %6964 = vmatprep.subr.mxu0 0.0
  %v6965 = vand.u32 %v5819, 4294901760
  %v6966 = vsub.f32 %v5819, %v6965
  %v6967 = vand.u32 %v6966, 4294901760
  %v6968 = vsub.f32 %v6966, %v6967
  %v6969 = vand.u32 %v6968, 4294901760
  %6970 = vmatpush1.msra.mxu0 %v6969
  %6971 = vmatprep.subr.mxu0 0.0
  %v6972 = vand.u32 %v5820, 4294901760
  %v6973 = vsub.f32 %v5820, %v6972
  %v6974 = vand.u32 %v6973, 4294901760
  %v6975 = vsub.f32 %v6973, %v6974
  %v6976 = vand.u32 %v6975, 4294901760
  %6977 = vmatpush1.msra.mxu0 %v6976
  %6978 = vmatprep.subr.mxu0 0.0
  %v6979 = vand.u32 %v5821, 4294901760
  %v6980 = vsub.f32 %v5821, %v6979
  %v6981 = vand.u32 %v6980, 4294901760
  %v6982 = vsub.f32 %v6980, %v6981
  %v6983 = vand.u32 %v6982, 4294901760
  %6984 = vmatpush1.msra.mxu0 %v6983
  %6985 = vmatprep.subr.mxu0 0.0
  %6986 = vmatpush1.msra.mxu0 0.0
  %6987 = vmatprep.subr.mxu0 0.0
  %6988 = vmatpush1.msra.mxu0 0.0
  %6989 = vmatprep.subr.mxu0 0.0
  %6990 = vmatpush1.msra.mxu0 0.0
  %6991 = vmatprep.subr.mxu0 0.0
  %6992 = vmatpush1.msra.mxu0 0.0
  %6993 = vmatprep.subr.mxu0 0.0
  %6994 = vmatpush1.msra.mxu0 0.0
  %6995 = vmatprep.subr.mxu0 0.0
  %6996 = vmatpush1.msra.mxu0 0.0
  %6997 = vmatprep.subr.mxu0 0.0
  %6998 = vmatpush1.msra.mxu0 0.0
  %6999 = vmatprep.subr.mxu0 0.0
  %7000 = vmatpush1.msra.mxu0 0.0
  %7001 = vmatprep.subr.mxu0 0.0
  %7002 = vmatpush1.msra.mxu0 0.0
  %7003 = vmatprep.subr.mxu0 0.0
  %7004 = vmatpush1.msra.mxu0 0.0
  %7005 = vmatprep.subr.mxu0 0.0
  %7006 = vmatpush1.msra.mxu0 0.0
  %7007 = vmatprep.subr.mxu0 0.0
  %7008 = vmatpush1.msra.mxu0 0.0
  %7009 = vmatprep.subr.mxu0 0.0
  %7010 = vmatpush1.msra.mxu0 0.0
  %7011 = vmatprep.subr.mxu0 0.0
  %7012 = vmatpush1.msra.mxu0 0.0
  %7013 = vmatprep.subr.mxu0 0.0
  %7014 = vmatpush1.msra.mxu0 0.0
  %7015 = vmatprep.subr.mxu0 0.0
  %7016 = vmatpush1.msra.mxu0 0.0
  %7017 = vmatprep.subr.mxu0 0.0
  %7018 = vmatpush1.msra.mxu0 0.0
  %7019 = vmatprep.subr.mxu0 0.0
  %7020 = vmatpush1.msra.mxu0 0.0
  %7021 = vmatprep.subr.mxu0 0.0
  %7022 = vmatpush1.msra.mxu0 0.0
  %7023 = vmatprep.subr.mxu0 0.0
  %7024 = vmatpush1.msra.mxu0 0.0
  %7025 = vmatprep.subr.mxu0 0.0
  %7026 = vmatpush1.msra.mxu0 0.0
  %7027 = vmatprep.subr.mxu0 0.0
  %7028 = vmatpush1.msra.mxu0 0.0
  %7029 = vmatprep.subr.mxu0 0.0
  %7030 = vmatpush1.msra.mxu0 0.0
  %7031 = vmatprep.subr.mxu0 0.0
  %7032 = vmatpush1.msra.mxu0 0.0
  %7033 = vmatprep.subr.mxu0 0.0
  %7034 = vmatpush1.msra.mxu0 0.0
  %7035 = vmatprep.subr.mxu0 0.0
  %7036 = vmatpush1.msra.mxu0 0.0
  %7037 = vmatprep.subr.mxu0 0.0
  %7038 = vmatpush1.msra.mxu0 0.0
  %7039 = vmatprep.subr.mxu0 0.0
  %7040 = vmatpush1.msra.mxu0 0.0
  %7041 = vmatprep.mubr.f32.mxu0 0.0
  %v7042 = vand.u32 %v6876, 4294901760
  %7043 = vmatmul.mubr.f32.gmra.mrb[0].mxu0 %v7042
  %v7044 = vpop.f32.mrb[0].mxu0
  %v7045 = vadd.f32 %v6954, %v7044
  %v7046 = vpop.f32.mrb[0].mxu0
  %7047 = vdwg.mxu0
  %7048 = vmatprep.subr.mxu0 0.0
  %v7049 = vand.u32 %v5818, 4294901760
  %v7050 = vsub.f32 %v5818, %v7049
  %7051 = vmatpush1.msra.mxu0 %v7050
  %7052 = vmatprep.subr.mxu0 0.0
  %v7053 = vand.u32 %v5819, 4294901760
  %v7054 = vsub.f32 %v5819, %v7053
  %7055 = vmatpush1.msra.mxu0 %v7054
  %7056 = vmatprep.subr.mxu0 0.0
  %v7057 = vand.u32 %v5820, 4294901760
  %v7058 = vsub.f32 %v5820, %v7057
  %7059 = vmatpush1.msra.mxu0 %v7058
  %7060 = vmatprep.subr.mxu0 0.0
  %v7061 = vand.u32 %v5821, 4294901760
  %v7062 = vsub.f32 %v5821, %v7061
  %7063 = vmatpush1.msra.mxu0 %v7062
  %7064 = vmatprep.subr.mxu0 0.0
  %7065 = vmatpush1.msra.mxu0 0.0
  %7066 = vmatprep.subr.mxu0 0.0
  %7067 = vmatpush1.msra.mxu0 0.0
  %7068 = vmatprep.subr.mxu0 0.0
  %7069 = vmatpush1.msra.mxu0 0.0
  %7070 = vmatprep.subr.mxu0 0.0
  %7071 = vmatpush1.msra.mxu0 0.0
  %7072 = vmatprep.subr.mxu0 0.0
  %7073 = vmatpush1.msra.mxu0 0.0
  %7074 = vmatprep.subr.mxu0 0.0
  %7075 = vmatpush1.msra.mxu0 0.0
  %7076 = vmatprep.subr.mxu0 0.0
  %7077 = vmatpush1.msra.mxu0 0.0
  %7078 = vmatprep.subr.mxu0 0.0
  %7079 = vmatpush1.msra.mxu0 0.0
  %7080 = vmatprep.subr.mxu0 0.0
  %7081 = vmatpush1.msra.mxu0 0.0
  %7082 = vmatprep.subr.mxu0 0.0
  %7083 = vmatpush1.msra.mxu0 0.0
  %7084 = vmatprep.subr.mxu0 0.0
  %7085 = vmatpush1.msra.mxu0 0.0
  %7086 = vmatprep.subr.mxu0 0.0
  %7087 = vmatpush1.msra.mxu0 0.0
  %7088 = vmatprep.subr.mxu0 0.0
  %7089 = vmatpush1.msra.mxu0 0.0
  %7090 = vmatprep.subr.mxu0 0.0
  %7091 = vmatpush1.msra.mxu0 0.0
  %7092 = vmatprep.subr.mxu0 0.0
  %7093 = vmatpush1.msra.mxu0 0.0
  %7094 = vmatprep.subr.mxu0 0.0
  %7095 = vmatpush1.msra.mxu0 0.0
  %7096 = vmatprep.subr.mxu0 0.0
  %7097 = vmatpush1.msra.mxu0 0.0
  %7098 = vmatprep.subr.mxu0 0.0
  %7099 = vmatpush1.msra.mxu0 0.0
  %7100 = vmatprep.subr.mxu0 0.0
  %7101 = vmatpush1.msra.mxu0 0.0
  %7102 = vmatprep.subr.mxu0 0.0
  %7103 = vmatpush1.msra.mxu0 0.0
  %7104 = vmatprep.subr.mxu0 0.0
  %7105 = vmatpush1.msra.mxu0 0.0
  %7106 = vmatprep.subr.mxu0 0.0
  %7107 = vmatpush1.msra.mxu0 0.0
  %7108 = vmatprep.subr.mxu0 0.0
  %7109 = vmatpush1.msra.mxu0 0.0
  %7110 = vmatprep.subr.mxu0 0.0
  %7111 = vmatpush1.msra.mxu0 0.0
  %7112 = vmatprep.subr.mxu0 0.0
  %7113 = vmatpush1.msra.mxu0 0.0
  %7114 = vmatprep.subr.mxu0 0.0
  %7115 = vmatpush1.msra.mxu0 0.0
  %7116 = vmatprep.subr.mxu0 0.0
  %7117 = vmatpush1.msra.mxu0 0.0
  %7118 = vmatprep.subr.mxu0 0.0
  %7119 = vmatpush1.msra.mxu0 0.0
  %7120 = vmatprep.mubr.f32.mxu0 0.0
  %v7121 = vand.u32 %v6876, 4294901760
  %v7122 = vsub.f32 %v6876, %v7121
  %7123 = vmatmul.mubr.f32.gmra.mrb[0].mxu0 %v7122
  %v7124 = vpop.f32.mrb[0].mxu0
  %v7125 = vadd.f32 %v7045, %v7124
  %v7126 = vpop.f32.mrb[0].mxu0
  %7127 = vdwg.mxu0
  %7128 = vmatprep.subr.mxu0 0.0
  %v7129 = vand.u32 %v5818, 4294901760
  %7130 = vmatpush1.msra.mxu0 %v7129
  %7131 = vmatprep.subr.mxu0 0.0
  %v7132 = vand.u32 %v5819, 4294901760
  %7133 = vmatpush1.msra.mxu0 %v7132
  %7134 = vmatprep.subr.mxu0 0.0
  %v7135 = vand.u32 %v5820, 4294901760
  %7136 = vmatpush1.msra.mxu0 %v7135
  %7137 = vmatprep.subr.mxu0 0.0
  %v7138 = vand.u32 %v5821, 4294901760
  %7139 = vmatpush1.msra.mxu0 %v7138
  %7140 = vmatprep.subr.mxu0 0.0
  %7141 = vmatpush1.msra.mxu0 0.0
  %7142 = vmatprep.subr.mxu0 0.0
  %7143 = vmatpush1.msra.mxu0 0.0
  %7144 = vmatprep.subr.mxu0 0.0
  %7145 = vmatpush1.msra.mxu0 0.0
  %7146 = vmatprep.subr.mxu0 0.0
  %7147 = vmatpush1.msra.mxu0 0.0
  %7148 = vmatprep.subr.mxu0 0.0
  %7149 = vmatpush1.msra.mxu0 0.0
  %7150 = vmatprep.subr.mxu0 0.0
  %7151 = vmatpush1.msra.mxu0 0.0
  %7152 = vmatprep.subr.mxu0 0.0
  %7153 = vmatpush1.msra.mxu0 0.0
  %7154 = vmatprep.subr.mxu0 0.0
  %7155 = vmatpush1.msra.mxu0 0.0
  %7156 = vmatprep.subr.mxu0 0.0
  %7157 = vmatpush1.msra.mxu0 0.0
  %7158 = vmatprep.subr.mxu0 0.0
  %7159 = vmatpush1.msra.mxu0 0.0
  %7160 = vmatprep.subr.mxu0 0.0
  %7161 = vmatpush1.msra.mxu0 0.0
  %7162 = vmatprep.subr.mxu0 0.0
  %7163 = vmatpush1.msra.mxu0 0.0
  %7164 = vmatprep.subr.mxu0 0.0
  %7165 = vmatpush1.msra.mxu0 0.0
  %7166 = vmatprep.subr.mxu0 0.0
  %7167 = vmatpush1.msra.mxu0 0.0
  %7168 = vmatprep.subr.mxu0 0.0
  %7169 = vmatpush1.msra.mxu0 0.0
  %7170 = vmatprep.subr.mxu0 0.0
  %7171 = vmatpush1.msra.mxu0 0.0
  %7172 = vmatprep.subr.mxu0 0.0
  %7173 = vmatpush1.msra.mxu0 0.0
  %7174 = vmatprep.subr.mxu0 0.0
  %7175 = vmatpush1.msra.mxu0 0.0
  %7176 = vmatprep.subr.mxu0 0.0
  %7177 = vmatpush1.msra.mxu0 0.0
  %7178 = vmatprep.subr.mxu0 0.0
  %7179 = vmatpush1.msra.mxu0 0.0
  %7180 = vmatprep.subr.mxu0 0.0
  %7181 = vmatpush1.msra.mxu0 0.0
  %7182 = vmatprep.subr.mxu0 0.0
  %7183 = vmatpush1.msra.mxu0 0.0
  %7184 = vmatprep.subr.mxu0 0.0
  %7185 = vmatpush1.msra.mxu0 0.0
  %7186 = vmatprep.subr.mxu0 0.0
  %7187 = vmatpush1.msra.mxu0 0.0
  %7188 = vmatprep.subr.mxu0 0.0
  %7189 = vmatpush1.msra.mxu0 0.0
  %7190 = vmatprep.subr.mxu0 0.0
  %7191 = vmatpush1.msra.mxu0 0.0
  %7192 = vmatprep.subr.mxu0 0.0
  %7193 = vmatpush1.msra.mxu0 0.0
  %7194 = vmatprep.subr.mxu0 0.0
  %7195 = vmatpush1.msra.mxu0 0.0
  %7196 = vmatprep.mubr.f32.mxu0 0.0
  %v7197 = vand.u32 %v6876, 4294901760
  %v7198 = vsub.f32 %v6876, %v7197
  %v7199 = vand.u32 %v7198, 4294901760
  %7200 = vmatmul.mubr.f32.gmra.mrb[0].mxu0 %v7199
  %v7201 = vpop.f32.mrb[0].mxu0
  %v7202 = vadd.f32 %v7125, %v7201
  %v7203 = vpop.f32.mrb[0].mxu0
  %7204 = vdwg.mxu0
  %7205 = vmatprep.subr.mxu0 0.0
  %v7206 = vand.u32 %v5818, 4294901760
  %v7207 = vsub.f32 %v5818, %v7206
  %v7208 = vand.u32 %v7207, 4294901760
  %7209 = vmatpush1.msra.mxu0 %v7208
  %7210 = vmatprep.subr.mxu0 0.0
  %v7211 = vand.u32 %v5819, 4294901760
  %v7212 = vsub.f32 %v5819, %v7211
  %v7213 = vand.u32 %v7212, 4294901760
  %7214 = vmatpush1.msra.mxu0 %v7213
  %7215 = vmatprep.subr.mxu0 0.0
  %v7216 = vand.u32 %v5820, 4294901760
  %v7217 = vsub.f32 %v5820, %v7216
  %v7218 = vand.u32 %v7217, 4294901760
  %7219 = vmatpush1.msra.mxu0 %v7218
  %7220 = vmatprep.subr.mxu0 0.0
  %v7221 = vand.u32 %v5821, 4294901760
  %v7222 = vsub.f32 %v5821, %v7221
  %v7223 = vand.u32 %v7222, 4294901760
  %7224 = vmatpush1.msra.mxu0 %v7223
  %7225 = vmatprep.subr.mxu0 0.0
  %7226 = vmatpush1.msra.mxu0 0.0
  %7227 = vmatprep.subr.mxu0 0.0
  %7228 = vmatpush1.msra.mxu0 0.0
  %7229 = vmatprep.subr.mxu0 0.0
  %7230 = vmatpush1.msra.mxu0 0.0
  %7231 = vmatprep.subr.mxu0 0.0
  %7232 = vmatpush1.msra.mxu0 0.0
  %7233 = vmatprep.subr.mxu0 0.0
  %7234 = vmatpush1.msra.mxu0 0.0
  %7235 = vmatprep.subr.mxu0 0.0
  %7236 = vmatpush1.msra.mxu0 0.0
  %7237 = vmatprep.subr.mxu0 0.0
  %7238 = vmatpush1.msra.mxu0 0.0
  %7239 = vmatprep.subr.mxu0 0.0
  %7240 = vmatpush1.msra.mxu0 0.0
  %7241 = vmatprep.subr.mxu0 0.0
  %7242 = vmatpush1.msra.mxu0 0.0
  %7243 = vmatprep.subr.mxu0 0.0
  %7244 = vmatpush1.msra.mxu0 0.0
  %7245 = vmatprep.subr.mxu0 0.0
  %7246 = vmatpush1.msra.mxu0 0.0
  %7247 = vmatprep.subr.mxu0 0.0
  %7248 = vmatpush1.msra.mxu0 0.0
  %7249 = vmatprep.subr.mxu0 0.0
  %7250 = vmatpush1.msra.mxu0 0.0
  %7251 = vmatprep.subr.mxu0 0.0
  %7252 = vmatpush1.msra.mxu0 0.0
  %7253 = vmatprep.subr.mxu0 0.0
  %7254 = vmatpush1.msra.mxu0 0.0
  %7255 = vmatprep.subr.mxu0 0.0
  %7256 = vmatpush1.msra.mxu0 0.0
  %7257 = vmatprep.subr.mxu0 0.0
  %7258 = vmatpush1.msra.mxu0 0.0
  %7259 = vmatprep.subr.mxu0 0.0
  %7260 = vmatpush1.msra.mxu0 0.0
  %7261 = vmatprep.subr.mxu0 0.0
  %7262 = vmatpush1.msra.mxu0 0.0
  %7263 = vmatprep.subr.mxu0 0.0
  %7264 = vmatpush1.msra.mxu0 0.0
  %7265 = vmatprep.subr.mxu0 0.0
  %7266 = vmatpush1.msra.mxu0 0.0
  %7267 = vmatprep.subr.mxu0 0.0
  %7268 = vmatpush1.msra.mxu0 0.0
  %7269 = vmatprep.subr.mxu0 0.0
  %7270 = vmatpush1.msra.mxu0 0.0
  %7271 = vmatprep.subr.mxu0 0.0
  %7272 = vmatpush1.msra.mxu0 0.0
  %7273 = vmatprep.subr.mxu0 0.0
  %7274 = vmatpush1.msra.mxu0 0.0
  %7275 = vmatprep.subr.mxu0 0.0
  %7276 = vmatpush1.msra.mxu0 0.0
  %7277 = vmatprep.subr.mxu0 0.0
  %7278 = vmatpush1.msra.mxu0 0.0
  %7279 = vmatprep.subr.mxu0 0.0
  %7280 = vmatpush1.msra.mxu0 0.0
  %7281 = vmatprep.mubr.f32.mxu0 0.0
  %v7282 = vand.u32 %v6876, 4294901760
  %7283 = vmatmul.mubr.f32.gmra.mrb[0].mxu0 %v7282
  %v7284 = vpop.f32.mrb[0].mxu0
  %v7285 = vadd.f32 %v7202, %v7284
  %v7286 = vpop.f32.mrb[0].mxu0
  %7287 = vdwg.mxu0
  %7288 = vmatprep.subr.mxu0 0.0
  %v7289 = vand.u32 %v5818, 4294901760
  %7290 = vmatpush1.msra.mxu0 %v7289
  %7291 = vmatprep.subr.mxu0 0.0
  %v7292 = vand.u32 %v5819, 4294901760
  %7293 = vmatpush1.msra.mxu0 %v7292
  %7294 = vmatprep.subr.mxu0 0.0
  %v7295 = vand.u32 %v5820, 4294901760
  %7296 = vmatpush1.msra.mxu0 %v7295
  %7297 = vmatprep.subr.mxu0 0.0
  %v7298 = vand.u32 %v5821, 4294901760
  %7299 = vmatpush1.msra.mxu0 %v7298
  %7300 = vmatprep.subr.mxu0 0.0
  %7301 = vmatpush1.msra.mxu0 0.0
  %7302 = vmatprep.subr.mxu0 0.0
  %7303 = vmatpush1.msra.mxu0 0.0
  %7304 = vmatprep.subr.mxu0 0.0
  %7305 = vmatpush1.msra.mxu0 0.0
  %7306 = vmatprep.subr.mxu0 0.0
  %7307 = vmatpush1.msra.mxu0 0.0
  %7308 = vmatprep.subr.mxu0 0.0
  %7309 = vmatpush1.msra.mxu0 0.0
  %7310 = vmatprep.subr.mxu0 0.0
  %7311 = vmatpush1.msra.mxu0 0.0
  %7312 = vmatprep.subr.mxu0 0.0
  %7313 = vmatpush1.msra.mxu0 0.0
  %7314 = vmatprep.subr.mxu0 0.0
  %7315 = vmatpush1.msra.mxu0 0.0
  %7316 = vmatprep.subr.mxu0 0.0
  %7317 = vmatpush1.msra.mxu0 0.0
  %7318 = vmatprep.subr.mxu0 0.0
  %7319 = vmatpush1.msra.mxu0 0.0
  %7320 = vmatprep.subr.mxu0 0.0
  %7321 = vmatpush1.msra.mxu0 0.0
  %7322 = vmatprep.subr.mxu0 0.0
  %7323 = vmatpush1.msra.mxu0 0.0
  %7324 = vmatprep.subr.mxu0 0.0
  %7325 = vmatpush1.msra.mxu0 0.0
  %7326 = vmatprep.subr.mxu0 0.0
  %7327 = vmatpush1.msra.mxu0 0.0
  %7328 = vmatprep.subr.mxu0 0.0
  %7329 = vmatpush1.msra.mxu0 0.0
  %7330 = vmatprep.subr.mxu0 0.0
  %7331 = vmatpush1.msra.mxu0 0.0
  %7332 = vmatprep.subr.mxu0 0.0
  %7333 = vmatpush1.msra.mxu0 0.0
  %7334 = vmatprep.subr.mxu0 0.0
  %7335 = vmatpush1.msra.mxu0 0.0
  %7336 = vmatprep.subr.mxu0 0.0
  %7337 = vmatpush1.msra.mxu0 0.0
  %7338 = vmatprep.subr.mxu0 0.0
  %7339 = vmatpush1.msra.mxu0 0.0
  %7340 = vmatprep.subr.mxu0 0.0
  %7341 = vmatpush1.msra.mxu0 0.0
  %7342 = vmatprep.subr.mxu0 0.0
  %7343 = vmatpush1.msra.mxu0 0.0
  %7344 = vmatprep.subr.mxu0 0.0
  %7345 = vmatpush1.msra.mxu0 0.0
  %7346 = vmatprep.subr.mxu0 0.0
  %7347 = vmatpush1.msra.mxu0 0.0
  %7348 = vmatprep.subr.mxu0 0.0
  %7349 = vmatpush1.msra.mxu0 0.0
  %7350 = vmatprep.subr.mxu0 0.0
  %7351 = vmatpush1.msra.mxu0 0.0
  %7352 = vmatprep.subr.mxu0 0.0
  %7353 = vmatpush1.msra.mxu0 0.0
  %7354 = vmatprep.subr.mxu0 0.0
  %7355 = vmatpush1.msra.mxu0 0.0
  %7356 = vmatprep.mubr.f32.mxu0 0.0
  %v7357 = vand.u32 %v6876, 4294901760
  %7358 = vmatmul.mubr.f32.gmra.mrb[0].mxu0 %v7357
  %v7359 = vpop.f32.mrb[0].mxu0
  %v7360 = vadd.f32 %v7285, %v7359
  %v7361 = vpop.f32.mrb[0].mxu0
  %7362 = vdwg.mxu0
  %v7363 = vadd.f32 %v6875, %v7360
  %v7364 = vxor.u32 %v7363, 2147483648
  %v7365 = vmul.f32 %v7364, 1.442695
  %v7366 = vpow.pop %v7365
  %v7367 = vadd.f32 %v7366, 1.0
  %v7368 = vrcp.pop %v7367
  %v7369 = vmul.f32 1.0, %v7368
  %v7370 = vtanh.pop %v7363
  %v7371 = vmul.f32 %v7369, %v6857
  %7373 = vrot.lane.b32.xlu0 %v7370, 64
  %v7374 = vpop.permute.xlu0 %7373
  %v7376 = vmul.f32 %v7369, %v7374
  %7378 = vrot.lane.b32.xlu0 %v7376, 32
  %v7379 = vpop.permute.xlu0 %7378
  %v7381 = vadd.f32 %v7371, %v7379
  %v7382 = vtanh.pop %v7381
  %7384 = vrot.lane.b32.xlu0 %v7382, 64
  %v7385 = vpop.permute.xlu0 %7384
  %v7387 = vmul.f32 %v7369, %v7385
  %7389 = vrot.lane.b32.xlu0 %v7387, 32
  %v7390 = vpop.permute.xlu0 %7389
  %7392 = vst.msk [vmem:[#allocation5 + $0x2] sm:$0x1] %vm1084, %v7390
  %7393 = vst.msk [vmem:[#allocation5 + $0x9] sm:$0x2] %vm1086, %v7390
  %v7394 = vld [vmem:[#allocation4 + $0x3] sm:$0x1]
  %v7395 = vld [vmem:[#allocation4 + $0xb] sm:$0x1]
  %v7397 = vrot.slane %v7395, 7
  %v7399 = vsel %vm564, %v7394, %v7397
  %v7400 = vsel %vm566, %v7390, 0
  %7402 = vmatprep.subr.mxu0 0.0
  %v7403 = vand.u32 %v5818, 4294901760
  %7404 = vmatpush1.msra.mxu0 %v7403
  %7405 = vmatprep.subr.mxu0 0.0
  %v7406 = vand.u32 %v5819, 4294901760
  %7407 = vmatpush1.msra.mxu0 %v7406
  %7408 = vmatprep.subr.mxu0 0.0
  %v7409 = vand.u32 %v5820, 4294901760
  %7410 = vmatpush1.msra.mxu0 %v7409
  %7411 = vmatprep.subr.mxu0 0.0
  %v7412 = vand.u32 %v5821, 4294901760
  %7413 = vmatpush1.msra.mxu0 %v7412
  %7414 = vmatprep.subr.mxu0 0.0
  %7415 = vmatpush1.msra.mxu0 0.0
  %7416 = vmatprep.subr.mxu0 0.0
  %7417 = vmatpush1.msra.mxu0 0.0
  %7418 = vmatprep.subr.mxu0 0.0
  %7419 = vmatpush1.msra.mxu0 0.0
  %7420 = vmatprep.subr.mxu0 0.0
  %7421 = vmatpush1.msra.mxu0 0.0
  %7422 = vmatprep.subr.mxu0 0.0
  %7423 = vmatpush1.msra.mxu0 0.0
  %7424 = vmatprep.subr.mxu0 0.0
  %7425 = vmatpush1.msra.mxu0 0.0
  %7426 = vmatprep.subr.mxu0 0.0
  %7427 = vmatpush1.msra.mxu0 0.0
  %7428 = vmatprep.subr.mxu0 0.0
  %7429 = vmatpush1.msra.mxu0 0.0
  %7430 = vmatprep.subr.mxu0 0.0
  %7431 = vmatpush1.msra.mxu0 0.0
  %7432 = vmatprep.subr.mxu0 0.0
  %7433 = vmatpush1.msra.mxu0 0.0
  %7434 = vmatprep.subr.mxu0 0.0
  %7435 = vmatpush1.msra.mxu0 0.0
  %7436 = vmatprep.subr.mxu0 0.0
  %7437 = vmatpush1.msra.mxu0 0.0
  %7438 = vmatprep.subr.mxu0 0.0
  %7439 = vmatpush1.msra.mxu0 0.0
  %7440 = vmatprep.subr.mxu0 0.0
  %7441 = vmatpush1.msra.mxu0 0.0
  %7442 = vmatprep.subr.mxu0 0.0
  %7443 = vmatpush1.msra.mxu0 0.0
  %7444 = vmatprep.subr.mxu0 0.0
  %7445 = vmatpush1.msra.mxu0 0.0
  %7446 = vmatprep.subr.mxu0 0.0
  %7447 = vmatpush1.msra.mxu0 0.0
  %7448 = vmatprep.subr.mxu0 0.0
  %7449 = vmatpush1.msra.mxu0 0.0
  %7450 = vmatprep.subr.mxu0 0.0
  %7451 = vmatpush1.msra.mxu0 0.0
  %7452 = vmatprep.subr.mxu0 0.0
  %7453 = vmatpush1.msra.mxu0 0.0
  %7454 = vmatprep.subr.mxu0 0.0
  %7455 = vmatpush1.msra.mxu0 0.0
  %7456 = vmatprep.subr.mxu0 0.0
  %7457 = vmatpush1.msra.mxu0 0.0
  %7458 = vmatprep.subr.mxu0 0.0
  %7459 = vmatpush1.msra.mxu0 0.0
  %7460 = vmatprep.subr.mxu0 0.0
  %7461 = vmatpush1.msra.mxu0 0.0
  %7462 = vmatprep.subr.mxu0 0.0
  %7463 = vmatpush1.msra.mxu0 0.0
  %7464 = vmatprep.subr.mxu0 0.0
  %7465 = vmatpush1.msra.mxu0 0.0
  %7466 = vmatprep.subr.mxu0 0.0
  %7467 = vmatpush1.msra.mxu0 0.0
  %7468 = vmatprep.subr.mxu0 0.0
  %7469 = vmatpush1.msra.mxu0 0.0
  %7470 = vmatprep.mubr.f32.mxu0 0.0
  %v7471 = vand.u32 %v7400, 4294901760
  %v7472 = vsub.f32 %v7400, %v7471
  %v7473 = vand.u32 %v7472, 4294901760
  %v7474 = vsub.f32 %v7472, %v7473
  %v7475 = vand.u32 %v7474, 4294901760
  %7476 = vmatmul.mubr.f32.gmra.mrb[0].mxu0 %v7475
  %v7477 = vpop.f32.mrb[0].mxu0
  %v7478 = vadd.f32 0.0, %v7477
  %v7479 = vpop.f32.mrb[0].mxu0
  %7480 = vdwg.mxu0
  %7481 = vmatprep.subr.mxu0 0.0
  %v7482 = vand.u32 %v5818, 4294901760
  %v7483 = vsub.f32 %v5818, %v7482
  %v7484 = vand.u32 %v7483, 4294901760
  %v7485 = vsub.f32 %v7483, %v7484
  %v7486 = vand.u32 %v7485, 4294901760
  %7487 = vmatpush1.msra.mxu0 %v7486
  %7488 = vmatprep.subr.mxu0 0.0
  %v7489 = vand.u32 %v5819, 4294901760
  %v7490 = vsub.f32 %v5819, %v7489
  %v7491 = vand.u32 %v7490, 4294901760
  %v7492 = vsub.f32 %v7490, %v7491
  %v7493 = vand.u32 %v7492, 4294901760
  %7494 = vmatpush1.msra.mxu0 %v7493
  %7495 = vmatprep.subr.mxu0 0.0
  %v7496 = vand.u32 %v5820, 4294901760
  %v7497 = vsub.f32 %v5820, %v7496
  %v7498 = vand.u32 %v7497, 4294901760
  %v7499 = vsub.f32 %v7497, %v7498
  %v7500 = vand.u32 %v7499, 4294901760
  %7501 = vmatpush1.msra.mxu0 %v7500
  %7502 = vmatprep.subr.mxu0 0.0
  %v7503 = vand.u32 %v5821, 4294901760
  %v7504 = vsub.f32 %v5821, %v7503
  %v7505 = vand.u32 %v7504, 4294901760
  %v7506 = vsub.f32 %v7504, %v7505
  %v7507 = vand.u32 %v7506, 4294901760
  %7508 = vmatpush1.msra.mxu0 %v7507
  %7509 = vmatprep.subr.mxu0 0.0
  %7510 = vmatpush1.msra.mxu0 0.0
  %7511 = vmatprep.subr.mxu0 0.0
  %7512 = vmatpush1.msra.mxu0 0.0
  %7513 = vmatprep.subr.mxu0 0.0
  %7514 = vmatpush1.msra.mxu0 0.0
  %7515 = vmatprep.subr.mxu0 0.0
  %7516 = vmatpush1.msra.mxu0 0.0
  %7517 = vmatprep.subr.mxu0 0.0
  %7518 = vmatpush1.msra.mxu0 0.0
  %7519 = vmatprep.subr.mxu0 0.0
  %7520 = vmatpush1.msra.mxu0 0.0
  %7521 = vmatprep.subr.mxu0 0.0
  %7522 = vmatpush1.msra.mxu0 0.0
  %7523 = vmatprep.subr.mxu0 0.0
  %7524 = vmatpush1.msra.mxu0 0.0
  %7525 = vmatprep.subr.mxu0 0.0
  %7526 = vmatpush1.msra.mxu0 0.0
  %7527 = vmatprep.subr.mxu0 0.0
  %7528 = vmatpush1.msra.mxu0 0.0
  %7529 = vmatprep.subr.mxu0 0.0
  %7530 = vmatpush1.msra.mxu0 0.0
  %7531 = vmatprep.subr.mxu0 0.0
  %7532 = vmatpush1.msra.mxu0 0.0
  %7533 = vmatprep.subr.mxu0 0.0
  %7534 = vmatpush1.msra.mxu0 0.0
  %7535 = vmatprep.subr.mxu0 0.0
  %7536 = vmatpush1.msra.mxu0 0.0
  %7537 = vmatprep.subr.mxu0 0.0
  %7538 = vmatpush1.msra.mxu0 0.0
  %7539 = vmatprep.subr.mxu0 0.0
  %7540 = vmatpush1.msra.mxu0 0.0
  %7541 = vmatprep.subr.mxu0 0.0
  %7542 = vmatpush1.msra.mxu0 0.0
  %7543 = vmatprep.subr.mxu0 0.0
  %7544 = vmatpush1.msra.mxu0 0.0
  %7545 = vmatprep.subr.mxu0 0.0
  %7546 = vmatpush1.msra.mxu0 0.0
  %7547 = vmatprep.subr.mxu0 0.0
  %7548 = vmatpush1.msra.mxu0 0.0
  %7549 = vmatprep.subr.mxu0 0.0
  %7550 = vmatpush1.msra.mxu0 0.0
  %7551 = vmatprep.subr.mxu0 0.0
  %7552 = vmatpush1.msra.mxu0 0.0
  %7553 = vmatprep.subr.mxu0 0.0
  %7554 = vmatpush1.msra.mxu0 0.0
  %7555 = vmatprep.subr.mxu0 0.0
  %7556 = vmatpush1.msra.mxu0 0.0
  %7557 = vmatprep.subr.mxu0 0.0
  %7558 = vmatpush1.msra.mxu0 0.0
  %7559 = vmatprep.subr.mxu0 0.0
  %7560 = vmatpush1.msra.mxu0 0.0
  %7561 = vmatprep.subr.mxu0 0.0
  %7562 = vmatpush1.msra.mxu0 0.0
  %7563 = vmatprep.subr.mxu0 0.0
  %7564 = vmatpush1.msra.mxu0 0.0
  %7565 = vmatprep.mubr.f32.mxu0 0.0
  %v7566 = vand.u32 %v7400, 4294901760
  %7567 = vmatmul.mubr.f32.gmra.mrb[0].mxu0 %v7566
  %v7568 = vpop.f32.mrb[0].mxu0
  %v7569 = vadd.f32 %v7478, %v7568
  %v7570 = vpop.f32.mrb[0].mxu0
  %7571 = vdwg.mxu0
  %7572 = vmatprep.subr.mxu0 0.0
  %v7573 = vand.u32 %v5818, 4294901760
  %v7574 = vsub.f32 %v5818, %v7573
  %7575 = vmatpush1.msra.mxu0 %v7574
  %7576 = vmatprep.subr.mxu0 0.0
  %v7577 = vand.u32 %v5819, 4294901760
  %v7578 = vsub.f32 %v5819, %v7577
  %7579 = vmatpush1.msra.mxu0 %v7578
  %7580 = vmatprep.subr.mxu0 0.0
  %v7581 = vand.u32 %v5820, 4294901760
  %v7582 = vsub.f32 %v5820, %v7581
  %7583 = vmatpush1.msra.mxu0 %v7582
  %7584 = vmatprep.subr.mxu0 0.0
  %v7585 = vand.u32 %v5821, 4294901760
  %v7586 = vsub.f32 %v5821, %v7585
  %7587 = vmatpush1.msra.mxu0 %v7586
  %7588 = vmatprep.subr.mxu0 0.0
  %7589 = vmatpush1.msra.mxu0 0.0
  %7590 = vmatprep.subr.mxu0 0.0
  %7591 = vmatpush1.msra.mxu0 0.0
  %7592 = vmatprep.subr.mxu0 0.0
  %7593 = vmatpush1.msra.mxu0 0.0
  %7594 = vmatprep.subr.mxu0 0.0
  %7595 = vmatpush1.msra.mxu0 0.0
  %7596 = vmatprep.subr.mxu0 0.0
  %7597 = vmatpush1.msra.mxu0 0.0
  %7598 = vmatprep.subr.mxu0 0.0
  %7599 = vmatpush1.msra.mxu0 0.0
  %7600 = vmatprep.subr.mxu0 0.0
  %7601 = vmatpush1.msra.mxu0 0.0
  %7602 = vmatprep.subr.mxu0 0.0
  %7603 = vmatpush1.msra.mxu0 0.0
  %7604 = vmatprep.subr.mxu0 0.0
  %7605 = vmatpush1.msra.mxu0 0.0
  %7606 = vmatprep.subr.mxu0 0.0
  %7607 = vmatpush1.msra.mxu0 0.0
  %7608 = vmatprep.subr.mxu0 0.0
  %7609 = vmatpush1.msra.mxu0 0.0
  %7610 = vmatprep.subr.mxu0 0.0
  %7611 = vmatpush1.msra.mxu0 0.0
  %7612 = vmatprep.subr.mxu0 0.0
  %7613 = vmatpush1.msra.mxu0 0.0
  %7614 = vmatprep.subr.mxu0 0.0
  %7615 = vmatpush1.msra.mxu0 0.0
  %7616 = vmatprep.subr.mxu0 0.0
  %7617 = vmatpush1.msra.mxu0 0.0
  %7618 = vmatprep.subr.mxu0 0.0
  %7619 = vmatpush1.msra.mxu0 0.0
  %7620 = vmatprep.subr.mxu0 0.0
  %7621 = vmatpush1.msra.mxu0 0.0
  %7622 = vmatprep.subr.mxu0 0.0
  %7623 = vmatpush1.msra.mxu0 0.0
  %7624 = vmatprep.subr.mxu0 0.0
  %7625 = vmatpush1.msra.mxu0 0.0
  %7626 = vmatprep.subr.mxu0 0.0
  %7627 = vmatpush1.msra.mxu0 0.0
  %7628 = vmatprep.subr.mxu0 0.0
  %7629 = vmatpush1.msra.mxu0 0.0
  %7630 = vmatprep.subr.mxu0 0.0
  %7631 = vmatpush1.msra.mxu0 0.0
  %7632 = vmatprep.subr.mxu0 0.0
  %7633 = vmatpush1.msra.mxu0 0.0
  %7634 = vmatprep.subr.mxu0 0.0
  %7635 = vmatpush1.msra.mxu0 0.0
  %7636 = vmatprep.subr.mxu0 0.0
  %7637 = vmatpush1.msra.mxu0 0.0
  %7638 = vmatprep.subr.mxu0 0.0
  %7639 = vmatpush1.msra.mxu0 0.0
  %7640 = vmatprep.subr.mxu0 0.0
  %7641 = vmatpush1.msra.mxu0 0.0
  %7642 = vmatprep.subr.mxu0 0.0
  %7643 = vmatpush1.msra.mxu0 0.0
  %7644 = vmatprep.mubr.f32.mxu0 0.0
  %v7645 = vand.u32 %v7400, 4294901760
  %v7646 = vsub.f32 %v7400, %v7645
  %7647 = vmatmul.mubr.f32.gmra.mrb[0].mxu0 %v7646
  %v7648 = vpop.f32.mrb[0].mxu0
  %v7649 = vadd.f32 %v7569, %v7648
  %v7650 = vpop.f32.mrb[0].mxu0
  %7651 = vdwg.mxu0
  %7652 = vmatprep.subr.mxu0 0.0
  %v7653 = vand.u32 %v5818, 4294901760
  %7654 = vmatpush1.msra.mxu0 %v7653
  %7655 = vmatprep.subr.mxu0 0.0
  %v7656 = vand.u32 %v5819, 4294901760
  %7657 = vmatpush1.msra.mxu0 %v7656
  %7658 = vmatprep.subr.mxu0 0.0
  %v7659 = vand.u32 %v5820, 4294901760
  %7660 = vmatpush1.msra.mxu0 %v7659
  %7661 = vmatprep.subr.mxu0 0.0
  %v7662 = vand.u32 %v5821, 4294901760
  %7663 = vmatpush1.msra.mxu0 %v7662
  %7664 = vmatprep.subr.mxu0 0.0
  %7665 = vmatpush1.msra.mxu0 0.0
  %7666 = vmatprep.subr.mxu0 0.0
  %7667 = vmatpush1.msra.mxu0 0.0
  %7668 = vmatprep.subr.mxu0 0.0
  %7669 = vmatpush1.msra.mxu0 0.0
  %7670 = vmatprep.subr.mxu0 0.0
  %7671 = vmatpush1.msra.mxu0 0.0
  %7672 = vmatprep.subr.mxu0 0.0
  %7673 = vmatpush1.msra.mxu0 0.0
  %7674 = vmatprep.subr.mxu0 0.0
  %7675 = vmatpush1.msra.mxu0 0.0
  %7676 = vmatprep.subr.mxu0 0.0
  %7677 = vmatpush1.msra.mxu0 0.0
  %7678 = vmatprep.subr.mxu0 0.0
  %7679 = vmatpush1.msra.mxu0 0.0
  %7680 = vmatprep.subr.mxu0 0.0
  %7681 = vmatpush1.msra.mxu0 0.0
  %7682 = vmatprep.subr.mxu0 0.0
  %7683 = vmatpush1.msra.mxu0 0.0
  %7684 = vmatprep.subr.mxu0 0.0
  %7685 = vmatpush1.msra.mxu0 0.0
  %7686 = vmatprep.subr.mxu0 0.0
  %7687 = vmatpush1.msra.mxu0 0.0
  %7688 = vmatprep.subr.mxu0 0.0
  %7689 = vmatpush1.msra.mxu0 0.0
  %7690 = vmatprep.subr.mxu0 0.0
  %7691 = vmatpush1.msra.mxu0 0.0
  %7692 = vmatprep.subr.mxu0 0.0
  %7693 = vmatpush1.msra.mxu0 0.0
  %7694 = vmatprep.subr.mxu0 0.0
  %7695 = vmatpush1.msra.mxu0 0.0
  %7696 = vmatprep.subr.mxu0 0.0
  %7697 = vmatpush1.msra.mxu0 0.0
  %7698 = vmatprep.subr.mxu0 0.0
  %7699 = vmatpush1.msra.mxu0 0.0
  %7700 = vmatprep.subr.mxu0 0.0
  %7701 = vmatpush1.msra.mxu0 0.0
  %7702 = vmatprep.subr.mxu0 0.0
  %7703 = vmatpush1.msra.mxu0 0.0
  %7704 = vmatprep.subr.mxu0 0.0
  %7705 = vmatpush1.msra.mxu0 0.0
  %7706 = vmatprep.subr.mxu0 0.0
  %7707 = vmatpush1.msra.mxu0 0.0
  %7708 = vmatprep.subr.mxu0 0.0
  %7709 = vmatpush1.msra.mxu0 0.0
  %7710 = vmatprep.subr.mxu0 0.0
  %7711 = vmatpush1.msra.mxu0 0.0
  %7712 = vmatprep.subr.mxu0 0.0
  %7713 = vmatpush1.msra.mxu0 0.0
  %7714 = vmatprep.subr.mxu0 0.0
  %7715 = vmatpush1.msra.mxu0 0.0
  %7716 = vmatprep.subr.mxu0 0.0
  %7717 = vmatpush1.msra.mxu0 0.0
  %7718 = vmatprep.subr.mxu0 0.0
  %7719 = vmatpush1.msra.mxu0 0.0
  %7720 = vmatprep.mubr.f32.mxu0 0.0
  %v7721 = vand.u32 %v7400, 4294901760
  %v7722 = vsub.f32 %v7400, %v7721
  %v7723 = vand.u32 %v7722, 4294901760
  %7724 = vmatmul.mubr.f32.gmra.mrb[0].mxu0 %v7723
  %v7725 = vpop.f32.mrb[0].mxu0
  %v7726 = vadd.f32 %v7649, %v7725
  %v7727 = vpop.f32.mrb[0].mxu0
  %7728 = vdwg.mxu0
  %7729 = vmatprep.subr.mxu0 0.0
  %v7730 = vand.u32 %v5818, 4294901760
  %v7731 = vsub.f32 %v5818, %v7730
  %v7732 = vand.u32 %v7731, 4294901760
  %7733 = vmatpush1.msra.mxu0 %v7732
  %7734 = vmatprep.subr.mxu0 0.0
  %v7735 = vand.u32 %v5819, 4294901760
  %v7736 = vsub.f32 %v5819, %v7735
  %v7737 = vand.u32 %v7736, 4294901760
  %7738 = vmatpush1.msra.mxu0 %v7737
  %7739 = vmatprep.subr.mxu0 0.0
  %v7740 = vand.u32 %v5820, 4294901760
  %v7741 = vsub.f32 %v5820, %v7740
  %v7742 = vand.u32 %v7741, 4294901760
  %7743 = vmatpush1.msra.mxu0 %v7742
  %7744 = vmatprep.subr.mxu0 0.0
  %v7745 = vand.u32 %v5821, 4294901760
  %v7746 = vsub.f32 %v5821, %v7745
  %v7747 = vand.u32 %v7746, 4294901760
  %7748 = vmatpush1.msra.mxu0 %v7747
  %7749 = vmatprep.subr.mxu0 0.0
  %7750 = vmatpush1.msra.mxu0 0.0
  %7751 = vmatprep.subr.mxu0 0.0
  %7752 = vmatpush1.msra.mxu0 0.0
  %7753 = vmatprep.subr.mxu0 0.0
  %7754 = vmatpush1.msra.mxu0 0.0
  %7755 = vmatprep.subr.mxu0 0.0
  %7756 = vmatpush1.msra.mxu0 0.0
  %7757 = vmatprep.subr.mxu0 0.0
  %7758 = vmatpush1.msra.mxu0 0.0
  %7759 = vmatprep.subr.mxu0 0.0
  %7760 = vmatpush1.msra.mxu0 0.0
  %7761 = vmatprep.subr.mxu0 0.0
  %7762 = vmatpush1.msra.mxu0 0.0
  %7763 = vmatprep.subr.mxu0 0.0
  %7764 = vmatpush1.msra.mxu0 0.0
  %7765 = vmatprep.subr.mxu0 0.0
  %7766 = vmatpush1.msra.mxu0 0.0
  %7767 = vmatprep.subr.mxu0 0.0
  %7768 = vmatpush1.msra.mxu0 0.0
  %7769 = vmatprep.subr.mxu0 0.0
  %7770 = vmatpush1.msra.mxu0 0.0
  %7771 = vmatprep.subr.mxu0 0.0
  %7772 = vmatpush1.msra.mxu0 0.0
  %7773 = vmatprep.subr.mxu0 0.0
  %7774 = vmatpush1.msra.mxu0 0.0
  %7775 = vmatprep.subr.mxu0 0.0
  %7776 = vmatpush1.msra.mxu0 0.0
  %7777 = vmatprep.subr.mxu0 0.0
  %7778 = vmatpush1.msra.mxu0 0.0
  %7779 = vmatprep.subr.mxu0 0.0
  %7780 = vmatpush1.msra.mxu0 0.0
  %7781 = vmatprep.subr.mxu0 0.0
  %7782 = vmatpush1.msra.mxu0 0.0
  %7783 = vmatprep.subr.mxu0 0.0
  %7784 = vmatpush1.msra.mxu0 0.0
  %7785 = vmatprep.subr.mxu0 0.0
  %7786 = vmatpush1.msra.mxu0 0.0
  %7787 = vmatprep.subr.mxu0 0.0
  %7788 = vmatpush1.msra.mxu0 0.0
  %7789 = vmatprep.subr.mxu0 0.0
  %7790 = vmatpush1.msra.mxu0 0.0
  %7791 = vmatprep.subr.mxu0 0.0
  %7792 = vmatpush1.msra.mxu0 0.0
  %7793 = vmatprep.subr.mxu0 0.0
  %7794 = vmatpush1.msra.mxu0 0.0
  %7795 = vmatprep.subr.mxu0 0.0
  %7796 = vmatpush1.msra.mxu0 0.0
  %7797 = vmatprep.subr.mxu0 0.0
  %7798 = vmatpush1.msra.mxu0 0.0
  %7799 = vmatprep.subr.mxu0 0.0
  %7800 = vmatpush1.msra.mxu0 0.0
  %7801 = vmatprep.subr.mxu0 0.0
  %7802 = vmatpush1.msra.mxu0 0.0
  %7803 = vmatprep.subr.mxu0 0.0
  %7804 = vmatpush1.msra.mxu0 0.0
  %7805 = vmatprep.mubr.f32.mxu0 0.0
  %v7806 = vand.u32 %v7400, 4294901760
  %7807 = vmatmul.mubr.f32.gmra.mrb[0].mxu0 %v7806
  %v7808 = vpop.f32.mrb[0].mxu0
  %v7809 = vadd.f32 %v7726, %v7808
  %v7810 = vpop.f32.mrb[0].mxu0
  %7811 = vdwg.mxu0
  %7812 = vmatprep.subr.mxu0 0.0
  %v7813 = vand.u32 %v5818, 4294901760
  %7814 = vmatpush1.msra.mxu0 %v7813
  %7815 = vmatprep.subr.mxu0 0.0
  %v7816 = vand.u32 %v5819, 4294901760
  %7817 = vmatpush1.msra.mxu0 %v7816
  %7818 = vmatprep.subr.mxu0 0.0
  %v7819 = vand.u32 %v5820, 4294901760
  %7820 = vmatpush1.msra.mxu0 %v7819
  %7821 = vmatprep.subr.mxu0 0.0
  %v7822 = vand.u32 %v5821, 4294901760
  %7823 = vmatpush1.msra.mxu0 %v7822
  %7824 = vmatprep.subr.mxu0 0.0
  %7825 = vmatpush1.msra.mxu0 0.0
  %7826 = vmatprep.subr.mxu0 0.0
  %7827 = vmatpush1.msra.mxu0 0.0
  %7828 = vmatprep.subr.mxu0 0.0
  %7829 = vmatpush1.msra.mxu0 0.0
  %7830 = vmatprep.subr.mxu0 0.0
  %7831 = vmatpush1.msra.mxu0 0.0
  %7832 = vmatprep.subr.mxu0 0.0
  %7833 = vmatpush1.msra.mxu0 0.0
  %7834 = vmatprep.subr.mxu0 0.0
  %7835 = vmatpush1.msra.mxu0 0.0
  %7836 = vmatprep.subr.mxu0 0.0
  %7837 = vmatpush1.msra.mxu0 0.0
  %7838 = vmatprep.subr.mxu0 0.0
  %7839 = vmatpush1.msra.mxu0 0.0
  %7840 = vmatprep.subr.mxu0 0.0
  %7841 = vmatpush1.msra.mxu0 0.0
  %7842 = vmatprep.subr.mxu0 0.0
  %7843 = vmatpush1.msra.mxu0 0.0
  %7844 = vmatprep.subr.mxu0 0.0
  %7845 = vmatpush1.msra.mxu0 0.0
  %7846 = vmatprep.subr.mxu0 0.0
  %7847 = vmatpush1.msra.mxu0 0.0
  %7848 = vmatprep.subr.mxu0 0.0
  %7849 = vmatpush1.msra.mxu0 0.0
  %7850 = vmatprep.subr.mxu0 0.0
  %7851 = vmatpush1.msra.mxu0 0.0
  %7852 = vmatprep.subr.mxu0 0.0
  %7853 = vmatpush1.msra.mxu0 0.0
  %7854 = vmatprep.subr.mxu0 0.0
  %7855 = vmatpush1.msra.mxu0 0.0
  %7856 = vmatprep.subr.mxu0 0.0
  %7857 = vmatpush1.msra.mxu0 0.0
  %7858 = vmatprep.subr.mxu0 0.0
  %7859 = vmatpush1.msra.mxu0 0.0
  %7860 = vmatprep.subr.mxu0 0.0
  %7861 = vmatpush1.msra.mxu0 0.0
  %7862 = vmatprep.subr.mxu0 0.0
  %7863 = vmatpush1.msra.mxu0 0.0
  %7864 = vmatprep.subr.mxu0 0.0
  %7865 = vmatpush1.msra.mxu0 0.0
  %7866 = vmatprep.subr.mxu0 0.0
  %7867 = vmatpush1.msra.mxu0 0.0
  %7868 = vmatprep.subr.mxu0 0.0
  %7869 = vmatpush1.msra.mxu0 0.0
  %7870 = vmatprep.subr.mxu0 0.0
  %7871 = vmatpush1.msra.mxu0 0.0
  %7872 = vmatprep.subr.mxu0 0.0
  %7873 = vmatpush1.msra.mxu0 0.0
  %7874 = vmatprep.subr.mxu0 0.0
  %7875 = vmatpush1.msra.mxu0 0.0
  %7876 = vmatprep.subr.mxu0 0.0
  %7877 = vmatpush1.msra.mxu0 0.0
  %7878 = vmatprep.subr.mxu0 0.0
  %7879 = vmatpush1.msra.mxu0 0.0
  %7880 = vmatprep.mubr.f32.mxu0 0.0
  %v7881 = vand.u32 %v7400, 4294901760
  %7882 = vmatmul.mubr.f32.gmra.mrb[0].mxu0 %v7881
  %v7883 = vpop.f32.mrb[0].mxu0
  %v7884 = vadd.f32 %v7809, %v7883
  %v7885 = vpop.f32.mrb[0].mxu0
  %7886 = vdwg.mxu0
  %v7887 = vadd.f32 %v7399, %v7884
  %v7888 = vxor.u32 %v7887, 2147483648
  %v7889 = vmul.f32 %v7888, 1.442695
  %v7890 = vpow.pop %v7889
  %v7891 = vadd.f32 %v7890, 1.0
  %v7892 = vrcp.pop %v7891
  %v7893 = vmul.f32 1.0, %v7892
  %v7894 = vtanh.pop %v7887
  %v7895 = vmul.f32 %v7893, %v7381
  %7897 = vrot.lane.b32.xlu0 %v7894, 64
  %v7898 = vpop.permute.xlu0 %7897
  %v7900 = vmul.f32 %v7893, %v7898
  %7902 = vrot.lane.b32.xlu0 %v7900, 32
  %v7903 = vpop.permute.xlu0 %7902
  %v7905 = vadd.f32 %v7895, %v7903
  %v7906 = vtanh.pop %v7905
  %7908 = vrot.lane.b32.xlu0 %v7906, 64
  %v7909 = vpop.permute.xlu0 %7908
  %v7911 = vmul.f32 %v7893, %v7909
  %7913 = vrot.lane.b32.xlu0 %v7911, 32
  %v7914 = vpop.permute.xlu0 %7913
  %7916 = vst.msk [vmem:[#allocation5 + $0x3] sm:$0x1] %vm1084, %v7914
  %7917 = vst.msk [vmem:[#allocation5 + $0xa] sm:$0x2] %vm1086, %v7914
  %v7918 = vld [vmem:[#allocation4 + $0x4] sm:$0x1]
  %v7919 = vld [vmem:[#allocation4 + $0xc] sm:$0x1]
  %v7921 = vrot.slane %v7919, 7
  %v7923 = vsel %vm564, %v7918, %v7921
  %v7924 = vsel %vm566, %v7914, 0
  %7926 = vmatprep.subr.mxu0 0.0
  %v7927 = vand.u32 %v5818, 4294901760
  %7928 = vmatpush1.msra.mxu0 %v7927
  %7929 = vmatprep.subr.mxu0 0.0
  %v7930 = vand.u32 %v5819, 4294901760
  %7931 = vmatpush1.msra.mxu0 %v7930
  %7932 = vmatprep.subr.mxu0 0.0
  %v7933 = vand.u32 %v5820, 4294901760
  %7934 = vmatpush1.msra.mxu0 %v7933
  %7935 = vmatprep.subr.mxu0 0.0
  %v7936 = vand.u32 %v5821, 4294901760
  %7937 = vmatpush1.msra.mxu0 %v7936
  %7938 = vmatprep.subr.mxu0 0.0
  %7939 = vmatpush1.msra.mxu0 0.0
  %7940 = vmatprep.subr.mxu0 0.0
  %7941 = vmatpush1.msra.mxu0 0.0
  %7942 = vmatprep.subr.mxu0 0.0
  %7943 = vmatpush1.msra.mxu0 0.0
  %7944 = vmatprep.subr.mxu0 0.0
  %7945 = vmatpush1.msra.mxu0 0.0
  %7946 = vmatprep.subr.mxu0 0.0
  %7947 = vmatpush1.msra.mxu0 0.0
  %7948 = vmatprep.subr.mxu0 0.0
  %7949 = vmatpush1.msra.mxu0 0.0
  %7950 = vmatprep.subr.mxu0 0.0
  %7951 = vmatpush1.msra.mxu0 0.0
  %7952 = vmatprep.subr.mxu0 0.0
  %7953 = vmatpush1.msra.mxu0 0.0
  %7954 = vmatprep.subr.mxu0 0.0
  %7955 = vmatpush1.msra.mxu0 0.0
  %7956 = vmatprep.subr.mxu0 0.0
  %7957 = vmatpush1.msra.mxu0 0.0
  %7958 = vmatprep.subr.mxu0 0.0
  %7959 = vmatpush1.msra.mxu0 0.0
  %7960 = vmatprep.subr.mxu0 0.0
  %7961 = vmatpush1.msra.mxu0 0.0
  %7962 = vmatprep.subr.mxu0 0.0
  %7963 = vmatpush1.msra.mxu0 0.0
  %7964 = vmatprep.subr.mxu0 0.0
  %7965 = vmatpush1.msra.mxu0 0.0
  %7966 = vmatprep.subr.mxu0 0.0
  %7967 = vmatpush1.msra.mxu0 0.0
  %7968 = vmatprep.subr.mxu0 0.0
  %7969 = vmatpush1.msra.mxu0 0.0
  %7970 = vmatprep.subr.mxu0 0.0
  %7971 = vmatpush1.msra.mxu0 0.0
  %7972 = vmatprep.subr.mxu0 0.0
  %7973 = vmatpush1.msra.mxu0 0.0
  %7974 = vmatprep.subr.mxu0 0.0
  %7975 = vmatpush1.msra.mxu0 0.0
  %7976 = vmatprep.subr.mxu0 0.0
  %7977 = vmatpush1.msra.mxu0 0.0
  %7978 = vmatprep.subr.mxu0 0.0
  %7979 = vmatpush1.msra.mxu0 0.0
  %7980 = vmatprep.subr.mxu0 0.0
  %7981 = vmatpush1.msra.mxu0 0.0
  %7982 = vmatprep.subr.mxu0 0.0
  %7983 = vmatpush1.msra.mxu0 0.0
  %7984 = vmatprep.subr.mxu0 0.0
  %7985 = vmatpush1.msra.mxu0 0.0
  %7986 = vmatprep.subr.mxu0 0.0
  %7987 = vmatpush1.msra.mxu0 0.0
  %7988 = vmatprep.subr.mxu0 0.0
  %7989 = vmatpush1.msra.mxu0 0.0
  %7990 = vmatprep.subr.mxu0 0.0
  %7991 = vmatpush1.msra.mxu0 0.0
  %7992 = vmatprep.subr.mxu0 0.0
  %7993 = vmatpush1.msra.mxu0 0.0
  %7994 = vmatprep.mubr.f32.mxu0 0.0
  %v7995 = vand.u32 %v7924, 4294901760
  %v7996 = vsub.f32 %v7924, %v7995
  %v7997 = vand.u32 %v7996, 4294901760
  %v7998 = vsub.f32 %v7996, %v7997
  %v7999 = vand.u32 %v7998, 4294901760
  %8000 = vmatmul.mubr.f32.gmra.mrb[0].mxu0 %v7999
  %v8001 = vpop.f32.mrb[0].mxu0
  %v8002 = vadd.f32 0.0, %v8001
  %v8003 = vpop.f32.mrb[0].mxu0
  %8004 = vdwg.mxu0
  %8005 = vmatprep.subr.mxu0 0.0
  %v8006 = vand.u32 %v5818, 4294901760
  %v8007 = vsub.f32 %v5818, %v8006
  %v8008 = vand.u32 %v8007, 4294901760
  %v8009 = vsub.f32 %v8007, %v8008
  %v8010 = vand.u32 %v8009, 4294901760
  %8011 = vmatpush1.msra.mxu0 %v8010
  %8012 = vmatprep.subr.mxu0 0.0
  %v8013 = vand.u32 %v5819, 4294901760
  %v8014 = vsub.f32 %v5819, %v8013
  %v8015 = vand.u32 %v8014, 4294901760
  %v8016 = vsub.f32 %v8014, %v8015
  %v8017 = vand.u32 %v8016, 4294901760
  %8018 = vmatpush1.msra.mxu0 %v8017
  %8019 = vmatprep.subr.mxu0 0.0
  %v8020 = vand.u32 %v5820, 4294901760
  %v8021 = vsub.f32 %v5820, %v8020
  %v8022 = vand.u32 %v8021, 4294901760
  %v8023 = vsub.f32 %v8021, %v8022
  %v8024 = vand.u32 %v8023, 4294901760
  %8025 = vmatpush1.msra.mxu0 %v8024
  %8026 = vmatprep.subr.mxu0 0.0
  %v8027 = vand.u32 %v5821, 4294901760
  %v8028 = vsub.f32 %v5821, %v8027
  %v8029 = vand.u32 %v8028, 4294901760
  %v8030 = vsub.f32 %v8028, %v8029
  %v8031 = vand.u32 %v8030, 4294901760
  %8032 = vmatpush1.msra.mxu0 %v8031
  %8033 = vmatprep.subr.mxu0 0.0
  %8034 = vmatpush1.msra.mxu0 0.0
  %8035 = vmatprep.subr.mxu0 0.0
  %8036 = vmatpush1.msra.mxu0 0.0
  %8037 = vmatprep.subr.mxu0 0.0
  %8038 = vmatpush1.msra.mxu0 0.0
  %8039 = vmatprep.subr.mxu0 0.0
  %8040 = vmatpush1.msra.mxu0 0.0
  %8041 = vmatprep.subr.mxu0 0.0
  %8042 = vmatpush1.msra.mxu0 0.0
  %8043 = vmatprep.subr.mxu0 0.0
  %8044 = vmatpush1.msra.mxu0 0.0
  %8045 = vmatprep.subr.mxu0 0.0
  %8046 = vmatpush1.msra.mxu0 0.0
  %8047 = vmatprep.subr.mxu0 0.0
  %8048 = vmatpush1.msra.mxu0 0.0
  %8049 = vmatprep.subr.mxu0 0.0
  %8050 = vmatpush1.msra.mxu0 0.0
  %8051 = vmatprep.subr.mxu0 0.0
  %8052 = vmatpush1.msra.mxu0 0.0
  %8053 = vmatprep.subr.mxu0 0.0
  %8054 = vmatpush1.msra.mxu0 0.0
  %8055 = vmatprep.subr.mxu0 0.0
  %8056 = vmatpush1.msra.mxu0 0.0
  %8057 = vmatprep.subr.mxu0 0.0
  %8058 = vmatpush1.msra.mxu0 0.0
  %8059 = vmatprep.subr.mxu0 0.0
  %8060 = vmatpush1.msra.mxu0 0.0
  %8061 = vmatprep.subr.mxu0 0.0
  %8062 = vmatpush1.msra.mxu0 0.0
  %8063 = vmatprep.subr.mxu0 0.0
  %8064 = vmatpush1.msra.mxu0 0.0
  %8065 = vmatprep.subr.mxu0 0.0
  %8066 = vmatpush1.msra.mxu0 0.0
  %8067 = vmatprep.subr.mxu0 0.0
  %8068 = vmatpush1.msra.mxu0 0.0
  %8069 = vmatprep.subr.mxu0 0.0
  %8070 = vmatpush1.msra.mxu0 0.0
  %8071 = vmatprep.subr.mxu0 0.0
  %8072 = vmatpush1.msra.mxu0 0.0
  %8073 = vmatprep.subr.mxu0 0.0
  %8074 = vmatpush1.msra.mxu0 0.0
  %8075 = vmatprep.subr.mxu0 0.0
  %8076 = vmatpush1.msra.mxu0 0.0
  %8077 = vmatprep.subr.mxu0 0.0
  %8078 = vmatpush1.msra.mxu0 0.0
  %8079 = vmatprep.subr.mxu0 0.0
  %8080 = vmatpush1.msra.mxu0 0.0
  %8081 = vmatprep.subr.mxu0 0.0
  %8082 = vmatpush1.msra.mxu0 0.0
  %8083 = vmatprep.subr.mxu0 0.0
  %8084 = vmatpush1.msra.mxu0 0.0
  %8085 = vmatprep.subr.mxu0 0.0
  %8086 = vmatpush1.msra.mxu0 0.0
  %8087 = vmatprep.subr.mxu0 0.0
  %8088 = vmatpush1.msra.mxu0 0.0
  %8089 = vmatprep.mubr.f32.mxu0 0.0
  %v8090 = vand.u32 %v7924, 4294901760
  %8091 = vmatmul.mubr.f32.gmra.mrb[0].mxu0 %v8090
  %v8092 = vpop.f32.mrb[0].mxu0
  %v8093 = vadd.f32 %v8002, %v8092
  %v8094 = vpop.f32.mrb[0].mxu0
  %8095 = vdwg.mxu0
  %8096 = vmatprep.subr.mxu0 0.0
  %v8097 = vand.u32 %v5818, 4294901760
  %v8098 = vsub.f32 %v5818, %v8097
  %8099 = vmatpush1.msra.mxu0 %v8098
  %8100 = vmatprep.subr.mxu0 0.0
  %v8101 = vand.u32 %v5819, 4294901760
  %v8102 = vsub.f32 %v5819, %v8101
  %8103 = vmatpush1.msra.mxu0 %v8102
  %8104 = vmatprep.subr.mxu0 0.0
  %v8105 = vand.u32 %v5820, 4294901760
  %v8106 = vsub.f32 %v5820, %v8105
  %8107 = vmatpush1.msra.mxu0 %v8106
  %8108 = vmatprep.subr.mxu0 0.0
  %v8109 = vand.u32 %v5821, 4294901760
  %v8110 = vsub.f32 %v5821, %v8109
  %8111 = vmatpush1.msra.mxu0 %v8110
  %8112 = vmatprep.subr.mxu0 0.0
  %8113 = vmatpush1.msra.mxu0 0.0
  %8114 = vmatprep.subr.mxu0 0.0
  %8115 = vmatpush1.msra.mxu0 0.0
  %8116 = vmatprep.subr.mxu0 0.0
  %8117 = vmatpush1.msra.mxu0 0.0
  %8118 = vmatprep.subr.mxu0 0.0
  %8119 = vmatpush1.msra.mxu0 0.0
  %8120 = vmatprep.subr.mxu0 0.0
  %8121 = vmatpush1.msra.mxu0 0.0
  %8122 = vmatprep.subr.mxu0 0.0
  %8123 = vmatpush1.msra.mxu0 0.0
  %8124 = vmatprep.subr.mxu0 0.0
  %8125 = vmatpush1.msra.mxu0 0.0
  %8126 = vmatprep.subr.mxu0 0.0
  %8127 = vmatpush1.msra.mxu0 0.0
  %8128 = vmatprep.subr.mxu0 0.0
  %8129 = vmatpush1.msra.mxu0 0.0
  %8130 = vmatprep.subr.mxu0 0.0
  %8131 = vmatpush1.msra.mxu0 0.0
  %8132 = vmatprep.subr.mxu0 0.0
  %8133 = vmatpush1.msra.mxu0 0.0
  %8134 = vmatprep.subr.mxu0 0.0
  %8135 = vmatpush1.msra.mxu0 0.0
  %8136 = vmatprep.subr.mxu0 0.0
  %8137 = vmatpush1.msra.mxu0 0.0
  %8138 = vmatprep.subr.mxu0 0.0
  %8139 = vmatpush1.msra.mxu0 0.0
  %8140 = vmatprep.subr.mxu0 0.0
  %8141 = vmatpush1.msra.mxu0 0.0
  %8142 = vmatprep.subr.mxu0 0.0
  %8143 = vmatpush1.msra.mxu0 0.0
  %8144 = vmatprep.subr.mxu0 0.0
  %8145 = vmatpush1.msra.mxu0 0.0
  %8146 = vmatprep.subr.mxu0 0.0
  %8147 = vmatpush1.msra.mxu0 0.0
  %8148 = vmatprep.subr.mxu0 0.0
  %8149 = vmatpush1.msra.mxu0 0.0
  %8150 = vmatprep.subr.mxu0 0.0
  %8151 = vmatpush1.msra.mxu0 0.0
  %8152 = vmatprep.subr.mxu0 0.0
  %8153 = vmatpush1.msra.mxu0 0.0
  %8154 = vmatprep.subr.mxu0 0.0
  %8155 = vmatpush1.msra.mxu0 0.0
  %8156 = vmatprep.subr.mxu0 0.0
  %8157 = vmatpush1.msra.mxu0 0.0
  %8158 = vmatprep.subr.mxu0 0.0
  %8159 = vmatpush1.msra.mxu0 0.0
  %8160 = vmatprep.subr.mxu0 0.0
  %8161 = vmatpush1.msra.mxu0 0.0
  %8162 = vmatprep.subr.mxu0 0.0
  %8163 = vmatpush1.msra.mxu0 0.0
  %8164 = vmatprep.subr.mxu0 0.0
  %8165 = vmatpush1.msra.mxu0 0.0
  %8166 = vmatprep.subr.mxu0 0.0
  %8167 = vmatpush1.msra.mxu0 0.0
  %8168 = vmatprep.mubr.f32.mxu0 0.0
  %v8169 = vand.u32 %v7924, 4294901760
  %v8170 = vsub.f32 %v7924, %v8169
  %8171 = vmatmul.mubr.f32.gmra.mrb[0].mxu0 %v8170
  %v8172 = vpop.f32.mrb[0].mxu0
  %v8173 = vadd.f32 %v8093, %v8172
  %v8174 = vpop.f32.mrb[0].mxu0
  %8175 = vdwg.mxu0
  %8176 = vmatprep.subr.mxu0 0.0
  %v8177 = vand.u32 %v5818, 4294901760
  %8178 = vmatpush1.msra.mxu0 %v8177
  %8179 = vmatprep.subr.mxu0 0.0
  %v8180 = vand.u32 %v5819, 4294901760
  %8181 = vmatpush1.msra.mxu0 %v8180
  %8182 = vmatprep.subr.mxu0 0.0
  %v8183 = vand.u32 %v5820, 4294901760
  %8184 = vmatpush1.msra.mxu0 %v8183
  %8185 = vmatprep.subr.mxu0 0.0
  %v8186 = vand.u32 %v5821, 4294901760
  %8187 = vmatpush1.msra.mxu0 %v8186
  %8188 = vmatprep.subr.mxu0 0.0
  %8189 = vmatpush1.msra.mxu0 0.0
  %8190 = vmatprep.subr.mxu0 0.0
  %8191 = vmatpush1.msra.mxu0 0.0
  %8192 = vmatprep.subr.mxu0 0.0
  %8193 = vmatpush1.msra.mxu0 0.0
  %8194 = vmatprep.subr.mxu0 0.0
  %8195 = vmatpush1.msra.mxu0 0.0
  %8196 = vmatprep.subr.mxu0 0.0
  %8197 = vmatpush1.msra.mxu0 0.0
  %8198 = vmatprep.subr.mxu0 0.0
  %8199 = vmatpush1.msra.mxu0 0.0
  %8200 = vmatprep.subr.mxu0 0.0
  %8201 = vmatpush1.msra.mxu0 0.0
  %8202 = vmatprep.subr.mxu0 0.0
  %8203 = vmatpush1.msra.mxu0 0.0
  %8204 = vmatprep.subr.mxu0 0.0
  %8205 = vmatpush1.msra.mxu0 0.0
  %8206 = vmatprep.subr.mxu0 0.0
  %8207 = vmatpush1.msra.mxu0 0.0
  %8208 = vmatprep.subr.mxu0 0.0
  %8209 = vmatpush1.msra.mxu0 0.0
  %8210 = vmatprep.subr.mxu0 0.0
  %8211 = vmatpush1.msra.mxu0 0.0
  %8212 = vmatprep.subr.mxu0 0.0
  %8213 = vmatpush1.msra.mxu0 0.0
  %8214 = vmatprep.subr.mxu0 0.0
  %8215 = vmatpush1.msra.mxu0 0.0
  %8216 = vmatprep.subr.mxu0 0.0
  %8217 = vmatpush1.msra.mxu0 0.0
  %8218 = vmatprep.subr.mxu0 0.0
  %8219 = vmatpush1.msra.mxu0 0.0
  %8220 = vmatprep.subr.mxu0 0.0
  %8221 = vmatpush1.msra.mxu0 0.0
  %8222 = vmatprep.subr.mxu0 0.0
  %8223 = vmatpush1.msra.mxu0 0.0
  %8224 = vmatprep.subr.mxu0 0.0
  %8225 = vmatpush1.msra.mxu0 0.0
  %8226 = vmatprep.subr.mxu0 0.0
  %8227 = vmatpush1.msra.mxu0 0.0
  %8228 = vmatprep.subr.mxu0 0.0
  %8229 = vmatpush1.msra.mxu0 0.0
  %8230 = vmatprep.subr.mxu0 0.0
  %8231 = vmatpush1.msra.mxu0 0.0
  %8232 = vmatprep.subr.mxu0 0.0
  %8233 = vmatpush1.msra.mxu0 0.0
  %8234 = vmatprep.subr.mxu0 0.0
  %8235 = vmatpush1.msra.mxu0 0.0
  %8236 = vmatprep.subr.mxu0 0.0
  %8237 = vmatpush1.msra.mxu0 0.0
  %8238 = vmatprep.subr.mxu0 0.0
  %8239 = vmatpush1.msra.mxu0 0.0
  %8240 = vmatprep.subr.mxu0 0.0
  %8241 = vmatpush1.msra.mxu0 0.0
  %8242 = vmatprep.subr.mxu0 0.0
  %8243 = vmatpush1.msra.mxu0 0.0
  %8244 = vmatprep.mubr.f32.mxu0 0.0
  %v8245 = vand.u32 %v7924, 4294901760
  %v8246 = vsub.f32 %v7924, %v8245
  %v8247 = vand.u32 %v8246, 4294901760
  %8248 = vmatmul.mubr.f32.gmra.mrb[0].mxu0 %v8247
  %v8249 = vpop.f32.mrb[0].mxu0
  %v8250 = vadd.f32 %v8173, %v8249
  %v8251 = vpop.f32.mrb[0].mxu0
  %8252 = vdwg.mxu0
  %8253 = vmatprep.subr.mxu0 0.0
  %v8254 = vand.u32 %v5818, 4294901760
  %v8255 = vsub.f32 %v5818, %v8254
  %v8256 = vand.u32 %v8255, 4294901760
  %8257 = vmatpush1.msra.mxu0 %v8256
  %8258 = vmatprep.subr.mxu0 0.0
  %v8259 = vand.u32 %v5819, 4294901760
  %v8260 = vsub.f32 %v5819, %v8259
  %v8261 = vand.u32 %v8260, 4294901760
  %8262 = vmatpush1.msra.mxu0 %v8261
  %8263 = vmatprep.subr.mxu0 0.0
  %v8264 = vand.u32 %v5820, 4294901760
  %v8265 = vsub.f32 %v5820, %v8264
  %v8266 = vand.u32 %v8265, 4294901760
  %8267 = vmatpush1.msra.mxu0 %v8266
  %8268 = vmatprep.subr.mxu0 0.0
  %v8269 = vand.u32 %v5821, 4294901760
  %v8270 = vsub.f32 %v5821, %v8269
  %v8271 = vand.u32 %v8270, 4294901760
  %8272 = vmatpush1.msra.mxu0 %v8271
  %8273 = vmatprep.subr.mxu0 0.0
  %8274 = vmatpush1.msra.mxu0 0.0
  %8275 = vmatprep.subr.mxu0 0.0
  %8276 = vmatpush1.msra.mxu0 0.0
  %8277 = vmatprep.subr.mxu0 0.0
  %8278 = vmatpush1.msra.mxu0 0.0
  %8279 = vmatprep.subr.mxu0 0.0
  %8280 = vmatpush1.msra.mxu0 0.0
  %8281 = vmatprep.subr.mxu0 0.0
  %8282 = vmatpush1.msra.mxu0 0.0
  %8283 = vmatprep.subr.mxu0 0.0
  %8284 = vmatpush1.msra.mxu0 0.0
  %8285 = vmatprep.subr.mxu0 0.0
  %8286 = vmatpush1.msra.mxu0 0.0
  %8287 = vmatprep.subr.mxu0 0.0
  %8288 = vmatpush1.msra.mxu0 0.0
  %8289 = vmatprep.subr.mxu0 0.0
  %8290 = vmatpush1.msra.mxu0 0.0
  %8291 = vmatprep.subr.mxu0 0.0
  %8292 = vmatpush1.msra.mxu0 0.0
  %8293 = vmatprep.subr.mxu0 0.0
  %8294 = vmatpush1.msra.mxu0 0.0
  %8295 = vmatprep.subr.mxu0 0.0
  %8296 = vmatpush1.msra.mxu0 0.0
  %8297 = vmatprep.subr.mxu0 0.0
  %8298 = vmatpush1.msra.mxu0 0.0
  %8299 = vmatprep.subr.mxu0 0.0
  %8300 = vmatpush1.msra.mxu0 0.0
  %8301 = vmatprep.subr.mxu0 0.0
  %8302 = vmatpush1.msra.mxu0 0.0
  %8303 = vmatprep.subr.mxu0 0.0
  %8304 = vmatpush1.msra.mxu0 0.0
  %8305 = vmatprep.subr.mxu0 0.0
  %8306 = vmatpush1.msra.mxu0 0.0
  %8307 = vmatprep.subr.mxu0 0.0
  %8308 = vmatpush1.msra.mxu0 0.0
  %8309 = vmatprep.subr.mxu0 0.0
  %8310 = vmatpush1.msra.mxu0 0.0
  %8311 = vmatprep.subr.mxu0 0.0
  %8312 = vmatpush1.msra.mxu0 0.0
  %8313 = vmatprep.subr.mxu0 0.0
  %8314 = vmatpush1.msra.mxu0 0.0
  %8315 = vmatprep.subr.mxu0 0.0
  %8316 = vmatpush1.msra.mxu0 0.0
  %8317 = vmatprep.subr.mxu0 0.0
  %8318 = vmatpush1.msra.mxu0 0.0
  %8319 = vmatprep.subr.mxu0 0.0
  %8320 = vmatpush1.msra.mxu0 0.0
  %8321 = vmatprep.subr.mxu0 0.0
  %8322 = vmatpush1.msra.mxu0 0.0
  %8323 = vmatprep.subr.mxu0 0.0
  %8324 = vmatpush1.msra.mxu0 0.0
  %8325 = vmatprep.subr.mxu0 0.0
  %8326 = vmatpush1.msra.mxu0 0.0
  %8327 = vmatprep.subr.mxu0 0.0
  %8328 = vmatpush1.msra.mxu0 0.0
  %8329 = vmatprep.mubr.f32.mxu0 0.0
  %v8330 = vand.u32 %v7924, 4294901760
  %8331 = vmatmul.mubr.f32.gmra.mrb[0].mxu0 %v8330
  %v8332 = vpop.f32.mrb[0].mxu0
  %v8333 = vadd.f32 %v8250, %v8332
  %v8334 = vpop.f32.mrb[0].mxu0
  %8335 = vdwg.mxu0
  %8336 = vmatprep.subr.mxu0 0.0
  %v8337 = vand.u32 %v5818, 4294901760
  %8338 = vmatpush1.msra.mxu0 %v8337
  %8339 = vmatprep.subr.mxu0 0.0
  %v8340 = vand.u32 %v5819, 4294901760
  %8341 = vmatpush1.msra.mxu0 %v8340
  %8342 = vmatprep.subr.mxu0 0.0
  %v8343 = vand.u32 %v5820, 4294901760
  %8344 = vmatpush1.msra.mxu0 %v8343
  %8345 = vmatprep.subr.mxu0 0.0
  %v8346 = vand.u32 %v5821, 4294901760
  %8347 = vmatpush1.msra.mxu0 %v8346
  %8348 = vmatprep.subr.mxu0 0.0
  %8349 = vmatpush1.msra.mxu0 0.0
  %8350 = vmatprep.subr.mxu0 0.0
  %8351 = vmatpush1.msra.mxu0 0.0
  %8352 = vmatprep.subr.mxu0 0.0
  %8353 = vmatpush1.msra.mxu0 0.0
  %8354 = vmatprep.subr.mxu0 0.0
  %8355 = vmatpush1.msra.mxu0 0.0
  %8356 = vmatprep.subr.mxu0 0.0
  %8357 = vmatpush1.msra.mxu0 0.0
  %8358 = vmatprep.subr.mxu0 0.0
  %8359 = vmatpush1.msra.mxu0 0.0
  %8360 = vmatprep.subr.mxu0 0.0
  %8361 = vmatpush1.msra.mxu0 0.0
  %8362 = vmatprep.subr.mxu0 0.0
  %8363 = vmatpush1.msra.mxu0 0.0
  %8364 = vmatprep.subr.mxu0 0.0
  %8365 = vmatpush1.msra.mxu0 0.0
  %8366 = vmatprep.subr.mxu0 0.0
  %8367 = vmatpush1.msra.mxu0 0.0
  %8368 = vmatprep.subr.mxu0 0.0
  %8369 = vmatpush1.msra.mxu0 0.0
  %8370 = vmatprep.subr.mxu0 0.0
  %8371 = vmatpush1.msra.mxu0 0.0
  %8372 = vmatprep.subr.mxu0 0.0
  %8373 = vmatpush1.msra.mxu0 0.0
  %8374 = vmatprep.subr.mxu0 0.0
  %8375 = vmatpush1.msra.mxu0 0.0
  %8376 = vmatprep.subr.mxu0 0.0
  %8377 = vmatpush1.msra.mxu0 0.0
  %8378 = vmatprep.subr.mxu0 0.0
  %8379 = vmatpush1.msra.mxu0 0.0
  %8380 = vmatprep.subr.mxu0 0.0
  %8381 = vmatpush1.msra.mxu0 0.0
  %8382 = vmatprep.subr.mxu0 0.0
  %8383 = vmatpush1.msra.mxu0 0.0
  %8384 = vmatprep.subr.mxu0 0.0
  %8385 = vmatpush1.msra.mxu0 0.0
  %8386 = vmatprep.subr.mxu0 0.0
  %8387 = vmatpush1.msra.mxu0 0.0
  %8388 = vmatprep.subr.mxu0 0.0
  %8389 = vmatpush1.msra.mxu0 0.0
  %8390 = vmatprep.subr.mxu0 0.0
  %8391 = vmatpush1.msra.mxu0 0.0
  %8392 = vmatprep.subr.mxu0 0.0
  %8393 = vmatpush1.msra.mxu0 0.0
  %8394 = vmatprep.subr.mxu0 0.0
  %8395 = vmatpush1.msra.mxu0 0.0
  %8396 = vmatprep.subr.mxu0 0.0
  %8397 = vmatpush1.msra.mxu0 0.0
  %8398 = vmatprep.subr.mxu0 0.0
  %8399 = vmatpush1.msra.mxu0 0.0
  %8400 = vmatprep.subr.mxu0 0.0
  %8401 = vmatpush1.msra.mxu0 0.0
  %8402 = vmatprep.subr.mxu0 0.0
  %8403 = vmatpush1.msra.mxu0 0.0
  %8404 = vmatprep.mubr.f32.mxu0 0.0
  %v8405 = vand.u32 %v7924, 4294901760
  %8406 = vmatmul.mubr.f32.gmra.mrb[0].mxu0 %v8405
  %v8407 = vpop.f32.mrb[0].mxu0
  %v8408 = vadd.f32 %v8333, %v8407
  %v8409 = vpop.f32.mrb[0].mxu0
  %8410 = vdwg.mxu0
  %v8411 = vadd.f32 %v7923, %v8408
  %v8412 = vxor.u32 %v8411, 2147483648
  %v8413 = vmul.f32 %v8412, 1.442695
  %v8414 = vpow.pop %v8413
  %v8415 = vadd.f32 %v8414, 1.0
  %v8416 = vrcp.pop %v8415
  %v8417 = vmul.f32 1.0, %v8416
  %v8418 = vtanh.pop %v8411
  %v8419 = vmul.f32 %v8417, %v7905
  %8421 = vrot.lane.b32.xlu0 %v8418, 64
  %v8422 = vpop.permute.xlu0 %8421
  %v8424 = vmul.f32 %v8417, %v8422
  %8426 = vrot.lane.b32.xlu0 %v8424, 32
  %v8427 = vpop.permute.xlu0 %8426
  %v8429 = vadd.f32 %v8419, %v8427
  %v8430 = vtanh.pop %v8429
  %8432 = vrot.lane.b32.xlu0 %v8430, 64
  %v8433 = vpop.permute.xlu0 %8432
  %v8435 = vmul.f32 %v8417, %v8433
  %8437 = vrot.lane.b32.xlu0 %v8435, 32
  %v8438 = vpop.permute.xlu0 %8437
  %8440 = vst.msk [vmem:[#allocation5 + $0x4] sm:$0x1] %vm1084, %v8438
  %8441 = vst.msk [vmem:[#allocation5 + $0xb] sm:$0x2] %vm1086, %v8438
  %v8442 = vld [vmem:[#allocation4 + $0x5] sm:$0x1]
  %v8443 = vld [vmem:[#allocation4 + $0xd] sm:$0x1]
  %v8445 = vrot.slane %v8443, 7
  %v8447 = vsel %vm564, %v8442, %v8445
  %v8448 = vsel %vm566, %v8438, 0
  %8450 = vmatprep.subr.mxu0 0.0
  %v8451 = vand.u32 %v5818, 4294901760
  %8452 = vmatpush1.msra.mxu0 %v8451
  %8453 = vmatprep.subr.mxu0 0.0
  %v8454 = vand.u32 %v5819, 4294901760
  %8455 = vmatpush1.msra.mxu0 %v8454
  %8456 = vmatprep.subr.mxu0 0.0
  %v8457 = vand.u32 %v5820, 4294901760
  %8458 = vmatpush1.msra.mxu0 %v8457
  %8459 = vmatprep.subr.mxu0 0.0
  %v8460 = vand.u32 %v5821, 4294901760
  %8461 = vmatpush1.msra.mxu0 %v8460
  %8462 = vmatprep.subr.mxu0 0.0
  %8463 = vmatpush1.msra.mxu0 0.0
  %8464 = vmatprep.subr.mxu0 0.0
  %8465 = vmatpush1.msra.mxu0 0.0
  %8466 = vmatprep.subr.mxu0 0.0
  %8467 = vmatpush1.msra.mxu0 0.0
  %8468 = vmatprep.subr.mxu0 0.0
  %8469 = vmatpush1.msra.mxu0 0.0
  %8470 = vmatprep.subr.mxu0 0.0
  %8471 = vmatpush1.msra.mxu0 0.0
  %8472 = vmatprep.subr.mxu0 0.0
  %8473 = vmatpush1.msra.mxu0 0.0
  %8474 = vmatprep.subr.mxu0 0.0
  %8475 = vmatpush1.msra.mxu0 0.0
  %8476 = vmatprep.subr.mxu0 0.0
  %8477 = vmatpush1.msra.mxu0 0.0
  %8478 = vmatprep.subr.mxu0 0.0
  %8479 = vmatpush1.msra.mxu0 0.0
  %8480 = vmatprep.subr.mxu0 0.0
  %8481 = vmatpush1.msra.mxu0 0.0
  %8482 = vmatprep.subr.mxu0 0.0
  %8483 = vmatpush1.msra.mxu0 0.0
  %8484 = vmatprep.subr.mxu0 0.0
  %8485 = vmatpush1.msra.mxu0 0.0
  %8486 = vmatprep.subr.mxu0 0.0
  %8487 = vmatpush1.msra.mxu0 0.0
  %8488 = vmatprep.subr.mxu0 0.0
  %8489 = vmatpush1.msra.mxu0 0.0
  %8490 = vmatprep.subr.mxu0 0.0
  %8491 = vmatpush1.msra.mxu0 0.0
  %8492 = vmatprep.subr.mxu0 0.0
  %8493 = vmatpush1.msra.mxu0 0.0
  %8494 = vmatprep.subr.mxu0 0.0
  %8495 = vmatpush1.msra.mxu0 0.0
  %8496 = vmatprep.subr.mxu0 0.0
  %8497 = vmatpush1.msra.mxu0 0.0
  %8498 = vmatprep.subr.mxu0 0.0
  %8499 = vmatpush1.msra.mxu0 0.0
  %8500 = vmatprep.subr.mxu0 0.0
  %8501 = vmatpush1.msra.mxu0 0.0
  %8502 = vmatprep.subr.mxu0 0.0
  %8503 = vmatpush1.msra.mxu0 0.0
  %8504 = vmatprep.subr.mxu0 0.0
  %8505 = vmatpush1.msra.mxu0 0.0
  %8506 = vmatprep.subr.mxu0 0.0
  %8507 = vmatpush1.msra.mxu0 0.0
  %8508 = vmatprep.subr.mxu0 0.0
  %8509 = vmatpush1.msra.mxu0 0.0
  %8510 = vmatprep.subr.mxu0 0.0
  %8511 = vmatpush1.msra.mxu0 0.0
  %8512 = vmatprep.subr.mxu0 0.0
  %8513 = vmatpush1.msra.mxu0 0.0
  %8514 = vmatprep.subr.mxu0 0.0
  %8515 = vmatpush1.msra.mxu0 0.0
  %8516 = vmatprep.subr.mxu0 0.0
  %8517 = vmatpush1.msra.mxu0 0.0
  %8518 = vmatprep.mubr.f32.mxu0 0.0
  %v8519 = vand.u32 %v8448, 4294901760
  %v8520 = vsub.f32 %v8448, %v8519
  %v8521 = vand.u32 %v8520, 4294901760
  %v8522 = vsub.f32 %v8520, %v8521
  %v8523 = vand.u32 %v8522, 4294901760
  %8524 = vmatmul.mubr.f32.gmra.mrb[0].mxu0 %v8523
  %v8525 = vpop.f32.mrb[0].mxu0
  %v8526 = vadd.f32 0.0, %v8525
  %v8527 = vpop.f32.mrb[0].mxu0
  %8528 = vdwg.mxu0
  %8529 = vmatprep.subr.mxu0 0.0
  %v8530 = vand.u32 %v5818, 4294901760
  %v8531 = vsub.f32 %v5818, %v8530
  %v8532 = vand.u32 %v8531, 4294901760
  %v8533 = vsub.f32 %v8531, %v8532
  %v8534 = vand.u32 %v8533, 4294901760
  %8535 = vmatpush1.msra.mxu0 %v8534
  %8536 = vmatprep.subr.mxu0 0.0
  %v8537 = vand.u32 %v5819, 4294901760
  %v8538 = vsub.f32 %v5819, %v8537
  %v8539 = vand.u32 %v8538, 4294901760
  %v8540 = vsub.f32 %v8538, %v8539
  %v8541 = vand.u32 %v8540, 4294901760
  %8542 = vmatpush1.msra.mxu0 %v8541
  %8543 = vmatprep.subr.mxu0 0.0
  %v8544 = vand.u32 %v5820, 4294901760
  %v8545 = vsub.f32 %v5820, %v8544
  %v8546 = vand.u32 %v8545, 4294901760
  %v8547 = vsub.f32 %v8545, %v8546
  %v8548 = vand.u32 %v8547, 4294901760
  %8549 = vmatpush1.msra.mxu0 %v8548
  %8550 = vmatprep.subr.mxu0 0.0
  %v8551 = vand.u32 %v5821, 4294901760
  %v8552 = vsub.f32 %v5821, %v8551
  %v8553 = vand.u32 %v8552, 4294901760
  %v8554 = vsub.f32 %v8552, %v8553
  %v8555 = vand.u32 %v8554, 4294901760
  %8556 = vmatpush1.msra.mxu0 %v8555
  %8557 = vmatprep.subr.mxu0 0.0
  %8558 = vmatpush1.msra.mxu0 0.0
  %8559 = vmatprep.subr.mxu0 0.0
  %8560 = vmatpush1.msra.mxu0 0.0
  %8561 = vmatprep.subr.mxu0 0.0
  %8562 = vmatpush1.msra.mxu0 0.0
  %8563 = vmatprep.subr.mxu0 0.0
  %8564 = vmatpush1.msra.mxu0 0.0
  %8565 = vmatprep.subr.mxu0 0.0
  %8566 = vmatpush1.msra.mxu0 0.0
  %8567 = vmatprep.subr.mxu0 0.0
  %8568 = vmatpush1.msra.mxu0 0.0
  %8569 = vmatprep.subr.mxu0 0.0
  %8570 = vmatpush1.msra.mxu0 0.0
  %8571 = vmatprep.subr.mxu0 0.0
  %8572 = vmatpush1.msra.mxu0 0.0
  %8573 = vmatprep.subr.mxu0 0.0
  %8574 = vmatpush1.msra.mxu0 0.0
  %8575 = vmatprep.subr.mxu0 0.0
  %8576 = vmatpush1.msra.mxu0 0.0
  %8577 = vmatprep.subr.mxu0 0.0
  %8578 = vmatpush1.msra.mxu0 0.0
  %8579 = vmatprep.subr.mxu0 0.0
  %8580 = vmatpush1.msra.mxu0 0.0
  %8581 = vmatprep.subr.mxu0 0.0
  %8582 = vmatpush1.msra.mxu0 0.0
  %8583 = vmatprep.subr.mxu0 0.0
  %8584 = vmatpush1.msra.mxu0 0.0
  %8585 = vmatprep.subr.mxu0 0.0
  %8586 = vmatpush1.msra.mxu0 0.0
  %8587 = vmatprep.subr.mxu0 0.0
  %8588 = vmatpush1.msra.mxu0 0.0
  %8589 = vmatprep.subr.mxu0 0.0
  %8590 = vmatpush1.msra.mxu0 0.0
  %8591 = vmatprep.subr.mxu0 0.0
  %8592 = vmatpush1.msra.mxu0 0.0
  %8593 = vmatprep.subr.mxu0 0.0
  %8594 = vmatpush1.msra.mxu0 0.0
  %8595 = vmatprep.subr.mxu0 0.0
  %8596 = vmatpush1.msra.mxu0 0.0
  %8597 = vmatprep.subr.mxu0 0.0
  %8598 = vmatpush1.msra.mxu0 0.0
  %8599 = vmatprep.subr.mxu0 0.0
  %8600 = vmatpush1.msra.mxu0 0.0
  %8601 = vmatprep.subr.mxu0 0.0
  %8602 = vmatpush1.msra.mxu0 0.0
  %8603 = vmatprep.subr.mxu0 0.0
  %8604 = vmatpush1.msra.mxu0 0.0
  %8605 = vmatprep.subr.mxu0 0.0
  %8606 = vmatpush1.msra.mxu0 0.0
  %8607 = vmatprep.subr.mxu0 0.0
  %8608 = vmatpush1.msra.mxu0 0.0
  %8609 = vmatprep.subr.mxu0 0.0
  %8610 = vmatpush1.msra.mxu0 0.0
  %8611 = vmatprep.subr.mxu0 0.0
  %8612 = vmatpush1.msra.mxu0 0.0
  %8613 = vmatprep.mubr.f32.mxu0 0.0
  %v8614 = vand.u32 %v8448, 4294901760
  %8615 = vmatmul.mubr.f32.gmra.mrb[0].mxu0 %v8614
  %v8616 = vpop.f32.mrb[0].mxu0
  %v8617 = vadd.f32 %v8526, %v8616
  %v8618 = vpop.f32.mrb[0].mxu0
  %8619 = vdwg.mxu0
  %8620 = vmatprep.subr.mxu0 0.0
  %v8621 = vand.u32 %v5818, 4294901760
  %v8622 = vsub.f32 %v5818, %v8621
  %8623 = vmatpush1.msra.mxu0 %v8622
  %8624 = vmatprep.subr.mxu0 0.0
  %v8625 = vand.u32 %v5819, 4294901760
  %v8626 = vsub.f32 %v5819, %v8625
  %8627 = vmatpush1.msra.mxu0 %v8626
  %8628 = vmatprep.subr.mxu0 0.0
  %v8629 = vand.u32 %v5820, 4294901760
  %v8630 = vsub.f32 %v5820, %v8629
  %8631 = vmatpush1.msra.mxu0 %v8630
  %8632 = vmatprep.subr.mxu0 0.0
  %v8633 = vand.u32 %v5821, 4294901760
  %v8634 = vsub.f32 %v5821, %v8633
  %8635 = vmatpush1.msra.mxu0 %v8634
  %8636 = vmatprep.subr.mxu0 0.0
  %8637 = vmatpush1.msra.mxu0 0.0
  %8638 = vmatprep.subr.mxu0 0.0
  %8639 = vmatpush1.msra.mxu0 0.0
  %8640 = vmatprep.subr.mxu0 0.0
  %8641 = vmatpush1.msra.mxu0 0.0
  %8642 = vmatprep.subr.mxu0 0.0
  %8643 = vmatpush1.msra.mxu0 0.0
  %8644 = vmatprep.subr.mxu0 0.0
  %8645 = vmatpush1.msra.mxu0 0.0
  %8646 = vmatprep.subr.mxu0 0.0
  %8647 = vmatpush1.msra.mxu0 0.0
  %8648 = vmatprep.subr.mxu0 0.0
  %8649 = vmatpush1.msra.mxu0 0.0
  %8650 = vmatprep.subr.mxu0 0.0
  %8651 = vmatpush1.msra.mxu0 0.0
  %8652 = vmatprep.subr.mxu0 0.0
  %8653 = vmatpush1.msra.mxu0 0.0
  %8654 = vmatprep.subr.mxu0 0.0
  %8655 = vmatpush1.msra.mxu0 0.0
  %8656 = vmatprep.subr.mxu0 0.0
  %8657 = vmatpush1.msra.mxu0 0.0
  %8658 = vmatprep.subr.mxu0 0.0
  %8659 = vmatpush1.msra.mxu0 0.0
  %8660 = vmatprep.subr.mxu0 0.0
  %8661 = vmatpush1.msra.mxu0 0.0
  %8662 = vmatprep.subr.mxu0 0.0
  %8663 = vmatpush1.msra.mxu0 0.0
  %8664 = vmatprep.subr.mxu0 0.0
  %8665 = vmatpush1.msra.mxu0 0.0
  %8666 = vmatprep.subr.mxu0 0.0
  %8667 = vmatpush1.msra.mxu0 0.0
  %8668 = vmatprep.subr.mxu0 0.0
  %8669 = vmatpush1.msra.mxu0 0.0
  %8670 = vmatprep.subr.mxu0 0.0
  %8671 = vmatpush1.msra.mxu0 0.0
  %8672 = vmatprep.subr.mxu0 0.0
  %8673 = vmatpush1.msra.mxu0 0.0
  %8674 = vmatprep.subr.mxu0 0.0
  %8675 = vmatpush1.msra.mxu0 0.0
  %8676 = vmatprep.subr.mxu0 0.0
  %8677 = vmatpush1.msra.mxu0 0.0
  %8678 = vmatprep.subr.mxu0 0.0
  %8679 = vmatpush1.msra.mxu0 0.0
  %8680 = vmatprep.subr.mxu0 0.0
  %8681 = vmatpush1.msra.mxu0 0.0
  %8682 = vmatprep.subr.mxu0 0.0
  %8683 = vmatpush1.msra.mxu0 0.0
  %8684 = vmatprep.subr.mxu0 0.0
  %8685 = vmatpush1.msra.mxu0 0.0
  %8686 = vmatprep.subr.mxu0 0.0
  %8687 = vmatpush1.msra.mxu0 0.0
  %8688 = vmatprep.subr.mxu0 0.0
  %8689 = vmatpush1.msra.mxu0 0.0
  %8690 = vmatprep.subr.mxu0 0.0
  %8691 = vmatpush1.msra.mxu0 0.0
  %8692 = vmatprep.mubr.f32.mxu0 0.0
  %v8693 = vand.u32 %v8448, 4294901760
  %v8694 = vsub.f32 %v8448, %v8693
  %8695 = vmatmul.mubr.f32.gmra.mrb[0].mxu0 %v8694
  %v8696 = vpop.f32.mrb[0].mxu0
  %v8697 = vadd.f32 %v8617, %v8696
  %v8698 = vpop.f32.mrb[0].mxu0
  %8699 = vdwg.mxu0
  %8700 = vmatprep.subr.mxu0 0.0
  %v8701 = vand.u32 %v5818, 4294901760
  %8702 = vmatpush1.msra.mxu0 %v8701
  %8703 = vmatprep.subr.mxu0 0.0
  %v8704 = vand.u32 %v5819, 4294901760
  %8705 = vmatpush1.msra.mxu0 %v8704
  %8706 = vmatprep.subr.mxu0 0.0
  %v8707 = vand.u32 %v5820, 4294901760
  %8708 = vmatpush1.msra.mxu0 %v8707
  %8709 = vmatprep.subr.mxu0 0.0
  %v8710 = vand.u32 %v5821, 4294901760
  %8711 = vmatpush1.msra.mxu0 %v8710
  %8712 = vmatprep.subr.mxu0 0.0
  %8713 = vmatpush1.msra.mxu0 0.0
  %8714 = vmatprep.subr.mxu0 0.0
  %8715 = vmatpush1.msra.mxu0 0.0
  %8716 = vmatprep.subr.mxu0 0.0
  %8717 = vmatpush1.msra.mxu0 0.0
  %8718 = vmatprep.subr.mxu0 0.0
  %8719 = vmatpush1.msra.mxu0 0.0
  %8720 = vmatprep.subr.mxu0 0.0
  %8721 = vmatpush1.msra.mxu0 0.0
  %8722 = vmatprep.subr.mxu0 0.0
  %8723 = vmatpush1.msra.mxu0 0.0
  %8724 = vmatprep.subr.mxu0 0.0
  %8725 = vmatpush1.msra.mxu0 0.0
  %8726 = vmatprep.subr.mxu0 0.0
  %8727 = vmatpush1.msra.mxu0 0.0
  %8728 = vmatprep.subr.mxu0 0.0
  %8729 = vmatpush1.msra.mxu0 0.0
  %8730 = vmatprep.subr.mxu0 0.0
  %8731 = vmatpush1.msra.mxu0 0.0
  %8732 = vmatprep.subr.mxu0 0.0
  %8733 = vmatpush1.msra.mxu0 0.0
  %8734 = vmatprep.subr.mxu0 0.0
  %8735 = vmatpush1.msra.mxu0 0.0
  %8736 = vmatprep.subr.mxu0 0.0
  %8737 = vmatpush1.msra.mxu0 0.0
  %8738 = vmatprep.subr.mxu0 0.0
  %8739 = vmatpush1.msra.mxu0 0.0
  %8740 = vmatprep.subr.mxu0 0.0
  %8741 = vmatpush1.msra.mxu0 0.0
  %8742 = vmatprep.subr.mxu0 0.0
  %8743 = vmatpush1.msra.mxu0 0.0
  %8744 = vmatprep.subr.mxu0 0.0
  %8745 = vmatpush1.msra.mxu0 0.0
  %8746 = vmatprep.subr.mxu0 0.0
  %8747 = vmatpush1.msra.mxu0 0.0
  %8748 = vmatprep.subr.mxu0 0.0
  %8749 = vmatpush1.msra.mxu0 0.0
  %8750 = vmatprep.subr.mxu0 0.0
  %8751 = vmatpush1.msra.mxu0 0.0
  %8752 = vmatprep.subr.mxu0 0.0
  %8753 = vmatpush1.msra.mxu0 0.0
  %8754 = vmatprep.subr.mxu0 0.0
  %8755 = vmatpush1.msra.mxu0 0.0
  %8756 = vmatprep.subr.mxu0 0.0
  %8757 = vmatpush1.msra.mxu0 0.0
  %8758 = vmatprep.subr.mxu0 0.0
  %8759 = vmatpush1.msra.mxu0 0.0
  %8760 = vmatprep.subr.mxu0 0.0
  %8761 = vmatpush1.msra.mxu0 0.0
  %8762 = vmatprep.subr.mxu0 0.0
  %8763 = vmatpush1.msra.mxu0 0.0
  %8764 = vmatprep.subr.mxu0 0.0
  %8765 = vmatpush1.msra.mxu0 0.0
  %8766 = vmatprep.subr.mxu0 0.0
  %8767 = vmatpush1.msra.mxu0 0.0
  %8768 = vmatprep.mubr.f32.mxu0 0.0
  %v8769 = vand.u32 %v8448, 4294901760
  %v8770 = vsub.f32 %v8448, %v8769
  %v8771 = vand.u32 %v8770, 4294901760
  %8772 = vmatmul.mubr.f32.gmra.mrb[0].mxu0 %v8771
  %v8773 = vpop.f32.mrb[0].mxu0
  %v8774 = vadd.f32 %v8697, %v8773
  %v8775 = vpop.f32.mrb[0].mxu0
  %8776 = vdwg.mxu0
  %8777 = vmatprep.subr.mxu0 0.0
  %v8778 = vand.u32 %v5818, 4294901760
  %v8779 = vsub.f32 %v5818, %v8778
  %v8780 = vand.u32 %v8779, 4294901760
  %8781 = vmatpush1.msra.mxu0 %v8780
  %8782 = vmatprep.subr.mxu0 0.0
  %v8783 = vand.u32 %v5819, 4294901760
  %v8784 = vsub.f32 %v5819, %v8783
  %v8785 = vand.u32 %v8784, 4294901760
  %8786 = vmatpush1.msra.mxu0 %v8785
  %8787 = vmatprep.subr.mxu0 0.0
  %v8788 = vand.u32 %v5820, 4294901760
  %v8789 = vsub.f32 %v5820, %v8788
  %v8790 = vand.u32 %v8789, 4294901760
  %8791 = vmatpush1.msra.mxu0 %v8790
  %8792 = vmatprep.subr.mxu0 0.0
  %v8793 = vand.u32 %v5821, 4294901760
  %v8794 = vsub.f32 %v5821, %v8793
  %v8795 = vand.u32 %v8794, 4294901760
  %8796 = vmatpush1.msra.mxu0 %v8795
  %8797 = vmatprep.subr.mxu0 0.0
  %8798 = vmatpush1.msra.mxu0 0.0
  %8799 = vmatprep.subr.mxu0 0.0
  %8800 = vmatpush1.msra.mxu0 0.0
  %8801 = vmatprep.subr.mxu0 0.0
  %8802 = vmatpush1.msra.mxu0 0.0
  %8803 = vmatprep.subr.mxu0 0.0
  %8804 = vmatpush1.msra.mxu0 0.0
  %8805 = vmatprep.subr.mxu0 0.0
  %8806 = vmatpush1.msra.mxu0 0.0
  %8807 = vmatprep.subr.mxu0 0.0
  %8808 = vmatpush1.msra.mxu0 0.0
  %8809 = vmatprep.subr.mxu0 0.0
  %8810 = vmatpush1.msra.mxu0 0.0
  %8811 = vmatprep.subr.mxu0 0.0
  %8812 = vmatpush1.msra.mxu0 0.0
  %8813 = vmatprep.subr.mxu0 0.0
  %8814 = vmatpush1.msra.mxu0 0.0
  %8815 = vmatprep.subr.mxu0 0.0
  %8816 = vmatpush1.msra.mxu0 0.0
  %8817 = vmatprep.subr.mxu0 0.0
  %8818 = vmatpush1.msra.mxu0 0.0
  %8819 = vmatprep.subr.mxu0 0.0
  %8820 = vmatpush1.msra.mxu0 0.0
  %8821 = vmatprep.subr.mxu0 0.0
  %8822 = vmatpush1.msra.mxu0 0.0
  %8823 = vmatprep.subr.mxu0 0.0
  %8824 = vmatpush1.msra.mxu0 0.0
  %8825 = vmatprep.subr.mxu0 0.0
  %8826 = vmatpush1.msra.mxu0 0.0
  %8827 = vmatprep.subr.mxu0 0.0
  %8828 = vmatpush1.msra.mxu0 0.0
  %8829 = vmatprep.subr.mxu0 0.0
  %8830 = vmatpush1.msra.mxu0 0.0
  %8831 = vmatprep.subr.mxu0 0.0
  %8832 = vmatpush1.msra.mxu0 0.0
  %8833 = vmatprep.subr.mxu0 0.0
  %8834 = vmatpush1.msra.mxu0 0.0
  %8835 = vmatprep.subr.mxu0 0.0
  %8836 = vmatpush1.msra.mxu0 0.0
  %8837 = vmatprep.subr.mxu0 0.0
  %8838 = vmatpush1.msra.mxu0 0.0
  %8839 = vmatprep.subr.mxu0 0.0
  %8840 = vmatpush1.msra.mxu0 0.0
  %8841 = vmatprep.subr.mxu0 0.0
  %8842 = vmatpush1.msra.mxu0 0.0
  %8843 = vmatprep.subr.mxu0 0.0
  %8844 = vmatpush1.msra.mxu0 0.0
  %8845 = vmatprep.subr.mxu0 0.0
  %8846 = vmatpush1.msra.mxu0 0.0
  %8847 = vmatprep.subr.mxu0 0.0
  %8848 = vmatpush1.msra.mxu0 0.0
  %8849 = vmatprep.subr.mxu0 0.0
  %8850 = vmatpush1.msra.mxu0 0.0
  %8851 = vmatprep.subr.mxu0 0.0
  %8852 = vmatpush1.msra.mxu0 0.0
  %8853 = vmatprep.mubr.f32.mxu0 0.0
  %v8854 = vand.u32 %v8448, 4294901760
  %8855 = vmatmul.mubr.f32.gmra.mrb[0].mxu0 %v8854
  %v8856 = vpop.f32.mrb[0].mxu0
  %v8857 = vadd.f32 %v8774, %v8856
  %v8858 = vpop.f32.mrb[0].mxu0
  %8859 = vdwg.mxu0
  %8860 = vmatprep.subr.mxu0 0.0
  %v8861 = vand.u32 %v5818, 4294901760
  %8862 = vmatpush1.msra.mxu0 %v8861
  %8863 = vmatprep.subr.mxu0 0.0
  %v8864 = vand.u32 %v5819, 4294901760
  %8865 = vmatpush1.msra.mxu0 %v8864
  %8866 = vmatprep.subr.mxu0 0.0
  %v8867 = vand.u32 %v5820, 4294901760
  %8868 = vmatpush1.msra.mxu0 %v8867
  %8869 = vmatprep.subr.mxu0 0.0
  %v8870 = vand.u32 %v5821, 4294901760
  %8871 = vmatpush1.msra.mxu0 %v8870
  %8872 = vmatprep.subr.mxu0 0.0
  %8873 = vmatpush1.msra.mxu0 0.0
  %8874 = vmatprep.subr.mxu0 0.0
  %8875 = vmatpush1.msra.mxu0 0.0
  %8876 = vmatprep.subr.mxu0 0.0
  %8877 = vmatpush1.msra.mxu0 0.0
  %8878 = vmatprep.subr.mxu0 0.0
  %8879 = vmatpush1.msra.mxu0 0.0
  %8880 = vmatprep.subr.mxu0 0.0
  %8881 = vmatpush1.msra.mxu0 0.0
  %8882 = vmatprep.subr.mxu0 0.0
  %8883 = vmatpush1.msra.mxu0 0.0
  %8884 = vmatprep.subr.mxu0 0.0
  %8885 = vmatpush1.msra.mxu0 0.0
  %8886 = vmatprep.subr.mxu0 0.0
  %8887 = vmatpush1.msra.mxu0 0.0
  %8888 = vmatprep.subr.mxu0 0.0
  %8889 = vmatpush1.msra.mxu0 0.0
  %8890 = vmatprep.subr.mxu0 0.0
  %8891 = vmatpush1.msra.mxu0 0.0
  %8892 = vmatprep.subr.mxu0 0.0
  %8893 = vmatpush1.msra.mxu0 0.0
  %8894 = vmatprep.subr.mxu0 0.0
  %8895 = vmatpush1.msra.mxu0 0.0
  %8896 = vmatprep.subr.mxu0 0.0
  %8897 = vmatpush1.msra.mxu0 0.0
  %8898 = vmatprep.subr.mxu0 0.0
  %8899 = vmatpush1.msra.mxu0 0.0
  %8900 = vmatprep.subr.mxu0 0.0
  %8901 = vmatpush1.msra.mxu0 0.0
  %8902 = vmatprep.subr.mxu0 0.0
  %8903 = vmatpush1.msra.mxu0 0.0
  %8904 = vmatprep.subr.mxu0 0.0
  %8905 = vmatpush1.msra.mxu0 0.0
  %8906 = vmatprep.subr.mxu0 0.0
  %8907 = vmatpush1.msra.mxu0 0.0
  %8908 = vmatprep.subr.mxu0 0.0
  %8909 = vmatpush1.msra.mxu0 0.0
  %8910 = vmatprep.subr.mxu0 0.0
  %8911 = vmatpush1.msra.mxu0 0.0
  %8912 = vmatprep.subr.mxu0 0.0
  %8913 = vmatpush1.msra.mxu0 0.0
  %8914 = vmatprep.subr.mxu0 0.0
  %8915 = vmatpush1.msra.mxu0 0.0
  %8916 = vmatprep.subr.mxu0 0.0
  %8917 = vmatpush1.msra.mxu0 0.0
  %8918 = vmatprep.subr.mxu0 0.0
  %8919 = vmatpush1.msra.mxu0 0.0
  %8920 = vmatprep.subr.mxu0 0.0
  %8921 = vmatpush1.msra.mxu0 0.0
  %8922 = vmatprep.subr.mxu0 0.0
  %8923 = vmatpush1.msra.mxu0 0.0
  %8924 = vmatprep.subr.mxu0 0.0
  %8925 = vmatpush1.msra.mxu0 0.0
  %8926 = vmatprep.subr.mxu0 0.0
  %8927 = vmatpush1.msra.mxu0 0.0
  %8928 = vmatprep.mubr.f32.mxu0 0.0
  %v8929 = vand.u32 %v8448, 4294901760
  %8930 = vmatmul.mubr.f32.gmra.mrb[0].mxu0 %v8929
  %v8931 = vpop.f32.mrb[0].mxu0
  %v8932 = vadd.f32 %v8857, %v8931
  %v8933 = vpop.f32.mrb[0].mxu0
  %8934 = vdwg.mxu0
  %v8935 = vadd.f32 %v8447, %v8932
  %v8936 = vxor.u32 %v8935, 2147483648
  %v8937 = vmul.f32 %v8936, 1.442695
  %v8938 = vpow.pop %v8937
  %v8939 = vadd.f32 %v8938, 1.0
  %v8940 = vrcp.pop %v8939
  %v8941 = vmul.f32 1.0, %v8940
  %v8942 = vtanh.pop %v8935
  %v8943 = vmul.f32 %v8941, %v8429
  %8945 = vrot.lane.b32.xlu0 %v8942, 64
  %v8946 = vpop.permute.xlu0 %8945
  %v8948 = vmul.f32 %v8941, %v8946
  %8950 = vrot.lane.b32.xlu0 %v8948, 32
  %v8951 = vpop.permute.xlu0 %8950
  %v8953 = vadd.f32 %v8943, %v8951
  %v8954 = vtanh.pop %v8953
  %8956 = vrot.lane.b32.xlu0 %v8954, 64
  %v8957 = vpop.permute.xlu0 %8956
  %v8959 = vmul.f32 %v8941, %v8957
  %8961 = vrot.lane.b32.xlu0 %v8959, 32
  %v8962 = vpop.permute.xlu0 %8961
  %8964 = vst.msk [vmem:[#allocation5 + $0x5] sm:$0x1] %vm1084, %v8962
  %8965 = vst.msk [vmem:[#allocation5 + $0xc] sm:$0x2] %vm1086, %v8962
  %v8966 = vld [vmem:[#allocation4 + $0x6] sm:$0x1]
  %v8967 = vld [vmem:[#allocation4 + $0xe] sm:$0x1]
  %v8969 = vrot.slane %v8967, 7
  %v8971 = vsel %vm564, %v8966, %v8969
  %v8972 = vsel %vm566, %v8962, 0
  %8974 = vmatprep.subr.mxu0 0.0
  %v8975 = vand.u32 %v5818, 4294901760
  %8976 = vmatpush1.msra.mxu0 %v8975
  %8977 = vmatprep.subr.mxu0 0.0
  %v8978 = vand.u32 %v5819, 4294901760
  %8979 = vmatpush1.msra.mxu0 %v8978
  %8980 = vmatprep.subr.mxu0 0.0
  %v8981 = vand.u32 %v5820, 4294901760
  %8982 = vmatpush1.msra.mxu0 %v8981
  %8983 = vmatprep.subr.mxu0 0.0
  %v8984 = vand.u32 %v5821, 4294901760
  %8985 = vmatpush1.msra.mxu0 %v8984
  %8986 = vmatprep.subr.mxu0 0.0
  %8987 = vmatpush1.msra.mxu0 0.0
  %8988 = vmatprep.subr.mxu0 0.0
  %8989 = vmatpush1.msra.mxu0 0.0
  %8990 = vmatprep.subr.mxu0 0.0
  %8991 = vmatpush1.msra.mxu0 0.0
  %8992 = vmatprep.subr.mxu0 0.0
  %8993 = vmatpush1.msra.mxu0 0.0
  %8994 = vmatprep.subr.mxu0 0.0
  %8995 = vmatpush1.msra.mxu0 0.0
  %8996 = vmatprep.subr.mxu0 0.0
  %8997 = vmatpush1.msra.mxu0 0.0
  %8998 = vmatprep.subr.mxu0 0.0
  %8999 = vmatpush1.msra.mxu0 0.0
  %9000 = vmatprep.subr.mxu0 0.0
  %9001 = vmatpush1.msra.mxu0 0.0
  %9002 = vmatprep.subr.mxu0 0.0
  %9003 = vmatpush1.msra.mxu0 0.0
  %9004 = vmatprep.subr.mxu0 0.0
  %9005 = vmatpush1.msra.mxu0 0.0
  %9006 = vmatprep.subr.mxu0 0.0
  %9007 = vmatpush1.msra.mxu0 0.0
  %9008 = vmatprep.subr.mxu0 0.0
  %9009 = vmatpush1.msra.mxu0 0.0
  %9010 = vmatprep.subr.mxu0 0.0
  %9011 = vmatpush1.msra.mxu0 0.0
  %9012 = vmatprep.subr.mxu0 0.0
  %9013 = vmatpush1.msra.mxu0 0.0
  %9014 = vmatprep.subr.mxu0 0.0
  %9015 = vmatpush1.msra.mxu0 0.0
  %9016 = vmatprep.subr.mxu0 0.0
  %9017 = vmatpush1.msra.mxu0 0.0
  %9018 = vmatprep.subr.mxu0 0.0
  %9019 = vmatpush1.msra.mxu0 0.0
  %9020 = vmatprep.subr.mxu0 0.0
  %9021 = vmatpush1.msra.mxu0 0.0
  %9022 = vmatprep.subr.mxu0 0.0
  %9023 = vmatpush1.msra.mxu0 0.0
  %9024 = vmatprep.subr.mxu0 0.0
  %9025 = vmatpush1.msra.mxu0 0.0
  %9026 = vmatprep.subr.mxu0 0.0
  %9027 = vmatpush1.msra.mxu0 0.0
  %9028 = vmatprep.subr.mxu0 0.0
  %9029 = vmatpush1.msra.mxu0 0.0
  %9030 = vmatprep.subr.mxu0 0.0
  %9031 = vmatpush1.msra.mxu0 0.0
  %9032 = vmatprep.subr.mxu0 0.0
  %9033 = vmatpush1.msra.mxu0 0.0
  %9034 = vmatprep.subr.mxu0 0.0
  %9035 = vmatpush1.msra.mxu0 0.0
  %9036 = vmatprep.subr.mxu0 0.0
  %9037 = vmatpush1.msra.mxu0 0.0
  %9038 = vmatprep.subr.mxu0 0.0
  %9039 = vmatpush1.msra.mxu0 0.0
  %9040 = vmatprep.subr.mxu0 0.0
  %9041 = vmatpush1.msra.mxu0 0.0
  %9042 = vmatprep.mubr.f32.mxu0 0.0
  %v9043 = vand.u32 %v8972, 4294901760
  %v9044 = vsub.f32 %v8972, %v9043
  %v9045 = vand.u32 %v9044, 4294901760
  %v9046 = vsub.f32 %v9044, %v9045
  %v9047 = vand.u32 %v9046, 4294901760
  %9048 = vmatmul.mubr.f32.gmra.mrb[0].mxu0 %v9047
  %v9049 = vpop.f32.mrb[0].mxu0
  %v9050 = vadd.f32 0.0, %v9049
  %v9051 = vpop.f32.mrb[0].mxu0
  %9052 = vdwg.mxu0
  %9053 = vmatprep.subr.mxu0 0.0
  %v9054 = vand.u32 %v5818, 4294901760
  %v9055 = vsub.f32 %v5818, %v9054
  %v9056 = vand.u32 %v9055, 4294901760
  %v9057 = vsub.f32 %v9055, %v9056
  %v9058 = vand.u32 %v9057, 4294901760
  %9059 = vmatpush1.msra.mxu0 %v9058
  %9060 = vmatprep.subr.mxu0 0.0
  %v9061 = vand.u32 %v5819, 4294901760
  %v9062 = vsub.f32 %v5819, %v9061
  %v9063 = vand.u32 %v9062, 4294901760
  %v9064 = vsub.f32 %v9062, %v9063
  %v9065 = vand.u32 %v9064, 4294901760
  %9066 = vmatpush1.msra.mxu0 %v9065
  %9067 = vmatprep.subr.mxu0 0.0
  %v9068 = vand.u32 %v5820, 4294901760
  %v9069 = vsub.f32 %v5820, %v9068
  %v9070 = vand.u32 %v9069, 4294901760
  %v9071 = vsub.f32 %v9069, %v9070
  %v9072 = vand.u32 %v9071, 4294901760
  %9073 = vmatpush1.msra.mxu0 %v9072
  %9074 = vmatprep.subr.mxu0 0.0
  %v9075 = vand.u32 %v5821, 4294901760
  %v9076 = vsub.f32 %v5821, %v9075
  %v9077 = vand.u32 %v9076, 4294901760
  %v9078 = vsub.f32 %v9076, %v9077
  %v9079 = vand.u32 %v9078, 4294901760
  %9080 = vmatpush1.msra.mxu0 %v9079
  %9081 = vmatprep.subr.mxu0 0.0
  %9082 = vmatpush1.msra.mxu0 0.0
  %9083 = vmatprep.subr.mxu0 0.0
  %9084 = vmatpush1.msra.mxu0 0.0
  %9085 = vmatprep.subr.mxu0 0.0
  %9086 = vmatpush1.msra.mxu0 0.0
  %9087 = vmatprep.subr.mxu0 0.0
  %9088 = vmatpush1.msra.mxu0 0.0
  %9089 = vmatprep.subr.mxu0 0.0
  %9090 = vmatpush1.msra.mxu0 0.0
  %9091 = vmatprep.subr.mxu0 0.0
  %9092 = vmatpush1.msra.mxu0 0.0
  %9093 = vmatprep.subr.mxu0 0.0
  %9094 = vmatpush1.msra.mxu0 0.0
  %9095 = vmatprep.subr.mxu0 0.0
  %9096 = vmatpush1.msra.mxu0 0.0
  %9097 = vmatprep.subr.mxu0 0.0
  %9098 = vmatpush1.msra.mxu0 0.0
  %9099 = vmatprep.subr.mxu0 0.0
  %9100 = vmatpush1.msra.mxu0 0.0
  %9101 = vmatprep.subr.mxu0 0.0
  %9102 = vmatpush1.msra.mxu0 0.0
  %9103 = vmatprep.subr.mxu0 0.0
  %9104 = vmatpush1.msra.mxu0 0.0
  %9105 = vmatprep.subr.mxu0 0.0
  %9106 = vmatpush1.msra.mxu0 0.0
  %9107 = vmatprep.subr.mxu0 0.0
  %9108 = vmatpush1.msra.mxu0 0.0
  %9109 = vmatprep.subr.mxu0 0.0
  %9110 = vmatpush1.msra.mxu0 0.0
  %9111 = vmatprep.subr.mxu0 0.0
  %9112 = vmatpush1.msra.mxu0 0.0
  %9113 = vmatprep.subr.mxu0 0.0
  %9114 = vmatpush1.msra.mxu0 0.0
  %9115 = vmatprep.subr.mxu0 0.0
  %9116 = vmatpush1.msra.mxu0 0.0
  %9117 = vmatprep.subr.mxu0 0.0
  %9118 = vmatpush1.msra.mxu0 0.0
  %9119 = vmatprep.subr.mxu0 0.0
  %9120 = vmatpush1.msra.mxu0 0.0
  %9121 = vmatprep.subr.mxu0 0.0
  %9122 = vmatpush1.msra.mxu0 0.0
  %9123 = vmatprep.subr.mxu0 0.0
  %9124 = vmatpush1.msra.mxu0 0.0
  %9125 = vmatprep.subr.mxu0 0.0
  %9126 = vmatpush1.msra.mxu0 0.0
  %9127 = vmatprep.subr.mxu0 0.0
  %9128 = vmatpush1.msra.mxu0 0.0
  %9129 = vmatprep.subr.mxu0 0.0
  %9130 = vmatpush1.msra.mxu0 0.0
  %9131 = vmatprep.subr.mxu0 0.0
  %9132 = vmatpush1.msra.mxu0 0.0
  %9133 = vmatprep.subr.mxu0 0.0
  %9134 = vmatpush1.msra.mxu0 0.0
  %9135 = vmatprep.subr.mxu0 0.0
  %9136 = vmatpush1.msra.mxu0 0.0
  %9137 = vmatprep.mubr.f32.mxu0 0.0
  %v9138 = vand.u32 %v8972, 4294901760
  %9139 = vmatmul.mubr.f32.gmra.mrb[0].mxu0 %v9138
  %v9140 = vpop.f32.mrb[0].mxu0
  %v9141 = vadd.f32 %v9050, %v9140
  %v9142 = vpop.f32.mrb[0].mxu0
  %9143 = vdwg.mxu0
  %9144 = vmatprep.subr.mxu0 0.0
  %v9145 = vand.u32 %v5818, 4294901760
  %v9146 = vsub.f32 %v5818, %v9145
  %9147 = vmatpush1.msra.mxu0 %v9146
  %9148 = vmatprep.subr.mxu0 0.0
  %v9149 = vand.u32 %v5819, 4294901760
  %v9150 = vsub.f32 %v5819, %v9149
  %9151 = vmatpush1.msra.mxu0 %v9150
  %9152 = vmatprep.subr.mxu0 0.0
  %v9153 = vand.u32 %v5820, 4294901760
  %v9154 = vsub.f32 %v5820, %v9153
  %9155 = vmatpush1.msra.mxu0 %v9154
  %9156 = vmatprep.subr.mxu0 0.0
  %v9157 = vand.u32 %v5821, 4294901760
  %v9158 = vsub.f32 %v5821, %v9157
  %9159 = vmatpush1.msra.mxu0 %v9158
  %9160 = vmatprep.subr.mxu0 0.0
  %9161 = vmatpush1.msra.mxu0 0.0
  %9162 = vmatprep.subr.mxu0 0.0
  %9163 = vmatpush1.msra.mxu0 0.0
  %9164 = vmatprep.subr.mxu0 0.0
  %9165 = vmatpush1.msra.mxu0 0.0
  %9166 = vmatprep.subr.mxu0 0.0
  %9167 = vmatpush1.msra.mxu0 0.0
  %9168 = vmatprep.subr.mxu0 0.0
  %9169 = vmatpush1.msra.mxu0 0.0
  %9170 = vmatprep.subr.mxu0 0.0
  %9171 = vmatpush1.msra.mxu0 0.0
  %9172 = vmatprep.subr.mxu0 0.0
  %9173 = vmatpush1.msra.mxu0 0.0
  %9174 = vmatprep.subr.mxu0 0.0
  %9175 = vmatpush1.msra.mxu0 0.0
  %9176 = vmatprep.subr.mxu0 0.0
  %9177 = vmatpush1.msra.mxu0 0.0
  %9178 = vmatprep.subr.mxu0 0.0
  %9179 = vmatpush1.msra.mxu0 0.0
  %9180 = vmatprep.subr.mxu0 0.0
  %9181 = vmatpush1.msra.mxu0 0.0
  %9182 = vmatprep.subr.mxu0 0.0
  %9183 = vmatpush1.msra.mxu0 0.0
  %9184 = vmatprep.subr.mxu0 0.0
  %9185 = vmatpush1.msra.mxu0 0.0
  %9186 = vmatprep.subr.mxu0 0.0
  %9187 = vmatpush1.msra.mxu0 0.0
  %9188 = vmatprep.subr.mxu0 0.0
  %9189 = vmatpush1.msra.mxu0 0.0
  %9190 = vmatprep.subr.mxu0 0.0
  %9191 = vmatpush1.msra.mxu0 0.0
  %9192 = vmatprep.subr.mxu0 0.0
  %9193 = vmatpush1.msra.mxu0 0.0
  %9194 = vmatprep.subr.mxu0 0.0
  %9195 = vmatpush1.msra.mxu0 0.0
  %9196 = vmatprep.subr.mxu0 0.0
  %9197 = vmatpush1.msra.mxu0 0.0
  %9198 = vmatprep.subr.mxu0 0.0
  %9199 = vmatpush1.msra.mxu0 0.0
  %9200 = vmatprep.subr.mxu0 0.0
  %9201 = vmatpush1.msra.mxu0 0.0
  %9202 = vmatprep.subr.mxu0 0.0
  %9203 = vmatpush1.msra.mxu0 0.0
  %9204 = vmatprep.subr.mxu0 0.0
  %9205 = vmatpush1.msra.mxu0 0.0
  %9206 = vmatprep.subr.mxu0 0.0
  %9207 = vmatpush1.msra.mxu0 0.0
  %9208 = vmatprep.subr.mxu0 0.0
  %9209 = vmatpush1.msra.mxu0 0.0
  %9210 = vmatprep.subr.mxu0 0.0
  %9211 = vmatpush1.msra.mxu0 0.0
  %9212 = vmatprep.subr.mxu0 0.0
  %9213 = vmatpush1.msra.mxu0 0.0
  %9214 = vmatprep.subr.mxu0 0.0
  %9215 = vmatpush1.msra.mxu0 0.0
  %9216 = vmatprep.mubr.f32.mxu0 0.0
  %v9217 = vand.u32 %v8972, 4294901760
  %v9218 = vsub.f32 %v8972, %v9217
  %9219 = vmatmul.mubr.f32.gmra.mrb[0].mxu0 %v9218
  %v9220 = vpop.f32.mrb[0].mxu0
  %v9221 = vadd.f32 %v9141, %v9220
  %v9222 = vpop.f32.mrb[0].mxu0
  %9223 = vdwg.mxu0
  %9224 = vmatprep.subr.mxu0 0.0
  %v9225 = vand.u32 %v5818, 4294901760
  %9226 = vmatpush1.msra.mxu0 %v9225
  %9227 = vmatprep.subr.mxu0 0.0
  %v9228 = vand.u32 %v5819, 4294901760
  %9229 = vmatpush1.msra.mxu0 %v9228
  %9230 = vmatprep.subr.mxu0 0.0
  %v9231 = vand.u32 %v5820, 4294901760
  %9232 = vmatpush1.msra.mxu0 %v9231
  %9233 = vmatprep.subr.mxu0 0.0
  %v9234 = vand.u32 %v5821, 4294901760
  %9235 = vmatpush1.msra.mxu0 %v9234
  %9236 = vmatprep.subr.mxu0 0.0
  %9237 = vmatpush1.msra.mxu0 0.0
  %9238 = vmatprep.subr.mxu0 0.0
  %9239 = vmatpush1.msra.mxu0 0.0
  %9240 = vmatprep.subr.mxu0 0.0
  %9241 = vmatpush1.msra.mxu0 0.0
  %9242 = vmatprep.subr.mxu0 0.0
  %9243 = vmatpush1.msra.mxu0 0.0
  %9244 = vmatprep.subr.mxu0 0.0
  %9245 = vmatpush1.msra.mxu0 0.0
  %9246 = vmatprep.subr.mxu0 0.0
  %9247 = vmatpush1.msra.mxu0 0.0
  %9248 = vmatprep.subr.mxu0 0.0
  %9249 = vmatpush1.msra.mxu0 0.0
  %9250 = vmatprep.subr.mxu0 0.0
  %9251 = vmatpush1.msra.mxu0 0.0
  %9252 = vmatprep.subr.mxu0 0.0
  %9253 = vmatpush1.msra.mxu0 0.0
  %9254 = vmatprep.subr.mxu0 0.0
  %9255 = vmatpush1.msra.mxu0 0.0
  %9256 = vmatprep.subr.mxu0 0.0
  %9257 = vmatpush1.msra.mxu0 0.0
  %9258 = vmatprep.subr.mxu0 0.0
  %9259 = vmatpush1.msra.mxu0 0.0
  %9260 = vmatprep.subr.mxu0 0.0
  %9261 = vmatpush1.msra.mxu0 0.0
  %9262 = vmatprep.subr.mxu0 0.0
  %9263 = vmatpush1.msra.mxu0 0.0
  %9264 = vmatprep.subr.mxu0 0.0
  %9265 = vmatpush1.msra.mxu0 0.0
  %9266 = vmatprep.subr.mxu0 0.0
  %9267 = vmatpush1.msra.mxu0 0.0
  %9268 = vmatprep.subr.mxu0 0.0
  %9269 = vmatpush1.msra.mxu0 0.0
  %9270 = vmatprep.subr.mxu0 0.0
  %9271 = vmatpush1.msra.mxu0 0.0
  %9272 = vmatprep.subr.mxu0 0.0
  %9273 = vmatpush1.msra.mxu0 0.0
  %9274 = vmatprep.subr.mxu0 0.0
  %9275 = vmatpush1.msra.mxu0 0.0
  %9276 = vmatprep.subr.mxu0 0.0
  %9277 = vmatpush1.msra.mxu0 0.0
  %9278 = vmatprep.subr.mxu0 0.0
  %9279 = vmatpush1.msra.mxu0 0.0
  %9280 = vmatprep.subr.mxu0 0.0
  %9281 = vmatpush1.msra.mxu0 0.0
  %9282 = vmatprep.subr.mxu0 0.0
  %9283 = vmatpush1.msra.mxu0 0.0
  %9284 = vmatprep.subr.mxu0 0.0
  %9285 = vmatpush1.msra.mxu0 0.0
  %9286 = vmatprep.subr.mxu0 0.0
  %9287 = vmatpush1.msra.mxu0 0.0
  %9288 = vmatprep.subr.mxu0 0.0
  %9289 = vmatpush1.msra.mxu0 0.0
  %9290 = vmatprep.subr.mxu0 0.0
  %9291 = vmatpush1.msra.mxu0 0.0
  %9292 = vmatprep.mubr.f32.mxu0 0.0
  %v9293 = vand.u32 %v8972, 4294901760
  %v9294 = vsub.f32 %v8972, %v9293
  %v9295 = vand.u32 %v9294, 4294901760
  %9296 = vmatmul.mubr.f32.gmra.mrb[0].mxu0 %v9295
  %v9297 = vpop.f32.mrb[0].mxu0
  %v9298 = vadd.f32 %v9221, %v9297
  %v9299 = vpop.f32.mrb[0].mxu0
  %9300 = vdwg.mxu0
  %9301 = vmatprep.subr.mxu0 0.0
  %v9302 = vand.u32 %v5818, 4294901760
  %v9303 = vsub.f32 %v5818, %v9302
  %v9304 = vand.u32 %v9303, 4294901760
  %9305 = vmatpush1.msra.mxu0 %v9304
  %9306 = vmatprep.subr.mxu0 0.0
  %v9307 = vand.u32 %v5819, 4294901760
  %v9308 = vsub.f32 %v5819, %v9307
  %v9309 = vand.u32 %v9308, 4294901760
  %9310 = vmatpush1.msra.mxu0 %v9309
  %9311 = vmatprep.subr.mxu0 0.0
  %v9312 = vand.u32 %v5820, 4294901760
  %v9313 = vsub.f32 %v5820, %v9312
  %v9314 = vand.u32 %v9313, 4294901760
  %9315 = vmatpush1.msra.mxu0 %v9314
  %9316 = vmatprep.subr.mxu0 0.0
  %v9317 = vand.u32 %v5821, 4294901760
  %v9318 = vsub.f32 %v5821, %v9317
  %v9319 = vand.u32 %v9318, 4294901760
  %9320 = vmatpush1.msra.mxu0 %v9319
  %9321 = vmatprep.subr.mxu0 0.0
  %9322 = vmatpush1.msra.mxu0 0.0
  %9323 = vmatprep.subr.mxu0 0.0
  %9324 = vmatpush1.msra.mxu0 0.0
  %9325 = vmatprep.subr.mxu0 0.0
  %9326 = vmatpush1.msra.mxu0 0.0
  %9327 = vmatprep.subr.mxu0 0.0
  %9328 = vmatpush1.msra.mxu0 0.0
  %9329 = vmatprep.subr.mxu0 0.0
  %9330 = vmatpush1.msra.mxu0 0.0
  %9331 = vmatprep.subr.mxu0 0.0
  %9332 = vmatpush1.msra.mxu0 0.0
  %9333 = vmatprep.subr.mxu0 0.0
  %9334 = vmatpush1.msra.mxu0 0.0
  %9335 = vmatprep.subr.mxu0 0.0
  %9336 = vmatpush1.msra.mxu0 0.0
  %9337 = vmatprep.subr.mxu0 0.0
  %9338 = vmatpush1.msra.mxu0 0.0
  %9339 = vmatprep.subr.mxu0 0.0
  %9340 = vmatpush1.msra.mxu0 0.0
  %9341 = vmatprep.subr.mxu0 0.0
  %9342 = vmatpush1.msra.mxu0 0.0
  %9343 = vmatprep.subr.mxu0 0.0
  %9344 = vmatpush1.msra.mxu0 0.0
  %9345 = vmatprep.subr.mxu0 0.0
  %9346 = vmatpush1.msra.mxu0 0.0
  %9347 = vmatprep.subr.mxu0 0.0
  %9348 = vmatpush1.msra.mxu0 0.0
  %9349 = vmatprep.subr.mxu0 0.0
  %9350 = vmatpush1.msra.mxu0 0.0
  %9351 = vmatprep.subr.mxu0 0.0
  %9352 = vmatpush1.msra.mxu0 0.0
  %9353 = vmatprep.subr.mxu0 0.0
  %9354 = vmatpush1.msra.mxu0 0.0
  %9355 = vmatprep.subr.mxu0 0.0
  %9356 = vmatpush1.msra.mxu0 0.0
  %9357 = vmatprep.subr.mxu0 0.0
  %9358 = vmatpush1.msra.mxu0 0.0
  %9359 = vmatprep.subr.mxu0 0.0
  %9360 = vmatpush1.msra.mxu0 0.0
  %9361 = vmatprep.subr.mxu0 0.0
  %9362 = vmatpush1.msra.mxu0 0.0
  %9363 = vmatprep.subr.mxu0 0.0
  %9364 = vmatpush1.msra.mxu0 0.0
  %9365 = vmatprep.subr.mxu0 0.0
  %9366 = vmatpush1.msra.mxu0 0.0
  %9367 = vmatprep.subr.mxu0 0.0
  %9368 = vmatpush1.msra.mxu0 0.0
  %9369 = vmatprep.subr.mxu0 0.0
  %9370 = vmatpush1.msra.mxu0 0.0
  %9371 = vmatprep.subr.mxu0 0.0
  %9372 = vmatpush1.msra.mxu0 0.0
  %9373 = vmatprep.subr.mxu0 0.0
  %9374 = vmatpush1.msra.mxu0 0.0
  %9375 = vmatprep.subr.mxu0 0.0
  %9376 = vmatpush1.msra.mxu0 0.0
  %9377 = vmatprep.mubr.f32.mxu0 0.0
  %v9378 = vand.u32 %v8972, 4294901760
  %9379 = vmatmul.mubr.f32.gmra.mrb[0].mxu0 %v9378
  %v9380 = vpop.f32.mrb[0].mxu0
  %v9381 = vadd.f32 %v9298, %v9380
  %v9382 = vpop.f32.mrb[0].mxu0
  %9383 = vdwg.mxu0
  %9384 = vmatprep.subr.mxu0 0.0
  %v9385 = vand.u32 %v5818, 4294901760
  %9386 = vmatpush1.msra.mxu0 %v9385
  %9387 = vmatprep.subr.mxu0 0.0
  %v9388 = vand.u32 %v5819, 4294901760
  %9389 = vmatpush1.msra.mxu0 %v9388
  %9390 = vmatprep.subr.mxu0 0.0
  %v9391 = vand.u32 %v5820, 4294901760
  %9392 = vmatpush1.msra.mxu0 %v9391
  %9393 = vmatprep.subr.mxu0 0.0
  %v9394 = vand.u32 %v5821, 4294901760
  %9395 = vmatpush1.msra.mxu0 %v9394
  %9396 = vmatprep.subr.mxu0 0.0
  %9397 = vmatpush1.msra.mxu0 0.0
  %9398 = vmatprep.subr.mxu0 0.0
  %9399 = vmatpush1.msra.mxu0 0.0
  %9400 = vmatprep.subr.mxu0 0.0
  %9401 = vmatpush1.msra.mxu0 0.0
  %9402 = vmatprep.subr.mxu0 0.0
  %9403 = vmatpush1.msra.mxu0 0.0
  %9404 = vmatprep.subr.mxu0 0.0
  %9405 = vmatpush1.msra.mxu0 0.0
  %9406 = vmatprep.subr.mxu0 0.0
  %9407 = vmatpush1.msra.mxu0 0.0
  %9408 = vmatprep.subr.mxu0 0.0
  %9409 = vmatpush1.msra.mxu0 0.0
  %9410 = vmatprep.subr.mxu0 0.0
  %9411 = vmatpush1.msra.mxu0 0.0
  %9412 = vmatprep.subr.mxu0 0.0
  %9413 = vmatpush1.msra.mxu0 0.0
  %9414 = vmatprep.subr.mxu0 0.0
  %9415 = vmatpush1.msra.mxu0 0.0
  %9416 = vmatprep.subr.mxu0 0.0
  %9417 = vmatpush1.msra.mxu0 0.0
  %9418 = vmatprep.subr.mxu0 0.0
  %9419 = vmatpush1.msra.mxu0 0.0
  %9420 = vmatprep.subr.mxu0 0.0
  %9421 = vmatpush1.msra.mxu0 0.0
  %9422 = vmatprep.subr.mxu0 0.0
  %9423 = vmatpush1.msra.mxu0 0.0
  %9424 = vmatprep.subr.mxu0 0.0
  %9425 = vmatpush1.msra.mxu0 0.0
  %9426 = vmatprep.subr.mxu0 0.0
  %9427 = vmatpush1.msra.mxu0 0.0
  %9428 = vmatprep.subr.mxu0 0.0
  %9429 = vmatpush1.msra.mxu0 0.0
  %9430 = vmatprep.subr.mxu0 0.0
  %9431 = vmatpush1.msra.mxu0 0.0
  %9432 = vmatprep.subr.mxu0 0.0
  %9433 = vmatpush1.msra.mxu0 0.0
  %9434 = vmatprep.subr.mxu0 0.0
  %9435 = vmatpush1.msra.mxu0 0.0
  %9436 = vmatprep.subr.mxu0 0.0
  %9437 = vmatpush1.msra.mxu0 0.0
  %9438 = vmatprep.subr.mxu0 0.0
  %9439 = vmatpush1.msra.mxu0 0.0
  %9440 = vmatprep.subr.mxu0 0.0
  %9441 = vmatpush1.msra.mxu0 0.0
  %9442 = vmatprep.subr.mxu0 0.0
  %9443 = vmatpush1.msra.mxu0 0.0
  %9444 = vmatprep.subr.mxu0 0.0
  %9445 = vmatpush1.msra.mxu0 0.0
  %9446 = vmatprep.subr.mxu0 0.0
  %9447 = vmatpush1.msra.mxu0 0.0
  %9448 = vmatprep.subr.mxu0 0.0
  %9449 = vmatpush1.msra.mxu0 0.0
  %9450 = vmatprep.subr.mxu0 0.0
  %9451 = vmatpush1.msra.mxu0 0.0
  %9452 = vmatprep.mubr.f32.mxu0 0.0
  %v9453 = vand.u32 %v8972, 4294901760
  %9454 = vmatmul.mubr.f32.gmra.mrb[0].mxu0 %v9453
  %v9455 = vpop.f32.mrb[0].mxu0
  %v9456 = vadd.f32 %v9381, %v9455
  %v9457 = vpop.f32.mrb[0].mxu0
  %9458 = vdwg.mxu0
  %v9459 = vadd.f32 %v8971, %v9456
  %v9460 = vxor.u32 %v9459, 2147483648
  %v9461 = vmul.f32 %v9460, 1.442695
  %v9462 = vpow.pop %v9461
  %v9463 = vadd.f32 %v9462, 1.0
  %v9464 = vrcp.pop %v9463
  %v9465 = vmul.f32 1.0, %v9464
  %v9466 = vtanh.pop %v9459
  %v9467 = vmul.f32 %v9465, %v8953
  %9469 = vrot.lane.b32.xlu0 %v9466, 64
  %v9470 = vpop.permute.xlu0 %9469
  %v9472 = vmul.f32 %v9465, %v9470
  %9474 = vrot.lane.b32.xlu0 %v9472, 32
  %v9475 = vpop.permute.xlu0 %9474
  %v9477 = vadd.f32 %v9467, %v9475
  %v9478 = vtanh.pop %v9477
  %9480 = vrot.lane.b32.xlu0 %v9478, 64
  %v9481 = vpop.permute.xlu0 %9480
  %v9483 = vmul.f32 %v9465, %v9481
  %9485 = vrot.lane.b32.xlu0 %v9483, 32
  %v9486 = vpop.permute.xlu0 %9485
  %9488 = vst.msk [vmem:[#allocation5 + $0x6] sm:$0x1] %vm1084, %v9486
  %9489 = vst.msk [vmem:[#allocation5 + $0xd] sm:$0x2] %vm1086, %v9486
  %v9490 = vld [vmem:[#allocation4 + $0x7] sm:$0x1]
  %v9491 = vld [vmem:[#allocation4 + $0xf] sm:$0x1]
  %v9493 = vrot.slane %v9491, 7
  %v9495 = vsel %vm564, %v9490, %v9493
  %v9496 = vsel %vm566, %v9486, 0
  %9498 = vmatprep.subr.mxu0 0.0
  %v9499 = vand.u32 %v5818, 4294901760
  %9500 = vmatpush1.msra.mxu0 %v9499
  %9501 = vmatprep.subr.mxu0 0.0
  %v9502 = vand.u32 %v5819, 4294901760
  %9503 = vmatpush1.msra.mxu0 %v9502
  %9504 = vmatprep.subr.mxu0 0.0
  %v9505 = vand.u32 %v5820, 4294901760
  %9506 = vmatpush1.msra.mxu0 %v9505
  %9507 = vmatprep.subr.mxu0 0.0
  %v9508 = vand.u32 %v5821, 4294901760
  %9509 = vmatpush1.msra.mxu0 %v9508
  %9510 = vmatprep.subr.mxu0 0.0
  %9511 = vmatpush1.msra.mxu0 0.0
  %9512 = vmatprep.subr.mxu0 0.0
  %9513 = vmatpush1.msra.mxu0 0.0
  %9514 = vmatprep.subr.mxu0 0.0
  %9515 = vmatpush1.msra.mxu0 0.0
  %9516 = vmatprep.subr.mxu0 0.0
  %9517 = vmatpush1.msra.mxu0 0.0
  %9518 = vmatprep.subr.mxu0 0.0
  %9519 = vmatpush1.msra.mxu0 0.0
  %9520 = vmatprep.subr.mxu0 0.0
  %9521 = vmatpush1.msra.mxu0 0.0
  %9522 = vmatprep.subr.mxu0 0.0
  %9523 = vmatpush1.msra.mxu0 0.0
  %9524 = vmatprep.subr.mxu0 0.0
  %9525 = vmatpush1.msra.mxu0 0.0
  %9526 = vmatprep.subr.mxu0 0.0
  %9527 = vmatpush1.msra.mxu0 0.0
  %9528 = vmatprep.subr.mxu0 0.0
  %9529 = vmatpush1.msra.mxu0 0.0
  %9530 = vmatprep.subr.mxu0 0.0
  %9531 = vmatpush1.msra.mxu0 0.0
  %9532 = vmatprep.subr.mxu0 0.0
  %9533 = vmatpush1.msra.mxu0 0.0
  %9534 = vmatprep.subr.mxu0 0.0
  %9535 = vmatpush1.msra.mxu0 0.0
  %9536 = vmatprep.subr.mxu0 0.0
  %9537 = vmatpush1.msra.mxu0 0.0
  %9538 = vmatprep.subr.mxu0 0.0
  %9539 = vmatpush1.msra.mxu0 0.0
  %9540 = vmatprep.subr.mxu0 0.0
  %9541 = vmatpush1.msra.mxu0 0.0
  %9542 = vmatprep.subr.mxu0 0.0
  %9543 = vmatpush1.msra.mxu0 0.0
  %9544 = vmatprep.subr.mxu0 0.0
  %9545 = vmatpush1.msra.mxu0 0.0
  %9546 = vmatprep.subr.mxu0 0.0
  %9547 = vmatpush1.msra.mxu0 0.0
  %9548 = vmatprep.subr.mxu0 0.0
  %9549 = vmatpush1.msra.mxu0 0.0
  %9550 = vmatprep.subr.mxu0 0.0
  %9551 = vmatpush1.msra.mxu0 0.0
  %9552 = vmatprep.subr.mxu0 0.0
  %9553 = vmatpush1.msra.mxu0 0.0
  %9554 = vmatprep.subr.mxu0 0.0
  %9555 = vmatpush1.msra.mxu0 0.0
  %9556 = vmatprep.subr.mxu0 0.0
  %9557 = vmatpush1.msra.mxu0 0.0
  %9558 = vmatprep.subr.mxu0 0.0
  %9559 = vmatpush1.msra.mxu0 0.0
  %9560 = vmatprep.subr.mxu0 0.0
  %9561 = vmatpush1.msra.mxu0 0.0
  %9562 = vmatprep.subr.mxu0 0.0
  %9563 = vmatpush1.msra.mxu0 0.0
  %9564 = vmatprep.subr.mxu0 0.0
  %9565 = vmatpush1.msra.mxu0 0.0
  %9566 = vmatprep.mubr.f32.mxu0 0.0
  %v9567 = vand.u32 %v9496, 4294901760
  %v9568 = vsub.f32 %v9496, %v9567
  %v9569 = vand.u32 %v9568, 4294901760
  %v9570 = vsub.f32 %v9568, %v9569
  %v9571 = vand.u32 %v9570, 4294901760
  %9572 = vmatmul.mubr.f32.gmra.mrb[0].mxu0 %v9571
  %v9573 = vpop.f32.mrb[0].mxu0
  %v9574 = vadd.f32 0.0, %v9573
  %v9575 = vpop.f32.mrb[0].mxu0
  %9576 = vdwg.mxu0
  %9577 = vmatprep.subr.mxu0 0.0
  %v9578 = vand.u32 %v5818, 4294901760
  %v9579 = vsub.f32 %v5818, %v9578
  %v9580 = vand.u32 %v9579, 4294901760
  %v9581 = vsub.f32 %v9579, %v9580
  %v9582 = vand.u32 %v9581, 4294901760
  %9583 = vmatpush1.msra.mxu0 %v9582
  %9584 = vmatprep.subr.mxu0 0.0
  %v9585 = vand.u32 %v5819, 4294901760
  %v9586 = vsub.f32 %v5819, %v9585
  %v9587 = vand.u32 %v9586, 4294901760
  %v9588 = vsub.f32 %v9586, %v9587
  %v9589 = vand.u32 %v9588, 4294901760
  %9590 = vmatpush1.msra.mxu0 %v9589
  %9591 = vmatprep.subr.mxu0 0.0
  %v9592 = vand.u32 %v5820, 4294901760
  %v9593 = vsub.f32 %v5820, %v9592
  %v9594 = vand.u32 %v9593, 4294901760
  %v9595 = vsub.f32 %v9593, %v9594
  %v9596 = vand.u32 %v9595, 4294901760
  %9597 = vmatpush1.msra.mxu0 %v9596
  %9598 = vmatprep.subr.mxu0 0.0
  %v9599 = vand.u32 %v5821, 4294901760
  %v9600 = vsub.f32 %v5821, %v9599
  %v9601 = vand.u32 %v9600, 4294901760
  %v9602 = vsub.f32 %v9600, %v9601
  %v9603 = vand.u32 %v9602, 4294901760
  %9604 = vmatpush1.msra.mxu0 %v9603
  %9605 = vmatprep.subr.mxu0 0.0
  %9606 = vmatpush1.msra.mxu0 0.0
  %9607 = vmatprep.subr.mxu0 0.0
  %9608 = vmatpush1.msra.mxu0 0.0
  %9609 = vmatprep.subr.mxu0 0.0
  %9610 = vmatpush1.msra.mxu0 0.0
  %9611 = vmatprep.subr.mxu0 0.0
  %9612 = vmatpush1.msra.mxu0 0.0
  %9613 = vmatprep.subr.mxu0 0.0
  %9614 = vmatpush1.msra.mxu0 0.0
  %9615 = vmatprep.subr.mxu0 0.0
  %9616 = vmatpush1.msra.mxu0 0.0
  %9617 = vmatprep.subr.mxu0 0.0
  %9618 = vmatpush1.msra.mxu0 0.0
  %9619 = vmatprep.subr.mxu0 0.0
  %9620 = vmatpush1.msra.mxu0 0.0
  %9621 = vmatprep.subr.mxu0 0.0
  %9622 = vmatpush1.msra.mxu0 0.0
  %9623 = vmatprep.subr.mxu0 0.0
  %9624 = vmatpush1.msra.mxu0 0.0
  %9625 = vmatprep.subr.mxu0 0.0
  %9626 = vmatpush1.msra.mxu0 0.0
  %9627 = vmatprep.subr.mxu0 0.0
  %9628 = vmatpush1.msra.mxu0 0.0
  %9629 = vmatprep.subr.mxu0 0.0
  %9630 = vmatpush1.msra.mxu0 0.0
  %9631 = vmatprep.subr.mxu0 0.0
  %9632 = vmatpush1.msra.mxu0 0.0
  %9633 = vmatprep.subr.mxu0 0.0
  %9634 = vmatpush1.msra.mxu0 0.0
  %9635 = vmatprep.subr.mxu0 0.0
  %9636 = vmatpush1.msra.mxu0 0.0
  %9637 = vmatprep.subr.mxu0 0.0
  %9638 = vmatpush1.msra.mxu0 0.0
  %9639 = vmatprep.subr.mxu0 0.0
  %9640 = vmatpush1.msra.mxu0 0.0
  %9641 = vmatprep.subr.mxu0 0.0
  %9642 = vmatpush1.msra.mxu0 0.0
  %9643 = vmatprep.subr.mxu0 0.0
  %9644 = vmatpush1.msra.mxu0 0.0
  %9645 = vmatprep.subr.mxu0 0.0
  %9646 = vmatpush1.msra.mxu0 0.0
  %9647 = vmatprep.subr.mxu0 0.0
  %9648 = vmatpush1.msra.mxu0 0.0
  %9649 = vmatprep.subr.mxu0 0.0
  %9650 = vmatpush1.msra.mxu0 0.0
  %9651 = vmatprep.subr.mxu0 0.0
  %9652 = vmatpush1.msra.mxu0 0.0
  %9653 = vmatprep.subr.mxu0 0.0
  %9654 = vmatpush1.msra.mxu0 0.0
  %9655 = vmatprep.subr.mxu0 0.0
  %9656 = vmatpush1.msra.mxu0 0.0
  %9657 = vmatprep.subr.mxu0 0.0
  %9658 = vmatpush1.msra.mxu0 0.0
  %9659 = vmatprep.subr.mxu0 0.0
  %9660 = vmatpush1.msra.mxu0 0.0
  %9661 = vmatprep.mubr.f32.mxu0 0.0
  %v9662 = vand.u32 %v9496, 4294901760
  %9663 = vmatmul.mubr.f32.gmra.mrb[0].mxu0 %v9662
  %v9664 = vpop.f32.mrb[0].mxu0
  %v9665 = vadd.f32 %v9574, %v9664
  %v9666 = vpop.f32.mrb[0].mxu0
  %9667 = vdwg.mxu0
  %9668 = vmatprep.subr.mxu0 0.0
  %v9669 = vand.u32 %v5818, 4294901760
  %v9670 = vsub.f32 %v5818, %v9669
  %9671 = vmatpush1.msra.mxu0 %v9670
  %9672 = vmatprep.subr.mxu0 0.0
  %v9673 = vand.u32 %v5819, 4294901760
  %v9674 = vsub.f32 %v5819, %v9673
  %9675 = vmatpush1.msra.mxu0 %v9674
  %9676 = vmatprep.subr.mxu0 0.0
  %v9677 = vand.u32 %v5820, 4294901760
  %v9678 = vsub.f32 %v5820, %v9677
  %9679 = vmatpush1.msra.mxu0 %v9678
  %9680 = vmatprep.subr.mxu0 0.0
  %v9681 = vand.u32 %v5821, 4294901760
  %v9682 = vsub.f32 %v5821, %v9681
  %9683 = vmatpush1.msra.mxu0 %v9682
  %9684 = vmatprep.subr.mxu0 0.0
  %9685 = vmatpush1.msra.mxu0 0.0
  %9686 = vmatprep.subr.mxu0 0.0
  %9687 = vmatpush1.msra.mxu0 0.0
  %9688 = vmatprep.subr.mxu0 0.0
  %9689 = vmatpush1.msra.mxu0 0.0
  %9690 = vmatprep.subr.mxu0 0.0
  %9691 = vmatpush1.msra.mxu0 0.0
  %9692 = vmatprep.subr.mxu0 0.0
  %9693 = vmatpush1.msra.mxu0 0.0
  %9694 = vmatprep.subr.mxu0 0.0
  %9695 = vmatpush1.msra.mxu0 0.0
  %9696 = vmatprep.subr.mxu0 0.0
  %9697 = vmatpush1.msra.mxu0 0.0
  %9698 = vmatprep.subr.mxu0 0.0
  %9699 = vmatpush1.msra.mxu0 0.0
  %9700 = vmatprep.subr.mxu0 0.0
  %9701 = vmatpush1.msra.mxu0 0.0
  %9702 = vmatprep.subr.mxu0 0.0
  %9703 = vmatpush1.msra.mxu0 0.0
  %9704 = vmatprep.subr.mxu0 0.0
  %9705 = vmatpush1.msra.mxu0 0.0
  %9706 = vmatprep.subr.mxu0 0.0
  %9707 = vmatpush1.msra.mxu0 0.0
  %9708 = vmatprep.subr.mxu0 0.0
  %9709 = vmatpush1.msra.mxu0 0.0
  %9710 = vmatprep.subr.mxu0 0.0
  %9711 = vmatpush1.msra.mxu0 0.0
  %9712 = vmatprep.subr.mxu0 0.0
  %9713 = vmatpush1.msra.mxu0 0.0
  %9714 = vmatprep.subr.mxu0 0.0
  %9715 = vmatpush1.msra.mxu0 0.0
  %9716 = vmatprep.subr.mxu0 0.0
  %9717 = vmatpush1.msra.mxu0 0.0
  %9718 = vmatprep.subr.mxu0 0.0
  %9719 = vmatpush1.msra.mxu0 0.0
  %9720 = vmatprep.subr.mxu0 0.0
  %9721 = vmatpush1.msra.mxu0 0.0
  %9722 = vmatprep.subr.mxu0 0.0
  %9723 = vmatpush1.msra.mxu0 0.0
  %9724 = vmatprep.subr.mxu0 0.0
  %9725 = vmatpush1.msra.mxu0 0.0
  %9726 = vmatprep.subr.mxu0 0.0
  %9727 = vmatpush1.msra.mxu0 0.0
  %9728 = vmatprep.subr.mxu0 0.0
  %9729 = vmatpush1.msra.mxu0 0.0
  %9730 = vmatprep.subr.mxu0 0.0
  %9731 = vmatpush1.msra.mxu0 0.0
  %9732 = vmatprep.subr.mxu0 0.0
  %9733 = vmatpush1.msra.mxu0 0.0
  %9734 = vmatprep.subr.mxu0 0.0
  %9735 = vmatpush1.msra.mxu0 0.0
  %9736 = vmatprep.subr.mxu0 0.0
  %9737 = vmatpush1.msra.mxu0 0.0
  %9738 = vmatprep.subr.mxu0 0.0
  %9739 = vmatpush1.msra.mxu0 0.0
  %9740 = vmatprep.mubr.f32.mxu0 0.0
  %v9741 = vand.u32 %v9496, 4294901760
  %v9742 = vsub.f32 %v9496, %v9741
  %9743 = vmatmul.mubr.f32.gmra.mrb[0].mxu0 %v9742
  %v9744 = vpop.f32.mrb[0].mxu0
  %v9745 = vadd.f32 %v9665, %v9744
  %v9746 = vpop.f32.mrb[0].mxu0
  %9747 = vdwg.mxu0
  %9748 = vmatprep.subr.mxu0 0.0
  %v9749 = vand.u32 %v5818, 4294901760
  %9750 = vmatpush1.msra.mxu0 %v9749
  %9751 = vmatprep.subr.mxu0 0.0
  %v9752 = vand.u32 %v5819, 4294901760
  %9753 = vmatpush1.msra.mxu0 %v9752
  %9754 = vmatprep.subr.mxu0 0.0
  %v9755 = vand.u32 %v5820, 4294901760
  %9756 = vmatpush1.msra.mxu0 %v9755
  %9757 = vmatprep.subr.mxu0 0.0
  %v9758 = vand.u32 %v5821, 4294901760
  %9759 = vmatpush1.msra.mxu0 %v9758
  %9760 = vmatprep.subr.mxu0 0.0
  %9761 = vmatpush1.msra.mxu0 0.0
  %9762 = vmatprep.subr.mxu0 0.0
  %9763 = vmatpush1.msra.mxu0 0.0
  %9764 = vmatprep.subr.mxu0 0.0
  %9765 = vmatpush1.msra.mxu0 0.0
  %9766 = vmatprep.subr.mxu0 0.0
  %9767 = vmatpush1.msra.mxu0 0.0
  %9768 = vmatprep.subr.mxu0 0.0
  %9769 = vmatpush1.msra.mxu0 0.0
  %9770 = vmatprep.subr.mxu0 0.0
  %9771 = vmatpush1.msra.mxu0 0.0
  %9772 = vmatprep.subr.mxu0 0.0
  %9773 = vmatpush1.msra.mxu0 0.0
  %9774 = vmatprep.subr.mxu0 0.0
  %9775 = vmatpush1.msra.mxu0 0.0
  %9776 = vmatprep.subr.mxu0 0.0
  %9777 = vmatpush1.msra.mxu0 0.0
  %9778 = vmatprep.subr.mxu0 0.0
  %9779 = vmatpush1.msra.mxu0 0.0
  %9780 = vmatprep.subr.mxu0 0.0
  %9781 = vmatpush1.msra.mxu0 0.0
  %9782 = vmatprep.subr.mxu0 0.0
  %9783 = vmatpush1.msra.mxu0 0.0
  %9784 = vmatprep.subr.mxu0 0.0
  %9785 = vmatpush1.msra.mxu0 0.0
  %9786 = vmatprep.subr.mxu0 0.0
  %9787 = vmatpush1.msra.mxu0 0.0
  %9788 = vmatprep.subr.mxu0 0.0
  %9789 = vmatpush1.msra.mxu0 0.0
  %9790 = vmatprep.subr.mxu0 0.0
  %9791 = vmatpush1.msra.mxu0 0.0
  %9792 = vmatprep.subr.mxu0 0.0
  %9793 = vmatpush1.msra.mxu0 0.0
  %9794 = vmatprep.subr.mxu0 0.0
  %9795 = vmatpush1.msra.mxu0 0.0
  %9796 = vmatprep.subr.mxu0 0.0
  %9797 = vmatpush1.msra.mxu0 0.0
  %9798 = vmatprep.subr.mxu0 0.0
  %9799 = vmatpush1.msra.mxu0 0.0
  %9800 = vmatprep.subr.mxu0 0.0
  %9801 = vmatpush1.msra.mxu0 0.0
  %9802 = vmatprep.subr.mxu0 0.0
  %9803 = vmatpush1.msra.mxu0 0.0
  %9804 = vmatprep.subr.mxu0 0.0
  %9805 = vmatpush1.msra.mxu0 0.0
  %9806 = vmatprep.subr.mxu0 0.0
  %9807 = vmatpush1.msra.mxu0 0.0
  %9808 = vmatprep.subr.mxu0 0.0
  %9809 = vmatpush1.msra.mxu0 0.0
  %9810 = vmatprep.subr.mxu0 0.0
  %9811 = vmatpush1.msra.mxu0 0.0
  %9812 = vmatprep.subr.mxu0 0.0
  %9813 = vmatpush1.msra.mxu0 0.0
  %9814 = vmatprep.subr.mxu0 0.0
  %9815 = vmatpush1.msra.mxu0 0.0
  %9816 = vmatprep.mubr.f32.mxu0 0.0
  %v9817 = vand.u32 %v9496, 4294901760
  %v9818 = vsub.f32 %v9496, %v9817
  %v9819 = vand.u32 %v9818, 4294901760
  %9820 = vmatmul.mubr.f32.gmra.mrb[0].mxu0 %v9819
  %v9821 = vpop.f32.mrb[0].mxu0
  %v9822 = vadd.f32 %v9745, %v9821
  %v9823 = vpop.f32.mrb[0].mxu0
  %9824 = vdwg.mxu0
  %9825 = vmatprep.subr.mxu0 0.0
  %v9826 = vand.u32 %v5818, 4294901760
  %v9827 = vsub.f32 %v5818, %v9826
  %v9828 = vand.u32 %v9827, 4294901760
  %9829 = vmatpush1.msra.mxu0 %v9828
  %9830 = vmatprep.subr.mxu0 0.0
  %v9831 = vand.u32 %v5819, 4294901760
  %v9832 = vsub.f32 %v5819, %v9831
  %v9833 = vand.u32 %v9832, 4294901760
  %9834 = vmatpush1.msra.mxu0 %v9833
  %9835 = vmatprep.subr.mxu0 0.0
  %v9836 = vand.u32 %v5820, 4294901760
  %v9837 = vsub.f32 %v5820, %v9836
  %v9838 = vand.u32 %v9837, 4294901760
  %9839 = vmatpush1.msra.mxu0 %v9838
  %9840 = vmatprep.subr.mxu0 0.0
  %v9841 = vand.u32 %v5821, 4294901760
  %v9842 = vsub.f32 %v5821, %v9841
  %v9843 = vand.u32 %v9842, 4294901760
  %9844 = vmatpush1.msra.mxu0 %v9843
  %9845 = vmatprep.subr.mxu0 0.0
  %9846 = vmatpush1.msra.mxu0 0.0
  %9847 = vmatprep.subr.mxu0 0.0
  %9848 = vmatpush1.msra.mxu0 0.0
  %9849 = vmatprep.subr.mxu0 0.0
  %9850 = vmatpush1.msra.mxu0 0.0
  %9851 = vmatprep.subr.mxu0 0.0
  %9852 = vmatpush1.msra.mxu0 0.0
  %9853 = vmatprep.subr.mxu0 0.0
  %9854 = vmatpush1.msra.mxu0 0.0
  %9855 = vmatprep.subr.mxu0 0.0
  %9856 = vmatpush1.msra.mxu0 0.0
  %9857 = vmatprep.subr.mxu0 0.0
  %9858 = vmatpush1.msra.mxu0 0.0
  %9859 = vmatprep.subr.mxu0 0.0
  %9860 = vmatpush1.msra.mxu0 0.0
  %9861 = vmatprep.subr.mxu0 0.0
  %9862 = vmatpush1.msra.mxu0 0.0
  %9863 = vmatprep.subr.mxu0 0.0
  %9864 = vmatpush1.msra.mxu0 0.0
  %9865 = vmatprep.subr.mxu0 0.0
  %9866 = vmatpush1.msra.mxu0 0.0
  %9867 = vmatprep.subr.mxu0 0.0
  %9868 = vmatpush1.msra.mxu0 0.0
  %9869 = vmatprep.subr.mxu0 0.0
  %9870 = vmatpush1.msra.mxu0 0.0
  %9871 = vmatprep.subr.mxu0 0.0
  %9872 = vmatpush1.msra.mxu0 0.0
  %9873 = vmatprep.subr.mxu0 0.0
  %9874 = vmatpush1.msra.mxu0 0.0
  %9875 = vmatprep.subr.mxu0 0.0
  %9876 = vmatpush1.msra.mxu0 0.0
  %9877 = vmatprep.subr.mxu0 0.0
  %9878 = vmatpush1.msra.mxu0 0.0
  %9879 = vmatprep.subr.mxu0 0.0
  %9880 = vmatpush1.msra.mxu0 0.0
  %9881 = vmatprep.subr.mxu0 0.0
  %9882 = vmatpush1.msra.mxu0 0.0
  %9883 = vmatprep.subr.mxu0 0.0
  %9884 = vmatpush1.msra.mxu0 0.0
  %9885 = vmatprep.subr.mxu0 0.0
  %9886 = vmatpush1.msra.mxu0 0.0
  %9887 = vmatprep.subr.mxu0 0.0
  %9888 = vmatpush1.msra.mxu0 0.0
  %9889 = vmatprep.subr.mxu0 0.0
  %9890 = vmatpush1.msra.mxu0 0.0
  %9891 = vmatprep.subr.mxu0 0.0
  %9892 = vmatpush1.msra.mxu0 0.0
  %9893 = vmatprep.subr.mxu0 0.0
  %9894 = vmatpush1.msra.mxu0 0.0
  %9895 = vmatprep.subr.mxu0 0.0
  %9896 = vmatpush1.msra.mxu0 0.0
  %9897 = vmatprep.subr.mxu0 0.0
  %9898 = vmatpush1.msra.mxu0 0.0
  %9899 = vmatprep.subr.mxu0 0.0
  %9900 = vmatpush1.msra.mxu0 0.0
  %9901 = vmatprep.mubr.f32.mxu0 0.0
  %v9902 = vand.u32 %v9496, 4294901760
  %9903 = vmatmul.mubr.f32.gmra.mrb[0].mxu0 %v9902
  %v9904 = vpop.f32.mrb[0].mxu0
  %v9905 = vadd.f32 %v9822, %v9904
  %v9906 = vpop.f32.mrb[0].mxu0
  %9907 = vdwg.mxu0
  %9908 = vmatprep.subr.mxu0 0.0
  %v9909 = vand.u32 %v5818, 4294901760
  %9910 = vmatpush1.msra.mxu0 %v9909
  %9911 = vmatprep.subr.mxu0 0.0
  %v9912 = vand.u32 %v5819, 4294901760
  %9913 = vmatpush1.msra.mxu0 %v9912
  %9914 = vmatprep.subr.mxu0 0.0
  %v9915 = vand.u32 %v5820, 4294901760
  %9916 = vmatpush1.msra.mxu0 %v9915
  %9917 = vmatprep.subr.mxu0 0.0
  %v9918 = vand.u32 %v5821, 4294901760
  %9919 = vmatpush1.msra.mxu0 %v9918
  %9920 = vmatprep.subr.mxu0 0.0
  %9921 = vmatpush1.msra.mxu0 0.0
  %9922 = vmatprep.subr.mxu0 0.0
  %9923 = vmatpush1.msra.mxu0 0.0
  %9924 = vmatprep.subr.mxu0 0.0
  %9925 = vmatpush1.msra.mxu0 0.0
  %9926 = vmatprep.subr.mxu0 0.0
  %9927 = vmatpush1.msra.mxu0 0.0
  %9928 = vmatprep.subr.mxu0 0.0
  %9929 = vmatpush1.msra.mxu0 0.0
  %9930 = vmatprep.subr.mxu0 0.0
  %9931 = vmatpush1.msra.mxu0 0.0
  %9932 = vmatprep.subr.mxu0 0.0
  %9933 = vmatpush1.msra.mxu0 0.0
  %9934 = vmatprep.subr.mxu0 0.0
  %9935 = vmatpush1.msra.mxu0 0.0
  %9936 = vmatprep.subr.mxu0 0.0
  %9937 = vmatpush1.msra.mxu0 0.0
  %9938 = vmatprep.subr.mxu0 0.0
  %9939 = vmatpush1.msra.mxu0 0.0
  %9940 = vmatprep.subr.mxu0 0.0
  %9941 = vmatpush1.msra.mxu0 0.0
  %9942 = vmatprep.subr.mxu0 0.0
  %9943 = vmatpush1.msra.mxu0 0.0
  %9944 = vmatprep.subr.mxu0 0.0
  %9945 = vmatpush1.msra.mxu0 0.0
  %9946 = vmatprep.subr.mxu0 0.0
  %9947 = vmatpush1.msra.mxu0 0.0
  %9948 = vmatprep.subr.mxu0 0.0
  %9949 = vmatpush1.msra.mxu0 0.0
  %9950 = vmatprep.subr.mxu0 0.0
  %9951 = vmatpush1.msra.mxu0 0.0
  %9952 = vmatprep.subr.mxu0 0.0
  %9953 = vmatpush1.msra.mxu0 0.0
  %9954 = vmatprep.subr.mxu0 0.0
  %9955 = vmatpush1.msra.mxu0 0.0
  %9956 = vmatprep.subr.mxu0 0.0
  %9957 = vmatpush1.msra.mxu0 0.0
  %9958 = vmatprep.subr.mxu0 0.0
  %9959 = vmatpush1.msra.mxu0 0.0
  %9960 = vmatprep.subr.mxu0 0.0
  %9961 = vmatpush1.msra.mxu0 0.0
  %9962 = vmatprep.subr.mxu0 0.0
  %9963 = vmatpush1.msra.mxu0 0.0
  %9964 = vmatprep.subr.mxu0 0.0
  %9965 = vmatpush1.msra.mxu0 0.0
  %9966 = vmatprep.subr.mxu0 0.0
  %9967 = vmatpush1.msra.mxu0 0.0
  %9968 = vmatprep.subr.mxu0 0.0
  %9969 = vmatpush1.msra.mxu0 0.0
  %9970 = vmatprep.subr.mxu0 0.0
  %9971 = vmatpush1.msra.mxu0 0.0
  %9972 = vmatprep.subr.mxu0 0.0
  %9973 = vmatpush1.msra.mxu0 0.0
  %9974 = vmatprep.subr.mxu0 0.0
  %9975 = vmatpush1.msra.mxu0 0.0
  %9976 = vmatprep.mubr.f32.mxu0 0.0
  %v9977 = vand.u32 %v9496, 4294901760
  %9978 = vmatmul.mubr.f32.gmra.mrb[0].mxu0 %v9977
  %v9979 = vpop.f32.mrb[0].mxu0
  %v9980 = vadd.f32 %v9905, %v9979
  %v9981 = vpop.f32.mrb[0].mxu0
  %9982 = vdwg.mxu0
  %v9983 = vadd.f32 %v9495, %v9980
  %v9984 = vxor.u32 %v9983, 2147483648
  %v9985 = vmul.f32 %v9984, 1.442695
  %v9986 = vpow.pop %v9985
  %v9987 = vadd.f32 %v9986, 1.0
  %v9988 = vrcp.pop %v9987
  %v9989 = vmul.f32 1.0, %v9988
  %v9990 = vtanh.pop %v9983
  %v9991 = vmul.f32 %v9989, %v9477
  %9993 = vrot.lane.b32.xlu0 %v9990, 64
  %v9994 = vpop.permute.xlu0 %9993
  %v9996 = vmul.f32 %v9989, %v9994
  %9998 = vrot.lane.b32.xlu0 %v9996, 32
  %v9999 = vpop.permute.xlu0 %9998
  %v10001 = vadd.f32 %v9991, %v9999
  %v10002 = vtanh.pop %v10001
  %10004 = vrot.lane.b32.xlu0 %v10002, 64
  %v10005 = vpop.permute.xlu0 %10004
  %v10007 = vmul.f32 %v9989, %v10005
  %10009 = vrot.lane.b32.xlu0 %v10007, 32
  %v10010 = vpop.permute.xlu0 %10009
  %10012 = vst.msk [vmem:[#allocation5 + $0x7] sm:$0x1] %vm1084, %v10010
  %10013 = vst.msk [vmem:[#allocation5 + $0xe] sm:$0x2] %vm1086, %v10010
  %v10014 = vld [vmem:[#allocation5] sm:$0xff]
  %v10015 = vld [vmem:[#allocation5 + $0x8] sm:$0xff]
  %v10016 = vld [vmem:[%s10] sm:$0xff]
  %v10017 = vld [vmem:[%s10 + $0x8] sm:$0xff]
  %v10018 = vld [vmem:[%s10 + $0x10] sm:$0xff]
  %v10019 = vld [vmem:[%s10 + $0x18] sm:$0xff]
  %v10020 = vld [vmem:[#allocation7] sm:$0x1]
  %v10022 = vlaneseq
  %v10023 = vshrl.u32 %v10022, 7
  %v10024 = vsub.s32 0, %v10023
  %v10025 = vrot.slane %v10020, %v10024
  %v10028 = vsel %vm566, %v10014, 0
  %v10031 = vsel %vm566, %v10015, 0
  %10033 = vmatprep.subr.mxu0 0.0
  %v10034 = vand.u32 %v10016, 4294901760
  %10035 = vmatpush1.msra.mxu0 %v10034
  %10036 = vmatprep.subr.mxu0 0.0
  %v10037 = vand.u32 %v10017, 4294901760
  %10038 = vmatpush1.msra.mxu0 %v10037
  %10039 = vmatprep.subr.mxu0 0.0
  %v10040 = vand.u32 %v10018, 4294901760
  %10041 = vmatpush1.msra.mxu0 %v10040
  %10042 = vmatprep.subr.mxu0 0.0
  %v10043 = vand.u32 %v10019, 4294901760
  %10044 = vmatpush1.msra.mxu0 %v10043
  %10045 = vmatprep.subr.mxu0 0.0
  %10046 = vmatpush1.msra.mxu0 0.0
  %10047 = vmatprep.subr.mxu0 0.0
  %10048 = vmatpush1.msra.mxu0 0.0
  %10049 = vmatprep.subr.mxu0 0.0
  %10050 = vmatpush1.msra.mxu0 0.0
  %10051 = vmatprep.subr.mxu0 0.0
  %10052 = vmatpush1.msra.mxu0 0.0
  %10053 = vmatprep.subr.mxu0 0.0
  %10054 = vmatpush1.msra.mxu0 0.0
  %10055 = vmatprep.subr.mxu0 0.0
  %10056 = vmatpush1.msra.mxu0 0.0
  %10057 = vmatprep.subr.mxu0 0.0
  %10058 = vmatpush1.msra.mxu0 0.0
  %10059 = vmatprep.subr.mxu0 0.0
  %10060 = vmatpush1.msra.mxu0 0.0
  %10061 = vmatprep.subr.mxu0 0.0
  %10062 = vmatpush1.msra.mxu0 0.0
  %10063 = vmatprep.subr.mxu0 0.0
  %10064 = vmatpush1.msra.mxu0 0.0
  %10065 = vmatprep.subr.mxu0 0.0
  %10066 = vmatpush1.msra.mxu0 0.0
  %10067 = vmatprep.subr.mxu0 0.0
  %10068 = vmatpush1.msra.mxu0 0.0
  %10069 = vmatprep.subr.mxu0 0.0
  %10070 = vmatpush1.msra.mxu0 0.0
  %10071 = vmatprep.subr.mxu0 0.0
  %10072 = vmatpush1.msra.mxu0 0.0
  %10073 = vmatprep.subr.mxu0 0.0
  %10074 = vmatpush1.msra.mxu0 0.0
  %10075 = vmatprep.subr.mxu0 0.0
  %10076 = vmatpush1.msra.mxu0 0.0
  %10077 = vmatprep.subr.mxu0 0.0
  %10078 = vmatpush1.msra.mxu0 0.0
  %10079 = vmatprep.subr.mxu0 0.0
  %10080 = vmatpush1.msra.mxu0 0.0
  %10081 = vmatprep.subr.mxu0 0.0
  %10082 = vmatpush1.msra.mxu0 0.0
  %10083 = vmatprep.subr.mxu0 0.0
  %10084 = vmatpush1.msra.mxu0 0.0
  %10085 = vmatprep.subr.mxu0 0.0
  %10086 = vmatpush1.msra.mxu0 0.0
  %10087 = vmatprep.subr.mxu0 0.0
  %10088 = vmatpush1.msra.mxu0 0.0
  %10089 = vmatprep.subr.mxu0 0.0
  %10090 = vmatpush1.msra.mxu0 0.0
  %10091 = vmatprep.subr.mxu0 0.0
  %10092 = vmatpush1.msra.mxu0 0.0
  %10093 = vmatprep.subr.mxu0 0.0
  %10094 = vmatpush1.msra.mxu0 0.0
  %10095 = vmatprep.subr.mxu0 0.0
  %10096 = vmatpush1.msra.mxu0 0.0
  %10097 = vmatprep.subr.mxu0 0.0
  %10098 = vmatpush1.msra.mxu0 0.0
  %10099 = vmatprep.subr.mxu0 0.0
  %10100 = vmatpush1.msra.mxu0 0.0
  %10101 = vmatprep.mubr.f32.mxu0 0.0
  %v10102 = vand.u32 %v10028, 4294901760
  %v10103 = vsub.f32 %v10028, %v10102
  %v10104 = vand.u32 %v10103, 4294901760
  %v10105 = vsub.f32 %v10103, %v10104
  %v10106 = vand.u32 %v10105, 4294901760
  %10107 = vmatmul.mubr.f32.gmra.mrb[0].mxu0 %v10106
  %v10108 = vpop.f32.mrb[0].mxu0
  %v10109 = vadd.f32 %v10025, %v10108
  %v10110 = vpop.f32.mrb[0].mxu0
  %10111 = vmatprep.mubr.f32.mxu0 0.0
  %v10112 = vand.u32 %v10031, 4294901760
  %v10113 = vsub.f32 %v10031, %v10112
  %v10114 = vand.u32 %v10113, 4294901760
  %v10115 = vsub.f32 %v10113, %v10114
  %v10116 = vand.u32 %v10115, 4294901760
  %10117 = vmatmul.mubr.f32.gmra.mrb[0].mxu0 %v10116
  %v10118 = vpop.f32.mrb[0].mxu0
  %v10119 = vadd.f32 %v10025, %v10118
  %v10120 = vpop.f32.mrb[0].mxu0
  %10121 = vdwg.mxu0
  %10122 = vmatprep.subr.mxu0 0.0
  %v10123 = vand.u32 %v10016, 4294901760
  %v10124 = vsub.f32 %v10016, %v10123
  %v10125 = vand.u32 %v10124, 4294901760
  %v10126 = vsub.f32 %v10124, %v10125
  %v10127 = vand.u32 %v10126, 4294901760
  %10128 = vmatpush1.msra.mxu0 %v10127
  %10129 = vmatprep.subr.mxu0 0.0
  %v10130 = vand.u32 %v10017, 4294901760
  %v10131 = vsub.f32 %v10017, %v10130
  %v10132 = vand.u32 %v10131, 4294901760
  %v10133 = vsub.f32 %v10131, %v10132
  %v10134 = vand.u32 %v10133, 4294901760
  %10135 = vmatpush1.msra.mxu0 %v10134
  %10136 = vmatprep.subr.mxu0 0.0
  %v10137 = vand.u32 %v10018, 4294901760
  %v10138 = vsub.f32 %v10018, %v10137
  %v10139 = vand.u32 %v10138, 4294901760
  %v10140 = vsub.f32 %v10138, %v10139
  %v10141 = vand.u32 %v10140, 4294901760
  %10142 = vmatpush1.msra.mxu0 %v10141
  %10143 = vmatprep.subr.mxu0 0.0
  %v10144 = vand.u32 %v10019, 4294901760
  %v10145 = vsub.f32 %v10019, %v10144
  %v10146 = vand.u32 %v10145, 4294901760
  %v10147 = vsub.f32 %v10145, %v10146
  %v10148 = vand.u32 %v10147, 4294901760
  %10149 = vmatpush1.msra.mxu0 %v10148
  %10150 = vmatprep.subr.mxu0 0.0
  %10151 = vmatpush1.msra.mxu0 0.0
  %10152 = vmatprep.subr.mxu0 0.0
  %10153 = vmatpush1.msra.mxu0 0.0
  %10154 = vmatprep.subr.mxu0 0.0
  %10155 = vmatpush1.msra.mxu0 0.0
  %10156 = vmatprep.subr.mxu0 0.0
  %10157 = vmatpush1.msra.mxu0 0.0
  %10158 = vmatprep.subr.mxu0 0.0
  %10159 = vmatpush1.msra.mxu0 0.0
  %10160 = vmatprep.subr.mxu0 0.0
  %10161 = vmatpush1.msra.mxu0 0.0
  %10162 = vmatprep.subr.mxu0 0.0
  %10163 = vmatpush1.msra.mxu0 0.0
  %10164 = vmatprep.subr.mxu0 0.0
  %10165 = vmatpush1.msra.mxu0 0.0
  %10166 = vmatprep.subr.mxu0 0.0
  %10167 = vmatpush1.msra.mxu0 0.0
  %10168 = vmatprep.subr.mxu0 0.0
  %10169 = vmatpush1.msra.mxu0 0.0
  %10170 = vmatprep.subr.mxu0 0.0
  %10171 = vmatpush1.msra.mxu0 0.0
  %10172 = vmatprep.subr.mxu0 0.0
  %10173 = vmatpush1.msra.mxu0 0.0
  %10174 = vmatprep.subr.mxu0 0.0
  %10175 = vmatpush1.msra.mxu0 0.0
  %10176 = vmatprep.subr.mxu0 0.0
  %10177 = vmatpush1.msra.mxu0 0.0
  %10178 = vmatprep.subr.mxu0 0.0
  %10179 = vmatpush1.msra.mxu0 0.0
  %10180 = vmatprep.subr.mxu0 0.0
  %10181 = vmatpush1.msra.mxu0 0.0
  %10182 = vmatprep.subr.mxu0 0.0
  %10183 = vmatpush1.msra.mxu0 0.0
  %10184 = vmatprep.subr.mxu0 0.0
  %10185 = vmatpush1.msra.mxu0 0.0
  %10186 = vmatprep.subr.mxu0 0.0
  %10187 = vmatpush1.msra.mxu0 0.0
  %10188 = vmatprep.subr.mxu0 0.0
  %10189 = vmatpush1.msra.mxu0 0.0
  %10190 = vmatprep.subr.mxu0 0.0
  %10191 = vmatpush1.msra.mxu0 0.0
  %10192 = vmatprep.subr.mxu0 0.0
  %10193 = vmatpush1.msra.mxu0 0.0
  %10194 = vmatprep.subr.mxu0 0.0
  %10195 = vmatpush1.msra.mxu0 0.0
  %10196 = vmatprep.subr.mxu0 0.0
  %10197 = vmatpush1.msra.mxu0 0.0
  %10198 = vmatprep.subr.mxu0 0.0
  %10199 = vmatpush1.msra.mxu0 0.0
  %10200 = vmatprep.subr.mxu0 0.0
  %10201 = vmatpush1.msra.mxu0 0.0
  %10202 = vmatprep.subr.mxu0 0.0
  %10203 = vmatpush1.msra.mxu0 0.0
  %10204 = vmatprep.subr.mxu0 0.0
  %10205 = vmatpush1.msra.mxu0 0.0
  %10206 = vmatprep.mubr.f32.mxu0 0.0
  %v10207 = vand.u32 %v10028, 4294901760
  %10208 = vmatmul.mubr.f32.gmra.mrb[0].mxu0 %v10207
  %v10209 = vpop.f32.mrb[0].mxu0
  %v10210 = vadd.f32 %v10109, %v10209
  %v10211 = vpop.f32.mrb[0].mxu0
  %10212 = vmatprep.mubr.f32.mxu0 0.0
  %v10213 = vand.u32 %v10031, 4294901760
  %10214 = vmatmul.mubr.f32.gmra.mrb[0].mxu0 %v10213
  %v10215 = vpop.f32.mrb[0].mxu0
  %v10216 = vadd.f32 %v10119, %v10215
  %v10217 = vpop.f32.mrb[0].mxu0
  %10218 = vdwg.mxu0
  %10219 = vmatprep.subr.mxu0 0.0
  %v10220 = vand.u32 %v10016, 4294901760
  %v10221 = vsub.f32 %v10016, %v10220
  %10222 = vmatpush1.msra.mxu0 %v10221
  %10223 = vmatprep.subr.mxu0 0.0
  %v10224 = vand.u32 %v10017, 4294901760
  %v10225 = vsub.f32 %v10017, %v10224
  %10226 = vmatpush1.msra.mxu0 %v10225
  %10227 = vmatprep.subr.mxu0 0.0
  %v10228 = vand.u32 %v10018, 4294901760
  %v10229 = vsub.f32 %v10018, %v10228
  %10230 = vmatpush1.msra.mxu0 %v10229
  %10231 = vmatprep.subr.mxu0 0.0
  %v10232 = vand.u32 %v10019, 4294901760
  %v10233 = vsub.f32 %v10019, %v10232
  %10234 = vmatpush1.msra.mxu0 %v10233
  %10235 = vmatprep.subr.mxu0 0.0
  %10236 = vmatpush1.msra.mxu0 0.0
  %10237 = vmatprep.subr.mxu0 0.0
  %10238 = vmatpush1.msra.mxu0 0.0
  %10239 = vmatprep.subr.mxu0 0.0
  %10240 = vmatpush1.msra.mxu0 0.0
  %10241 = vmatprep.subr.mxu0 0.0
  %10242 = vmatpush1.msra.mxu0 0.0
  %10243 = vmatprep.subr.mxu0 0.0
  %10244 = vmatpush1.msra.mxu0 0.0
  %10245 = vmatprep.subr.mxu0 0.0
  %10246 = vmatpush1.msra.mxu0 0.0
  %10247 = vmatprep.subr.mxu0 0.0
  %10248 = vmatpush1.msra.mxu0 0.0
  %10249 = vmatprep.subr.mxu0 0.0
  %10250 = vmatpush1.msra.mxu0 0.0
  %10251 = vmatprep.subr.mxu0 0.0
  %10252 = vmatpush1.msra.mxu0 0.0
  %10253 = vmatprep.subr.mxu0 0.0
  %10254 = vmatpush1.msra.mxu0 0.0
  %10255 = vmatprep.subr.mxu0 0.0
  %10256 = vmatpush1.msra.mxu0 0.0
  %10257 = vmatprep.subr.mxu0 0.0
  %10258 = vmatpush1.msra.mxu0 0.0
  %10259 = vmatprep.subr.mxu0 0.0
  %10260 = vmatpush1.msra.mxu0 0.0
  %10261 = vmatprep.subr.mxu0 0.0
  %10262 = vmatpush1.msra.mxu0 0.0
  %10263 = vmatprep.subr.mxu0 0.0
  %10264 = vmatpush1.msra.mxu0 0.0
  %10265 = vmatprep.subr.mxu0 0.0
  %10266 = vmatpush1.msra.mxu0 0.0
  %10267 = vmatprep.subr.mxu0 0.0
  %10268 = vmatpush1.msra.mxu0 0.0
  %10269 = vmatprep.subr.mxu0 0.0
  %10270 = vmatpush1.msra.mxu0 0.0
  %10271 = vmatprep.subr.mxu0 0.0
  %10272 = vmatpush1.msra.mxu0 0.0
  %10273 = vmatprep.subr.mxu0 0.0
  %10274 = vmatpush1.msra.mxu0 0.0
  %10275 = vmatprep.subr.mxu0 0.0
  %10276 = vmatpush1.msra.mxu0 0.0
  %10277 = vmatprep.subr.mxu0 0.0
  %10278 = vmatpush1.msra.mxu0 0.0
  %10279 = vmatprep.subr.mxu0 0.0
  %10280 = vmatpush1.msra.mxu0 0.0
  %10281 = vmatprep.subr.mxu0 0.0
  %10282 = vmatpush1.msra.mxu0 0.0
  %10283 = vmatprep.subr.mxu0 0.0
  %10284 = vmatpush1.msra.mxu0 0.0
  %10285 = vmatprep.subr.mxu0 0.0
  %10286 = vmatpush1.msra.mxu0 0.0
  %10287 = vmatprep.subr.mxu0 0.0
  %10288 = vmatpush1.msra.mxu0 0.0
  %10289 = vmatprep.subr.mxu0 0.0
  %10290 = vmatpush1.msra.mxu0 0.0
  %10291 = vmatprep.mubr.f32.mxu0 0.0
  %v10292 = vand.u32 %v10028, 4294901760
  %v10293 = vsub.f32 %v10028, %v10292
  %10294 = vmatmul.mubr.f32.gmra.mrb[0].mxu0 %v10293
  %v10295 = vpop.f32.mrb[0].mxu0
  %v10296 = vadd.f32 %v10210, %v10295
  %v10297 = vpop.f32.mrb[0].mxu0
  %10298 = vmatprep.mubr.f32.mxu0 0.0
  %v10299 = vand.u32 %v10031, 4294901760
  %v10300 = vsub.f32 %v10031, %v10299
  %10301 = vmatmul.mubr.f32.gmra.mrb[0].mxu0 %v10300
  %v10302 = vpop.f32.mrb[0].mxu0
  %v10303 = vadd.f32 %v10216, %v10302
  %v10304 = vpop.f32.mrb[0].mxu0
  %10305 = vdwg.mxu0
  %10306 = vmatprep.subr.mxu0 0.0
  %v10307 = vand.u32 %v10016, 4294901760
  %10308 = vmatpush1.msra.mxu0 %v10307
  %10309 = vmatprep.subr.mxu0 0.0
  %v10310 = vand.u32 %v10017, 4294901760
  %10311 = vmatpush1.msra.mxu0 %v10310
  %10312 = vmatprep.subr.mxu0 0.0
  %v10313 = vand.u32 %v10018, 4294901760
  %10314 = vmatpush1.msra.mxu0 %v10313
  %10315 = vmatprep.subr.mxu0 0.0
  %v10316 = vand.u32 %v10019, 4294901760
  %10317 = vmatpush1.msra.mxu0 %v10316
  %10318 = vmatprep.subr.mxu0 0.0
  %10319 = vmatpush1.msra.mxu0 0.0
  %10320 = vmatprep.subr.mxu0 0.0
  %10321 = vmatpush1.msra.mxu0 0.0
  %10322 = vmatprep.subr.mxu0 0.0
  %10323 = vmatpush1.msra.mxu0 0.0
  %10324 = vmatprep.subr.mxu0 0.0
  %10325 = vmatpush1.msra.mxu0 0.0
  %10326 = vmatprep.subr.mxu0 0.0
  %10327 = vmatpush1.msra.mxu0 0.0
  %10328 = vmatprep.subr.mxu0 0.0
  %10329 = vmatpush1.msra.mxu0 0.0
  %10330 = vmatprep.subr.mxu0 0.0
  %10331 = vmatpush1.msra.mxu0 0.0
  %10332 = vmatprep.subr.mxu0 0.0
  %10333 = vmatpush1.msra.mxu0 0.0
  %10334 = vmatprep.subr.mxu0 0.0
  %10335 = vmatpush1.msra.mxu0 0.0
  %10336 = vmatprep.subr.mxu0 0.0
  %10337 = vmatpush1.msra.mxu0 0.0
  %10338 = vmatprep.subr.mxu0 0.0
  %10339 = vmatpush1.msra.mxu0 0.0
  %10340 = vmatprep.subr.mxu0 0.0
  %10341 = vmatpush1.msra.mxu0 0.0
  %10342 = vmatprep.subr.mxu0 0.0
  %10343 = vmatpush1.msra.mxu0 0.0
  %10344 = vmatprep.subr.mxu0 0.0
  %10345 = vmatpush1.msra.mxu0 0.0
  %10346 = vmatprep.subr.mxu0 0.0
  %10347 = vmatpush1.msra.mxu0 0.0
  %10348 = vmatprep.subr.mxu0 0.0
  %10349 = vmatpush1.msra.mxu0 0.0
  %10350 = vmatprep.subr.mxu0 0.0
  %10351 = vmatpush1.msra.mxu0 0.0
  %10352 = vmatprep.subr.mxu0 0.0
  %10353 = vmatpush1.msra.mxu0 0.0
  %10354 = vmatprep.subr.mxu0 0.0
  %10355 = vmatpush1.msra.mxu0 0.0
  %10356 = vmatprep.subr.mxu0 0.0
  %10357 = vmatpush1.msra.mxu0 0.0
  %10358 = vmatprep.subr.mxu0 0.0
  %10359 = vmatpush1.msra.mxu0 0.0
  %10360 = vmatprep.subr.mxu0 0.0
  %10361 = vmatpush1.msra.mxu0 0.0
  %10362 = vmatprep.subr.mxu0 0.0
  %10363 = vmatpush1.msra.mxu0 0.0
  %10364 = vmatprep.subr.mxu0 0.0
  %10365 = vmatpush1.msra.mxu0 0.0
  %10366 = vmatprep.subr.mxu0 0.0
  %10367 = vmatpush1.msra.mxu0 0.0
  %10368 = vmatprep.subr.mxu0 0.0
  %10369 = vmatpush1.msra.mxu0 0.0
  %10370 = vmatprep.subr.mxu0 0.0
  %10371 = vmatpush1.msra.mxu0 0.0
  %10372 = vmatprep.subr.mxu0 0.0
  %10373 = vmatpush1.msra.mxu0 0.0
  %10374 = vmatprep.mubr.f32.mxu0 0.0
  %v10375 = vand.u32 %v10028, 4294901760
  %v10376 = vsub.f32 %v10028, %v10375
  %v10377 = vand.u32 %v10376, 4294901760
  %10378 = vmatmul.mubr.f32.gmra.mrb[0].mxu0 %v10377
  %v10379 = vpop.f32.mrb[0].mxu0
  %v10380 = vadd.f32 %v10296, %v10379
  %v10381 = vpop.f32.mrb[0].mxu0
  %10382 = vmatprep.mubr.f32.mxu0 0.0
  %v10383 = vand.u32 %v10031, 4294901760
  %v10384 = vsub.f32 %v10031, %v10383
  %v10385 = vand.u32 %v10384, 4294901760
  %10386 = vmatmul.mubr.f32.gmra.mrb[0].mxu0 %v10385
  %v10387 = vpop.f32.mrb[0].mxu0
  %v10388 = vadd.f32 %v10303, %v10387
  %v10389 = vpop.f32.mrb[0].mxu0
  %10390 = vdwg.mxu0
  %10391 = vmatprep.subr.mxu0 0.0
  %v10392 = vand.u32 %v10016, 4294901760
  %v10393 = vsub.f32 %v10016, %v10392
  %v10394 = vand.u32 %v10393, 4294901760
  %10395 = vmatpush1.msra.mxu0 %v10394
  %10396 = vmatprep.subr.mxu0 0.0
  %v10397 = vand.u32 %v10017, 4294901760
  %v10398 = vsub.f32 %v10017, %v10397
  %v10399 = vand.u32 %v10398, 4294901760
  %10400 = vmatpush1.msra.mxu0 %v10399
  %10401 = vmatprep.subr.mxu0 0.0
  %v10402 = vand.u32 %v10018, 4294901760
  %v10403 = vsub.f32 %v10018, %v10402
  %v10404 = vand.u32 %v10403, 4294901760
  %10405 = vmatpush1.msra.mxu0 %v10404
  %10406 = vmatprep.subr.mxu0 0.0
  %v10407 = vand.u32 %v10019, 4294901760
  %v10408 = vsub.f32 %v10019, %v10407
  %v10409 = vand.u32 %v10408, 4294901760
  %10410 = vmatpush1.msra.mxu0 %v10409
  %10411 = vmatprep.subr.mxu0 0.0
  %10412 = vmatpush1.msra.mxu0 0.0
  %10413 = vmatprep.subr.mxu0 0.0
  %10414 = vmatpush1.msra.mxu0 0.0
  %10415 = vmatprep.subr.mxu0 0.0
  %10416 = vmatpush1.msra.mxu0 0.0
  %10417 = vmatprep.subr.mxu0 0.0
  %10418 = vmatpush1.msra.mxu0 0.0
  %10419 = vmatprep.subr.mxu0 0.0
  %10420 = vmatpush1.msra.mxu0 0.0
  %10421 = vmatprep.subr.mxu0 0.0
  %10422 = vmatpush1.msra.mxu0 0.0
  %10423 = vmatprep.subr.mxu0 0.0
  %10424 = vmatpush1.msra.mxu0 0.0
  %10425 = vmatprep.subr.mxu0 0.0
  %10426 = vmatpush1.msra.mxu0 0.0
  %10427 = vmatprep.subr.mxu0 0.0
  %10428 = vmatpush1.msra.mxu0 0.0
  %10429 = vmatprep.subr.mxu0 0.0
  %10430 = vmatpush1.msra.mxu0 0.0
  %10431 = vmatprep.subr.mxu0 0.0
  %10432 = vmatpush1.msra.mxu0 0.0
  %10433 = vmatprep.subr.mxu0 0.0
  %10434 = vmatpush1.msra.mxu0 0.0
  %10435 = vmatprep.subr.mxu0 0.0
  %10436 = vmatpush1.msra.mxu0 0.0
  %10437 = vmatprep.subr.mxu0 0.0
  %10438 = vmatpush1.msra.mxu0 0.0
  %10439 = vmatprep.subr.mxu0 0.0
  %10440 = vmatpush1.msra.mxu0 0.0
  %10441 = vmatprep.subr.mxu0 0.0
  %10442 = vmatpush1.msra.mxu0 0.0
  %10443 = vmatprep.subr.mxu0 0.0
  %10444 = vmatpush1.msra.mxu0 0.0
  %10445 = vmatprep.subr.mxu0 0.0
  %10446 = vmatpush1.msra.mxu0 0.0
  %10447 = vmatprep.subr.mxu0 0.0
  %10448 = vmatpush1.msra.mxu0 0.0
  %10449 = vmatprep.subr.mxu0 0.0
  %10450 = vmatpush1.msra.mxu0 0.0
  %10451 = vmatprep.subr.mxu0 0.0
  %10452 = vmatpush1.msra.mxu0 0.0
  %10453 = vmatprep.subr.mxu0 0.0
  %10454 = vmatpush1.msra.mxu0 0.0
  %10455 = vmatprep.subr.mxu0 0.0
  %10456 = vmatpush1.msra.mxu0 0.0
  %10457 = vmatprep.subr.mxu0 0.0
  %10458 = vmatpush1.msra.mxu0 0.0
  %10459 = vmatprep.subr.mxu0 0.0
  %10460 = vmatpush1.msra.mxu0 0.0
  %10461 = vmatprep.subr.mxu0 0.0
  %10462 = vmatpush1.msra.mxu0 0.0
  %10463 = vmatprep.subr.mxu0 0.0
  %10464 = vmatpush1.msra.mxu0 0.0
  %10465 = vmatprep.subr.mxu0 0.0
  %10466 = vmatpush1.msra.mxu0 0.0
  %10467 = vmatprep.mubr.f32.mxu0 0.0
  %v10468 = vand.u32 %v10028, 4294901760
  %10469 = vmatmul.mubr.f32.gmra.mrb[0].mxu0 %v10468
  %v10470 = vpop.f32.mrb[0].mxu0
  %v10471 = vadd.f32 %v10380, %v10470
  %v10472 = vpop.f32.mrb[0].mxu0
  %10473 = vmatprep.mubr.f32.mxu0 0.0
  %v10474 = vand.u32 %v10031, 4294901760
  %10475 = vmatmul.mubr.f32.gmra.mrb[0].mxu0 %v10474
  %v10476 = vpop.f32.mrb[0].mxu0
  %v10477 = vadd.f32 %v10388, %v10476
  %v10478 = vpop.f32.mrb[0].mxu0
  %10479 = vdwg.mxu0
  %10480 = vmatprep.subr.mxu0 0.0
  %v10481 = vand.u32 %v10016, 4294901760
  %10482 = vmatpush1.msra.mxu0 %v10481
  %10483 = vmatprep.subr.mxu0 0.0
  %v10484 = vand.u32 %v10017, 4294901760
  %10485 = vmatpush1.msra.mxu0 %v10484
  %10486 = vmatprep.subr.mxu0 0.0
  %v10487 = vand.u32 %v10018, 4294901760
  %10488 = vmatpush1.msra.mxu0 %v10487
  %10489 = vmatprep.subr.mxu0 0.0
  %v10490 = vand.u32 %v10019, 4294901760
  %10491 = vmatpush1.msra.mxu0 %v10490
  %10492 = vmatprep.subr.mxu0 0.0
  %10493 = vmatpush1.msra.mxu0 0.0
  %10494 = vmatprep.subr.mxu0 0.0
  %10495 = vmatpush1.msra.mxu0 0.0
  %10496 = vmatprep.subr.mxu0 0.0
  %10497 = vmatpush1.msra.mxu0 0.0
  %10498 = vmatprep.subr.mxu0 0.0
  %10499 = vmatpush1.msra.mxu0 0.0
  %10500 = vmatprep.subr.mxu0 0.0
  %10501 = vmatpush1.msra.mxu0 0.0
  %10502 = vmatprep.subr.mxu0 0.0
  %10503 = vmatpush1.msra.mxu0 0.0
  %10504 = vmatprep.subr.mxu0 0.0
  %10505 = vmatpush1.msra.mxu0 0.0
  %10506 = vmatprep.subr.mxu0 0.0
  %10507 = vmatpush1.msra.mxu0 0.0
  %10508 = vmatprep.subr.mxu0 0.0
  %10509 = vmatpush1.msra.mxu0 0.0
  %10510 = vmatprep.subr.mxu0 0.0
  %10511 = vmatpush1.msra.mxu0 0.0
  %10512 = vmatprep.subr.mxu0 0.0
  %10513 = vmatpush1.msra.mxu0 0.0
  %10514 = vmatprep.subr.mxu0 0.0
  %10515 = vmatpush1.msra.mxu0 0.0
  %10516 = vmatprep.subr.mxu0 0.0
  %10517 = vmatpush1.msra.mxu0 0.0
  %10518 = vmatprep.subr.mxu0 0.0
  %10519 = vmatpush1.msra.mxu0 0.0
  %10520 = vmatprep.subr.mxu0 0.0
  %10521 = vmatpush1.msra.mxu0 0.0
  %10522 = vmatprep.subr.mxu0 0.0
  %10523 = vmatpush1.msra.mxu0 0.0
  %10524 = vmatprep.subr.mxu0 0.0
  %10525 = vmatpush1.msra.mxu0 0.0
  %10526 = vmatprep.subr.mxu0 0.0
  %10527 = vmatpush1.msra.mxu0 0.0
  %10528 = vmatprep.subr.mxu0 0.0
  %10529 = vmatpush1.msra.mxu0 0.0
  %10530 = vmatprep.subr.mxu0 0.0
  %10531 = vmatpush1.msra.mxu0 0.0
  %10532 = vmatprep.subr.mxu0 0.0
  %10533 = vmatpush1.msra.mxu0 0.0
  %10534 = vmatprep.subr.mxu0 0.0
  %10535 = vmatpush1.msra.mxu0 0.0
  %10536 = vmatprep.subr.mxu0 0.0
  %10537 = vmatpush1.msra.mxu0 0.0
  %10538 = vmatprep.subr.mxu0 0.0
  %10539 = vmatpush1.msra.mxu0 0.0
  %10540 = vmatprep.subr.mxu0 0.0
  %10541 = vmatpush1.msra.mxu0 0.0
  %10542 = vmatprep.subr.mxu0 0.0
  %10543 = vmatpush1.msra.mxu0 0.0
  %10544 = vmatprep.subr.mxu0 0.0
  %10545 = vmatpush1.msra.mxu0 0.0
  %10546 = vmatprep.subr.mxu0 0.0
  %10547 = vmatpush1.msra.mxu0 0.0
  %10548 = vmatprep.mubr.f32.mxu0 0.0
  %v10549 = vand.u32 %v10028, 4294901760
  %10550 = vmatmul.mubr.f32.gmra.mrb[0].mxu0 %v10549
  %v10551 = vpop.f32.mrb[0].mxu0
  %v10552 = vadd.f32 %v10471, %v10551
  %v10553 = vpop.f32.mrb[0].mxu0
  %10554 = vmatprep.mubr.f32.mxu0 0.0
  %v10555 = vand.u32 %v10031, 4294901760
  %10556 = vmatmul.mubr.f32.gmra.mrb[0].mxu0 %v10555
  %v10557 = vpop.f32.mrb[0].mxu0
  %v10558 = vadd.f32 %v10477, %v10557
  %v10559 = vpop.f32.mrb[0].mxu0
  %10560 = vdwg.mxu0
  %10561 = vst.msk [vmem:[%s12] sm:$0xff] %vm5303, %v10552
  %10562 = vst.msk [vmem:[%s12 + $0x8] sm:$0xff] %vm5303, %v10558
  // Predicated region
  $region50: #{google_lstm_model.1} parent=0 // pred_check
    _
  $region51: #{google_lstm_model.1} parent=0 // pred_check_branch
    %10564 = sbr.rel (0) target = $region53
  $region52: #{google_lstm_model.1} parent=0 // pred_region
    _
  $region53: #{google_lstm_model.1} parent=0 // pred_fallthru
    _
  // Predicated region
  $region54: #{google_lstm_model.1} parent=0 // pred_check
    _
  $region55: #{google_lstm_model.1} parent=0 // pred_check_branch
    %10566 = sbr.rel (0) target = $region57
  $region56: #{google_lstm_model.1} parent=0 // pred_region
    _
  $region57: #{google_lstm_model.1} parent=0 // pred_fallthru
    _
  // Predicated region
  $region58: #{google_lstm_model.1} parent=0 // pred_check
    _
  $region59: #{google_lstm_model.1} parent=0 // pred_check_branch
    %10568 = sbr.rel (0) target = $region61
  $region60: #{google_lstm_model.1} parent=0 // pred_region
    _
  $region61: #{google_lstm_model.1} parent=0 // pred_fallthru
    _
  // Predicated region
  $region62: #{google_lstm_model.1} parent=0 // pred_check
    _
  $region63: #{google_lstm_model.1} parent=0 // pred_check_branch
    %10570 = sbr.rel (0) target = $region65
  $region64: #{google_lstm_model.1} parent=0 // pred_region
    _
  $region65: #{google_lstm_model.1} parent=0 // pred_fallthru
    _

</llo_original>
